<compile_context>
chip_gen: v7x
topology: tpu7x:2x2x1
jax: 0.10.0
libtpu: 0.0.40
codegen_flags: <defaults>
</compile_context>

<pallas_src>
import functools

import jax
import jax.numpy as jnp
import numpy as np
from jax.experimental import pallas as pl
from jax.experimental.pallas import tpu as pltpu


def _round_up(x, m):
    return ((x + m - 1) // m) * m


# ----------------------------------------------------------------------------
# Pallas kernel 1: single-shot matmul + bias + optional ReLU (full K, full N)
# ----------------------------------------------------------------------------
def _matmul_bias_act_kernel(x_ref, w_ref, b_ref, o_ref, *, apply_relu):
    y = jnp.dot(x_ref[...], w_ref[...], preferred_element_type=jnp.float32)
    y = y + b_ref[...]                       # (tm, N) + (1, N) broadcast, f32
    if apply_relu:
        y = jnp.maximum(y, 0.0)
    o_ref[...] = y.astype(o_ref.dtype)


def matmul_bias_act(x, w, b, *, relu, out_dtype=jnp.bfloat16, tm_cap=1024):
    """Y = (relu)(x @ w + b) with a Pallas TPU kernel.

    x: (M, K), w: (K, N), b: (N,).  K and N are kept at their true sizes
    (full-array blocks); only M is tiled (tm up to 1024, multiple of 16).
    """
    M, K = x.shape
    K2, N = w.shape
    assert K == K2 and b.shape == (N,)

    tm = min(_round_up(M, 16), tm_cap)
    Mp = _round_up(M, tm)

    xb = x.astype(jnp.bfloat16)
    if Mp != M:
        xb = jnp.pad(xb, ((0, Mp - M), (0, 0)))
    wb = w.astype(jnp.bfloat16)
    bb = b.reshape(1, N).astype(jnp.float32)

    out = pl.pallas_call(
        functools.partial(_matmul_bias_act_kernel, apply_relu=relu),
        out_shape=jax.ShapeDtypeStruct((Mp, N), out_dtype),
        grid=(Mp // tm,),
        in_specs=[
            pl.BlockSpec((tm, K), lambda i: (i, 0)),   # X tile: big-M rows
            pl.BlockSpec((K, N), lambda i: (0, 0)),    # whole W, VMEM-resident
            pl.BlockSpec((1, N), lambda i: (0, 0)),    # bias row
        ],
        out_specs=pl.BlockSpec((tm, N), lambda i: (i, 0)),
        compiler_params=pltpu.CompilerParams(
            dimension_semantics=("parallel",)),
    )(xb, wb, bb)
    return out if Mp == M else out[:M]


# ----------------------------------------------------------------------------
# Pallas kernel 2: both classifier branches fused in one call (M = batch)
# ----------------------------------------------------------------------------
def _two_branch_classifier_kernel(
    x_ref,
    w1a_ref, b1a_ref, w2a_ref, b2a_ref, w3a_ref, b3a_ref,
    w1b_ref, b1b_ref, w2b_ref, b2b_ref, w3b_ref, b3b_ref,
    o1_ref, o2_ref,
):
    x = x_ref[...]                                      # (Mp, 7*7*C) bf16

    def branch(w1, b1, w2, b2, w3, b3, o_ref):
        h = jnp.dot(x, w1[...], preferred_element_type=jnp.float32) + b1[...]
        h = jnp.maximum(h, 0.0)
        # TODO(synk): nn.Dropout is identity in eval-mode inference; no mask.
        h = jnp.dot(h.astype(jnp.bfloat16), w2[...],
                    preferred_element_type=jnp.float32) + b2[...]
        h = jnp.maximum(h, 0.0)
        y = jnp.dot(h.astype(jnp.bfloat16), w3[...],
                    preferred_element_type=jnp.float32) + b3[...]
        o_ref[...] = y.astype(o_ref.dtype)

    branch(w1a_ref, b1a_ref, w2a_ref, b2a_ref, w3a_ref, b3a_ref, o1_ref)
    branch(w1b_ref, b1b_ref, w2b_ref, b2b_ref, w3b_ref, b3b_ref, o2_ref)


def two_branch_classifier(feat77_nhwc, cls_layers, cls_shape_layers):
    """Runs both 3-layer conv-classifier branches in a single pallas_call."""
    n = feat77_nhwc.shape[0]
    x = feat77_nhwc.reshape(n, -1).astype(jnp.bfloat16)     # (N, 7*7*C)
    M, _ = x.shape
    Mp = _round_up(M, 8)
    if Mp != M:
        x = jnp.pad(x, ((0, Mp - M), (0, 0)))

    def prep(layers):
        flat = []
        for w, b in layers:
            flat.append(w.astype(jnp.bfloat16))
            flat.append(b.reshape(1, -1).astype(jnp.float32))
        return flat

    args = [x] + prep(cls_layers) + prep(cls_shape_layers)
    n1 = cls_layers[-1][0].shape[1]
    n2 = cls_shape_layers[-1][0].shape[1]

    def vmem_spec():
        return pl.BlockSpec(memory_space=pltpu.MemorySpace.VMEM)

    o1, o2 = pl.pallas_call(
        _two_branch_classifier_kernel,
        out_shape=(jax.ShapeDtypeStruct((Mp, n1), jnp.float32),
                   jax.ShapeDtypeStruct((Mp, n2), jnp.float32)),
        in_specs=[vmem_spec() for _ in range(len(args))],
        out_specs=(vmem_spec(), vmem_spec()),
    )(*args)
    return o1[:n], o2[:n]


# ----------------------------------------------------------------------------
# Glue: im2col conv, max-pool, adaptive avg-pool (plain JAX)
# ----------------------------------------------------------------------------
def conv3x3_relu(x_nhwc, w_mat, b):
    """3x3 conv, stride 1, padding 1, fused ReLU (conv-as-matmul via Pallas)."""
    n, h, wdt, c = x_nhwc.shape
    xp = jnp.pad(x_nhwc, ((0, 0), (1, 1), (1, 1), (0, 0)))
    patches = [
        xp[:, dy:dy + h, dx:dx + wdt, :] for dy in range(3) for dx in range(3)
    ]
    cols = jnp.concatenate(patches, axis=-1).reshape(n * h * wdt, 9 * c)
    y = matmul_bias_act(cols, w_mat, b, relu=True, out_dtype=jnp.bfloat16)
    return y.reshape(n, h, wdt, w_mat.shape[1])


def max_pool_2x2(x_nhwc):
    n, h, w, c = x_nhwc.shape
    return x_nhwc.reshape(n, h // 2, 2, w // 2, 2, c).max(axis=(2, 4))


def adaptive_avg_pool2d(x_nhwc, out_h, out_w):
    """torch.nn.AdaptiveAvgPool2d semantics via a separable pooling einsum."""
    n, h, w, c = x_nhwc.shape

    def pool_matrix(in_size, out_size):
        m = np.zeros((out_size, in_size), np.float32)
        for i in range(out_size):
            s = (i * in_size) // out_size
            e = -(-((i + 1) * in_size) // out_size)
            m[i, s:e] = 1.0 / (e - s)
        return jnp.asarray(m)

    ah = pool_matrix(h, out_h)
    aw = pool_matrix(w, out_w)
    return jnp.einsum("nhwc,ih,jw->nijc",
                      x_nhwc.astype(jnp.float32), ah, aw)   # (n,out_h,out_w,c)


# ----------------------------------------------------------------------------
# Model: VGG11 head (features + adaptive avg-pool) + two classifier branches
# ----------------------------------------------------------------------------
VGG11_BASE_CFG = [64, "M", 128, "M", 256, 256, "M", 512, 512, "M", 512, 512, "M"]


def make_cfg(scale):
    return [c if c == "M" else max(4, c // scale) for c in VGG11_BASE_CFG]


def init_params(key, cfg, in_ch, hidden, n_out1, n_out2):
    params = {"features": [], "cls": [], "cls_shape": []}

    def conv_init(k, fan_in, fan_out):
        kw, kb = jax.random.split(k)
        w = jax.random.normal(kw, (fan_in, fan_out), jnp.float32) * 0.05
        b = jax.random.normal(kb, (fan_out,), jnp.float32) * 0.01
        return w, b

    c_prev = in_ch
    for c in cfg:
        if c == "M":
            continue
        key, sub = jax.random.split(key)
        params["features"].append(conv_init(sub, 9 * c_prev, c))
        c_prev = c
    feat_ch = c_prev

    for name, n_out in (("cls", n_out1), ("cls_shape", n_out2)):
        key, k1, k2, k3 = jax.random.split(key, 4)
        params[name] = [
            conv_init(k1, 7 * 7 * feat_ch, hidden),  # Conv2d(C, hidden, k=7)
            conv_init(k2, hidden, hidden),           # Conv2d(hidden, hidden, k=1)
            conv_init(k3, hidden, n_out),            # Conv2d(hidden, n_out, k=1)
        ]
    return params, feat_ch


def two_branch_net_forward(x_nchw, params, cfg):
    # NCHW (PyTorch convention) -> NHWC for the kernel pipeline.
    x = jnp.transpose(x_nchw, (0, 2, 3, 1)).astype(jnp.float32)

    conv_i = 0
    for c in cfg:
        if c == "M":
            x = max_pool_2x2(x)                  # even H/W guaranteed for 64x64
        else:
            w, b = params["features"][conv_i]
            x = conv3x3_relu(x, w, b)
            conv_i += 1

    x = adaptive_avg_pool2d(x, 7, 7)             # vgg11.avgpool -> (N, 7, 7, C)

    # Both classifier branches in one fused pallas_call.
    out1, out2 = two_branch_classifier(x, params["cls"], params["cls_shape"])
    return out1, out2                            # (N, 16), (N, 4)


# ----------------------------------------------------------------------------
if __name__ == "__main__":
    batch, in_ch, spatial = 2, 3, 64             # NCHW input (2, 3, 64, 64)
    scale = 16                                   # VGG11 channels / 16, hidden 256
    hidden = 4096 // scale
    cfg = make_cfg(scale)

    key = jax.random.PRNGKey(0)
    key, pkey, xkey = jax.random.split(key, 3)
    params, _ = init_params(pkey, cfg, in_ch, hidden, n_out1=16, n_out2=4)

    x = jax.random.normal(xkey, (batch, in_ch, spatial, spatial), jnp.float32)

    fwd = jax.jit(functools.partial(two_branch_net_forward, cfg=cfg))
    out1, out2 = fwd(x, params)
    jax.block_until_ready((out1, out2))

    assert out1.shape == (batch, 16) and out1.dtype == jnp.float32
    assert out2.shape == (batch, 4) and out2.dtype == jnp.float32
    print("KERNEL_OK")
</pallas_src>

<mosaic_0001>
module attributes {stable_mosaic.version = 11 : i64} {
  func.func @_matmul_bias_act_kernel(%arg0: i32, %arg1: memref<1024x27xbf16, #tpu.memory_space<vmem>>, %arg2: memref<27x4xbf16, #tpu.memory_space<vmem>>, %arg3: memref<1x4xf32, #tpu.memory_space<vmem>>, %arg4: memref<1024x4xbf16, #tpu.memory_space<vmem>>) attributes {dimension_semantics = [#tpu.dimension_semantics<parallel>], iteration_bounds = array<i64: 8>, scalar_prefetch = 0 : i64, scratch_operands = 0 : i64, tpu.core_type = #tpu.core_type<tc>, window_params = [{transform_indices = @transform_0, window_bounds = array<i64: 1024, 27>}, {pipeline_mode = #tpu.pipeline_mode<synchronous>, transform_indices = @transform_1, window_bounds = array<i64: 27, 4>}, {pipeline_mode = #tpu.pipeline_mode<synchronous>, transform_indices = @transform_2, window_bounds = array<i64: 1, 4>}, {transform_indices = @transform_3, window_bounds = array<i64: 1024, 4>}]} {
    %c0 = arith.constant 0 : index
    %c0_0 = arith.constant 0 : index
    %0 = vector.load %arg1[%c0, %c0_0] : memref<1024x27xbf16, #tpu.memory_space<vmem>>, vector<1024x27xbf16>
    %c0_1 = arith.constant 0 : index
    %c0_2 = arith.constant 0 : index
    %1 = vector.load %arg2[%c0_1, %c0_2] : memref<27x4xbf16, #tpu.memory_space<vmem>>, vector<27x4xbf16>
    %cst = arith.constant dense<0.000000e+00> : vector<1024x4xf32>
    %2 = tpu.matmul %0, %1, %cst {dimension_numbers = #tpu.dot_dimension_numbers<[1], [0], [0], [1], [0, 0, 1, 1], [], []>} : vector<1024x27xbf16>, vector<27x4xbf16>, vector<1024x4xf32> -> vector<1024x4xf32>
    %c0_3 = arith.constant 0 : index
    %c0_4 = arith.constant 0 : index
    %3 = vector.load %arg3[%c0_3, %c0_4] : memref<1x4xf32, #tpu.memory_space<vmem>>, vector<1x4xf32>
    %4 = vector.broadcast %3 : vector<1x4xf32> to vector<1024x4xf32>
    %5 = arith.addf %2, %4 : vector<1024x4xf32>
    %cst_5 = arith.constant 0.000000e+00 : f32
    %6 = vector.broadcast %cst_5 : f32 to vector<1024x4xf32>
    %7 = arith.maximumf %5, %6 : vector<1024x4xf32>
    %8 = arith.truncf %7 : vector<1024x4xf32> to vector<1024x4xbf16>
    %c0_6 = arith.constant 0 : index
    %c0_7 = arith.constant 0 : index
    %9 = vector.load %arg4[%c0_6, %c0_7] : memref<1024x4xbf16, #tpu.memory_space<vmem>>, vector<1024x4xbf16>
    tpu.vector_store %arg4[%c0_6, %c0_7], %8 {strides = array<i32>} : memref<1024x4xbf16, #tpu.memory_space<vmem>>, vector<1024x4xbf16>,
    return
  }
  func.func @transform_0(%arg0: i32) -> (i32, i32) {
    %c0_i32 = arith.constant 0 : i32
    %c0_i32_0 = arith.constant 0 : i32
    return %arg0, %c0_i32 : i32, i32
  }
  func.func @transform_1(%arg0: i32) -> (i32, i32) {
    %c0_i32 = arith.constant 0 : i32
    %c0_i32_0 = arith.constant 0 : i32
    %c0_i32_1 = arith.constant 0 : i32
    return %c0_i32, %c0_i32_0 : i32, i32
  }
  func.func @transform_2(%arg0: i32) -> (i32, i32) {
    %c0_i32 = arith.constant 0 : i32
    %c0_i32_0 = arith.constant 0 : i32
    %c0_i32_1 = arith.constant 0 : i32
    return %c0_i32, %c0_i32_0 : i32, i32
  }
  func.func @transform_3(%arg0: i32) -> (i32, i32) {
    %c0_i32 = arith.constant 0 : i32
    %c0_i32_0 = arith.constant 0 : i32
    return %arg0, %c0_i32 : i32, i32
  }
}

module attributes {stable_mosaic.version = 11 : i64} {
  func.func @_matmul_bias_act_kernel(%arg0: i32, %arg1: memref<1024x36xbf16, #tpu.memory_space<vmem>>, %arg2: memref<36x8xbf16, #tpu.memory_space<vmem>>, %arg3: memref<1x8xf32, #tpu.memory_space<vmem>>, %arg4: memref<1024x8xbf16, #tpu.memory_space<vmem>>) attributes {dimension_semantics = [#tpu.dimension_semantics<parallel>], iteration_bounds = array<i64: 2>, scalar_prefetch = 0 : i64, scratch_operands = 0 : i64, tpu.core_type = #tpu.core_type<tc>, window_params = [{transform_indices = @transform_0, window_bounds = array<i64: 1024, 36>}, {pipeline_mode = #tpu.pipeline_mode<synchronous>, transform_indices = @transform_1, window_bounds = array<i64: 36, 8>}, {pipeline_mode = #tpu.pipeline_mode<synchronous>, transform_indices = @transform_2, window_bounds = array<i64: 1, 8>}, {transform_indices = @transform_3, window_bounds = array<i64: 1024, 8>}]} {
    %c0 = arith.constant 0 : index
    %c0_0 = arith.constant 0 : index
    %0 = vector.load %arg1[%c0, %c0_0] : memref<1024x36xbf16, #tpu.memory_space<vmem>>, vector<1024x36xbf16>
    %c0_1 = arith.constant 0 : index
    %c0_2 = arith.constant 0 : index
    %1 = vector.load %arg2[%c0_1, %c0_2] : memref<36x8xbf16, #tpu.memory_space<vmem>>, vector<36x8xbf16>
    %cst = arith.constant dense<0.000000e+00> : vector<1024x8xf32>
    %2 = tpu.matmul %0, %1, %cst {dimension_numbers = #tpu.dot_dimension_numbers<[1], [0], [0], [1], [0, 0, 1, 1], [], []>} : vector<1024x36xbf16>, vector<36x8xbf16>, vector<1024x8xf32> -> vector<1024x8xf32>
    %c0_3 = arith.constant 0 : index
    %c0_4 = arith.constant 0 : index
    %3 = vector.load %arg3[%c0_3, %c0_4] : memref<1x8xf32, #tpu.memory_space<vmem>>, vector<1x8xf32>
    %4 = vector.broadcast %3 : vector<1x8xf32> to vector<1024x8xf32>
    %5 = arith.addf %2, %4 : vector<1024x8xf32>
    %cst_5 = arith.constant 0.000000e+00 : f32
    %6 = vector.broadcast %cst_5 : f32 to vector<1024x8xf32>
    %7 = arith.maximumf %5, %6 : vector<1024x8xf32>
    %8 = arith.truncf %7 : vector<1024x8xf32> to vector<1024x8xbf16>
    %c0_6 = arith.constant 0 : index
    %c0_7 = arith.constant 0 : index
    %9 = vector.load %arg4[%c0_6, %c0_7] : memref<1024x8xbf16, #tpu.memory_space<vmem>>, vector<1024x8xbf16>
    tpu.vector_store %arg4[%c0_6, %c0_7], %8 {strides = array<i32>} : memref<1024x8xbf16, #tpu.memory_space<vmem>>, vector<1024x8xbf16>,
    return
  }
  func.func @transform_0(%arg0: i32) -> (i32, i32) {
    %c0_i32 = arith.constant 0 : i32
    %c0_i32_0 = arith.constant 0 : i32
    return %arg0, %c0_i32 : i32, i32
  }
  func.func @transform_1(%arg0: i32) -> (i32, i32) {
    %c0_i32 = arith.constant 0 : i32
    %c0_i32_0 = arith.constant 0 : i32
    %c0_i32_1 = arith.constant 0 : i32
    return %c0_i32, %c0_i32_0 : i32, i32
  }
  func.func @transform_2(%arg0: i32) -> (i32, i32) {
    %c0_i32 = arith.constant 0 : i32
    %c0_i32_0 = arith.constant 0 : i32
    %c0_i32_1 = arith.constant 0 : i32
    return %c0_i32, %c0_i32_0 : i32, i32
  }
  func.func @transform_3(%arg0: i32) -> (i32, i32) {
    %c0_i32 = arith.constant 0 : i32
    %c0_i32_0 = arith.constant 0 : i32
    return %arg0, %c0_i32 : i32, i32
  }
}

module attributes {stable_mosaic.version = 11 : i64} {
  func.func @_matmul_bias_act_kernel(%arg0: i32, %arg1: memref<512x72xbf16, #tpu.memory_space<vmem>>, %arg2: memref<72x16xbf16, #tpu.memory_space<vmem>>, %arg3: memref<1x16xf32, #tpu.memory_space<vmem>>, %arg4: memref<512x16xbf16, #tpu.memory_space<vmem>>) attributes {dimension_semantics = [#tpu.dimension_semantics<parallel>], iteration_bounds = array<i64: 1>, scalar_prefetch = 0 : i64, scratch_operands = 0 : i64, tpu.core_type = #tpu.core_type<tc>, window_params = [{transform_indices = @transform_0, window_bounds = array<i64: 512, 72>}, {pipeline_mode = #tpu.pipeline_mode<synchronous>, transform_indices = @transform_1, window_bounds = array<i64: 72, 16>}, {pipeline_mode = #tpu.pipeline_mode<synchronous>, transform_indices = @transform_2, window_bounds = array<i64: 1, 16>}, {transform_indices = @transform_3, window_bounds = array<i64: 512, 16>}]} {
    %c0 = arith.constant 0 : index
    %c0_0 = arith.constant 0 : index
    %0 = vector.load %arg1[%c0, %c0_0] : memref<512x72xbf16, #tpu.memory_space<vmem>>, vector<512x72xbf16>
    %c0_1 = arith.constant 0 : index
    %c0_2 = arith.constant 0 : index
    %1 = vector.load %arg2[%c0_1, %c0_2] : memref<72x16xbf16, #tpu.memory_space<vmem>>, vector<72x16xbf16>
    %cst = arith.constant dense<0.000000e+00> : vector<512x16xf32>
    %2 = tpu.matmul %0, %1, %cst {dimension_numbers = #tpu.dot_dimension_numbers<[1], [0], [0], [1], [0, 0, 1, 1], [], []>} : vector<512x72xbf16>, vector<72x16xbf16>, vector<512x16xf32> -> vector<512x16xf32>
    %c0_3 = arith.constant 0 : index
    %c0_4 = arith.constant 0 : index
    %3 = vector.load %arg3[%c0_3, %c0_4] : memref<1x16xf32, #tpu.memory_space<vmem>>, vector<1x16xf32>
    %4 = vector.broadcast %3 : vector<1x16xf32> to vector<512x16xf32>
    %5 = arith.addf %2, %4 : vector<512x16xf32>
    %cst_5 = arith.constant 0.000000e+00 : f32
    %6 = vector.broadcast %cst_5 : f32 to vector<512x16xf32>
    %7 = arith.maximumf %5, %6 : vector<512x16xf32>
    %8 = arith.truncf %7 : vector<512x16xf32> to vector<512x16xbf16>
    %c0_6 = arith.constant 0 : index
    %c0_7 = arith.constant 0 : index
    %9 = vector.load %arg4[%c0_6, %c0_7] : memref<512x16xbf16, #tpu.memory_space<vmem>>, vector<512x16xbf16>
    tpu.vector_store %arg4[%c0_6, %c0_7], %8 {strides = array<i32>} : memref<512x16xbf16, #tpu.memory_space<vmem>>, vector<512x16xbf16>,
    return
  }
  func.func @transform_0(%arg0: i32) -> (i32, i32) {
    %c0_i32 = arith.constant 0 : i32
    %c0_i32_0 = arith.constant 0 : i32
    return %arg0, %c0_i32 : i32, i32
  }
  func.func @transform_1(%arg0: i32) -> (i32, i32) {
    %c0_i32 = arith.constant 0 : i32
    %c0_i32_0 = arith.constant 0 : i32
    %c0_i32_1 = arith.constant 0 : i32
    return %c0_i32, %c0_i32_0 : i32, i32
  }
  func.func @transform_2(%arg0: i32) -> (i32, i32) {
    %c0_i32 = arith.constant 0 : i32
    %c0_i32_0 = arith.constant 0 : i32
    %c0_i32_1 = arith.constant 0 : i32
    return %c0_i32, %c0_i32_0 : i32, i32
  }
  func.func @transform_3(%arg0: i32) -> (i32, i32) {
    %c0_i32 = arith.constant 0 : i32
    %c0_i32_0 = arith.constant 0 : i32
    return %arg0, %c0_i32 : i32, i32
  }
}

module attributes {stable_mosaic.version = 11 : i64} {
  func.func @_matmul_bias_act_kernel(%arg0: i32, %arg1: memref<512x144xbf16, #tpu.memory_space<vmem>>, %arg2: memref<144x16xbf16, #tpu.memory_space<vmem>>, %arg3: memref<1x16xf32, #tpu.memory_space<vmem>>, %arg4: memref<512x16xbf16, #tpu.memory_space<vmem>>) attributes {dimension_semantics = [#tpu.dimension_semantics<parallel>], iteration_bounds = array<i64: 1>, scalar_prefetch = 0 : i64, scratch_operands = 0 : i64, tpu.core_type = #tpu.core_type<tc>, window_params = [{transform_indices = @transform_0, window_bounds = array<i64: 512, 144>}, {pipeline_mode = #tpu.pipeline_mode<synchronous>, transform_indices = @transform_1, window_bounds = array<i64: 144, 16>}, {pipeline_mode = #tpu.pipeline_mode<synchronous>, transform_indices = @transform_2, window_bounds = array<i64: 1, 16>}, {transform_indices = @transform_3, window_bounds = array<i64: 512, 16>}]} {
    %c0 = arith.constant 0 : index
    %c0_0 = arith.constant 0 : index
    %0 = vector.load %arg1[%c0, %c0_0] : memref<512x144xbf16, #tpu.memory_space<vmem>>, vector<512x144xbf16>
    %c0_1 = arith.constant 0 : index
    %c0_2 = arith.constant 0 : index
    %1 = vector.load %arg2[%c0_1, %c0_2] : memref<144x16xbf16, #tpu.memory_space<vmem>>, vector<144x16xbf16>
    %cst = arith.constant dense<0.000000e+00> : vector<512x16xf32>
    %2 = tpu.matmul %0, %1, %cst {dimension_numbers = #tpu.dot_dimension_numbers<[1], [0], [0], [1], [0, 0, 1, 1], [], []>} : vector<512x144xbf16>, vector<144x16xbf16>, vector<512x16xf32> -> vector<512x16xf32>
    %c0_3 = arith.constant 0 : index
    %c0_4 = arith.constant 0 : index
    %3 = vector.load %arg3[%c0_3, %c0_4] : memref<1x16xf32, #tpu.memory_space<vmem>>, vector<1x16xf32>
    %4 = vector.broadcast %3 : vector<1x16xf32> to vector<512x16xf32>
    %5 = arith.addf %2, %4 : vector<512x16xf32>
    %cst_5 = arith.constant 0.000000e+00 : f32
    %6 = vector.broadcast %cst_5 : f32 to vector<512x16xf32>
    %7 = arith.maximumf %5, %6 : vector<512x16xf32>
    %8 = arith.truncf %7 : vector<512x16xf32> to vector<512x16xbf16>
    %c0_6 = arith.constant 0 : index
    %c0_7 = arith.constant 0 : index
    %9 = vector.load %arg4[%c0_6, %c0_7] : memref<512x16xbf16, #tpu.memory_space<vmem>>, vector<512x16xbf16>
    tpu.vector_store %arg4[%c0_6, %c0_7], %8 {strides = array<i32>} : memref<512x16xbf16, #tpu.memory_space<vmem>>, vector<512x16xbf16>,
    return
  }
  func.func @transform_0(%arg0: i32) -> (i32, i32) {
    %c0_i32 = arith.constant 0 : i32
    %c0_i32_0 = arith.constant 0 : i32
    return %arg0, %c0_i32 : i32, i32
  }
  func.func @transform_1(%arg0: i32) -> (i32, i32) {
    %c0_i32 = arith.constant 0 : i32
    %c0_i32_0 = arith.constant 0 : i32
    %c0_i32_1 = arith.constant 0 : i32
    return %c0_i32, %c0_i32_0 : i32, i32
  }
  func.func @transform_2(%arg0: i32) -> (i32, i32) {
    %c0_i32 = arith.constant 0 : i32
    %c0_i32_0 = arith.constant 0 : i32
    %c0_i32_1 = arith.constant 0 : i32
    return %c0_i32, %c0_i32_0 : i32, i32
  }
  func.func @transform_3(%arg0: i32) -> (i32, i32) {
    %c0_i32 = arith.constant 0 : i32
    %c0_i32_0 = arith.constant 0 : i32
    return %arg0, %c0_i32 : i32, i32
  }
}

module attributes {stable_mosaic.version = 11 : i64} {
  func.func @_matmul_bias_act_kernel(%arg0: i32, %arg1: memref<128x144xbf16, #tpu.memory_space<vmem>>, %arg2: memref<144x32xbf16, #tpu.memory_space<vmem>>, %arg3: memref<1x32xf32, #tpu.memory_space<vmem>>, %arg4: memref<128x32xbf16, #tpu.memory_space<vmem>>) attributes {dimension_semantics = [#tpu.dimension_semantics<parallel>], iteration_bounds = array<i64: 1>, scalar_prefetch = 0 : i64, scratch_operands = 0 : i64, tpu.core_type = #tpu.core_type<tc>, window_params = [{transform_indices = @transform_0, window_bounds = array<i64: 128, 144>}, {pipeline_mode = #tpu.pipeline_mode<synchronous>, transform_indices = @transform_1, window_bounds = array<i64: 144, 32>}, {pipeline_mode = #tpu.pipeline_mode<synchronous>, transform_indices = @transform_2, window_bounds = array<i64: 1, 32>}, {transform_indices = @transform_3, window_bounds = array<i64: 128, 32>}]} {
    %c0 = arith.constant 0 : index
    %c0_0 = arith.constant 0 : index
    %0 = vector.load %arg1[%c0, %c0_0] : memref<128x144xbf16, #tpu.memory_space<vmem>>, vector<128x144xbf16>
    %c0_1 = arith.constant 0 : index
    %c0_2 = arith.constant 0 : index
    %1 = vector.load %arg2[%c0_1, %c0_2] : memref<144x32xbf16, #tpu.memory_space<vmem>>, vector<144x32xbf16>
    %cst = arith.constant dense<0.000000e+00> : vector<128x32xf32>
    %2 = tpu.matmul %0, %1, %cst {dimension_numbers = #tpu.dot_dimension_numbers<[1], [0], [0], [1], [0, 0, 1, 1], [], []>} : vector<128x144xbf16>, vector<144x32xbf16>, vector<128x32xf32> -> vector<128x32xf32>
    %c0_3 = arith.constant 0 : index
    %c0_4 = arith.constant 0 : index
    %3 = vector.load %arg3[%c0_3, %c0_4] : memref<1x32xf32, #tpu.memory_space<vmem>>, vector<1x32xf32>
    %4 = vector.broadcast %3 : vector<1x32xf32> to vector<128x32xf32>
    %5 = arith.addf %2, %4 : vector<128x32xf32>
    %cst_5 = arith.constant 0.000000e+00 : f32
    %6 = vector.broadcast %cst_5 : f32 to vector<128x32xf32>
    %7 = arith.maximumf %5, %6 : vector<128x32xf32>
    %8 = arith.truncf %7 : vector<128x32xf32> to vector<128x32xbf16>
    %c0_6 = arith.constant 0 : index
    %c0_7 = arith.constant 0 : index
    %9 = vector.load %arg4[%c0_6, %c0_7] : memref<128x32xbf16, #tpu.memory_space<vmem>>, vector<128x32xbf16>
    tpu.vector_store %arg4[%c0_6, %c0_7], %8 {strides = array<i32>} : memref<128x32xbf16, #tpu.memory_space<vmem>>, vector<128x32xbf16>,
    return
  }
  func.func @transform_0(%arg0: i32) -> (i32, i32) {
    %c0_i32 = arith.constant 0 : i32
    %c0_i32_0 = arith.constant 0 : i32
    return %arg0, %c0_i32 : i32, i32
  }
  func.func @transform_1(%arg0: i32) -> (i32, i32) {
    %c0_i32 = arith.constant 0 : i32
    %c0_i32_0 = arith.constant 0 : i32
    %c0_i32_1 = arith.constant 0 : i32
    return %c0_i32, %c0_i32_0 : i32, i32
  }
  func.func @transform_2(%arg0: i32) -> (i32, i32) {
    %c0_i32 = arith.constant 0 : i32
    %c0_i32_0 = arith.constant 0 : i32
    %c0_i32_1 = arith.constant 0 : i32
    return %c0_i32, %c0_i32_0 : i32, i32
  }
  func.func @transform_3(%arg0: i32) -> (i32, i32) {
    %c0_i32 = arith.constant 0 : i32
    %c0_i32_0 = arith.constant 0 : i32
    return %arg0, %c0_i32 : i32, i32
  }
}

module attributes {stable_mosaic.version = 11 : i64} {
  func.func @_matmul_bias_act_kernel(%arg0: i32, %arg1: memref<128x288xbf16, #tpu.memory_space<vmem>>, %arg2: memref<288x32xbf16, #tpu.memory_space<vmem>>, %arg3: memref<1x32xf32, #tpu.memory_space<vmem>>, %arg4: memref<128x32xbf16, #tpu.memory_space<vmem>>) attributes {dimension_semantics = [#tpu.dimension_semantics<parallel>], iteration_bounds = array<i64: 1>, scalar_prefetch = 0 : i64, scratch_operands = 0 : i64, tpu.core_type = #tpu.core_type<tc>, window_params = [{transform_indices = @transform_0, window_bounds = array<i64: 128, 288>}, {pipeline_mode = #tpu.pipeline_mode<synchronous>, transform_indices = @transform_1, window_bounds = array<i64: 288, 32>}, {pipeline_mode = #tpu.pipeline_mode<synchronous>, transform_indices = @transform_2, window_bounds = array<i64: 1, 32>}, {transform_indices = @transform_3, window_bounds = array<i64: 128, 32>}]} {
    %c0 = arith.constant 0 : index
    %c0_0 = arith.constant 0 : index
    %0 = vector.load %arg1[%c0, %c0_0] : memref<128x288xbf16, #tpu.memory_space<vmem>>, vector<128x288xbf16>
    %c0_1 = arith.constant 0 : index
    %c0_2 = arith.constant 0 : index
    %1 = vector.load %arg2[%c0_1, %c0_2] : memref<288x32xbf16, #tpu.memory_space<vmem>>, vector<288x32xbf16>
    %cst = arith.constant dense<0.000000e+00> : vector<128x32xf32>
    %2 = tpu.matmul %0, %1, %cst {dimension_numbers = #tpu.dot_dimension_numbers<[1], [0], [0], [1], [0, 0, 1, 1], [], []>} : vector<128x288xbf16>, vector<288x32xbf16>, vector<128x32xf32> -> vector<128x32xf32>
    %c0_3 = arith.constant 0 : index
    %c0_4 = arith.constant 0 : index
    %3 = vector.load %arg3[%c0_3, %c0_4] : memref<1x32xf32, #tpu.memory_space<vmem>>, vector<1x32xf32>
    %4 = vector.broadcast %3 : vector<1x32xf32> to vector<128x32xf32>
    %5 = arith.addf %2, %4 : vector<128x32xf32>
    %cst_5 = arith.constant 0.000000e+00 : f32
    %6 = vector.broadcast %cst_5 : f32 to vector<128x32xf32>
    %7 = arith.maximumf %5, %6 : vector<128x32xf32>
    %8 = arith.truncf %7 : vector<128x32xf32> to vector<128x32xbf16>
    %c0_6 = arith.constant 0 : index
    %c0_7 = arith.constant 0 : index
    %9 = vector.load %arg4[%c0_6, %c0_7] : memref<128x32xbf16, #tpu.memory_space<vmem>>, vector<128x32xbf16>
    tpu.vector_store %arg4[%c0_6, %c0_7], %8 {strides = array<i32>} : memref<128x32xbf16, #tpu.memory_space<vmem>>, vector<128x32xbf16>,
    return
  }
  func.func @transform_0(%arg0: i32) -> (i32, i32) {
    %c0_i32 = arith.constant 0 : i32
    %c0_i32_0 = arith.constant 0 : i32
    return %arg0, %c0_i32 : i32, i32
  }
  func.func @transform_1(%arg0: i32) -> (i32, i32) {
    %c0_i32 = arith.constant 0 : i32
    %c0_i32_0 = arith.constant 0 : i32
    %c0_i32_1 = arith.constant 0 : i32
    return %c0_i32, %c0_i32_0 : i32, i32
  }
  func.func @transform_2(%arg0: i32) -> (i32, i32) {
    %c0_i32 = arith.constant 0 : i32
    %c0_i32_0 = arith.constant 0 : i32
    %c0_i32_1 = arith.constant 0 : i32
    return %c0_i32, %c0_i32_0 : i32, i32
  }
  func.func @transform_3(%arg0: i32) -> (i32, i32) {
    %c0_i32 = arith.constant 0 : i32
    %c0_i32_0 = arith.constant 0 : i32
    return %arg0, %c0_i32 : i32, i32
  }
}

module attributes {stable_mosaic.version = 11 : i64} {
  func.func @_matmul_bias_act_kernel(%arg0: i32, %arg1: memref<32x288xbf16, #tpu.memory_space<vmem>>, %arg2: memref<288x32xbf16, #tpu.memory_space<vmem>>, %arg3: memref<1x32xf32, #tpu.memory_space<vmem>>, %arg4: memref<32x32xbf16, #tpu.memory_space<vmem>>) attributes {dimension_semantics = [#tpu.dimension_semantics<parallel>], iteration_bounds = array<i64: 1>, scalar_prefetch = 0 : i64, scratch_operands = 0 : i64, tpu.core_type = #tpu.core_type<tc>, window_params = [{transform_indices = @transform_0, window_bounds = array<i64: 32, 288>}, {pipeline_mode = #tpu.pipeline_mode<synchronous>, transform_indices = @transform_1, window_bounds = array<i64: 288, 32>}, {pipeline_mode = #tpu.pipeline_mode<synchronous>, transform_indices = @transform_2, window_bounds = array<i64: 1, 32>}, {transform_indices = @transform_3, window_bounds = array<i64: 32, 32>}]} {
    %c0 = arith.constant 0 : index
    %c0_0 = arith.constant 0 : index
    %0 = vector.load %arg1[%c0, %c0_0] : memref<32x288xbf16, #tpu.memory_space<vmem>>, vector<32x288xbf16>
    %c0_1 = arith.constant 0 : index
    %c0_2 = arith.constant 0 : index
    %1 = vector.load %arg2[%c0_1, %c0_2] : memref<288x32xbf16, #tpu.memory_space<vmem>>, vector<288x32xbf16>
    %cst = arith.constant dense<0.000000e+00> : vector<32x32xf32>
    %2 = tpu.matmul %0, %1, %cst {dimension_numbers = #tpu.dot_dimension_numbers<[1], [0], [0], [1], [0, 0, 1, 1], [], []>} : vector<32x288xbf16>, vector<288x32xbf16>, vector<32x32xf32> -> vector<32x32xf32>
    %c0_3 = arith.constant 0 : index
    %c0_4 = arith.constant 0 : index
    %3 = vector.load %arg3[%c0_3, %c0_4] : memref<1x32xf32, #tpu.memory_space<vmem>>, vector<1x32xf32>
    %4 = vector.broadcast %3 : vector<1x32xf32> to vector<32x32xf32>
    %5 = arith.addf %2, %4 : vector<32x32xf32>
    %cst_5 = arith.constant 0.000000e+00 : f32
    %6 = vector.broadcast %cst_5 : f32 to vector<32x32xf32>
    %7 = arith.maximumf %5, %6 : vector<32x32xf32>
    %8 = arith.truncf %7 : vector<32x32xf32> to vector<32x32xbf16>
    %c0_6 = arith.constant 0 : index
    %c0_7 = arith.constant 0 : index
    %9 = vector.load %arg4[%c0_6, %c0_7] : memref<32x32xbf16, #tpu.memory_space<vmem>>, vector<32x32xbf16>
    tpu.vector_store %arg4[%c0_6, %c0_7], %8 {strides = array<i32>} : memref<32x32xbf16, #tpu.memory_space<vmem>>, vector<32x32xbf16>,
    return
  }
  func.func @transform_0(%arg0: i32) -> (i32, i32) {
    %c0_i32 = arith.constant 0 : i32
    %c0_i32_0 = arith.constant 0 : i32
    return %arg0, %c0_i32 : i32, i32
  }
  func.func @transform_1(%arg0: i32) -> (i32, i32) {
    %c0_i32 = arith.constant 0 : i32
    %c0_i32_0 = arith.constant 0 : i32
    %c0_i32_1 = arith.constant 0 : i32
    return %c0_i32, %c0_i32_0 : i32, i32
  }
  func.func @transform_2(%arg0: i32) -> (i32, i32) {
    %c0_i32 = arith.constant 0 : i32
    %c0_i32_0 = arith.constant 0 : i32
    %c0_i32_1 = arith.constant 0 : i32
    return %c0_i32, %c0_i32_0 : i32, i32
  }
  func.func @transform_3(%arg0: i32) -> (i32, i32) {
    %c0_i32 = arith.constant 0 : i32
    %c0_i32_0 = arith.constant 0 : i32
    return %arg0, %c0_i32 : i32, i32
  }
}

module attributes {stable_mosaic.version = 11 : i64} {
  func.func @_two_branch_classifier_kernel(%arg0: memref<8x1568xbf16, #tpu.memory_space<vmem>>, %arg1: memref<1568x256xbf16, #tpu.memory_space<vmem>>, %arg2: memref<1x256xf32, #tpu.memory_space<vmem>>, %arg3: memref<256x256xbf16, #tpu.memory_space<vmem>>, %arg4: memref<1x256xf32, #tpu.memory_space<vmem>>, %arg5: memref<256x16xbf16, #tpu.memory_space<vmem>>, %arg6: memref<1x16xf32, #tpu.memory_space<vmem>>, %arg7: memref<1568x256xbf16, #tpu.memory_space<vmem>>, %arg8: memref<1x256xf32, #tpu.memory_space<vmem>>, %arg9: memref<256x256xbf16, #tpu.memory_space<vmem>>, %arg10: memref<1x256xf32, #tpu.memory_space<vmem>>, %arg11: memref<256x4xbf16, #tpu.memory_space<vmem>>, %arg12: memref<1x4xf32, #tpu.memory_space<vmem>>, %arg13: memref<8x16xf32, #tpu.memory_space<vmem>>, %arg14: memref<8x4xf32, #tpu.memory_space<vmem>>) attributes {dimension_semantics = [], scalar_prefetch = 0 : i64, scratch_operands = 0 : i64, tpu.core_type = #tpu.core_type<tc>} {
    %c0 = arith.constant 0 : index
    %c0_0 = arith.constant 0 : index
    %0 = vector.load %arg0[%c0, %c0_0] : memref<8x1568xbf16, #tpu.memory_space<vmem>>, vector<8x1568xbf16>
    %c0_1 = arith.constant 0 : index
    %c0_2 = arith.constant 0 : index
    %1 = vector.load %arg1[%c0_1, %c0_2] : memref<1568x256xbf16, #tpu.memory_space<vmem>>, vector<1568x256xbf16>
    %cst = arith.constant dense<0.000000e+00> : vector<8x256xf32>
    %2 = tpu.matmul %0, %1, %cst {dimension_numbers = #tpu.dot_dimension_numbers<[1], [0], [0], [1], [0, 0, 1, 1], [], []>} : vector<8x1568xbf16>, vector<1568x256xbf16>, vector<8x256xf32> -> vector<8x256xf32>
    %c0_3 = arith.constant 0 : index
    %c0_4 = arith.constant 0 : index
    %3 = vector.load %arg2[%c0_3, %c0_4] : memref<1x256xf32, #tpu.memory_space<vmem>>, vector<1x256xf32>
    %4 = vector.broadcast %3 : vector<1x256xf32> to vector<8x256xf32>
    %5 = arith.addf %2, %4 : vector<8x256xf32>
    %cst_5 = arith.constant 0.000000e+00 : f32
    %6 = vector.broadcast %cst_5 : f32 to vector<8x256xf32>
    %7 = arith.maximumf %5, %6 : vector<8x256xf32>
    %8 = arith.truncf %7 : vector<8x256xf32> to vector<8x256xbf16>
    %c0_6 = arith.constant 0 : index
    %c0_7 = arith.constant 0 : index
    %9 = vector.load %arg3[%c0_6, %c0_7] : memref<256x256xbf16, #tpu.memory_space<vmem>>, vector<256x256xbf16>
    %cst_8 = arith.constant dense<0.000000e+00> : vector<8x256xf32>
    %10 = tpu.matmul %8, %9, %cst_8 {dimension_numbers = #tpu.dot_dimension_numbers<[1], [0], [0], [1], [0, 0, 1, 1], [], []>} : vector<8x256xbf16>, vector<256x256xbf16>, vector<8x256xf32> -> vector<8x256xf32>
    %c0_9 = arith.constant 0 : index
    %c0_10 = arith.constant 0 : index
    %11 = vector.load %arg4[%c0_9, %c0_10] : memref<1x256xf32, #tpu.memory_space<vmem>>, vector<1x256xf32>
    %12 = vector.broadcast %11 : vector<1x256xf32> to vector<8x256xf32>
    %13 = arith.addf %10, %12 : vector<8x256xf32>
    %cst_11 = arith.constant 0.000000e+00 : f32
    %14 = vector.broadcast %cst_11 : f32 to vector<8x256xf32>
    %15 = arith.maximumf %13, %14 : vector<8x256xf32>
    %16 = arith.truncf %15 : vector<8x256xf32> to vector<8x256xbf16>
    %c0_12 = arith.constant 0 : index
    %c0_13 = arith.constant 0 : index
    %17 = vector.load %arg5[%c0_12, %c0_13] : memref<256x16xbf16, #tpu.memory_space<vmem>>, vector<256x16xbf16>
    %cst_14 = arith.constant dense<0.000000e+00> : vector<8x16xf32>
    %18 = tpu.matmul %16, %17, %cst_14 {dimension_numbers = #tpu.dot_dimension_numbers<[1], [0], [0], [1], [0, 0, 1, 1], [], []>} : vector<8x256xbf16>, vector<256x16xbf16>, vector<8x16xf32> -> vector<8x16xf32>
    %c0_15 = arith.constant 0 : index
    %c0_16 = arith.constant 0 : index
    %19 = vector.load %arg6[%c0_15, %c0_16] : memref<1x16xf32, #tpu.memory_space<vmem>>, vector<1x16xf32>
    %20 = vector.broadcast %19 : vector<1x16xf32> to vector<8x16xf32>
    %21 = arith.addf %18, %20 : vector<8x16xf32>
    %c0_17 = arith.constant 0 : index
    %c0_18 = arith.constant 0 : index
    %22 = vector.load %arg13[%c0_17, %c0_18] : memref<8x16xf32, #tpu.memory_space<vmem>>, vector<8x16xf32>
    tpu.vector_store %arg13[%c0_17, %c0_18], %21 {strides = array<i32>} : memref<8x16xf32, #tpu.memory_space<vmem>>, vector<8x16xf32>,
    %c0_19 = arith.constant 0 : index
    %c0_20 = arith.constant 0 : index
    %23 = vector.load %arg7[%c0_19, %c0_20] : memref<1568x256xbf16, #tpu.memory_space<vmem>>, vector<1568x256xbf16>
    %cst_21 = arith.constant dense<0.000000e+00> : vector<8x256xf32>
    %24 = tpu.matmul %0, %23, %cst_21 {dimension_numbers = #tpu.dot_dimension_numbers<[1], [0], [0], [1], [0, 0, 1, 1], [], []>} : vector<8x1568xbf16>, vector<1568x256xbf16>, vector<8x256xf32> -> vector<8x256xf32>
    %c0_22 = arith.constant 0 : index
    %c0_23 = arith.constant 0 : index
    %25 = vector.load %arg8[%c0_22, %c0_23] : memref<1x256xf32, #tpu.memory_space<vmem>>, vector<1x256xf32>
    %26 = vector.broadcast %25 : vector<1x256xf32> to vector<8x256xf32>
    %27 = arith.addf %24, %26 : vector<8x256xf32>
    %cst_24 = arith.constant 0.000000e+00 : f32
    %28 = vector.broadcast %cst_24 : f32 to vector<8x256xf32>
    %29 = arith.maximumf %27, %28 : vector<8x256xf32>
    %30 = arith.truncf %29 : vector<8x256xf32> to vector<8x256xbf16>
    %c0_25 = arith.constant 0 : index
    %c0_26 = arith.constant 0 : index
    %31 = vector.load %arg9[%c0_25, %c0_26] : memref<256x256xbf16, #tpu.memory_space<vmem>>, vector<256x256xbf16>
    %cst_27 = arith.constant dense<0.000000e+00> : vector<8x256xf32>
    %32 = tpu.matmul %30, %31, %cst_27 {dimension_numbers = #tpu.dot_dimension_numbers<[1], [0], [0], [1], [0, 0, 1, 1], [], []>} : vector<8x256xbf16>, vector<256x256xbf16>, vector<8x256xf32> -> vector<8x256xf32>
    %c0_28 = arith.constant 0 : index
    %c0_29 = arith.constant 0 : index
    %33 = vector.load %arg10[%c0_28, %c0_29] : memref<1x256xf32, #tpu.memory_space<vmem>>, vector<1x256xf32>
    %34 = vector.broadcast %33 : vector<1x256xf32> to vector<8x256xf32>
    %35 = arith.addf %32, %34 : vector<8x256xf32>
    %cst_30 = arith.constant 0.000000e+00 : f32
    %36 = vector.broadcast %cst_30 : f32 to vector<8x256xf32>
    %37 = arith.maximumf %35, %36 : vector<8x256xf32>
    %38 = arith.truncf %37 : vector<8x256xf32> to vector<8x256xbf16>
    %c0_31 = arith.constant 0 : index
    %c0_32 = arith.constant 0 : index
    %39 = vector.load %arg11[%c0_31, %c0_32] : memref<256x4xbf16, #tpu.memory_space<vmem>>, vector<256x4xbf16>
    %cst_33 = arith.constant dense<0.000000e+00> : vector<8x4xf32>
    %40 = tpu.matmul %38, %39, %cst_33 {dimension_numbers = #tpu.dot_dimension_numbers<[1], [0], [0], [1], [0, 0, 1, 1], [], []>} : vector<8x256xbf16>, vector<256x4xbf16>, vector<8x4xf32> -> vector<8x4xf32>
    %c0_34 = arith.constant 0 : index
    %c0_35 = arith.constant 0 : index
    %41 = vector.load %arg12[%c0_34, %c0_35] : memref<1x4xf32, #tpu.memory_space<vmem>>, vector<1x4xf32>
    %42 = vector.broadcast %41 : vector<1x4xf32> to vector<8x4xf32>
    %43 = arith.addf %40, %42 : vector<8x4xf32>
    %c0_36 = arith.constant 0 : index
    %c0_37 = arith.constant 0 : index
    %44 = vector.load %arg14[%c0_36, %c0_37] : memref<8x4xf32, #tpu.memory_space<vmem>>, vector<8x4xf32>
    tpu.vector_store %arg14[%c0_36, %c0_37], %43 {strides = array<i32>} : memref<8x4xf32, #tpu.memory_space<vmem>>, vector<8x4xf32>,
    return
  }
}

</mosaic_0001>

<llo_original>
// kernel: two_branch_net_forward.9
$region0: #{two_branch_net_forward.9}
  #allocation0 [shape = 'u32[]', space=smem, size = 0x4, offset = 0x4, fixed_abs, tag = 'smem constant byte address 0x4 - core index']
  #allocation1 [shape = 'u32[144,128]{1,0:T(1,128)}', space=vmem, size = 0x12000, scoped, tag = 'internal scratch']
  %s0 = inlined_call_operand.vmem [shape: bf16[8192,27], index: 0, kind: input, shape index: {}]
  %s1 = inlined_call_operand.vmem [shape: bf16[27,4], index: 1, kind: input, shape index: {}]
  %s2 = inlined_call_operand.vmem [shape: f32[1,4], index: 2, kind: input, shape index: {}]
  %s3 = inlined_call_operand.vmem [shape: bf16[8192,4], index: 3, kind: output, shape index: {}]
  %s4 = sld [smem:[#allocation0]]
  $region45: #{two_branch_net_forward.9} parent=0
    _
  %s6 = ssub.s32 1, %s4
  %s7 = scalar_select 0, %s6, %s4
  loop: start=0, step=1, limit=10
  $region2: #{two_branch_net_forward.9} parent=0 // loop_pre_header
    _
  $region3: #{two_branch_net_forward.9} parent=0 // loop_header
    %s9 = sphi 0, %s13
    %p10 = scmp.ge.s32.totalorder %s9, 10
    %s19 = sphi 0, %s21
    %s22 = sphi 0, %s19
    %s23 = sphi 0, %s22
    %s39 = sphi 0, %s23
    %s43 = sphi 0, %s43
    %s45 = sphi 0, %s43
    %s46 = sphi 0, %s45
    %s60 = sphi 0, %s46
    %s64 = sphi 0, %s64
    %s66 = sphi 0, %s64
    %s67 = sphi 0, %s66
    %s81 = sphi 0, %s67
    %s87 = sphi 0, %s89
    %s90 = sphi 0, %s87
    %s91 = sphi 0, %s90
    %s107 = sphi 0, %s91
  $region4: #{two_branch_net_forward.9} parent=0 // loop_header_branch
    %12 = sbr.rel (%p10) target = $region8
  $region5: #{two_branch_net_forward.9} parent=0 // loop_body
    %s14 = ssub.s32 %s9, 1
    %s15 = ssub.s32 %s9, 2
    %s16 = sadd.s32 %s9, 1
    %s17 = ssub.s32 %s9, %s16
    %p18 = scmp.eq.s32.totalorder %s17, 0
    %s20 = sadd.s32 %s19, 1
    %s21 = scalar_select %p18, %s19, %s20
    %p24 = pneg %p18
    %p25 = scmp.eq.s32.totalorder %s9, 7
    %p26 = por %p24, %p25
    %p27 = scmp.ne.s32.totalorder %s19, %s22
    %p28 = scmp.eq.s32.totalorder %s9, 0
    %p29 = por %p27, %p28
    %p30 = scmp.ne.s32.totalorder %s19, %s22
    %p31 = scmp.eq.s32.totalorder %s14, 7
    %p32 = por %p30, %p31
    %p33 = scmp.ne.s32.totalorder %s22, %s23
    %p34 = scmp.eq.s32.totalorder %s14, 0
    %p35 = por %p33, %p34
    %p36 = scmp.ne.s32.totalorder %s22, %s23
    %p37 = scmp.eq.s32.totalorder %s15, 7
    %p38 = por %p36, %p37
    %p40 = scmp.ne.s32.totalorder %s23, %s39
    %p41 = scmp.eq.s32.totalorder %s15, 0
    %p42 = por %p40, %p41
    %s44 = sadd.s32 %s43, 1
    %p47 = scmp.eq.s32.totalorder %s9, 7
    %p48 = scmp.ne.s32.totalorder %s43, %s45
    %p49 = scmp.eq.s32.totalorder %s9, 0
    %p50 = por %p48, %p49
    %p51 = scmp.ne.s32.totalorder %s43, %s45
    %p52 = scmp.eq.s32.totalorder %s14, 7
    %p53 = por %p51, %p52
    %p54 = scmp.ne.s32.totalorder %s45, %s46
    %p55 = scmp.eq.s32.totalorder %s14, 0
    %p56 = por %p54, %p55
    %p57 = scmp.ne.s32.totalorder %s45, %s46
    %p58 = scmp.eq.s32.totalorder %s15, 7
    %p59 = por %p57, %p58
    %p61 = scmp.ne.s32.totalorder %s46, %s60
    %p62 = scmp.eq.s32.totalorder %s15, 0
    %p63 = por %p61, %p62
    %s65 = sadd.s32 %s64, 1
    %p68 = scmp.eq.s32.totalorder %s9, 7
    %p69 = scmp.ne.s32.totalorder %s64, %s66
    %p70 = scmp.eq.s32.totalorder %s9, 0
    %p71 = por %p69, %p70
    %p72 = scmp.ne.s32.totalorder %s64, %s66
    %p73 = scmp.eq.s32.totalorder %s14, 7
    %p74 = por %p72, %p73
    %p75 = scmp.ne.s32.totalorder %s66, %s67
    %p76 = scmp.eq.s32.totalorder %s14, 0
    %p77 = por %p75, %p76
    %p78 = scmp.ne.s32.totalorder %s66, %s67
    %p79 = scmp.eq.s32.totalorder %s15, 7
    %p80 = por %p78, %p79
    %p82 = scmp.ne.s32.totalorder %s67, %s81
    %p83 = scmp.eq.s32.totalorder %s15, 0
    %p84 = por %p82, %p83
    %s85 = ssub.s32 %s9, %s16
    %p86 = scmp.eq.s32.totalorder %s85, 0
    %s88 = sadd.s32 %s87, 1
    %s89 = scalar_select %p86, %s87, %s88
    %p92 = pneg %p86
    %p93 = scmp.eq.s32.totalorder %s9, 7
    %p94 = por %p92, %p93
    %p95 = scmp.ne.s32.totalorder %s87, %s90
    %p96 = scmp.eq.s32.totalorder %s9, 0
    %p97 = por %p95, %p96
    %p98 = scmp.ne.s32.totalorder %s87, %s90
    %p99 = scmp.eq.s32.totalorder %s14, 7
    %p100 = por %p98, %p99
    %p101 = scmp.ne.s32.totalorder %s90, %s91
    %p102 = scmp.eq.s32.totalorder %s14, 0
    %p103 = por %p101, %p102
    %p104 = scmp.ne.s32.totalorder %s90, %s91
    %p105 = scmp.eq.s32.totalorder %s15, 7
    %p106 = por %p104, %p105
    %p108 = scmp.ne.s32.totalorder %s91, %s107
    %p109 = scmp.eq.s32.totalorder %s15, 0
    %p110 = por %p108, %p109
    %p111 = scmp.le.s32.totalorder 1, %s9
    %p112 = scmp.lt.s32.totalorder %s9, 9
    %p113 = pnand %p111, %p112
    %p114 = pneg %p113
    // Predicated region
    $region9: #{two_branch_net_forward.9} parent=5 // pred_check
      _
    $region10: #{two_branch_net_forward.9} parent=5 // pred_check_branch
      %116 = sbr.rel (%p113) target = $region12
    $region11: #{two_branch_net_forward.9} parent=5 // pred_region
      %s117 = ssub.s32 %s9, 1
      // Predicated region
      $region13: #{two_branch_net_forward.9} parent=11 // pred_check
        %p118 = pneg %p56
      $region14: #{two_branch_net_forward.9} parent=11 // pred_check_branch
        %120 = sbr.rel (%p118) target = $region16
      $region15: #{two_branch_net_forward.9} parent=11 // pred_region
        _
      $region16: #{two_branch_net_forward.9} parent=11 // pred_fallthru
        _
      // Predicated region
      $region17: #{two_branch_net_forward.9} parent=11 // pred_check
        %p121 = pneg %p77
      $region18: #{two_branch_net_forward.9} parent=11 // pred_check_branch
        %123 = sbr.rel (%p121) target = $region20
      $region19: #{two_branch_net_forward.9} parent=11 // pred_region
        _
      $region20: #{two_branch_net_forward.9} parent=11 // pred_fallthru
        _
    $region12: #{two_branch_net_forward.9} parent=5 // pred_fallthru
      _
    %p124 = scmp.lt.s32.totalorder %s9, 8
    // Predicated region
    $region21: #{two_branch_net_forward.9} parent=5 // pred_check
      %p125 = pneg %p124
    $region22: #{two_branch_net_forward.9} parent=5 // pred_check_branch
      %127 = sbr.rel (%p125) target = $region24
    $region23: #{two_branch_net_forward.9} parent=5 // pred_region
      // Predicated region
      $region25: #{two_branch_net_forward.9} parent=23 // pred_check
        %p128 = pneg %p29
      $region26: #{two_branch_net_forward.9} parent=23 // pred_check_branch
        %130 = sbr.rel (%p128) target = $region28
      $region27: #{two_branch_net_forward.9} parent=23 // pred_region
        %s131 = smul.u32 128, %s9
        %p132 = scmp.lt.s32.totalorder %s131, 1023
        %s133 = scalar_select %p132, %s131, 1023
        %s134 = smul.addr %s133, 4
        %s135 = scalar_lea.vmem %s0, %s134
        %s136 = smul.u32 128, %s9
      $region28: #{two_branch_net_forward.9} parent=23 // pred_fallthru
        _
    $region24: #{two_branch_net_forward.9} parent=5 // pred_fallthru
      _
    %p137 = scmp.le.s32.totalorder 1, %s9
    %p138 = scmp.lt.s32.totalorder %s9, 9
    %p139 = pnand %p137, %p138
    %p140 = pneg %p139
    // Predicated region
    $region29: #{two_branch_net_forward.9} parent=5 // pred_check
      _
    $region30: #{two_branch_net_forward.9} parent=5 // pred_check_branch
      %142 = sbr.rel (%p139) target = $region32
    $region31: #{two_branch_net_forward.9} parent=5 // pred_region
      %s143 = ssub.s32 %s9, 1
      %s144 = smul.u32 128, %s14
      %p145 = scmp.lt.s32.totalorder %s144, 1023
      %s146 = scalar_select %p145, %s144, 1023
      %s147 = smul.addr %s146, 4
      %s148 = scalar_lea.vmem %s0, %s147
      %p149 = pneg %p35
      %p150 = pneg %p32
      %p151 = pneg %p56
      %p152 = pneg %p53
      %p153 = pneg %p77
      %p154 = pneg %p74
      %p155 = pneg %p103
      %p156 = pneg %p100
      %s157 = smul.u32 128, %s14
      %p158 = scmp.lt.s32.totalorder %s157, 1023
      %s159 = scalar_select %p158, %s157, 1023
      %s160 = smul.addr %s159, 4
      %s161 = scalar_lea.vmem %s3, %s160
      %s162 = smul.u32 128, %s14
      %p163 = scmp.lt.s32.totalorder %s162, 1023
      %s164 = scalar_select %p163, %s162, 1023
      %s165 = smul.addr %s164, 4
      %s166 = scalar_lea.vmem %s0, %s165
      %s167 = smul.u32 128, %s14
      %s168 = smul.u32 128, %s14
      %p169 = scmp.lt.s32.totalorder %s168, 1023
      %s170 = scalar_select %p169, %s168, 1023
      %s171 = smul.addr %s170, 4
      %s172 = scalar_lea.vmem %s3, %s171
      %s173 = smul.u32 128, %s14
      %v175 = vld [vmem:[%s166] sm:$0xf]
      %v176 = vld [vmem:[%s166 + $0x4] sm:$0xf]
      %v177 = vld [vmem:[%s166 + $0x8] sm:$0xf]
      %v178 = vld [vmem:[%s166 + $0xc] sm:$0xf]
      %v179 = vld [vmem:[%s166 + $0x10] sm:$0xf]
      %v180 = vld [vmem:[%s166 + $0x14] sm:$0xf]
      %v181 = vld [vmem:[%s166 + $0x18] sm:$0xf]
      %v182 = vld [vmem:[%s166 + $0x1c] sm:$0xf]
      %v183 = vld [vmem:[%s166 + $0x20] sm:$0xf]
      %v184 = vld [vmem:[%s166 + $0x24] sm:$0xf]
      %v185 = vld [vmem:[%s166 + $0x28] sm:$0xf]
      %v186 = vld [vmem:[%s166 + $0x2c] sm:$0xf]
      %v187 = vld [vmem:[%s166 + $0x30] sm:$0xf]
      %v188 = vld [vmem:[%s166 + $0x34] sm:$0xf]
      %v189 = vld [vmem:[%s166 + $0x38] sm:$0xf]
      %v190 = vld [vmem:[%s166 + $0x3c] sm:$0xf]
      %v191 = vld [vmem:[%s166 + $0x40] sm:$0xf]
      %v192 = vld [vmem:[%s166 + $0x44] sm:$0xf]
      %v193 = vld [vmem:[%s166 + $0x48] sm:$0xf]
      %v194 = vld [vmem:[%s166 + $0x4c] sm:$0xf]
      %v195 = vld [vmem:[%s166 + $0x50] sm:$0xf]
      %v196 = vld [vmem:[%s166 + $0x54] sm:$0xf]
      %v197 = vld [vmem:[%s166 + $0x58] sm:$0xf]
      %v198 = vld [vmem:[%s166 + $0x5c] sm:$0xf]
      %v199 = vld [vmem:[%s166 + $0x60] sm:$0xf]
      %v200 = vld [vmem:[%s166 + $0x64] sm:$0xf]
      %v201 = vld [vmem:[%s166 + $0x68] sm:$0xf]
      %v202 = vld [vmem:[%s166 + $0x6c] sm:$0xf]
      %v203 = vld [vmem:[%s166 + $0x70] sm:$0xf]
      %v204 = vld [vmem:[%s166 + $0x74] sm:$0xf]
      %v205 = vld [vmem:[%s166 + $0x78] sm:$0xf]
      %v206 = vld [vmem:[%s166 + $0x7c] sm:$0xf]
      %v207 = vld [vmem:[%s166 + $0x80] sm:$0xf]
      %v208 = vld [vmem:[%s166 + $0x84] sm:$0xf]
      %v209 = vld [vmem:[%s166 + $0x88] sm:$0xf]
      %v210 = vld [vmem:[%s166 + $0x8c] sm:$0xf]
      %v211 = vld [vmem:[%s166 + $0x90] sm:$0xf]
      %v212 = vld [vmem:[%s166 + $0x94] sm:$0xf]
      %v213 = vld [vmem:[%s166 + $0x98] sm:$0xf]
      %v214 = vld [vmem:[%s166 + $0x9c] sm:$0xf]
      %v215 = vld [vmem:[%s166 + $0xa0] sm:$0xf]
      %v216 = vld [vmem:[%s166 + $0xa4] sm:$0xf]
      %v217 = vld [vmem:[%s166 + $0xa8] sm:$0xf]
      %v218 = vld [vmem:[%s166 + $0xac] sm:$0xf]
      %v219 = vld [vmem:[%s166 + $0xb0] sm:$0xf]
      %v220 = vld [vmem:[%s166 + $0xb4] sm:$0xf]
      %v221 = vld [vmem:[%s166 + $0xb8] sm:$0xf]
      %v222 = vld [vmem:[%s166 + $0xbc] sm:$0xf]
      %v223 = vld [vmem:[%s166 + $0xc0] sm:$0xf]
      %v224 = vld [vmem:[%s166 + $0xc4] sm:$0xf]
      %v225 = vld [vmem:[%s166 + $0xc8] sm:$0xf]
      %v226 = vld [vmem:[%s166 + $0xcc] sm:$0xf]
      %v227 = vld [vmem:[%s166 + $0xd0] sm:$0xf]
      %v228 = vld [vmem:[%s166 + $0xd4] sm:$0xf]
      %v229 = vld [vmem:[%s166 + $0xd8] sm:$0xf]
      %v230 = vld [vmem:[%s166 + $0xdc] sm:$0xf]
      %v231 = vld [vmem:[%s166 + $0xe0] sm:$0xf]
      %v232 = vld [vmem:[%s166 + $0xe4] sm:$0xf]
      %v233 = vld [vmem:[%s166 + $0xe8] sm:$0xf]
      %v234 = vld [vmem:[%s166 + $0xec] sm:$0xf]
      %v235 = vld [vmem:[%s166 + $0xf0] sm:$0xf]
      %v236 = vld [vmem:[%s166 + $0xf4] sm:$0xf]
      %v237 = vld [vmem:[%s166 + $0xf8] sm:$0xf]
      %v238 = vld [vmem:[%s166 + $0xfc] sm:$0xf]
      %v239 = vld [vmem:[%s166 + $0x100] sm:$0xf]
      %v240 = vld [vmem:[%s166 + $0x104] sm:$0xf]
      %v241 = vld [vmem:[%s166 + $0x108] sm:$0xf]
      %v242 = vld [vmem:[%s166 + $0x10c] sm:$0xf]
      %v243 = vld [vmem:[%s166 + $0x110] sm:$0xf]
      %v244 = vld [vmem:[%s166 + $0x114] sm:$0xf]
      %v245 = vld [vmem:[%s166 + $0x118] sm:$0xf]
      %v246 = vld [vmem:[%s166 + $0x11c] sm:$0xf]
      %v247 = vld [vmem:[%s166 + $0x120] sm:$0xf]
      %v248 = vld [vmem:[%s166 + $0x124] sm:$0xf]
      %v249 = vld [vmem:[%s166 + $0x128] sm:$0xf]
      %v250 = vld [vmem:[%s166 + $0x12c] sm:$0xf]
      %v251 = vld [vmem:[%s166 + $0x130] sm:$0xf]
      %v252 = vld [vmem:[%s166 + $0x134] sm:$0xf]
      %v253 = vld [vmem:[%s166 + $0x138] sm:$0xf]
      %v254 = vld [vmem:[%s166 + $0x13c] sm:$0xf]
      %v255 = vld [vmem:[%s166 + $0x140] sm:$0xf]
      %v256 = vld [vmem:[%s166 + $0x144] sm:$0xf]
      %v257 = vld [vmem:[%s166 + $0x148] sm:$0xf]
      %v258 = vld [vmem:[%s166 + $0x14c] sm:$0xf]
      %v259 = vld [vmem:[%s166 + $0x150] sm:$0xf]
      %v260 = vld [vmem:[%s166 + $0x154] sm:$0xf]
      %v261 = vld [vmem:[%s166 + $0x158] sm:$0xf]
      %v262 = vld [vmem:[%s166 + $0x15c] sm:$0xf]
      %v263 = vld [vmem:[%s166 + $0x160] sm:$0xf]
      %v264 = vld [vmem:[%s166 + $0x164] sm:$0xf]
      %v265 = vld [vmem:[%s166 + $0x168] sm:$0xf]
      %v266 = vld [vmem:[%s166 + $0x16c] sm:$0xf]
      %v267 = vld [vmem:[%s166 + $0x170] sm:$0xf]
      %v268 = vld [vmem:[%s166 + $0x174] sm:$0xf]
      %v269 = vld [vmem:[%s166 + $0x178] sm:$0xf]
      %v270 = vld [vmem:[%s166 + $0x17c] sm:$0xf]
      %v271 = vld [vmem:[%s166 + $0x180] sm:$0xf]
      %v272 = vld [vmem:[%s166 + $0x184] sm:$0xf]
      %v273 = vld [vmem:[%s166 + $0x188] sm:$0xf]
      %v274 = vld [vmem:[%s166 + $0x18c] sm:$0xf]
      %v275 = vld [vmem:[%s166 + $0x190] sm:$0xf]
      %v276 = vld [vmem:[%s166 + $0x194] sm:$0xf]
      %v277 = vld [vmem:[%s166 + $0x198] sm:$0xf]
      %v278 = vld [vmem:[%s166 + $0x19c] sm:$0xf]
      %v279 = vld [vmem:[%s166 + $0x1a0] sm:$0xf]
      %v280 = vld [vmem:[%s166 + $0x1a4] sm:$0xf]
      %v281 = vld [vmem:[%s166 + $0x1a8] sm:$0xf]
      %v282 = vld [vmem:[%s166 + $0x1ac] sm:$0xf]
      %v283 = vld [vmem:[%s166 + $0x1b0] sm:$0xf]
      %v284 = vld [vmem:[%s166 + $0x1b4] sm:$0xf]
      %v285 = vld [vmem:[%s166 + $0x1b8] sm:$0xf]
      %v286 = vld [vmem:[%s166 + $0x1bc] sm:$0xf]
      %v287 = vld [vmem:[%s166 + $0x1c0] sm:$0xf]
      %v288 = vld [vmem:[%s166 + $0x1c4] sm:$0xf]
      %v289 = vld [vmem:[%s166 + $0x1c8] sm:$0xf]
      %v290 = vld [vmem:[%s166 + $0x1cc] sm:$0xf]
      %v291 = vld [vmem:[%s166 + $0x1d0] sm:$0xf]
      %v292 = vld [vmem:[%s166 + $0x1d4] sm:$0xf]
      %v293 = vld [vmem:[%s166 + $0x1d8] sm:$0xf]
      %v294 = vld [vmem:[%s166 + $0x1dc] sm:$0xf]
      %v295 = vld [vmem:[%s166 + $0x1e0] sm:$0xf]
      %v296 = vld [vmem:[%s166 + $0x1e4] sm:$0xf]
      %v297 = vld [vmem:[%s166 + $0x1e8] sm:$0xf]
      %v298 = vld [vmem:[%s166 + $0x1ec] sm:$0xf]
      %v299 = vld [vmem:[%s166 + $0x1f0] sm:$0xf]
      %v300 = vld [vmem:[%s166 + $0x1f4] sm:$0xf]
      %v301 = vld [vmem:[%s166 + $0x1f8] sm:$0xf]
      %v302 = vld [vmem:[%s166 + $0x1fc] sm:$0xf]
      %v303 = vld [vmem:[%s1] sm:$0xf]
      %v304 = vld [vmem:[%s1 + $0x4] sm:$0xf]
      %v305 = vld [vmem:[%s1 + $0x8] sm:$0xf]
      %v306 = vld [vmem:[%s1 + $0xc] sm:$0x3]
      %v307 = vld [vmem:[%s2] sm:$0x1]
      %v309 = vlaneseq
      %v310 = vshrl.u32 %v309, 7
      %v311 = vsub.s32 0, %v310
      %v312 = vrot.slane %v307, %v311
      %v442 = vunpack.c.l.b16 %v175
      %v443 = vunpack.c.l.b16 %v176
      %v444 = vunpack.c.l.b16 %v177
      %v445 = vunpack.c.l.b16 %v178
      %v446 = vunpack.c.l.b16 %v179
      %v447 = vunpack.c.l.b16 %v180
      %v448 = vunpack.c.l.b16 %v181
      %v449 = vunpack.c.l.b16 %v182
      %v450 = vunpack.c.l.b16 %v183
      %v451 = vunpack.c.l.b16 %v184
      %v452 = vunpack.c.l.b16 %v185
      %v453 = vunpack.c.l.b16 %v186
      %v454 = vunpack.c.l.b16 %v187
      %v455 = vunpack.c.l.b16 %v188
      %v456 = vunpack.c.l.b16 %v189
      %v457 = vunpack.c.l.b16 %v190
      %v458 = vunpack.c.l.b16 %v191
      %v459 = vunpack.c.l.b16 %v192
      %v460 = vunpack.c.l.b16 %v193
      %v461 = vunpack.c.l.b16 %v194
      %v462 = vunpack.c.l.b16 %v195
      %v463 = vunpack.c.l.b16 %v196
      %v464 = vunpack.c.l.b16 %v197
      %v465 = vunpack.c.l.b16 %v198
      %v466 = vunpack.c.l.b16 %v199
      %v467 = vunpack.c.l.b16 %v200
      %v468 = vunpack.c.l.b16 %v201
      %v469 = vunpack.c.l.b16 %v202
      %v470 = vunpack.c.l.b16 %v203
      %v471 = vunpack.c.l.b16 %v204
      %v472 = vunpack.c.l.b16 %v205
      %v473 = vunpack.c.l.b16 %v206
      %v474 = vunpack.c.l.b16 %v207
      %v475 = vunpack.c.l.b16 %v208
      %v476 = vunpack.c.l.b16 %v209
      %v477 = vunpack.c.l.b16 %v210
      %v478 = vunpack.c.l.b16 %v211
      %v479 = vunpack.c.l.b16 %v212
      %v480 = vunpack.c.l.b16 %v213
      %v481 = vunpack.c.l.b16 %v214
      %v482 = vunpack.c.l.b16 %v215
      %v483 = vunpack.c.l.b16 %v216
      %v484 = vunpack.c.l.b16 %v217
      %v485 = vunpack.c.l.b16 %v218
      %v486 = vunpack.c.l.b16 %v219
      %v487 = vunpack.c.l.b16 %v220
      %v488 = vunpack.c.l.b16 %v221
      %v489 = vunpack.c.l.b16 %v222
      %v490 = vunpack.c.l.b16 %v223
      %v491 = vunpack.c.l.b16 %v224
      %v492 = vunpack.c.l.b16 %v225
      %v493 = vunpack.c.l.b16 %v226
      %v494 = vunpack.c.l.b16 %v227
      %v495 = vunpack.c.l.b16 %v228
      %v496 = vunpack.c.l.b16 %v229
      %v497 = vunpack.c.l.b16 %v230
      %v498 = vunpack.c.l.b16 %v231
      %v499 = vunpack.c.l.b16 %v232
      %v500 = vunpack.c.l.b16 %v233
      %v501 = vunpack.c.l.b16 %v234
      %v502 = vunpack.c.l.b16 %v235
      %v503 = vunpack.c.l.b16 %v236
      %v504 = vunpack.c.l.b16 %v237
      %v505 = vunpack.c.l.b16 %v238
      %v506 = vunpack.c.l.b16 %v239
      %v507 = vunpack.c.l.b16 %v240
      %v508 = vunpack.c.l.b16 %v241
      %v509 = vunpack.c.l.b16 %v242
      %v510 = vunpack.c.l.b16 %v243
      %v511 = vunpack.c.l.b16 %v244
      %v512 = vunpack.c.l.b16 %v245
      %v513 = vunpack.c.l.b16 %v246
      %v514 = vunpack.c.l.b16 %v247
      %v515 = vunpack.c.l.b16 %v248
      %v516 = vunpack.c.l.b16 %v249
      %v517 = vunpack.c.l.b16 %v250
      %v518 = vunpack.c.l.b16 %v251
      %v519 = vunpack.c.l.b16 %v252
      %v520 = vunpack.c.l.b16 %v253
      %v521 = vunpack.c.l.b16 %v254
      %v522 = vunpack.c.l.b16 %v255
      %v523 = vunpack.c.l.b16 %v256
      %v524 = vunpack.c.l.b16 %v257
      %v525 = vunpack.c.l.b16 %v258
      %v526 = vunpack.c.l.b16 %v259
      %v527 = vunpack.c.l.b16 %v260
      %v528 = vunpack.c.l.b16 %v261
      %v529 = vunpack.c.l.b16 %v262
      %v530 = vunpack.c.l.b16 %v263
      %v531 = vunpack.c.l.b16 %v264
      %v532 = vunpack.c.l.b16 %v265
      %v533 = vunpack.c.l.b16 %v266
      %v534 = vunpack.c.l.b16 %v267
      %v535 = vunpack.c.l.b16 %v268
      %v536 = vunpack.c.l.b16 %v269
      %v537 = vunpack.c.l.b16 %v270
      %v538 = vunpack.c.l.b16 %v271
      %v539 = vunpack.c.l.b16 %v272
      %v540 = vunpack.c.l.b16 %v273
      %v541 = vunpack.c.l.b16 %v274
      %v542 = vunpack.c.l.b16 %v275
      %v543 = vunpack.c.l.b16 %v276
      %v544 = vunpack.c.l.b16 %v277
      %v545 = vunpack.c.l.b16 %v278
      %v546 = vunpack.c.l.b16 %v279
      %v547 = vunpack.c.l.b16 %v280
      %v548 = vunpack.c.l.b16 %v281
      %v549 = vunpack.c.l.b16 %v282
      %v550 = vunpack.c.l.b16 %v283
      %v551 = vunpack.c.l.b16 %v284
      %v552 = vunpack.c.l.b16 %v285
      %v553 = vunpack.c.l.b16 %v286
      %v554 = vunpack.c.l.b16 %v287
      %v555 = vunpack.c.l.b16 %v288
      %v556 = vunpack.c.l.b16 %v289
      %v557 = vunpack.c.l.b16 %v290
      %v558 = vunpack.c.l.b16 %v291
      %v559 = vunpack.c.l.b16 %v292
      %v560 = vunpack.c.l.b16 %v293
      %v561 = vunpack.c.l.b16 %v294
      %v562 = vunpack.c.l.b16 %v295
      %v563 = vunpack.c.l.b16 %v296
      %v564 = vunpack.c.l.b16 %v297
      %v565 = vunpack.c.l.b16 %v298
      %v566 = vunpack.c.l.b16 %v299
      %v567 = vunpack.c.l.b16 %v300
      %v568 = vunpack.c.l.b16 %v301
      %v569 = vunpack.c.l.b16 %v302
      %v570 = vpack.c.b16 %v443, %v442
      %v571 = vpack.c.b16 %v445, %v444
      %v572 = vpack.c.b16 %v447, %v446
      %v573 = vpack.c.b16 %v449, %v448
      %v574 = vpack.c.b16 %v451, %v450
      %v575 = vpack.c.b16 %v453, %v452
      %v576 = vpack.c.b16 %v455, %v454
      %v577 = vpack.c.b16 %v457, %v456
      %v578 = vpack.c.b16 %v459, %v458
      %v579 = vpack.c.b16 %v461, %v460
      %v580 = vpack.c.b16 %v463, %v462
      %v581 = vpack.c.b16 %v465, %v464
      %v582 = vpack.c.b16 %v467, %v466
      %v583 = vpack.c.b16 %v469, %v468
      %v584 = vpack.c.b16 %v471, %v470
      %v585 = vpack.c.b16 %v473, %v472
      %v586 = vpack.c.b16 %v475, %v474
      %v587 = vpack.c.b16 %v477, %v476
      %v588 = vpack.c.b16 %v479, %v478
      %v589 = vpack.c.b16 %v481, %v480
      %v590 = vpack.c.b16 %v483, %v482
      %v591 = vpack.c.b16 %v485, %v484
      %v592 = vpack.c.b16 %v487, %v486
      %v593 = vpack.c.b16 %v489, %v488
      %v594 = vpack.c.b16 %v491, %v490
      %v595 = vpack.c.b16 %v493, %v492
      %v596 = vpack.c.b16 %v495, %v494
      %v597 = vpack.c.b16 %v497, %v496
      %v598 = vpack.c.b16 %v499, %v498
      %v599 = vpack.c.b16 %v501, %v500
      %v600 = vpack.c.b16 %v503, %v502
      %v601 = vpack.c.b16 %v505, %v504
      %v602 = vpack.c.b16 %v507, %v506
      %v603 = vpack.c.b16 %v509, %v508
      %v604 = vpack.c.b16 %v511, %v510
      %v605 = vpack.c.b16 %v513, %v512
      %v606 = vpack.c.b16 %v515, %v514
      %v607 = vpack.c.b16 %v517, %v516
      %v608 = vpack.c.b16 %v519, %v518
      %v609 = vpack.c.b16 %v521, %v520
      %v610 = vpack.c.b16 %v523, %v522
      %v611 = vpack.c.b16 %v525, %v524
      %v612 = vpack.c.b16 %v527, %v526
      %v613 = vpack.c.b16 %v529, %v528
      %v614 = vpack.c.b16 %v531, %v530
      %v615 = vpack.c.b16 %v533, %v532
      %v616 = vpack.c.b16 %v535, %v534
      %v617 = vpack.c.b16 %v537, %v536
      %v618 = vpack.c.b16 %v539, %v538
      %v619 = vpack.c.b16 %v541, %v540
      %v620 = vpack.c.b16 %v543, %v542
      %v621 = vpack.c.b16 %v545, %v544
      %v622 = vpack.c.b16 %v547, %v546
      %v623 = vpack.c.b16 %v549, %v548
      %v624 = vpack.c.b16 %v551, %v550
      %v625 = vpack.c.b16 %v553, %v552
      %v626 = vpack.c.b16 %v555, %v554
      %v627 = vpack.c.b16 %v557, %v556
      %v628 = vpack.c.b16 %v559, %v558
      %v629 = vpack.c.b16 %v561, %v560
      %v630 = vpack.c.b16 %v563, %v562
      %v631 = vpack.c.b16 %v565, %v564
      %v632 = vpack.c.b16 %v567, %v566
      %v633 = vpack.c.b16 %v569, %v568
      %v638 = vunpack.c.l.b16 %v303
      %v639 = vunpack.c.l.b16 %v304
      %v640 = vunpack.c.l.b16 %v305
      %v641 = vunpack.c.l.b16 %v306
      %v642 = vpack.c.b16 %v639, %v638
      %v643 = vpack.c.b16 %v641, %v640
      %vm645 = vcmask 220160
      %v647 = vsel %vm645, %v570, 0
      %v650 = vsel %vm645, %v571, 0
      %v653 = vsel %vm645, %v572, 0
      %v656 = vsel %vm645, %v573, 0
      %v659 = vsel %vm645, %v574, 0
      %v662 = vsel %vm645, %v575, 0
      %v665 = vsel %vm645, %v576, 0
      %v668 = vsel %vm645, %v577, 0
      %v671 = vsel %vm645, %v578, 0
      %v674 = vsel %vm645, %v579, 0
      %v677 = vsel %vm645, %v580, 0
      %v680 = vsel %vm645, %v581, 0
      %v683 = vsel %vm645, %v582, 0
      %v686 = vsel %vm645, %v583, 0
      %v689 = vsel %vm645, %v584, 0
      %v692 = vsel %vm645, %v585, 0
      %v695 = vsel %vm645, %v586, 0
      %v698 = vsel %vm645, %v587, 0
      %v701 = vsel %vm645, %v588, 0
      %v704 = vsel %vm645, %v589, 0
      %v707 = vsel %vm645, %v590, 0
      %v710 = vsel %vm645, %v591, 0
      %v713 = vsel %vm645, %v592, 0
      %v716 = vsel %vm645, %v593, 0
      %v719 = vsel %vm645, %v594, 0
      %v722 = vsel %vm645, %v595, 0
      %v725 = vsel %vm645, %v596, 0
      %v728 = vsel %vm645, %v597, 0
      %v731 = vsel %vm645, %v598, 0
      %v734 = vsel %vm645, %v599, 0
      %v737 = vsel %vm645, %v600, 0
      %v740 = vsel %vm645, %v601, 0
      %v743 = vsel %vm645, %v602, 0
      %v746 = vsel %vm645, %v603, 0
      %v749 = vsel %vm645, %v604, 0
      %v752 = vsel %vm645, %v605, 0
      %v755 = vsel %vm645, %v606, 0
      %v758 = vsel %vm645, %v607, 0
      %v761 = vsel %vm645, %v608, 0
      %v764 = vsel %vm645, %v609, 0
      %v767 = vsel %vm645, %v610, 0
      %v770 = vsel %vm645, %v611, 0
      %v773 = vsel %vm645, %v612, 0
      %v776 = vsel %vm645, %v613, 0
      %v779 = vsel %vm645, %v614, 0
      %v782 = vsel %vm645, %v615, 0
      %v785 = vsel %vm645, %v616, 0
      %v788 = vsel %vm645, %v617, 0
      %v791 = vsel %vm645, %v618, 0
      %v794 = vsel %vm645, %v619, 0
      %v797 = vsel %vm645, %v620, 0
      %v800 = vsel %vm645, %v621, 0
      %v803 = vsel %vm645, %v622, 0
      %v806 = vsel %vm645, %v623, 0
      %v809 = vsel %vm645, %v624, 0
      %v812 = vsel %vm645, %v625, 0
      %v815 = vsel %vm645, %v626, 0
      %v818 = vsel %vm645, %v627, 0
      %v821 = vsel %vm645, %v628, 0
      %v824 = vsel %vm645, %v629, 0
      %v827 = vsel %vm645, %v630, 0
      %v830 = vsel %vm645, %v631, 0
      %v833 = vsel %vm645, %v632, 0
      %v836 = vsel %vm645, %v633, 0
      %vm838 = vcmask 1044480
      %vm839 = vcmask 1045504
      %v840 = vsel %vm838, 4294967295, 65535
      %v841 = vsel %vm839, %v840, 0
      %v843 = vand.u32 %v643, %v841
      %845 = vmatprep.subr.bf16.mxu0 0
      %846 = vmatpush1.bf16.msra.mxu0 %v642
      %847 = vmatprep.subr.bf16.mxu0 0
      %848 = vmatpush1.bf16.msra.mxu0 %v843
      %849 = vmatprep.subr.bf16.mxu0 0
      %850 = vmatpush1.bf16.msra.mxu0 0
      %851 = vmatprep.subr.bf16.mxu0 0
      %852 = vmatpush1.bf16.msra.mxu0 0
      %853 = vmatprep.subr.bf16.mxu0 0
      %854 = vmatpush1.bf16.msra.mxu0 0
      %855 = vmatprep.subr.bf16.mxu0 0
      %856 = vmatpush1.bf16.msra.mxu0 0
      %857 = vmatprep.subr.bf16.mxu0 0
      %858 = vmatpush1.bf16.msra.mxu0 0
      %859 = vmatprep.subr.bf16.mxu0 0
      %860 = vmatpush1.bf16.msra.mxu0 0
      %861 = vmatprep.subr.bf16.mxu0 0
      %862 = vmatpush1.bf16.msra.mxu0 0
      %863 = vmatprep.subr.bf16.mxu0 0
      %864 = vmatpush1.bf16.msra.mxu0 0
      %865 = vmatprep.subr.bf16.mxu0 0
      %866 = vmatpush1.bf16.msra.mxu0 0
      %867 = vmatprep.subr.bf16.mxu0 0
      %868 = vmatpush1.bf16.msra.mxu0 0
      %869 = vmatprep.subr.bf16.mxu0 0
      %870 = vmatpush1.bf16.msra.mxu0 0
      %871 = vmatprep.subr.bf16.mxu0 0
      %872 = vmatpush1.bf16.msra.mxu0 0
      %873 = vmatprep.subr.bf16.mxu0 0
      %874 = vmatpush1.bf16.msra.mxu0 0
      %875 = vmatprep.subr.bf16.mxu0 0
      %876 = vmatpush1.bf16.msra.mxu0 0
      %877 = vmatprep.mubr.bf16.mxu0 0
      %878 = vmatmul.mubr.bf16.gmra.mrb[0].mxu0 %v647
      %v879 = vpop.f32.mrb[0].mxu0
      %v880 = vadd.f32 %v312, %v879
      %v881 = vpop.f32.mrb[0].mxu0
      %v882 = vpop.f32.mrb[0].mxu0
      %v883 = vadd.f32 %v312, %v882
      %v884 = vpop.f32.mrb[0].mxu0
      %885 = vmatprep.mubr.bf16.mxu0 0
      %886 = vmatmul.mubr.bf16.gmra.mrb[0].mxu0 %v650
      %v887 = vpop.f32.mrb[0].mxu0
      %v888 = vadd.f32 %v312, %v887
      %v889 = vpop.f32.mrb[0].mxu0
      %v890 = vpop.f32.mrb[0].mxu0
      %v891 = vadd.f32 %v312, %v890
      %v892 = vpop.f32.mrb[0].mxu0
      %893 = vmatprep.mubr.bf16.mxu0 0
      %894 = vmatmul.mubr.bf16.gmra.mrb[0].mxu0 %v653
      %v895 = vpop.f32.mrb[0].mxu0
      %v896 = vadd.f32 %v312, %v895
      %v897 = vpop.f32.mrb[0].mxu0
      %v898 = vpop.f32.mrb[0].mxu0
      %v899 = vadd.f32 %v312, %v898
      %v900 = vpop.f32.mrb[0].mxu0
      %901 = vmatprep.mubr.bf16.mxu0 0
      %902 = vmatmul.mubr.bf16.gmra.mrb[0].mxu0 %v656
      %v903 = vpop.f32.mrb[0].mxu0
      %v904 = vadd.f32 %v312, %v903
      %v905 = vpop.f32.mrb[0].mxu0
      %v906 = vpop.f32.mrb[0].mxu0
      %v907 = vadd.f32 %v312, %v906
      %v908 = vpop.f32.mrb[0].mxu0
      %909 = vmatprep.mubr.bf16.mxu0 0
      %910 = vmatmul.mubr.bf16.gmra.mrb[0].mxu0 %v659
      %v911 = vpop.f32.mrb[0].mxu0
      %v912 = vadd.f32 %v312, %v911
      %v913 = vpop.f32.mrb[0].mxu0
      %v914 = vpop.f32.mrb[0].mxu0
      %v915 = vadd.f32 %v312, %v914
      %v916 = vpop.f32.mrb[0].mxu0
      %917 = vmatprep.mubr.bf16.mxu0 0
      %918 = vmatmul.mubr.bf16.gmra.mrb[0].mxu0 %v662
      %v919 = vpop.f32.mrb[0].mxu0
      %v920 = vadd.f32 %v312, %v919
      %v921 = vpop.f32.mrb[0].mxu0
      %v922 = vpop.f32.mrb[0].mxu0
      %v923 = vadd.f32 %v312, %v922
      %v924 = vpop.f32.mrb[0].mxu0
      %925 = vmatprep.mubr.bf16.mxu0 0
      %926 = vmatmul.mubr.bf16.gmra.mrb[0].mxu0 %v665
      %v927 = vpop.f32.mrb[0].mxu0
      %v928 = vadd.f32 %v312, %v927
      %v929 = vpop.f32.mrb[0].mxu0
      %v930 = vpop.f32.mrb[0].mxu0
      %v931 = vadd.f32 %v312, %v930
      %v932 = vpop.f32.mrb[0].mxu0
      %933 = vmatprep.mubr.bf16.mxu0 0
      %934 = vmatmul.mubr.bf16.gmra.mrb[0].mxu0 %v668
      %v935 = vpop.f32.mrb[0].mxu0
      %v936 = vadd.f32 %v312, %v935
      %v937 = vpop.f32.mrb[0].mxu0
      %v938 = vpop.f32.mrb[0].mxu0
      %v939 = vadd.f32 %v312, %v938
      %v940 = vpop.f32.mrb[0].mxu0
      %941 = vmatprep.mubr.bf16.mxu0 0
      %942 = vmatmul.mubr.bf16.gmra.mrb[0].mxu0 %v671
      %v943 = vpop.f32.mrb[0].mxu0
      %v944 = vadd.f32 %v312, %v943
      %v945 = vpop.f32.mrb[0].mxu0
      %v946 = vpop.f32.mrb[0].mxu0
      %v947 = vadd.f32 %v312, %v946
      %v948 = vpop.f32.mrb[0].mxu0
      %949 = vmatprep.mubr.bf16.mxu0 0
      %950 = vmatmul.mubr.bf16.gmra.mrb[0].mxu0 %v674
      %v951 = vpop.f32.mrb[0].mxu0
      %v952 = vadd.f32 %v312, %v951
      %v953 = vpop.f32.mrb[0].mxu0
      %v954 = vpop.f32.mrb[0].mxu0
      %v955 = vadd.f32 %v312, %v954
      %v956 = vpop.f32.mrb[0].mxu0
      %957 = vmatprep.mubr.bf16.mxu0 0
      %958 = vmatmul.mubr.bf16.gmra.mrb[0].mxu0 %v677
      %v959 = vpop.f32.mrb[0].mxu0
      %v960 = vadd.f32 %v312, %v959
      %v961 = vpop.f32.mrb[0].mxu0
      %v962 = vpop.f32.mrb[0].mxu0
      %v963 = vadd.f32 %v312, %v962
      %v964 = vpop.f32.mrb[0].mxu0
      %965 = vmatprep.mubr.bf16.mxu0 0
      %966 = vmatmul.mubr.bf16.gmra.mrb[0].mxu0 %v680
      %v967 = vpop.f32.mrb[0].mxu0
      %v968 = vadd.f32 %v312, %v967
      %v969 = vpop.f32.mrb[0].mxu0
      %v970 = vpop.f32.mrb[0].mxu0
      %v971 = vadd.f32 %v312, %v970
      %v972 = vpop.f32.mrb[0].mxu0
      %973 = vmatprep.mubr.bf16.mxu0 0
      %974 = vmatmul.mubr.bf16.gmra.mrb[0].mxu0 %v683
      %v975 = vpop.f32.mrb[0].mxu0
      %v976 = vadd.f32 %v312, %v975
      %v977 = vpop.f32.mrb[0].mxu0
      %v978 = vpop.f32.mrb[0].mxu0
      %v979 = vadd.f32 %v312, %v978
      %v980 = vpop.f32.mrb[0].mxu0
      %981 = vmatprep.mubr.bf16.mxu0 0
      %982 = vmatmul.mubr.bf16.gmra.mrb[0].mxu0 %v686
      %v983 = vpop.f32.mrb[0].mxu0
      %v984 = vadd.f32 %v312, %v983
      %v985 = vpop.f32.mrb[0].mxu0
      %v986 = vpop.f32.mrb[0].mxu0
      %v987 = vadd.f32 %v312, %v986
      %v988 = vpop.f32.mrb[0].mxu0
      %989 = vmatprep.mubr.bf16.mxu0 0
      %990 = vmatmul.mubr.bf16.gmra.mrb[0].mxu0 %v689
      %v991 = vpop.f32.mrb[0].mxu0
      %v992 = vadd.f32 %v312, %v991
      %v993 = vpop.f32.mrb[0].mxu0
      %v994 = vpop.f32.mrb[0].mxu0
      %v995 = vadd.f32 %v312, %v994
      %v996 = vpop.f32.mrb[0].mxu0
      %997 = vmatprep.mubr.bf16.mxu0 0
      %998 = vmatmul.mubr.bf16.gmra.mrb[0].mxu0 %v692
      %v999 = vpop.f32.mrb[0].mxu0
      %v1000 = vadd.f32 %v312, %v999
      %v1001 = vpop.f32.mrb[0].mxu0
      %v1002 = vpop.f32.mrb[0].mxu0
      %v1003 = vadd.f32 %v312, %v1002
      %v1004 = vpop.f32.mrb[0].mxu0
      %1005 = vmatprep.mubr.bf16.mxu0 0
      %1006 = vmatmul.mubr.bf16.gmra.mrb[0].mxu0 %v695
      %v1007 = vpop.f32.mrb[0].mxu0
      %v1008 = vadd.f32 %v312, %v1007
      %v1009 = vpop.f32.mrb[0].mxu0
      %v1010 = vpop.f32.mrb[0].mxu0
      %v1011 = vadd.f32 %v312, %v1010
      %v1012 = vpop.f32.mrb[0].mxu0
      %1013 = vmatprep.mubr.bf16.mxu0 0
      %1014 = vmatmul.mubr.bf16.gmra.mrb[0].mxu0 %v698
      %v1015 = vpop.f32.mrb[0].mxu0
      %v1016 = vadd.f32 %v312, %v1015
      %v1017 = vpop.f32.mrb[0].mxu0
      %v1018 = vpop.f32.mrb[0].mxu0
      %v1019 = vadd.f32 %v312, %v1018
      %v1020 = vpop.f32.mrb[0].mxu0
      %1021 = vmatprep.mubr.bf16.mxu0 0
      %1022 = vmatmul.mubr.bf16.gmra.mrb[0].mxu0 %v701
      %v1023 = vpop.f32.mrb[0].mxu0
      %v1024 = vadd.f32 %v312, %v1023
      %v1025 = vpop.f32.mrb[0].mxu0
      %v1026 = vpop.f32.mrb[0].mxu0
      %v1027 = vadd.f32 %v312, %v1026
      %v1028 = vpop.f32.mrb[0].mxu0
      %1029 = vmatprep.mubr.bf16.mxu0 0
      %1030 = vmatmul.mubr.bf16.gmra.mrb[0].mxu0 %v704
      %v1031 = vpop.f32.mrb[0].mxu0
      %v1032 = vadd.f32 %v312, %v1031
      %v1033 = vpop.f32.mrb[0].mxu0
      %v1034 = vpop.f32.mrb[0].mxu0
      %v1035 = vadd.f32 %v312, %v1034
      %v1036 = vpop.f32.mrb[0].mxu0
      %1037 = vmatprep.mubr.bf16.mxu0 0
      %1038 = vmatmul.mubr.bf16.gmra.mrb[0].mxu0 %v707
      %v1039 = vpop.f32.mrb[0].mxu0
      %v1040 = vadd.f32 %v312, %v1039
      %v1041 = vpop.f32.mrb[0].mxu0
      %v1042 = vpop.f32.mrb[0].mxu0
      %v1043 = vadd.f32 %v312, %v1042
      %v1044 = vpop.f32.mrb[0].mxu0
      %1045 = vmatprep.mubr.bf16.mxu0 0
      %1046 = vmatmul.mubr.bf16.gmra.mrb[0].mxu0 %v710
      %v1047 = vpop.f32.mrb[0].mxu0
      %v1048 = vadd.f32 %v312, %v1047
      %v1049 = vpop.f32.mrb[0].mxu0
      %v1050 = vpop.f32.mrb[0].mxu0
      %v1051 = vadd.f32 %v312, %v1050
      %v1052 = vpop.f32.mrb[0].mxu0
      %1053 = vmatprep.mubr.bf16.mxu0 0
      %1054 = vmatmul.mubr.bf16.gmra.mrb[0].mxu0 %v713
      %v1055 = vpop.f32.mrb[0].mxu0
      %v1056 = vadd.f32 %v312, %v1055
      %v1057 = vpop.f32.mrb[0].mxu0
      %v1058 = vpop.f32.mrb[0].mxu0
      %v1059 = vadd.f32 %v312, %v1058
      %v1060 = vpop.f32.mrb[0].mxu0
      %1061 = vmatprep.mubr.bf16.mxu0 0
      %1062 = vmatmul.mubr.bf16.gmra.mrb[0].mxu0 %v716
      %v1063 = vpop.f32.mrb[0].mxu0
      %v1064 = vadd.f32 %v312, %v1063
      %v1065 = vpop.f32.mrb[0].mxu0
      %v1066 = vpop.f32.mrb[0].mxu0
      %v1067 = vadd.f32 %v312, %v1066
      %v1068 = vpop.f32.mrb[0].mxu0
      %1069 = vmatprep.mubr.bf16.mxu0 0
      %1070 = vmatmul.mubr.bf16.gmra.mrb[0].mxu0 %v719
      %v1071 = vpop.f32.mrb[0].mxu0
      %v1072 = vadd.f32 %v312, %v1071
      %v1073 = vpop.f32.mrb[0].mxu0
      %v1074 = vpop.f32.mrb[0].mxu0
      %v1075 = vadd.f32 %v312, %v1074
      %v1076 = vpop.f32.mrb[0].mxu0
      %1077 = vmatprep.mubr.bf16.mxu0 0
      %1078 = vmatmul.mubr.bf16.gmra.mrb[0].mxu0 %v722
      %v1079 = vpop.f32.mrb[0].mxu0
      %v1080 = vadd.f32 %v312, %v1079
      %v1081 = vpop.f32.mrb[0].mxu0
      %v1082 = vpop.f32.mrb[0].mxu0
      %v1083 = vadd.f32 %v312, %v1082
      %v1084 = vpop.f32.mrb[0].mxu0
      %1085 = vmatprep.mubr.bf16.mxu0 0
      %1086 = vmatmul.mubr.bf16.gmra.mrb[0].mxu0 %v725
      %v1087 = vpop.f32.mrb[0].mxu0
      %v1088 = vadd.f32 %v312, %v1087
      %v1089 = vpop.f32.mrb[0].mxu0
      %v1090 = vpop.f32.mrb[0].mxu0
      %v1091 = vadd.f32 %v312, %v1090
      %v1092 = vpop.f32.mrb[0].mxu0
      %1093 = vmatprep.mubr.bf16.mxu0 0
      %1094 = vmatmul.mubr.bf16.gmra.mrb[0].mxu0 %v728
      %v1095 = vpop.f32.mrb[0].mxu0
      %v1096 = vadd.f32 %v312, %v1095
      %v1097 = vpop.f32.mrb[0].mxu0
      %v1098 = vpop.f32.mrb[0].mxu0
      %v1099 = vadd.f32 %v312, %v1098
      %v1100 = vpop.f32.mrb[0].mxu0
      %1101 = vmatprep.mubr.bf16.mxu0 0
      %1102 = vmatmul.mubr.bf16.gmra.mrb[0].mxu0 %v731
      %v1103 = vpop.f32.mrb[0].mxu0
      %v1104 = vadd.f32 %v312, %v1103
      %v1105 = vpop.f32.mrb[0].mxu0
      %v1106 = vpop.f32.mrb[0].mxu0
      %v1107 = vadd.f32 %v312, %v1106
      %v1108 = vpop.f32.mrb[0].mxu0
      %1109 = vmatprep.mubr.bf16.mxu0 0
      %1110 = vmatmul.mubr.bf16.gmra.mrb[0].mxu0 %v734
      %v1111 = vpop.f32.mrb[0].mxu0
      %v1112 = vadd.f32 %v312, %v1111
      %v1113 = vpop.f32.mrb[0].mxu0
      %v1114 = vpop.f32.mrb[0].mxu0
      %v1115 = vadd.f32 %v312, %v1114
      %v1116 = vpop.f32.mrb[0].mxu0
      %1117 = vmatprep.mubr.bf16.mxu0 0
      %1118 = vmatmul.mubr.bf16.gmra.mrb[0].mxu0 %v737
      %v1119 = vpop.f32.mrb[0].mxu0
      %v1120 = vadd.f32 %v312, %v1119
      %v1121 = vpop.f32.mrb[0].mxu0
      %v1122 = vpop.f32.mrb[0].mxu0
      %v1123 = vadd.f32 %v312, %v1122
      %v1124 = vpop.f32.mrb[0].mxu0
      %1125 = vmatprep.mubr.bf16.mxu0 0
      %1126 = vmatmul.mubr.bf16.gmra.mrb[0].mxu0 %v740
      %v1127 = vpop.f32.mrb[0].mxu0
      %v1128 = vadd.f32 %v312, %v1127
      %v1129 = vpop.f32.mrb[0].mxu0
      %v1130 = vpop.f32.mrb[0].mxu0
      %v1131 = vadd.f32 %v312, %v1130
      %v1132 = vpop.f32.mrb[0].mxu0
      %1133 = vmatprep.mubr.bf16.mxu0 0
      %1134 = vmatmul.mubr.bf16.gmra.mrb[0].mxu0 %v743
      %v1135 = vpop.f32.mrb[0].mxu0
      %v1136 = vadd.f32 %v312, %v1135
      %v1137 = vpop.f32.mrb[0].mxu0
      %v1138 = vpop.f32.mrb[0].mxu0
      %v1139 = vadd.f32 %v312, %v1138
      %v1140 = vpop.f32.mrb[0].mxu0
      %1141 = vmatprep.mubr.bf16.mxu0 0
      %1142 = vmatmul.mubr.bf16.gmra.mrb[0].mxu0 %v746
      %v1143 = vpop.f32.mrb[0].mxu0
      %v1144 = vadd.f32 %v312, %v1143
      %v1145 = vpop.f32.mrb[0].mxu0
      %v1146 = vpop.f32.mrb[0].mxu0
      %v1147 = vadd.f32 %v312, %v1146
      %v1148 = vpop.f32.mrb[0].mxu0
      %1149 = vmatprep.mubr.bf16.mxu0 0
      %1150 = vmatmul.mubr.bf16.gmra.mrb[0].mxu0 %v749
      %v1151 = vpop.f32.mrb[0].mxu0
      %v1152 = vadd.f32 %v312, %v1151
      %v1153 = vpop.f32.mrb[0].mxu0
      %v1154 = vpop.f32.mrb[0].mxu0
      %v1155 = vadd.f32 %v312, %v1154
      %v1156 = vpop.f32.mrb[0].mxu0
      %1157 = vmatprep.mubr.bf16.mxu0 0
      %1158 = vmatmul.mubr.bf16.gmra.mrb[0].mxu0 %v752
      %v1159 = vpop.f32.mrb[0].mxu0
      %v1160 = vadd.f32 %v312, %v1159
      %v1161 = vpop.f32.mrb[0].mxu0
      %v1162 = vpop.f32.mrb[0].mxu0
      %v1163 = vadd.f32 %v312, %v1162
      %v1164 = vpop.f32.mrb[0].mxu0
      %1165 = vmatprep.mubr.bf16.mxu0 0
      %1166 = vmatmul.mubr.bf16.gmra.mrb[0].mxu0 %v755
      %v1167 = vpop.f32.mrb[0].mxu0
      %v1168 = vadd.f32 %v312, %v1167
      %v1169 = vpop.f32.mrb[0].mxu0
      %v1170 = vpop.f32.mrb[0].mxu0
      %v1171 = vadd.f32 %v312, %v1170
      %v1172 = vpop.f32.mrb[0].mxu0
      %1173 = vmatprep.mubr.bf16.mxu0 0
      %1174 = vmatmul.mubr.bf16.gmra.mrb[0].mxu0 %v758
      %v1175 = vpop.f32.mrb[0].mxu0
      %v1176 = vadd.f32 %v312, %v1175
      %v1177 = vpop.f32.mrb[0].mxu0
      %v1178 = vpop.f32.mrb[0].mxu0
      %v1179 = vadd.f32 %v312, %v1178
      %v1180 = vpop.f32.mrb[0].mxu0
      %1181 = vmatprep.mubr.bf16.mxu0 0
      %1182 = vmatmul.mubr.bf16.gmra.mrb[0].mxu0 %v761
      %v1183 = vpop.f32.mrb[0].mxu0
      %v1184 = vadd.f32 %v312, %v1183
      %v1185 = vpop.f32.mrb[0].mxu0
      %v1186 = vpop.f32.mrb[0].mxu0
      %v1187 = vadd.f32 %v312, %v1186
      %v1188 = vpop.f32.mrb[0].mxu0
      %1189 = vmatprep.mubr.bf16.mxu0 0
      %1190 = vmatmul.mubr.bf16.gmra.mrb[0].mxu0 %v764
      %v1191 = vpop.f32.mrb[0].mxu0
      %v1192 = vadd.f32 %v312, %v1191
      %v1193 = vpop.f32.mrb[0].mxu0
      %v1194 = vpop.f32.mrb[0].mxu0
      %v1195 = vadd.f32 %v312, %v1194
      %v1196 = vpop.f32.mrb[0].mxu0
      %1197 = vmatprep.mubr.bf16.mxu0 0
      %1198 = vmatmul.mubr.bf16.gmra.mrb[0].mxu0 %v767
      %v1199 = vpop.f32.mrb[0].mxu0
      %v1200 = vadd.f32 %v312, %v1199
      %v1201 = vpop.f32.mrb[0].mxu0
      %v1202 = vpop.f32.mrb[0].mxu0
      %v1203 = vadd.f32 %v312, %v1202
      %v1204 = vpop.f32.mrb[0].mxu0
      %1205 = vmatprep.mubr.bf16.mxu0 0
      %1206 = vmatmul.mubr.bf16.gmra.mrb[0].mxu0 %v770
      %v1207 = vpop.f32.mrb[0].mxu0
      %v1208 = vadd.f32 %v312, %v1207
      %v1209 = vpop.f32.mrb[0].mxu0
      %v1210 = vpop.f32.mrb[0].mxu0
      %v1211 = vadd.f32 %v312, %v1210
      %v1212 = vpop.f32.mrb[0].mxu0
      %1213 = vmatprep.mubr.bf16.mxu0 0
      %1214 = vmatmul.mubr.bf16.gmra.mrb[0].mxu0 %v773
      %v1215 = vpop.f32.mrb[0].mxu0
      %v1216 = vadd.f32 %v312, %v1215
      %v1217 = vpop.f32.mrb[0].mxu0
      %v1218 = vpop.f32.mrb[0].mxu0
      %v1219 = vadd.f32 %v312, %v1218
      %v1220 = vpop.f32.mrb[0].mxu0
      %1221 = vmatprep.mubr.bf16.mxu0 0
      %1222 = vmatmul.mubr.bf16.gmra.mrb[0].mxu0 %v776
      %v1223 = vpop.f32.mrb[0].mxu0
      %v1224 = vadd.f32 %v312, %v1223
      %v1225 = vpop.f32.mrb[0].mxu0
      %v1226 = vpop.f32.mrb[0].mxu0
      %v1227 = vadd.f32 %v312, %v1226
      %v1228 = vpop.f32.mrb[0].mxu0
      %1229 = vmatprep.mubr.bf16.mxu0 0
      %1230 = vmatmul.mubr.bf16.gmra.mrb[0].mxu0 %v779
      %v1231 = vpop.f32.mrb[0].mxu0
      %v1232 = vadd.f32 %v312, %v1231
      %v1233 = vpop.f32.mrb[0].mxu0
      %v1234 = vpop.f32.mrb[0].mxu0
      %v1235 = vadd.f32 %v312, %v1234
      %v1236 = vpop.f32.mrb[0].mxu0
      %1237 = vmatprep.mubr.bf16.mxu0 0
      %1238 = vmatmul.mubr.bf16.gmra.mrb[0].mxu0 %v782
      %v1239 = vpop.f32.mrb[0].mxu0
      %v1240 = vadd.f32 %v312, %v1239
      %v1241 = vpop.f32.mrb[0].mxu0
      %v1242 = vpop.f32.mrb[0].mxu0
      %v1243 = vadd.f32 %v312, %v1242
      %v1244 = vpop.f32.mrb[0].mxu0
      %1245 = vmatprep.mubr.bf16.mxu0 0
      %1246 = vmatmul.mubr.bf16.gmra.mrb[0].mxu0 %v785
      %v1247 = vpop.f32.mrb[0].mxu0
      %v1248 = vadd.f32 %v312, %v1247
      %v1249 = vpop.f32.mrb[0].mxu0
      %v1250 = vpop.f32.mrb[0].mxu0
      %v1251 = vadd.f32 %v312, %v1250
      %v1252 = vpop.f32.mrb[0].mxu0
      %1253 = vmatprep.mubr.bf16.mxu0 0
      %1254 = vmatmul.mubr.bf16.gmra.mrb[0].mxu0 %v788
      %v1255 = vpop.f32.mrb[0].mxu0
      %v1256 = vadd.f32 %v312, %v1255
      %v1257 = vpop.f32.mrb[0].mxu0
      %v1258 = vpop.f32.mrb[0].mxu0
      %v1259 = vadd.f32 %v312, %v1258
      %v1260 = vpop.f32.mrb[0].mxu0
      %1261 = vmatprep.mubr.bf16.mxu0 0
      %1262 = vmatmul.mubr.bf16.gmra.mrb[0].mxu0 %v791
      %v1263 = vpop.f32.mrb[0].mxu0
      %v1264 = vadd.f32 %v312, %v1263
      %v1265 = vpop.f32.mrb[0].mxu0
      %v1266 = vpop.f32.mrb[0].mxu0
      %v1267 = vadd.f32 %v312, %v1266
      %v1268 = vpop.f32.mrb[0].mxu0
      %1269 = vmatprep.mubr.bf16.mxu0 0
      %1270 = vmatmul.mubr.bf16.gmra.mrb[0].mxu0 %v794
      %v1271 = vpop.f32.mrb[0].mxu0
      %v1272 = vadd.f32 %v312, %v1271
      %v1273 = vpop.f32.mrb[0].mxu0
      %v1274 = vpop.f32.mrb[0].mxu0
      %v1275 = vadd.f32 %v312, %v1274
      %v1276 = vpop.f32.mrb[0].mxu0
      %1277 = vmatprep.mubr.bf16.mxu0 0
      %1278 = vmatmul.mubr.bf16.gmra.mrb[0].mxu0 %v797
      %v1279 = vpop.f32.mrb[0].mxu0
      %v1280 = vadd.f32 %v312, %v1279
      %v1281 = vpop.f32.mrb[0].mxu0
      %v1282 = vpop.f32.mrb[0].mxu0
      %v1283 = vadd.f32 %v312, %v1282
      %v1284 = vpop.f32.mrb[0].mxu0
      %1285 = vmatprep.mubr.bf16.mxu0 0
      %1286 = vmatmul.mubr.bf16.gmra.mrb[0].mxu0 %v800
      %v1287 = vpop.f32.mrb[0].mxu0
      %v1288 = vadd.f32 %v312, %v1287
      %v1289 = vpop.f32.mrb[0].mxu0
      %v1290 = vpop.f32.mrb[0].mxu0
      %v1291 = vadd.f32 %v312, %v1290
      %v1292 = vpop.f32.mrb[0].mxu0
      %1293 = vmatprep.mubr.bf16.mxu0 0
      %1294 = vmatmul.mubr.bf16.gmra.mrb[0].mxu0 %v803
      %v1295 = vpop.f32.mrb[0].mxu0
      %v1296 = vadd.f32 %v312, %v1295
      %v1297 = vpop.f32.mrb[0].mxu0
      %v1298 = vpop.f32.mrb[0].mxu0
      %v1299 = vadd.f32 %v312, %v1298
      %v1300 = vpop.f32.mrb[0].mxu0
      %1301 = vmatprep.mubr.bf16.mxu0 0
      %1302 = vmatmul.mubr.bf16.gmra.mrb[0].mxu0 %v806
      %v1303 = vpop.f32.mrb[0].mxu0
      %v1304 = vadd.f32 %v312, %v1303
      %v1305 = vpop.f32.mrb[0].mxu0
      %v1306 = vpop.f32.mrb[0].mxu0
      %v1307 = vadd.f32 %v312, %v1306
      %v1308 = vpop.f32.mrb[0].mxu0
      %1309 = vmatprep.mubr.bf16.mxu0 0
      %1310 = vmatmul.mubr.bf16.gmra.mrb[0].mxu0 %v809
      %v1311 = vpop.f32.mrb[0].mxu0
      %v1312 = vadd.f32 %v312, %v1311
      %v1313 = vpop.f32.mrb[0].mxu0
      %v1314 = vpop.f32.mrb[0].mxu0
      %v1315 = vadd.f32 %v312, %v1314
      %v1316 = vpop.f32.mrb[0].mxu0
      %1317 = vmatprep.mubr.bf16.mxu0 0
      %1318 = vmatmul.mubr.bf16.gmra.mrb[0].mxu0 %v812
      %v1319 = vpop.f32.mrb[0].mxu0
      %v1320 = vadd.f32 %v312, %v1319
      %v1321 = vpop.f32.mrb[0].mxu0
      %v1322 = vpop.f32.mrb[0].mxu0
      %v1323 = vadd.f32 %v312, %v1322
      %v1324 = vpop.f32.mrb[0].mxu0
      %1325 = vmatprep.mubr.bf16.mxu0 0
      %1326 = vmatmul.mubr.bf16.gmra.mrb[0].mxu0 %v815
      %v1327 = vpop.f32.mrb[0].mxu0
      %v1328 = vadd.f32 %v312, %v1327
      %v1329 = vpop.f32.mrb[0].mxu0
      %v1330 = vpop.f32.mrb[0].mxu0
      %v1331 = vadd.f32 %v312, %v1330
      %v1332 = vpop.f32.mrb[0].mxu0
      %1333 = vmatprep.mubr.bf16.mxu0 0
      %1334 = vmatmul.mubr.bf16.gmra.mrb[0].mxu0 %v818
      %v1335 = vpop.f32.mrb[0].mxu0
      %v1336 = vadd.f32 %v312, %v1335
      %v1337 = vpop.f32.mrb[0].mxu0
      %v1338 = vpop.f32.mrb[0].mxu0
      %v1339 = vadd.f32 %v312, %v1338
      %v1340 = vpop.f32.mrb[0].mxu0
      %1341 = vmatprep.mubr.bf16.mxu0 0
      %1342 = vmatmul.mubr.bf16.gmra.mrb[0].mxu0 %v821
      %v1343 = vpop.f32.mrb[0].mxu0
      %v1344 = vadd.f32 %v312, %v1343
      %v1345 = vpop.f32.mrb[0].mxu0
      %v1346 = vpop.f32.mrb[0].mxu0
      %v1347 = vadd.f32 %v312, %v1346
      %v1348 = vpop.f32.mrb[0].mxu0
      %1349 = vmatprep.mubr.bf16.mxu0 0
      %1350 = vmatmul.mubr.bf16.gmra.mrb[0].mxu0 %v824
      %v1351 = vpop.f32.mrb[0].mxu0
      %v1352 = vadd.f32 %v312, %v1351
      %v1353 = vpop.f32.mrb[0].mxu0
      %v1354 = vpop.f32.mrb[0].mxu0
      %v1355 = vadd.f32 %v312, %v1354
      %v1356 = vpop.f32.mrb[0].mxu0
      %1357 = vmatprep.mubr.bf16.mxu0 0
      %1358 = vmatmul.mubr.bf16.gmra.mrb[0].mxu0 %v827
      %v1359 = vpop.f32.mrb[0].mxu0
      %v1360 = vadd.f32 %v312, %v1359
      %v1361 = vpop.f32.mrb[0].mxu0
      %v1362 = vpop.f32.mrb[0].mxu0
      %v1363 = vadd.f32 %v312, %v1362
      %v1364 = vpop.f32.mrb[0].mxu0
      %1365 = vmatprep.mubr.bf16.mxu0 0
      %1366 = vmatmul.mubr.bf16.gmra.mrb[0].mxu0 %v830
      %v1367 = vpop.f32.mrb[0].mxu0
      %v1368 = vadd.f32 %v312, %v1367
      %v1369 = vpop.f32.mrb[0].mxu0
      %v1370 = vpop.f32.mrb[0].mxu0
      %v1371 = vadd.f32 %v312, %v1370
      %v1372 = vpop.f32.mrb[0].mxu0
      %1373 = vmatprep.mubr.bf16.mxu0 0
      %1374 = vmatmul.mubr.bf16.gmra.mrb[0].mxu0 %v833
      %v1375 = vpop.f32.mrb[0].mxu0
      %v1376 = vadd.f32 %v312, %v1375
      %v1377 = vpop.f32.mrb[0].mxu0
      %v1378 = vpop.f32.mrb[0].mxu0
      %v1379 = vadd.f32 %v312, %v1378
      %v1380 = vpop.f32.mrb[0].mxu0
      %1381 = vmatprep.mubr.bf16.mxu0 0
      %1382 = vmatmul.mubr.bf16.gmra.mrb[0].mxu0 %v836
      %v1383 = vpop.f32.mrb[0].mxu0
      %v1384 = vadd.f32 %v312, %v1383
      %v1385 = vpop.f32.mrb[0].mxu0
      %v1386 = vpop.f32.mrb[0].mxu0
      %v1387 = vadd.f32 %v312, %v1386
      %v1388 = vpop.f32.mrb[0].mxu0
      %1389 = vdwg.mxu0
      %v1390 = vmax.f32 %v880, 0.0
      %v1391 = vmax.f32 %v883, 0.0
      %v1392 = vmax.f32 %v888, 0.0
      %v1393 = vmax.f32 %v891, 0.0
      %v1394 = vmax.f32 %v896, 0.0
      %v1395 = vmax.f32 %v899, 0.0
      %v1396 = vmax.f32 %v904, 0.0
      %v1397 = vmax.f32 %v907, 0.0
      %v1398 = vmax.f32 %v912, 0.0
      %v1399 = vmax.f32 %v915, 0.0
      %v1400 = vmax.f32 %v920, 0.0
      %v1401 = vmax.f32 %v923, 0.0
      %v1402 = vmax.f32 %v928, 0.0
      %v1403 = vmax.f32 %v931, 0.0
      %v1404 = vmax.f32 %v936, 0.0
      %v1405 = vmax.f32 %v939, 0.0
      %v1406 = vmax.f32 %v944, 0.0
      %v1407 = vmax.f32 %v947, 0.0
      %v1408 = vmax.f32 %v952, 0.0
      %v1409 = vmax.f32 %v955, 0.0
      %v1410 = vmax.f32 %v960, 0.0
      %v1411 = vmax.f32 %v963, 0.0
      %v1412 = vmax.f32 %v968, 0.0
      %v1413 = vmax.f32 %v971, 0.0
      %v1414 = vmax.f32 %v976, 0.0
      %v1415 = vmax.f32 %v979, 0.0
      %v1416 = vmax.f32 %v984, 0.0
      %v1417 = vmax.f32 %v987, 0.0
      %v1418 = vmax.f32 %v992, 0.0
      %v1419 = vmax.f32 %v995, 0.0
      %v1420 = vmax.f32 %v1000, 0.0
      %v1421 = vmax.f32 %v1003, 0.0
      %v1422 = vmax.f32 %v1008, 0.0
      %v1423 = vmax.f32 %v1011, 0.0
      %v1424 = vmax.f32 %v1016, 0.0
      %v1425 = vmax.f32 %v1019, 0.0
      %v1426 = vmax.f32 %v1024, 0.0
      %v1427 = vmax.f32 %v1027, 0.0
      %v1428 = vmax.f32 %v1032, 0.0
      %v1429 = vmax.f32 %v1035, 0.0
      %v1430 = vmax.f32 %v1040, 0.0
      %v1431 = vmax.f32 %v1043, 0.0
      %v1432 = vmax.f32 %v1048, 0.0
      %v1433 = vmax.f32 %v1051, 0.0
      %v1434 = vmax.f32 %v1056, 0.0
      %v1435 = vmax.f32 %v1059, 0.0
      %v1436 = vmax.f32 %v1064, 0.0
      %v1437 = vmax.f32 %v1067, 0.0
      %v1438 = vmax.f32 %v1072, 0.0
      %v1439 = vmax.f32 %v1075, 0.0
      %v1440 = vmax.f32 %v1080, 0.0
      %v1441 = vmax.f32 %v1083, 0.0
      %v1442 = vmax.f32 %v1088, 0.0
      %v1443 = vmax.f32 %v1091, 0.0
      %v1444 = vmax.f32 %v1096, 0.0
      %v1445 = vmax.f32 %v1099, 0.0
      %v1446 = vmax.f32 %v1104, 0.0
      %v1447 = vmax.f32 %v1107, 0.0
      %v1448 = vmax.f32 %v1112, 0.0
      %v1449 = vmax.f32 %v1115, 0.0
      %v1450 = vmax.f32 %v1120, 0.0
      %v1451 = vmax.f32 %v1123, 0.0
      %v1452 = vmax.f32 %v1128, 0.0
      %v1453 = vmax.f32 %v1131, 0.0
      %v1454 = vmax.f32 %v1136, 0.0
      %v1455 = vmax.f32 %v1139, 0.0
      %v1456 = vmax.f32 %v1144, 0.0
      %v1457 = vmax.f32 %v1147, 0.0
      %v1458 = vmax.f32 %v1152, 0.0
      %v1459 = vmax.f32 %v1155, 0.0
      %v1460 = vmax.f32 %v1160, 0.0
      %v1461 = vmax.f32 %v1163, 0.0
      %v1462 = vmax.f32 %v1168, 0.0
      %v1463 = vmax.f32 %v1171, 0.0
      %v1464 = vmax.f32 %v1176, 0.0
      %v1465 = vmax.f32 %v1179, 0.0
      %v1466 = vmax.f32 %v1184, 0.0
      %v1467 = vmax.f32 %v1187, 0.0
      %v1468 = vmax.f32 %v1192, 0.0
      %v1469 = vmax.f32 %v1195, 0.0
      %v1470 = vmax.f32 %v1200, 0.0
      %v1471 = vmax.f32 %v1203, 0.0
      %v1472 = vmax.f32 %v1208, 0.0
      %v1473 = vmax.f32 %v1211, 0.0
      %v1474 = vmax.f32 %v1216, 0.0
      %v1475 = vmax.f32 %v1219, 0.0
      %v1476 = vmax.f32 %v1224, 0.0
      %v1477 = vmax.f32 %v1227, 0.0
      %v1478 = vmax.f32 %v1232, 0.0
      %v1479 = vmax.f32 %v1235, 0.0
      %v1480 = vmax.f32 %v1240, 0.0
      %v1481 = vmax.f32 %v1243, 0.0
      %v1482 = vmax.f32 %v1248, 0.0
      %v1483 = vmax.f32 %v1251, 0.0
      %v1484 = vmax.f32 %v1256, 0.0
      %v1485 = vmax.f32 %v1259, 0.0
      %v1486 = vmax.f32 %v1264, 0.0
      %v1487 = vmax.f32 %v1267, 0.0
      %v1488 = vmax.f32 %v1272, 0.0
      %v1489 = vmax.f32 %v1275, 0.0
      %v1490 = vmax.f32 %v1280, 0.0
      %v1491 = vmax.f32 %v1283, 0.0
      %v1492 = vmax.f32 %v1288, 0.0
      %v1493 = vmax.f32 %v1291, 0.0
      %v1494 = vmax.f32 %v1296, 0.0
      %v1495 = vmax.f32 %v1299, 0.0
      %v1496 = vmax.f32 %v1304, 0.0
      %v1497 = vmax.f32 %v1307, 0.0
      %v1498 = vmax.f32 %v1312, 0.0
      %v1499 = vmax.f32 %v1315, 0.0
      %v1500 = vmax.f32 %v1320, 0.0
      %v1501 = vmax.f32 %v1323, 0.0
      %v1502 = vmax.f32 %v1328, 0.0
      %v1503 = vmax.f32 %v1331, 0.0
      %v1504 = vmax.f32 %v1336, 0.0
      %v1505 = vmax.f32 %v1339, 0.0
      %v1506 = vmax.f32 %v1344, 0.0
      %v1507 = vmax.f32 %v1347, 0.0
      %v1508 = vmax.f32 %v1352, 0.0
      %v1509 = vmax.f32 %v1355, 0.0
      %v1510 = vmax.f32 %v1360, 0.0
      %v1511 = vmax.f32 %v1363, 0.0
      %v1512 = vmax.f32 %v1368, 0.0
      %v1513 = vmax.f32 %v1371, 0.0
      %v1514 = vmax.f32 %v1376, 0.0
      %v1515 = vmax.f32 %v1379, 0.0
      %v1516 = vmax.f32 %v1384, 0.0
      %v1517 = vmax.f32 %v1387, 0.0
      %v1518 = vpack.c.bf16 %v1391, %v1390
      %v1519 = vpack.c.bf16 %v1393, %v1392
      %v1520 = vpack.c.bf16 %v1395, %v1394
      %v1521 = vpack.c.bf16 %v1397, %v1396
      %v1522 = vpack.c.bf16 %v1399, %v1398
      %v1523 = vpack.c.bf16 %v1401, %v1400
      %v1524 = vpack.c.bf16 %v1403, %v1402
      %v1525 = vpack.c.bf16 %v1405, %v1404
      %v1526 = vpack.c.bf16 %v1407, %v1406
      %v1527 = vpack.c.bf16 %v1409, %v1408
      %v1528 = vpack.c.bf16 %v1411, %v1410
      %v1529 = vpack.c.bf16 %v1413, %v1412
      %v1530 = vpack.c.bf16 %v1415, %v1414
      %v1531 = vpack.c.bf16 %v1417, %v1416
      %v1532 = vpack.c.bf16 %v1419, %v1418
      %v1533 = vpack.c.bf16 %v1421, %v1420
      %v1534 = vpack.c.bf16 %v1423, %v1422
      %v1535 = vpack.c.bf16 %v1425, %v1424
      %v1536 = vpack.c.bf16 %v1427, %v1426
      %v1537 = vpack.c.bf16 %v1429, %v1428
      %v1538 = vpack.c.bf16 %v1431, %v1430
      %v1539 = vpack.c.bf16 %v1433, %v1432
      %v1540 = vpack.c.bf16 %v1435, %v1434
      %v1541 = vpack.c.bf16 %v1437, %v1436
      %v1542 = vpack.c.bf16 %v1439, %v1438
      %v1543 = vpack.c.bf16 %v1441, %v1440
      %v1544 = vpack.c.bf16 %v1443, %v1442
      %v1545 = vpack.c.bf16 %v1445, %v1444
      %v1546 = vpack.c.bf16 %v1447, %v1446
      %v1547 = vpack.c.bf16 %v1449, %v1448
      %v1548 = vpack.c.bf16 %v1451, %v1450
      %v1549 = vpack.c.bf16 %v1453, %v1452
      %v1550 = vpack.c.bf16 %v1455, %v1454
      %v1551 = vpack.c.bf16 %v1457, %v1456
      %v1552 = vpack.c.bf16 %v1459, %v1458
      %v1553 = vpack.c.bf16 %v1461, %v1460
      %v1554 = vpack.c.bf16 %v1463, %v1462
      %v1555 = vpack.c.bf16 %v1465, %v1464
      %v1556 = vpack.c.bf16 %v1467, %v1466
      %v1557 = vpack.c.bf16 %v1469, %v1468
      %v1558 = vpack.c.bf16 %v1471, %v1470
      %v1559 = vpack.c.bf16 %v1473, %v1472
      %v1560 = vpack.c.bf16 %v1475, %v1474
      %v1561 = vpack.c.bf16 %v1477, %v1476
      %v1562 = vpack.c.bf16 %v1479, %v1478
      %v1563 = vpack.c.bf16 %v1481, %v1480
      %v1564 = vpack.c.bf16 %v1483, %v1482
      %v1565 = vpack.c.bf16 %v1485, %v1484
      %v1566 = vpack.c.bf16 %v1487, %v1486
      %v1567 = vpack.c.bf16 %v1489, %v1488
      %v1568 = vpack.c.bf16 %v1491, %v1490
      %v1569 = vpack.c.bf16 %v1493, %v1492
      %v1570 = vpack.c.bf16 %v1495, %v1494
      %v1571 = vpack.c.bf16 %v1497, %v1496
      %v1572 = vpack.c.bf16 %v1499, %v1498
      %v1573 = vpack.c.bf16 %v1501, %v1500
      %v1574 = vpack.c.bf16 %v1503, %v1502
      %v1575 = vpack.c.bf16 %v1505, %v1504
      %v1576 = vpack.c.bf16 %v1507, %v1506
      %v1577 = vpack.c.bf16 %v1509, %v1508
      %v1578 = vpack.c.bf16 %v1511, %v1510
      %v1579 = vpack.c.bf16 %v1513, %v1512
      %v1580 = vpack.c.bf16 %v1515, %v1514
      %v1581 = vpack.c.bf16 %v1517, %v1516
      %v1646 = vunpack.c.l.b16 %v1518
      %v1647 = vunpack.c.h.b16 %v1518
      %v1648 = vunpack.c.l.b16 %v1519
      %v1649 = vunpack.c.h.b16 %v1519
      %v1650 = vunpack.c.l.b16 %v1520
      %v1651 = vunpack.c.h.b16 %v1520
      %v1652 = vunpack.c.l.b16 %v1521
      %v1653 = vunpack.c.h.b16 %v1521
      %v1654 = vunpack.c.l.b16 %v1522
      %v1655 = vunpack.c.h.b16 %v1522
      %v1656 = vunpack.c.l.b16 %v1523
      %v1657 = vunpack.c.h.b16 %v1523
      %v1658 = vunpack.c.l.b16 %v1524
      %v1659 = vunpack.c.h.b16 %v1524
      %v1660 = vunpack.c.l.b16 %v1525
      %v1661 = vunpack.c.h.b16 %v1525
      %v1662 = vunpack.c.l.b16 %v1526
      %v1663 = vunpack.c.h.b16 %v1526
      %v1664 = vunpack.c.l.b16 %v1527
      %v1665 = vunpack.c.h.b16 %v1527
      %v1666 = vunpack.c.l.b16 %v1528
      %v1667 = vunpack.c.h.b16 %v1528
      %v1668 = vunpack.c.l.b16 %v1529
      %v1669 = vunpack.c.h.b16 %v1529
      %v1670 = vunpack.c.l.b16 %v1530
      %v1671 = vunpack.c.h.b16 %v1530
      %v1672 = vunpack.c.l.b16 %v1531
      %v1673 = vunpack.c.h.b16 %v1531
      %v1674 = vunpack.c.l.b16 %v1532
      %v1675 = vunpack.c.h.b16 %v1532
      %v1676 = vunpack.c.l.b16 %v1533
      %v1677 = vunpack.c.h.b16 %v1533
      %v1678 = vunpack.c.l.b16 %v1534
      %v1679 = vunpack.c.h.b16 %v1534
      %v1680 = vunpack.c.l.b16 %v1535
      %v1681 = vunpack.c.h.b16 %v1535
      %v1682 = vunpack.c.l.b16 %v1536
      %v1683 = vunpack.c.h.b16 %v1536
      %v1684 = vunpack.c.l.b16 %v1537
      %v1685 = vunpack.c.h.b16 %v1537
      %v1686 = vunpack.c.l.b16 %v1538
      %v1687 = vunpack.c.h.b16 %v1538
      %v1688 = vunpack.c.l.b16 %v1539
      %v1689 = vunpack.c.h.b16 %v1539
      %v1690 = vunpack.c.l.b16 %v1540
      %v1691 = vunpack.c.h.b16 %v1540
      %v1692 = vunpack.c.l.b16 %v1541
      %v1693 = vunpack.c.h.b16 %v1541
      %v1694 = vunpack.c.l.b16 %v1542
      %v1695 = vunpack.c.h.b16 %v1542
      %v1696 = vunpack.c.l.b16 %v1543
      %v1697 = vunpack.c.h.b16 %v1543
      %v1698 = vunpack.c.l.b16 %v1544
      %v1699 = vunpack.c.h.b16 %v1544
      %v1700 = vunpack.c.l.b16 %v1545
      %v1701 = vunpack.c.h.b16 %v1545
      %v1702 = vunpack.c.l.b16 %v1546
      %v1703 = vunpack.c.h.b16 %v1546
      %v1704 = vunpack.c.l.b16 %v1547
      %v1705 = vunpack.c.h.b16 %v1547
      %v1706 = vunpack.c.l.b16 %v1548
      %v1707 = vunpack.c.h.b16 %v1548
      %v1708 = vunpack.c.l.b16 %v1549
      %v1709 = vunpack.c.h.b16 %v1549
      %v1710 = vunpack.c.l.b16 %v1550
      %v1711 = vunpack.c.h.b16 %v1550
      %v1712 = vunpack.c.l.b16 %v1551
      %v1713 = vunpack.c.h.b16 %v1551
      %v1714 = vunpack.c.l.b16 %v1552
      %v1715 = vunpack.c.h.b16 %v1552
      %v1716 = vunpack.c.l.b16 %v1553
      %v1717 = vunpack.c.h.b16 %v1553
      %v1718 = vunpack.c.l.b16 %v1554
      %v1719 = vunpack.c.h.b16 %v1554
      %v1720 = vunpack.c.l.b16 %v1555
      %v1721 = vunpack.c.h.b16 %v1555
      %v1722 = vunpack.c.l.b16 %v1556
      %v1723 = vunpack.c.h.b16 %v1556
      %v1724 = vunpack.c.l.b16 %v1557
      %v1725 = vunpack.c.h.b16 %v1557
      %v1726 = vunpack.c.l.b16 %v1558
      %v1727 = vunpack.c.h.b16 %v1558
      %v1728 = vunpack.c.l.b16 %v1559
      %v1729 = vunpack.c.h.b16 %v1559
      %v1730 = vunpack.c.l.b16 %v1560
      %v1731 = vunpack.c.h.b16 %v1560
      %v1732 = vunpack.c.l.b16 %v1561
      %v1733 = vunpack.c.h.b16 %v1561
      %v1734 = vunpack.c.l.b16 %v1562
      %v1735 = vunpack.c.h.b16 %v1562
      %v1736 = vunpack.c.l.b16 %v1563
      %v1737 = vunpack.c.h.b16 %v1563
      %v1738 = vunpack.c.l.b16 %v1564
      %v1739 = vunpack.c.h.b16 %v1564
      %v1740 = vunpack.c.l.b16 %v1565
      %v1741 = vunpack.c.h.b16 %v1565
      %v1742 = vunpack.c.l.b16 %v1566
      %v1743 = vunpack.c.h.b16 %v1566
      %v1744 = vunpack.c.l.b16 %v1567
      %v1745 = vunpack.c.h.b16 %v1567
      %v1746 = vunpack.c.l.b16 %v1568
      %v1747 = vunpack.c.h.b16 %v1568
      %v1748 = vunpack.c.l.b16 %v1569
      %v1749 = vunpack.c.h.b16 %v1569
      %v1750 = vunpack.c.l.b16 %v1570
      %v1751 = vunpack.c.h.b16 %v1570
      %v1752 = vunpack.c.l.b16 %v1571
      %v1753 = vunpack.c.h.b16 %v1571
      %v1754 = vunpack.c.l.b16 %v1572
      %v1755 = vunpack.c.h.b16 %v1572
      %v1756 = vunpack.c.l.b16 %v1573
      %v1757 = vunpack.c.h.b16 %v1573
      %v1758 = vunpack.c.l.b16 %v1574
      %v1759 = vunpack.c.h.b16 %v1574
      %v1760 = vunpack.c.l.b16 %v1575
      %v1761 = vunpack.c.h.b16 %v1575
      %v1762 = vunpack.c.l.b16 %v1576
      %v1763 = vunpack.c.h.b16 %v1576
      %v1764 = vunpack.c.l.b16 %v1577
      %v1765 = vunpack.c.h.b16 %v1577
      %v1766 = vunpack.c.l.b16 %v1578
      %v1767 = vunpack.c.h.b16 %v1578
      %v1768 = vunpack.c.l.b16 %v1579
      %v1769 = vunpack.c.h.b16 %v1579
      %v1770 = vunpack.c.l.b16 %v1580
      %v1771 = vunpack.c.h.b16 %v1580
      %v1772 = vunpack.c.l.b16 %v1581
      %v1773 = vunpack.c.h.b16 %v1581
      %v1774 = vpack.c.b16 %v1646, %v1646
      %v1775 = vpack.c.b16 %v1647, %v1647
      %v1776 = vpack.c.b16 %v1648, %v1648
      %v1777 = vpack.c.b16 %v1649, %v1649
      %v1778 = vpack.c.b16 %v1650, %v1650
      %v1779 = vpack.c.b16 %v1651, %v1651
      %v1780 = vpack.c.b16 %v1652, %v1652
      %v1781 = vpack.c.b16 %v1653, %v1653
      %v1782 = vpack.c.b16 %v1654, %v1654
      %v1783 = vpack.c.b16 %v1655, %v1655
      %v1784 = vpack.c.b16 %v1656, %v1656
      %v1785 = vpack.c.b16 %v1657, %v1657
      %v1786 = vpack.c.b16 %v1658, %v1658
      %v1787 = vpack.c.b16 %v1659, %v1659
      %v1788 = vpack.c.b16 %v1660, %v1660
      %v1789 = vpack.c.b16 %v1661, %v1661
      %v1790 = vpack.c.b16 %v1662, %v1662
      %v1791 = vpack.c.b16 %v1663, %v1663
      %v1792 = vpack.c.b16 %v1664, %v1664
      %v1793 = vpack.c.b16 %v1665, %v1665
      %v1794 = vpack.c.b16 %v1666, %v1666
      %v1795 = vpack.c.b16 %v1667, %v1667
      %v1796 = vpack.c.b16 %v1668, %v1668
      %v1797 = vpack.c.b16 %v1669, %v1669
      %v1798 = vpack.c.b16 %v1670, %v1670
      %v1799 = vpack.c.b16 %v1671, %v1671
      %v1800 = vpack.c.b16 %v1672, %v1672
      %v1801 = vpack.c.b16 %v1673, %v1673
      %v1802 = vpack.c.b16 %v1674, %v1674
      %v1803 = vpack.c.b16 %v1675, %v1675
      %v1804 = vpack.c.b16 %v1676, %v1676
      %v1805 = vpack.c.b16 %v1677, %v1677
      %v1806 = vpack.c.b16 %v1678, %v1678
      %v1807 = vpack.c.b16 %v1679, %v1679
      %v1808 = vpack.c.b16 %v1680, %v1680
      %v1809 = vpack.c.b16 %v1681, %v1681
      %v1810 = vpack.c.b16 %v1682, %v1682
      %v1811 = vpack.c.b16 %v1683, %v1683
      %v1812 = vpack.c.b16 %v1684, %v1684
      %v1813 = vpack.c.b16 %v1685, %v1685
      %v1814 = vpack.c.b16 %v1686, %v1686
      %v1815 = vpack.c.b16 %v1687, %v1687
      %v1816 = vpack.c.b16 %v1688, %v1688
      %v1817 = vpack.c.b16 %v1689, %v1689
      %v1818 = vpack.c.b16 %v1690, %v1690
      %v1819 = vpack.c.b16 %v1691, %v1691
      %v1820 = vpack.c.b16 %v1692, %v1692
      %v1821 = vpack.c.b16 %v1693, %v1693
      %v1822 = vpack.c.b16 %v1694, %v1694
      %v1823 = vpack.c.b16 %v1695, %v1695
      %v1824 = vpack.c.b16 %v1696, %v1696
      %v1825 = vpack.c.b16 %v1697, %v1697
      %v1826 = vpack.c.b16 %v1698, %v1698
      %v1827 = vpack.c.b16 %v1699, %v1699
      %v1828 = vpack.c.b16 %v1700, %v1700
      %v1829 = vpack.c.b16 %v1701, %v1701
      %v1830 = vpack.c.b16 %v1702, %v1702
      %v1831 = vpack.c.b16 %v1703, %v1703
      %v1832 = vpack.c.b16 %v1704, %v1704
      %v1833 = vpack.c.b16 %v1705, %v1705
      %v1834 = vpack.c.b16 %v1706, %v1706
      %v1835 = vpack.c.b16 %v1707, %v1707
      %v1836 = vpack.c.b16 %v1708, %v1708
      %v1837 = vpack.c.b16 %v1709, %v1709
      %v1838 = vpack.c.b16 %v1710, %v1710
      %v1839 = vpack.c.b16 %v1711, %v1711
      %v1840 = vpack.c.b16 %v1712, %v1712
      %v1841 = vpack.c.b16 %v1713, %v1713
      %v1842 = vpack.c.b16 %v1714, %v1714
      %v1843 = vpack.c.b16 %v1715, %v1715
      %v1844 = vpack.c.b16 %v1716, %v1716
      %v1845 = vpack.c.b16 %v1717, %v1717
      %v1846 = vpack.c.b16 %v1718, %v1718
      %v1847 = vpack.c.b16 %v1719, %v1719
      %v1848 = vpack.c.b16 %v1720, %v1720
      %v1849 = vpack.c.b16 %v1721, %v1721
      %v1850 = vpack.c.b16 %v1722, %v1722
      %v1851 = vpack.c.b16 %v1723, %v1723
      %v1852 = vpack.c.b16 %v1724, %v1724
      %v1853 = vpack.c.b16 %v1725, %v1725
      %v1854 = vpack.c.b16 %v1726, %v1726
      %v1855 = vpack.c.b16 %v1727, %v1727
      %v1856 = vpack.c.b16 %v1728, %v1728
      %v1857 = vpack.c.b16 %v1729, %v1729
      %v1858 = vpack.c.b16 %v1730, %v1730
      %v1859 = vpack.c.b16 %v1731, %v1731
      %v1860 = vpack.c.b16 %v1732, %v1732
      %v1861 = vpack.c.b16 %v1733, %v1733
      %v1862 = vpack.c.b16 %v1734, %v1734
      %v1863 = vpack.c.b16 %v1735, %v1735
      %v1864 = vpack.c.b16 %v1736, %v1736
      %v1865 = vpack.c.b16 %v1737, %v1737
      %v1866 = vpack.c.b16 %v1738, %v1738
      %v1867 = vpack.c.b16 %v1739, %v1739
      %v1868 = vpack.c.b16 %v1740, %v1740
      %v1869 = vpack.c.b16 %v1741, %v1741
      %v1870 = vpack.c.b16 %v1742, %v1742
      %v1871 = vpack.c.b16 %v1743, %v1743
      %v1872 = vpack.c.b16 %v1744, %v1744
      %v1873 = vpack.c.b16 %v1745, %v1745
      %v1874 = vpack.c.b16 %v1746, %v1746
      %v1875 = vpack.c.b16 %v1747, %v1747
      %v1876 = vpack.c.b16 %v1748, %v1748
      %v1877 = vpack.c.b16 %v1749, %v1749
      %v1878 = vpack.c.b16 %v1750, %v1750
      %v1879 = vpack.c.b16 %v1751, %v1751
      %v1880 = vpack.c.b16 %v1752, %v1752
      %v1881 = vpack.c.b16 %v1753, %v1753
      %v1882 = vpack.c.b16 %v1754, %v1754
      %v1883 = vpack.c.b16 %v1755, %v1755
      %v1884 = vpack.c.b16 %v1756, %v1756
      %v1885 = vpack.c.b16 %v1757, %v1757
      %v1886 = vpack.c.b16 %v1758, %v1758
      %v1887 = vpack.c.b16 %v1759, %v1759
      %v1888 = vpack.c.b16 %v1760, %v1760
      %v1889 = vpack.c.b16 %v1761, %v1761
      %v1890 = vpack.c.b16 %v1762, %v1762
      %v1891 = vpack.c.b16 %v1763, %v1763
      %v1892 = vpack.c.b16 %v1764, %v1764
      %v1893 = vpack.c.b16 %v1765, %v1765
      %v1894 = vpack.c.b16 %v1766, %v1766
      %v1895 = vpack.c.b16 %v1767, %v1767
      %v1896 = vpack.c.b16 %v1768, %v1768
      %v1897 = vpack.c.b16 %v1769, %v1769
      %v1898 = vpack.c.b16 %v1770, %v1770
      %v1899 = vpack.c.b16 %v1771, %v1771
      %v1900 = vpack.c.b16 %v1772, %v1772
      %v1901 = vpack.c.b16 %v1773, %v1773
      %vm2030 = vcmask 27648
      %2031 = vst.msk [vmem:[%s172] sm:$0xf] %vm2030, %v1774
      %2032 = vst.msk [vmem:[%s172 + $0x4] sm:$0xf] %vm2030, %v1775
      %2033 = vst.msk [vmem:[%s172 + $0x8] sm:$0xf] %vm2030, %v1776
      %2034 = vst.msk [vmem:[%s172 + $0xc] sm:$0xf] %vm2030, %v1777
      %2035 = vst.msk [vmem:[%s172 + $0x10] sm:$0xf] %vm2030, %v1778
      %2036 = vst.msk [vmem:[%s172 + $0x14] sm:$0xf] %vm2030, %v1779
      %2037 = vst.msk [vmem:[%s172 + $0x18] sm:$0xf] %vm2030, %v1780
      %2038 = vst.msk [vmem:[%s172 + $0x1c] sm:$0xf] %vm2030, %v1781
      %2039 = vst.msk [vmem:[%s172 + $0x20] sm:$0xf] %vm2030, %v1782
      %2040 = vst.msk [vmem:[%s172 + $0x24] sm:$0xf] %vm2030, %v1783
      %2041 = vst.msk [vmem:[%s172 + $0x28] sm:$0xf] %vm2030, %v1784
      %2042 = vst.msk [vmem:[%s172 + $0x2c] sm:$0xf] %vm2030, %v1785
      %2043 = vst.msk [vmem:[%s172 + $0x30] sm:$0xf] %vm2030, %v1786
      %2044 = vst.msk [vmem:[%s172 + $0x34] sm:$0xf] %vm2030, %v1787
      %2045 = vst.msk [vmem:[%s172 + $0x38] sm:$0xf] %vm2030, %v1788
      %2046 = vst.msk [vmem:[%s172 + $0x3c] sm:$0xf] %vm2030, %v1789
      %2047 = vst.msk [vmem:[%s172 + $0x40] sm:$0xf] %vm2030, %v1790
      %2048 = vst.msk [vmem:[%s172 + $0x44] sm:$0xf] %vm2030, %v1791
      %2049 = vst.msk [vmem:[%s172 + $0x48] sm:$0xf] %vm2030, %v1792
      %2050 = vst.msk [vmem:[%s172 + $0x4c] sm:$0xf] %vm2030, %v1793
      %2051 = vst.msk [vmem:[%s172 + $0x50] sm:$0xf] %vm2030, %v1794
      %2052 = vst.msk [vmem:[%s172 + $0x54] sm:$0xf] %vm2030, %v1795
      %2053 = vst.msk [vmem:[%s172 + $0x58] sm:$0xf] %vm2030, %v1796
      %2054 = vst.msk [vmem:[%s172 + $0x5c] sm:$0xf] %vm2030, %v1797
      %2055 = vst.msk [vmem:[%s172 + $0x60] sm:$0xf] %vm2030, %v1798
      %2056 = vst.msk [vmem:[%s172 + $0x64] sm:$0xf] %vm2030, %v1799
      %2057 = vst.msk [vmem:[%s172 + $0x68] sm:$0xf] %vm2030, %v1800
      %2058 = vst.msk [vmem:[%s172 + $0x6c] sm:$0xf] %vm2030, %v1801
      %2059 = vst.msk [vmem:[%s172 + $0x70] sm:$0xf] %vm2030, %v1802
      %2060 = vst.msk [vmem:[%s172 + $0x74] sm:$0xf] %vm2030, %v1803
      %2061 = vst.msk [vmem:[%s172 + $0x78] sm:$0xf] %vm2030, %v1804
      %2062 = vst.msk [vmem:[%s172 + $0x7c] sm:$0xf] %vm2030, %v1805
      %2063 = vst.msk [vmem:[%s172 + $0x80] sm:$0xf] %vm2030, %v1806
      %2064 = vst.msk [vmem:[%s172 + $0x84] sm:$0xf] %vm2030, %v1807
      %2065 = vst.msk [vmem:[%s172 + $0x88] sm:$0xf] %vm2030, %v1808
      %2066 = vst.msk [vmem:[%s172 + $0x8c] sm:$0xf] %vm2030, %v1809
      %2067 = vst.msk [vmem:[%s172 + $0x90] sm:$0xf] %vm2030, %v1810
      %2068 = vst.msk [vmem:[%s172 + $0x94] sm:$0xf] %vm2030, %v1811
      %2069 = vst.msk [vmem:[%s172 + $0x98] sm:$0xf] %vm2030, %v1812
      %2070 = vst.msk [vmem:[%s172 + $0x9c] sm:$0xf] %vm2030, %v1813
      %2071 = vst.msk [vmem:[%s172 + $0xa0] sm:$0xf] %vm2030, %v1814
      %2072 = vst.msk [vmem:[%s172 + $0xa4] sm:$0xf] %vm2030, %v1815
      %2073 = vst.msk [vmem:[%s172 + $0xa8] sm:$0xf] %vm2030, %v1816
      %2074 = vst.msk [vmem:[%s172 + $0xac] sm:$0xf] %vm2030, %v1817
      %2075 = vst.msk [vmem:[%s172 + $0xb0] sm:$0xf] %vm2030, %v1818
      %2076 = vst.msk [vmem:[%s172 + $0xb4] sm:$0xf] %vm2030, %v1819
      %2077 = vst.msk [vmem:[%s172 + $0xb8] sm:$0xf] %vm2030, %v1820
      %2078 = vst.msk [vmem:[%s172 + $0xbc] sm:$0xf] %vm2030, %v1821
      %2079 = vst.msk [vmem:[%s172 + $0xc0] sm:$0xf] %vm2030, %v1822
      %2080 = vst.msk [vmem:[%s172 + $0xc4] sm:$0xf] %vm2030, %v1823
      %2081 = vst.msk [vmem:[%s172 + $0xc8] sm:$0xf] %vm2030, %v1824
      %2082 = vst.msk [vmem:[%s172 + $0xcc] sm:$0xf] %vm2030, %v1825
      %2083 = vst.msk [vmem:[%s172 + $0xd0] sm:$0xf] %vm2030, %v1826
      %2084 = vst.msk [vmem:[%s172 + $0xd4] sm:$0xf] %vm2030, %v1827
      %2085 = vst.msk [vmem:[%s172 + $0xd8] sm:$0xf] %vm2030, %v1828
      %2086 = vst.msk [vmem:[%s172 + $0xdc] sm:$0xf] %vm2030, %v1829
      %2087 = vst.msk [vmem:[%s172 + $0xe0] sm:$0xf] %vm2030, %v1830
      %2088 = vst.msk [vmem:[%s172 + $0xe4] sm:$0xf] %vm2030, %v1831
      %2089 = vst.msk [vmem:[%s172 + $0xe8] sm:$0xf] %vm2030, %v1832
      %2090 = vst.msk [vmem:[%s172 + $0xec] sm:$0xf] %vm2030, %v1833
      %2091 = vst.msk [vmem:[%s172 + $0xf0] sm:$0xf] %vm2030, %v1834
      %2092 = vst.msk [vmem:[%s172 + $0xf4] sm:$0xf] %vm2030, %v1835
      %2093 = vst.msk [vmem:[%s172 + $0xf8] sm:$0xf] %vm2030, %v1836
      %2094 = vst.msk [vmem:[%s172 + $0xfc] sm:$0xf] %vm2030, %v1837
      %2095 = vst.msk [vmem:[%s172 + $0x100] sm:$0xf] %vm2030, %v1838
      %2096 = vst.msk [vmem:[%s172 + $0x104] sm:$0xf] %vm2030, %v1839
      %2097 = vst.msk [vmem:[%s172 + $0x108] sm:$0xf] %vm2030, %v1840
      %2098 = vst.msk [vmem:[%s172 + $0x10c] sm:$0xf] %vm2030, %v1841
      %2099 = vst.msk [vmem:[%s172 + $0x110] sm:$0xf] %vm2030, %v1842
      %2100 = vst.msk [vmem:[%s172 + $0x114] sm:$0xf] %vm2030, %v1843
      %2101 = vst.msk [vmem:[%s172 + $0x118] sm:$0xf] %vm2030, %v1844
      %2102 = vst.msk [vmem:[%s172 + $0x11c] sm:$0xf] %vm2030, %v1845
      %2103 = vst.msk [vmem:[%s172 + $0x120] sm:$0xf] %vm2030, %v1846
      %2104 = vst.msk [vmem:[%s172 + $0x124] sm:$0xf] %vm2030, %v1847
      %2105 = vst.msk [vmem:[%s172 + $0x128] sm:$0xf] %vm2030, %v1848
      %2106 = vst.msk [vmem:[%s172 + $0x12c] sm:$0xf] %vm2030, %v1849
      %2107 = vst.msk [vmem:[%s172 + $0x130] sm:$0xf] %vm2030, %v1850
      %2108 = vst.msk [vmem:[%s172 + $0x134] sm:$0xf] %vm2030, %v1851
      %2109 = vst.msk [vmem:[%s172 + $0x138] sm:$0xf] %vm2030, %v1852
      %2110 = vst.msk [vmem:[%s172 + $0x13c] sm:$0xf] %vm2030, %v1853
      %2111 = vst.msk [vmem:[%s172 + $0x140] sm:$0xf] %vm2030, %v1854
      %2112 = vst.msk [vmem:[%s172 + $0x144] sm:$0xf] %vm2030, %v1855
      %2113 = vst.msk [vmem:[%s172 + $0x148] sm:$0xf] %vm2030, %v1856
      %2114 = vst.msk [vmem:[%s172 + $0x14c] sm:$0xf] %vm2030, %v1857
      %2115 = vst.msk [vmem:[%s172 + $0x150] sm:$0xf] %vm2030, %v1858
      %2116 = vst.msk [vmem:[%s172 + $0x154] sm:$0xf] %vm2030, %v1859
      %2117 = vst.msk [vmem:[%s172 + $0x158] sm:$0xf] %vm2030, %v1860
      %2118 = vst.msk [vmem:[%s172 + $0x15c] sm:$0xf] %vm2030, %v1861
      %2119 = vst.msk [vmem:[%s172 + $0x160] sm:$0xf] %vm2030, %v1862
      %2120 = vst.msk [vmem:[%s172 + $0x164] sm:$0xf] %vm2030, %v1863
      %2121 = vst.msk [vmem:[%s172 + $0x168] sm:$0xf] %vm2030, %v1864
      %2122 = vst.msk [vmem:[%s172 + $0x16c] sm:$0xf] %vm2030, %v1865
      %2123 = vst.msk [vmem:[%s172 + $0x170] sm:$0xf] %vm2030, %v1866
      %2124 = vst.msk [vmem:[%s172 + $0x174] sm:$0xf] %vm2030, %v1867
      %2125 = vst.msk [vmem:[%s172 + $0x178] sm:$0xf] %vm2030, %v1868
      %2126 = vst.msk [vmem:[%s172 + $0x17c] sm:$0xf] %vm2030, %v1869
      %2127 = vst.msk [vmem:[%s172 + $0x180] sm:$0xf] %vm2030, %v1870
      %2128 = vst.msk [vmem:[%s172 + $0x184] sm:$0xf] %vm2030, %v1871
      %2129 = vst.msk [vmem:[%s172 + $0x188] sm:$0xf] %vm2030, %v1872
      %2130 = vst.msk [vmem:[%s172 + $0x18c] sm:$0xf] %vm2030, %v1873
      %2131 = vst.msk [vmem:[%s172 + $0x190] sm:$0xf] %vm2030, %v1874
      %2132 = vst.msk [vmem:[%s172 + $0x194] sm:$0xf] %vm2030, %v1875
      %2133 = vst.msk [vmem:[%s172 + $0x198] sm:$0xf] %vm2030, %v1876
      %2134 = vst.msk [vmem:[%s172 + $0x19c] sm:$0xf] %vm2030, %v1877
      %2135 = vst.msk [vmem:[%s172 + $0x1a0] sm:$0xf] %vm2030, %v1878
      %2136 = vst.msk [vmem:[%s172 + $0x1a4] sm:$0xf] %vm2030, %v1879
      %2137 = vst.msk [vmem:[%s172 + $0x1a8] sm:$0xf] %vm2030, %v1880
      %2138 = vst.msk [vmem:[%s172 + $0x1ac] sm:$0xf] %vm2030, %v1881
      %2139 = vst.msk [vmem:[%s172 + $0x1b0] sm:$0xf] %vm2030, %v1882
      %2140 = vst.msk [vmem:[%s172 + $0x1b4] sm:$0xf] %vm2030, %v1883
      %2141 = vst.msk [vmem:[%s172 + $0x1b8] sm:$0xf] %vm2030, %v1884
      %2142 = vst.msk [vmem:[%s172 + $0x1bc] sm:$0xf] %vm2030, %v1885
      %2143 = vst.msk [vmem:[%s172 + $0x1c0] sm:$0xf] %vm2030, %v1886
      %2144 = vst.msk [vmem:[%s172 + $0x1c4] sm:$0xf] %vm2030, %v1887
      %2145 = vst.msk [vmem:[%s172 + $0x1c8] sm:$0xf] %vm2030, %v1888
      %2146 = vst.msk [vmem:[%s172 + $0x1cc] sm:$0xf] %vm2030, %v1889
      %2147 = vst.msk [vmem:[%s172 + $0x1d0] sm:$0xf] %vm2030, %v1890
      %2148 = vst.msk [vmem:[%s172 + $0x1d4] sm:$0xf] %vm2030, %v1891
      %2149 = vst.msk [vmem:[%s172 + $0x1d8] sm:$0xf] %vm2030, %v1892
      %2150 = vst.msk [vmem:[%s172 + $0x1dc] sm:$0xf] %vm2030, %v1893
      %2151 = vst.msk [vmem:[%s172 + $0x1e0] sm:$0xf] %vm2030, %v1894
      %2152 = vst.msk [vmem:[%s172 + $0x1e4] sm:$0xf] %vm2030, %v1895
      %2153 = vst.msk [vmem:[%s172 + $0x1e8] sm:$0xf] %vm2030, %v1896
      %2154 = vst.msk [vmem:[%s172 + $0x1ec] sm:$0xf] %vm2030, %v1897
      %2155 = vst.msk [vmem:[%s172 + $0x1f0] sm:$0xf] %vm2030, %v1898
      %2156 = vst.msk [vmem:[%s172 + $0x1f4] sm:$0xf] %vm2030, %v1899
      %2157 = vst.msk [vmem:[%s172 + $0x1f8] sm:$0xf] %vm2030, %v1900
      %2158 = vst.msk [vmem:[%s172 + $0x1fc] sm:$0xf] %vm2030, %v1901
      %s2159 = smul.u32 128, %s14
      %p2160 = scmp.lt.s32.totalorder %s2159, 1023
      %s2161 = scalar_select %p2160, %s2159, 1023
      %s2162 = smul.addr %s2161, 4
      %s2163 = scalar_lea.vmem %s3, %s2162
      // Predicated region
      $region33: #{two_branch_net_forward.9} parent=31 // pred_check
        %p2164 = pneg %p100
      $region34: #{two_branch_net_forward.9} parent=31 // pred_check_branch
        %2166 = sbr.rel (%p2164) target = $region36
      $region35: #{two_branch_net_forward.9} parent=31 // pred_region
        %s2167 = smul.u32 128, %s14
      $region36: #{two_branch_net_forward.9} parent=31 // pred_fallthru
        _
    $region32: #{two_branch_net_forward.9} parent=5 // pred_fallthru
      _
    %p2168 = scmp.le.s32.totalorder 2, %s9
    // Predicated region
    $region37: #{two_branch_net_forward.9} parent=5 // pred_check
      %p2169 = pneg %p2168
    $region38: #{two_branch_net_forward.9} parent=5 // pred_check_branch
      %2171 = sbr.rel (%p2169) target = $region40
    $region39: #{two_branch_net_forward.9} parent=5 // pred_region
      %s2172 = ssub.s32 %s9, 2
      // Predicated region
      $region41: #{two_branch_net_forward.9} parent=39 // pred_check
        %p2173 = pneg %p106
      $region42: #{two_branch_net_forward.9} parent=39 // pred_check_branch
        %2175 = sbr.rel (%p2173) target = $region44
      $region43: #{two_branch_net_forward.9} parent=39 // pred_region
        %s2176 = smul.u32 128, %s15
        %p2177 = scmp.lt.s32.totalorder %s2176, 1023
        %s2178 = scalar_select %p2177, %s2176, 1023
        %s2179 = smul.addr %s2178, 4
        %s2180 = scalar_lea.vmem %s3, %s2179
      $region44: #{two_branch_net_forward.9} parent=39 // pred_fallthru
        _
    $region40: #{two_branch_net_forward.9} parent=5 // pred_fallthru
      _
  $region6: #{two_branch_net_forward.9} parent=0 // loop_footer
    %s13 = sadd.s32 1, %s9
  $region7: #{two_branch_net_forward.9} parent=0 // loop_footer_branch
    %8 = sbr.rel target = $region3
  $region8: #{two_branch_net_forward.9} parent=0 // loop_exit
    _

// kernel: two_branch_net_forward.10
$region0: #{two_branch_net_forward.10}
  #allocation0 [shape = 'u32[]', space=smem, size = 0x4, offset = 0x4, fixed_abs, tag = 'smem constant byte address 0x4 - core index']
  #allocation1 [shape = 'u32[144,128]{1,0:T(1,128)}', space=vmem, size = 0x12000, scoped, tag = 'internal scratch']
  %s0 = inlined_call_operand.vmem [shape: bf16[2048,36], index: 0, kind: input, shape index: {}]
  %s1 = inlined_call_operand.vmem [shape: bf16[36,8], index: 1, kind: input, shape index: {}]
  %s2 = inlined_call_operand.vmem [shape: f32[1,8], index: 2, kind: input, shape index: {}]
  %s3 = inlined_call_operand.vmem [shape: bf16[2048,8], index: 3, kind: output, shape index: {}]
  %s4 = sld [smem:[#allocation0]]
  $region45: #{two_branch_net_forward.10} parent=0
    _
  %s6 = ssub.s32 1, %s4
  %s7 = scalar_select 0, %s6, %s4
  loop: start=0, step=1, limit=4
  $region2: #{two_branch_net_forward.10} parent=0 // loop_pre_header
    _
  $region3: #{two_branch_net_forward.10} parent=0 // loop_header
    %s9 = sphi 0, %s13
    %p10 = scmp.ge.s32.totalorder %s9, 4
    %s19 = sphi 0, %s21
    %s22 = sphi 0, %s19
    %s23 = sphi 0, %s22
    %s39 = sphi 0, %s23
    %s43 = sphi 0, %s43
    %s45 = sphi 0, %s43
    %s46 = sphi 0, %s45
    %s60 = sphi 0, %s46
    %s64 = sphi 0, %s64
    %s66 = sphi 0, %s64
    %s67 = sphi 0, %s66
    %s81 = sphi 0, %s67
    %s87 = sphi 0, %s89
    %s90 = sphi 0, %s87
    %s91 = sphi 0, %s90
    %s107 = sphi 0, %s91
  $region4: #{two_branch_net_forward.10} parent=0 // loop_header_branch
    %12 = sbr.rel (%p10) target = $region8
  $region5: #{two_branch_net_forward.10} parent=0 // loop_body
    %s14 = ssub.s32 %s9, 1
    %s15 = ssub.s32 %s9, 2
    %s16 = sadd.s32 %s9, 1
    %s17 = ssub.s32 %s9, %s16
    %p18 = scmp.eq.s32.totalorder %s17, 0
    %s20 = sadd.s32 %s19, 1
    %s21 = scalar_select %p18, %s19, %s20
    %p24 = pneg %p18
    %p25 = scmp.eq.s32.totalorder %s9, 1
    %p26 = por %p24, %p25
    %p27 = scmp.ne.s32.totalorder %s19, %s22
    %p28 = scmp.eq.s32.totalorder %s9, 0
    %p29 = por %p27, %p28
    %p30 = scmp.ne.s32.totalorder %s19, %s22
    %p31 = scmp.eq.s32.totalorder %s14, 1
    %p32 = por %p30, %p31
    %p33 = scmp.ne.s32.totalorder %s22, %s23
    %p34 = scmp.eq.s32.totalorder %s14, 0
    %p35 = por %p33, %p34
    %p36 = scmp.ne.s32.totalorder %s22, %s23
    %p37 = scmp.eq.s32.totalorder %s15, 1
    %p38 = por %p36, %p37
    %p40 = scmp.ne.s32.totalorder %s23, %s39
    %p41 = scmp.eq.s32.totalorder %s15, 0
    %p42 = por %p40, %p41
    %s44 = sadd.s32 %s43, 1
    %p47 = scmp.eq.s32.totalorder %s9, 1
    %p48 = scmp.ne.s32.totalorder %s43, %s45
    %p49 = scmp.eq.s32.totalorder %s9, 0
    %p50 = por %p48, %p49
    %p51 = scmp.ne.s32.totalorder %s43, %s45
    %p52 = scmp.eq.s32.totalorder %s14, 1
    %p53 = por %p51, %p52
    %p54 = scmp.ne.s32.totalorder %s45, %s46
    %p55 = scmp.eq.s32.totalorder %s14, 0
    %p56 = por %p54, %p55
    %p57 = scmp.ne.s32.totalorder %s45, %s46
    %p58 = scmp.eq.s32.totalorder %s15, 1
    %p59 = por %p57, %p58
    %p61 = scmp.ne.s32.totalorder %s46, %s60
    %p62 = scmp.eq.s32.totalorder %s15, 0
    %p63 = por %p61, %p62
    %s65 = sadd.s32 %s64, 1
    %p68 = scmp.eq.s32.totalorder %s9, 1
    %p69 = scmp.ne.s32.totalorder %s64, %s66
    %p70 = scmp.eq.s32.totalorder %s9, 0
    %p71 = por %p69, %p70
    %p72 = scmp.ne.s32.totalorder %s64, %s66
    %p73 = scmp.eq.s32.totalorder %s14, 1
    %p74 = por %p72, %p73
    %p75 = scmp.ne.s32.totalorder %s66, %s67
    %p76 = scmp.eq.s32.totalorder %s14, 0
    %p77 = por %p75, %p76
    %p78 = scmp.ne.s32.totalorder %s66, %s67
    %p79 = scmp.eq.s32.totalorder %s15, 1
    %p80 = por %p78, %p79
    %p82 = scmp.ne.s32.totalorder %s67, %s81
    %p83 = scmp.eq.s32.totalorder %s15, 0
    %p84 = por %p82, %p83
    %s85 = ssub.s32 %s9, %s16
    %p86 = scmp.eq.s32.totalorder %s85, 0
    %s88 = sadd.s32 %s87, 1
    %s89 = scalar_select %p86, %s87, %s88
    %p92 = pneg %p86
    %p93 = scmp.eq.s32.totalorder %s9, 1
    %p94 = por %p92, %p93
    %p95 = scmp.ne.s32.totalorder %s87, %s90
    %p96 = scmp.eq.s32.totalorder %s9, 0
    %p97 = por %p95, %p96
    %p98 = scmp.ne.s32.totalorder %s87, %s90
    %p99 = scmp.eq.s32.totalorder %s14, 1
    %p100 = por %p98, %p99
    %p101 = scmp.ne.s32.totalorder %s90, %s91
    %p102 = scmp.eq.s32.totalorder %s14, 0
    %p103 = por %p101, %p102
    %p104 = scmp.ne.s32.totalorder %s90, %s91
    %p105 = scmp.eq.s32.totalorder %s15, 1
    %p106 = por %p104, %p105
    %p108 = scmp.ne.s32.totalorder %s91, %s107
    %p109 = scmp.eq.s32.totalorder %s15, 0
    %p110 = por %p108, %p109
    %p111 = scmp.le.s32.totalorder 1, %s9
    %p112 = scmp.lt.s32.totalorder %s9, 3
    %p113 = pnand %p111, %p112
    %p114 = pneg %p113
    // Predicated region
    $region9: #{two_branch_net_forward.10} parent=5 // pred_check
      _
    $region10: #{two_branch_net_forward.10} parent=5 // pred_check_branch
      %116 = sbr.rel (%p113) target = $region12
    $region11: #{two_branch_net_forward.10} parent=5 // pred_region
      %s117 = ssub.s32 %s9, 1
      // Predicated region
      $region13: #{two_branch_net_forward.10} parent=11 // pred_check
        %p118 = pneg %p56
      $region14: #{two_branch_net_forward.10} parent=11 // pred_check_branch
        %120 = sbr.rel (%p118) target = $region16
      $region15: #{two_branch_net_forward.10} parent=11 // pred_region
        _
      $region16: #{two_branch_net_forward.10} parent=11 // pred_fallthru
        _
      // Predicated region
      $region17: #{two_branch_net_forward.10} parent=11 // pred_check
        %p121 = pneg %p77
      $region18: #{two_branch_net_forward.10} parent=11 // pred_check_branch
        %123 = sbr.rel (%p121) target = $region20
      $region19: #{two_branch_net_forward.10} parent=11 // pred_region
        _
      $region20: #{two_branch_net_forward.10} parent=11 // pred_fallthru
        _
    $region12: #{two_branch_net_forward.10} parent=5 // pred_fallthru
      _
    %p124 = scmp.lt.s32.totalorder %s9, 2
    // Predicated region
    $region21: #{two_branch_net_forward.10} parent=5 // pred_check
      %p125 = pneg %p124
    $region22: #{two_branch_net_forward.10} parent=5 // pred_check_branch
      %127 = sbr.rel (%p125) target = $region24
    $region23: #{two_branch_net_forward.10} parent=5 // pred_region
      // Predicated region
      $region25: #{two_branch_net_forward.10} parent=23 // pred_check
        %p128 = pneg %p29
      $region26: #{two_branch_net_forward.10} parent=23 // pred_check_branch
        %130 = sbr.rel (%p128) target = $region28
      $region27: #{two_branch_net_forward.10} parent=23 // pred_region
        %s131 = smul.u32 128, %s9
        %p132 = scmp.lt.s32.totalorder %s131, 255
        %s133 = scalar_select %p132, %s131, 255
        %s134 = smul.addr %s133, 4
        %s135 = scalar_lea.vmem %s0, %s134
        %s136 = smul.u32 128, %s9
      $region28: #{two_branch_net_forward.10} parent=23 // pred_fallthru
        _
    $region24: #{two_branch_net_forward.10} parent=5 // pred_fallthru
      _
    %p137 = scmp.le.s32.totalorder 1, %s9
    %p138 = scmp.lt.s32.totalorder %s9, 3
    %p139 = pnand %p137, %p138
    %p140 = pneg %p139
    // Predicated region
    $region29: #{two_branch_net_forward.10} parent=5 // pred_check
      _
    $region30: #{two_branch_net_forward.10} parent=5 // pred_check_branch
      %142 = sbr.rel (%p139) target = $region32
    $region31: #{two_branch_net_forward.10} parent=5 // pred_region
      %s143 = ssub.s32 %s9, 1
      %s144 = smul.u32 128, %s14
      %p145 = scmp.lt.s32.totalorder %s144, 255
      %s146 = scalar_select %p145, %s144, 255
      %s147 = smul.addr %s146, 4
      %s148 = scalar_lea.vmem %s0, %s147
      %p149 = pneg %p35
      %p150 = pneg %p32
      %p151 = pneg %p56
      %p152 = pneg %p53
      %p153 = pneg %p77
      %p154 = pneg %p74
      %p155 = pneg %p103
      %p156 = pneg %p100
      %s157 = smul.u32 128, %s14
      %p158 = scmp.lt.s32.totalorder %s157, 255
      %s159 = scalar_select %p158, %s157, 255
      %s160 = smul.addr %s159, 4
      %s161 = scalar_lea.vmem %s3, %s160
      %s162 = smul.u32 128, %s14
      %p163 = scmp.lt.s32.totalorder %s162, 255
      %s164 = scalar_select %p163, %s162, 255
      %s165 = smul.addr %s164, 4
      %s166 = scalar_lea.vmem %s0, %s165
      %s167 = smul.u32 128, %s14
      %s168 = smul.u32 128, %s14
      %p169 = scmp.lt.s32.totalorder %s168, 255
      %s170 = scalar_select %p169, %s168, 255
      %s171 = smul.addr %s170, 4
      %s172 = scalar_lea.vmem %s3, %s171
      %s173 = smul.u32 128, %s14
      %v175 = vld [vmem:[%s166] sm:$0xf]
      %v176 = vld [vmem:[%s166 + $0x4] sm:$0xf]
      %v177 = vld [vmem:[%s166 + $0x8] sm:$0xf]
      %v178 = vld [vmem:[%s166 + $0xc] sm:$0xf]
      %v179 = vld [vmem:[%s166 + $0x10] sm:$0xf]
      %v180 = vld [vmem:[%s166 + $0x14] sm:$0xf]
      %v181 = vld [vmem:[%s166 + $0x18] sm:$0xf]
      %v182 = vld [vmem:[%s166 + $0x1c] sm:$0xf]
      %v183 = vld [vmem:[%s166 + $0x20] sm:$0xf]
      %v184 = vld [vmem:[%s166 + $0x24] sm:$0xf]
      %v185 = vld [vmem:[%s166 + $0x28] sm:$0xf]
      %v186 = vld [vmem:[%s166 + $0x2c] sm:$0xf]
      %v187 = vld [vmem:[%s166 + $0x30] sm:$0xf]
      %v188 = vld [vmem:[%s166 + $0x34] sm:$0xf]
      %v189 = vld [vmem:[%s166 + $0x38] sm:$0xf]
      %v190 = vld [vmem:[%s166 + $0x3c] sm:$0xf]
      %v191 = vld [vmem:[%s166 + $0x40] sm:$0xf]
      %v192 = vld [vmem:[%s166 + $0x44] sm:$0xf]
      %v193 = vld [vmem:[%s166 + $0x48] sm:$0xf]
      %v194 = vld [vmem:[%s166 + $0x4c] sm:$0xf]
      %v195 = vld [vmem:[%s166 + $0x50] sm:$0xf]
      %v196 = vld [vmem:[%s166 + $0x54] sm:$0xf]
      %v197 = vld [vmem:[%s166 + $0x58] sm:$0xf]
      %v198 = vld [vmem:[%s166 + $0x5c] sm:$0xf]
      %v199 = vld [vmem:[%s166 + $0x60] sm:$0xf]
      %v200 = vld [vmem:[%s166 + $0x64] sm:$0xf]
      %v201 = vld [vmem:[%s166 + $0x68] sm:$0xf]
      %v202 = vld [vmem:[%s166 + $0x6c] sm:$0xf]
      %v203 = vld [vmem:[%s166 + $0x70] sm:$0xf]
      %v204 = vld [vmem:[%s166 + $0x74] sm:$0xf]
      %v205 = vld [vmem:[%s166 + $0x78] sm:$0xf]
      %v206 = vld [vmem:[%s166 + $0x7c] sm:$0xf]
      %v207 = vld [vmem:[%s166 + $0x80] sm:$0xf]
      %v208 = vld [vmem:[%s166 + $0x84] sm:$0xf]
      %v209 = vld [vmem:[%s166 + $0x88] sm:$0xf]
      %v210 = vld [vmem:[%s166 + $0x8c] sm:$0xf]
      %v211 = vld [vmem:[%s166 + $0x90] sm:$0xf]
      %v212 = vld [vmem:[%s166 + $0x94] sm:$0xf]
      %v213 = vld [vmem:[%s166 + $0x98] sm:$0xf]
      %v214 = vld [vmem:[%s166 + $0x9c] sm:$0xf]
      %v215 = vld [vmem:[%s166 + $0xa0] sm:$0xf]
      %v216 = vld [vmem:[%s166 + $0xa4] sm:$0xf]
      %v217 = vld [vmem:[%s166 + $0xa8] sm:$0xf]
      %v218 = vld [vmem:[%s166 + $0xac] sm:$0xf]
      %v219 = vld [vmem:[%s166 + $0xb0] sm:$0xf]
      %v220 = vld [vmem:[%s166 + $0xb4] sm:$0xf]
      %v221 = vld [vmem:[%s166 + $0xb8] sm:$0xf]
      %v222 = vld [vmem:[%s166 + $0xbc] sm:$0xf]
      %v223 = vld [vmem:[%s166 + $0xc0] sm:$0xf]
      %v224 = vld [vmem:[%s166 + $0xc4] sm:$0xf]
      %v225 = vld [vmem:[%s166 + $0xc8] sm:$0xf]
      %v226 = vld [vmem:[%s166 + $0xcc] sm:$0xf]
      %v227 = vld [vmem:[%s166 + $0xd0] sm:$0xf]
      %v228 = vld [vmem:[%s166 + $0xd4] sm:$0xf]
      %v229 = vld [vmem:[%s166 + $0xd8] sm:$0xf]
      %v230 = vld [vmem:[%s166 + $0xdc] sm:$0xf]
      %v231 = vld [vmem:[%s166 + $0xe0] sm:$0xf]
      %v232 = vld [vmem:[%s166 + $0xe4] sm:$0xf]
      %v233 = vld [vmem:[%s166 + $0xe8] sm:$0xf]
      %v234 = vld [vmem:[%s166 + $0xec] sm:$0xf]
      %v235 = vld [vmem:[%s166 + $0xf0] sm:$0xf]
      %v236 = vld [vmem:[%s166 + $0xf4] sm:$0xf]
      %v237 = vld [vmem:[%s166 + $0xf8] sm:$0xf]
      %v238 = vld [vmem:[%s166 + $0xfc] sm:$0xf]
      %v239 = vld [vmem:[%s166 + $0x100] sm:$0xf]
      %v240 = vld [vmem:[%s166 + $0x104] sm:$0xf]
      %v241 = vld [vmem:[%s166 + $0x108] sm:$0xf]
      %v242 = vld [vmem:[%s166 + $0x10c] sm:$0xf]
      %v243 = vld [vmem:[%s166 + $0x110] sm:$0xf]
      %v244 = vld [vmem:[%s166 + $0x114] sm:$0xf]
      %v245 = vld [vmem:[%s166 + $0x118] sm:$0xf]
      %v246 = vld [vmem:[%s166 + $0x11c] sm:$0xf]
      %v247 = vld [vmem:[%s166 + $0x120] sm:$0xf]
      %v248 = vld [vmem:[%s166 + $0x124] sm:$0xf]
      %v249 = vld [vmem:[%s166 + $0x128] sm:$0xf]
      %v250 = vld [vmem:[%s166 + $0x12c] sm:$0xf]
      %v251 = vld [vmem:[%s166 + $0x130] sm:$0xf]
      %v252 = vld [vmem:[%s166 + $0x134] sm:$0xf]
      %v253 = vld [vmem:[%s166 + $0x138] sm:$0xf]
      %v254 = vld [vmem:[%s166 + $0x13c] sm:$0xf]
      %v255 = vld [vmem:[%s166 + $0x140] sm:$0xf]
      %v256 = vld [vmem:[%s166 + $0x144] sm:$0xf]
      %v257 = vld [vmem:[%s166 + $0x148] sm:$0xf]
      %v258 = vld [vmem:[%s166 + $0x14c] sm:$0xf]
      %v259 = vld [vmem:[%s166 + $0x150] sm:$0xf]
      %v260 = vld [vmem:[%s166 + $0x154] sm:$0xf]
      %v261 = vld [vmem:[%s166 + $0x158] sm:$0xf]
      %v262 = vld [vmem:[%s166 + $0x15c] sm:$0xf]
      %v263 = vld [vmem:[%s166 + $0x160] sm:$0xf]
      %v264 = vld [vmem:[%s166 + $0x164] sm:$0xf]
      %v265 = vld [vmem:[%s166 + $0x168] sm:$0xf]
      %v266 = vld [vmem:[%s166 + $0x16c] sm:$0xf]
      %v267 = vld [vmem:[%s166 + $0x170] sm:$0xf]
      %v268 = vld [vmem:[%s166 + $0x174] sm:$0xf]
      %v269 = vld [vmem:[%s166 + $0x178] sm:$0xf]
      %v270 = vld [vmem:[%s166 + $0x17c] sm:$0xf]
      %v271 = vld [vmem:[%s166 + $0x180] sm:$0xf]
      %v272 = vld [vmem:[%s166 + $0x184] sm:$0xf]
      %v273 = vld [vmem:[%s166 + $0x188] sm:$0xf]
      %v274 = vld [vmem:[%s166 + $0x18c] sm:$0xf]
      %v275 = vld [vmem:[%s166 + $0x190] sm:$0xf]
      %v276 = vld [vmem:[%s166 + $0x194] sm:$0xf]
      %v277 = vld [vmem:[%s166 + $0x198] sm:$0xf]
      %v278 = vld [vmem:[%s166 + $0x19c] sm:$0xf]
      %v279 = vld [vmem:[%s166 + $0x1a0] sm:$0xf]
      %v280 = vld [vmem:[%s166 + $0x1a4] sm:$0xf]
      %v281 = vld [vmem:[%s166 + $0x1a8] sm:$0xf]
      %v282 = vld [vmem:[%s166 + $0x1ac] sm:$0xf]
      %v283 = vld [vmem:[%s166 + $0x1b0] sm:$0xf]
      %v284 = vld [vmem:[%s166 + $0x1b4] sm:$0xf]
      %v285 = vld [vmem:[%s166 + $0x1b8] sm:$0xf]
      %v286 = vld [vmem:[%s166 + $0x1bc] sm:$0xf]
      %v287 = vld [vmem:[%s166 + $0x1c0] sm:$0xf]
      %v288 = vld [vmem:[%s166 + $0x1c4] sm:$0xf]
      %v289 = vld [vmem:[%s166 + $0x1c8] sm:$0xf]
      %v290 = vld [vmem:[%s166 + $0x1cc] sm:$0xf]
      %v291 = vld [vmem:[%s166 + $0x1d0] sm:$0xf]
      %v292 = vld [vmem:[%s166 + $0x1d4] sm:$0xf]
      %v293 = vld [vmem:[%s166 + $0x1d8] sm:$0xf]
      %v294 = vld [vmem:[%s166 + $0x1dc] sm:$0xf]
      %v295 = vld [vmem:[%s166 + $0x1e0] sm:$0xf]
      %v296 = vld [vmem:[%s166 + $0x1e4] sm:$0xf]
      %v297 = vld [vmem:[%s166 + $0x1e8] sm:$0xf]
      %v298 = vld [vmem:[%s166 + $0x1ec] sm:$0xf]
      %v299 = vld [vmem:[%s166 + $0x1f0] sm:$0xf]
      %v300 = vld [vmem:[%s166 + $0x1f4] sm:$0xf]
      %v301 = vld [vmem:[%s166 + $0x1f8] sm:$0xf]
      %v302 = vld [vmem:[%s166 + $0x1fc] sm:$0xf]
      %v303 = vld [vmem:[%s1] sm:$0xf]
      %v304 = vld [vmem:[%s1 + $0x4] sm:$0xf]
      %v305 = vld [vmem:[%s1 + $0x8] sm:$0xf]
      %v306 = vld [vmem:[%s1 + $0xc] sm:$0xf]
      %v307 = vld [vmem:[%s1 + $0x10] sm:$0x3]
      %v308 = vld [vmem:[%s2] sm:$0x1]
      %v310 = vlaneseq
      %v311 = vshrl.u32 %v310, 7
      %v312 = vsub.s32 0, %v311
      %v313 = vrot.slane %v308, %v312
      %v443 = vunpack.c.l.b16 %v175
      %v444 = vunpack.c.l.b16 %v176
      %v445 = vunpack.c.l.b16 %v177
      %v446 = vunpack.c.l.b16 %v178
      %v447 = vunpack.c.l.b16 %v179
      %v448 = vunpack.c.l.b16 %v180
      %v449 = vunpack.c.l.b16 %v181
      %v450 = vunpack.c.l.b16 %v182
      %v451 = vunpack.c.l.b16 %v183
      %v452 = vunpack.c.l.b16 %v184
      %v453 = vunpack.c.l.b16 %v185
      %v454 = vunpack.c.l.b16 %v186
      %v455 = vunpack.c.l.b16 %v187
      %v456 = vunpack.c.l.b16 %v188
      %v457 = vunpack.c.l.b16 %v189
      %v458 = vunpack.c.l.b16 %v190
      %v459 = vunpack.c.l.b16 %v191
      %v460 = vunpack.c.l.b16 %v192
      %v461 = vunpack.c.l.b16 %v193
      %v462 = vunpack.c.l.b16 %v194
      %v463 = vunpack.c.l.b16 %v195
      %v464 = vunpack.c.l.b16 %v196
      %v465 = vunpack.c.l.b16 %v197
      %v466 = vunpack.c.l.b16 %v198
      %v467 = vunpack.c.l.b16 %v199
      %v468 = vunpack.c.l.b16 %v200
      %v469 = vunpack.c.l.b16 %v201
      %v470 = vunpack.c.l.b16 %v202
      %v471 = vunpack.c.l.b16 %v203
      %v472 = vunpack.c.l.b16 %v204
      %v473 = vunpack.c.l.b16 %v205
      %v474 = vunpack.c.l.b16 %v206
      %v475 = vunpack.c.l.b16 %v207
      %v476 = vunpack.c.l.b16 %v208
      %v477 = vunpack.c.l.b16 %v209
      %v478 = vunpack.c.l.b16 %v210
      %v479 = vunpack.c.l.b16 %v211
      %v480 = vunpack.c.l.b16 %v212
      %v481 = vunpack.c.l.b16 %v213
      %v482 = vunpack.c.l.b16 %v214
      %v483 = vunpack.c.l.b16 %v215
      %v484 = vunpack.c.l.b16 %v216
      %v485 = vunpack.c.l.b16 %v217
      %v486 = vunpack.c.l.b16 %v218
      %v487 = vunpack.c.l.b16 %v219
      %v488 = vunpack.c.l.b16 %v220
      %v489 = vunpack.c.l.b16 %v221
      %v490 = vunpack.c.l.b16 %v222
      %v491 = vunpack.c.l.b16 %v223
      %v492 = vunpack.c.l.b16 %v224
      %v493 = vunpack.c.l.b16 %v225
      %v494 = vunpack.c.l.b16 %v226
      %v495 = vunpack.c.l.b16 %v227
      %v496 = vunpack.c.l.b16 %v228
      %v497 = vunpack.c.l.b16 %v229
      %v498 = vunpack.c.l.b16 %v230
      %v499 = vunpack.c.l.b16 %v231
      %v500 = vunpack.c.l.b16 %v232
      %v501 = vunpack.c.l.b16 %v233
      %v502 = vunpack.c.l.b16 %v234
      %v503 = vunpack.c.l.b16 %v235
      %v504 = vunpack.c.l.b16 %v236
      %v505 = vunpack.c.l.b16 %v237
      %v506 = vunpack.c.l.b16 %v238
      %v507 = vunpack.c.l.b16 %v239
      %v508 = vunpack.c.l.b16 %v240
      %v509 = vunpack.c.l.b16 %v241
      %v510 = vunpack.c.l.b16 %v242
      %v511 = vunpack.c.l.b16 %v243
      %v512 = vunpack.c.l.b16 %v244
      %v513 = vunpack.c.l.b16 %v245
      %v514 = vunpack.c.l.b16 %v246
      %v515 = vunpack.c.l.b16 %v247
      %v516 = vunpack.c.l.b16 %v248
      %v517 = vunpack.c.l.b16 %v249
      %v518 = vunpack.c.l.b16 %v250
      %v519 = vunpack.c.l.b16 %v251
      %v520 = vunpack.c.l.b16 %v252
      %v521 = vunpack.c.l.b16 %v253
      %v522 = vunpack.c.l.b16 %v254
      %v523 = vunpack.c.l.b16 %v255
      %v524 = vunpack.c.l.b16 %v256
      %v525 = vunpack.c.l.b16 %v257
      %v526 = vunpack.c.l.b16 %v258
      %v527 = vunpack.c.l.b16 %v259
      %v528 = vunpack.c.l.b16 %v260
      %v529 = vunpack.c.l.b16 %v261
      %v530 = vunpack.c.l.b16 %v262
      %v531 = vunpack.c.l.b16 %v263
      %v532 = vunpack.c.l.b16 %v264
      %v533 = vunpack.c.l.b16 %v265
      %v534 = vunpack.c.l.b16 %v266
      %v535 = vunpack.c.l.b16 %v267
      %v536 = vunpack.c.l.b16 %v268
      %v537 = vunpack.c.l.b16 %v269
      %v538 = vunpack.c.l.b16 %v270
      %v539 = vunpack.c.l.b16 %v271
      %v540 = vunpack.c.l.b16 %v272
      %v541 = vunpack.c.l.b16 %v273
      %v542 = vunpack.c.l.b16 %v274
      %v543 = vunpack.c.l.b16 %v275
      %v544 = vunpack.c.l.b16 %v276
      %v545 = vunpack.c.l.b16 %v277
      %v546 = vunpack.c.l.b16 %v278
      %v547 = vunpack.c.l.b16 %v279
      %v548 = vunpack.c.l.b16 %v280
      %v549 = vunpack.c.l.b16 %v281
      %v550 = vunpack.c.l.b16 %v282
      %v551 = vunpack.c.l.b16 %v283
      %v552 = vunpack.c.l.b16 %v284
      %v553 = vunpack.c.l.b16 %v285
      %v554 = vunpack.c.l.b16 %v286
      %v555 = vunpack.c.l.b16 %v287
      %v556 = vunpack.c.l.b16 %v288
      %v557 = vunpack.c.l.b16 %v289
      %v558 = vunpack.c.l.b16 %v290
      %v559 = vunpack.c.l.b16 %v291
      %v560 = vunpack.c.l.b16 %v292
      %v561 = vunpack.c.l.b16 %v293
      %v562 = vunpack.c.l.b16 %v294
      %v563 = vunpack.c.l.b16 %v295
      %v564 = vunpack.c.l.b16 %v296
      %v565 = vunpack.c.l.b16 %v297
      %v566 = vunpack.c.l.b16 %v298
      %v567 = vunpack.c.l.b16 %v299
      %v568 = vunpack.c.l.b16 %v300
      %v569 = vunpack.c.l.b16 %v301
      %v570 = vunpack.c.l.b16 %v302
      %v571 = vpack.c.b16 %v444, %v443
      %v572 = vpack.c.b16 %v446, %v445
      %v573 = vpack.c.b16 %v448, %v447
      %v574 = vpack.c.b16 %v450, %v449
      %v575 = vpack.c.b16 %v452, %v451
      %v576 = vpack.c.b16 %v454, %v453
      %v577 = vpack.c.b16 %v456, %v455
      %v578 = vpack.c.b16 %v458, %v457
      %v579 = vpack.c.b16 %v460, %v459
      %v580 = vpack.c.b16 %v462, %v461
      %v581 = vpack.c.b16 %v464, %v463
      %v582 = vpack.c.b16 %v466, %v465
      %v583 = vpack.c.b16 %v468, %v467
      %v584 = vpack.c.b16 %v470, %v469
      %v585 = vpack.c.b16 %v472, %v471
      %v586 = vpack.c.b16 %v474, %v473
      %v587 = vpack.c.b16 %v476, %v475
      %v588 = vpack.c.b16 %v478, %v477
      %v589 = vpack.c.b16 %v480, %v479
      %v590 = vpack.c.b16 %v482, %v481
      %v591 = vpack.c.b16 %v484, %v483
      %v592 = vpack.c.b16 %v486, %v485
      %v593 = vpack.c.b16 %v488, %v487
      %v594 = vpack.c.b16 %v490, %v489
      %v595 = vpack.c.b16 %v492, %v491
      %v596 = vpack.c.b16 %v494, %v493
      %v597 = vpack.c.b16 %v496, %v495
      %v598 = vpack.c.b16 %v498, %v497
      %v599 = vpack.c.b16 %v500, %v499
      %v600 = vpack.c.b16 %v502, %v501
      %v601 = vpack.c.b16 %v504, %v503
      %v602 = vpack.c.b16 %v506, %v505
      %v603 = vpack.c.b16 %v508, %v507
      %v604 = vpack.c.b16 %v510, %v509
      %v605 = vpack.c.b16 %v512, %v511
      %v606 = vpack.c.b16 %v514, %v513
      %v607 = vpack.c.b16 %v516, %v515
      %v608 = vpack.c.b16 %v518, %v517
      %v609 = vpack.c.b16 %v520, %v519
      %v610 = vpack.c.b16 %v522, %v521
      %v611 = vpack.c.b16 %v524, %v523
      %v612 = vpack.c.b16 %v526, %v525
      %v613 = vpack.c.b16 %v528, %v527
      %v614 = vpack.c.b16 %v530, %v529
      %v615 = vpack.c.b16 %v532, %v531
      %v616 = vpack.c.b16 %v534, %v533
      %v617 = vpack.c.b16 %v536, %v535
      %v618 = vpack.c.b16 %v538, %v537
      %v619 = vpack.c.b16 %v540, %v539
      %v620 = vpack.c.b16 %v542, %v541
      %v621 = vpack.c.b16 %v544, %v543
      %v622 = vpack.c.b16 %v546, %v545
      %v623 = vpack.c.b16 %v548, %v547
      %v624 = vpack.c.b16 %v550, %v549
      %v625 = vpack.c.b16 %v552, %v551
      %v626 = vpack.c.b16 %v554, %v553
      %v627 = vpack.c.b16 %v556, %v555
      %v628 = vpack.c.b16 %v558, %v557
      %v629 = vpack.c.b16 %v560, %v559
      %v630 = vpack.c.b16 %v562, %v561
      %v631 = vpack.c.b16 %v564, %v563
      %v632 = vpack.c.b16 %v566, %v565
      %v633 = vpack.c.b16 %v568, %v567
      %v634 = vpack.c.b16 %v570, %v569
      %v640 = vunpack.c.l.b16 %v303
      %v641 = vunpack.c.l.b16 %v304
      %v642 = vunpack.c.l.b16 %v305
      %v643 = vunpack.c.l.b16 %v306
      %v644 = vunpack.c.l.b16 %v307
      %v645 = vpack.c.b16 %v641, %v640
      %v646 = vpack.c.b16 %v643, %v642
      %v647 = vpack.c.b16 %v644, %v644
      %vm650 = vcmask 293888
      %v652 = vsel %vm650, %v571, 0
      %v655 = vsel %vm650, %v572, 0
      %v658 = vsel %vm650, %v573, 0
      %v661 = vsel %vm650, %v574, 0
      %v664 = vsel %vm650, %v575, 0
      %v667 = vsel %vm650, %v576, 0
      %v670 = vsel %vm650, %v577, 0
      %v673 = vsel %vm650, %v578, 0
      %v676 = vsel %vm650, %v579, 0
      %v679 = vsel %vm650, %v580, 0
      %v682 = vsel %vm650, %v581, 0
      %v685 = vsel %vm650, %v582, 0
      %v688 = vsel %vm650, %v583, 0
      %v691 = vsel %vm650, %v584, 0
      %v694 = vsel %vm650, %v585, 0
      %v697 = vsel %vm650, %v586, 0
      %v700 = vsel %vm650, %v587, 0
      %v703 = vsel %vm650, %v588, 0
      %v706 = vsel %vm650, %v589, 0
      %v709 = vsel %vm650, %v590, 0
      %v712 = vsel %vm650, %v591, 0
      %v715 = vsel %vm650, %v592, 0
      %v718 = vsel %vm650, %v593, 0
      %v721 = vsel %vm650, %v594, 0
      %v724 = vsel %vm650, %v595, 0
      %v727 = vsel %vm650, %v596, 0
      %v730 = vsel %vm650, %v597, 0
      %v733 = vsel %vm650, %v598, 0
      %v736 = vsel %vm650, %v599, 0
      %v739 = vsel %vm650, %v600, 0
      %v742 = vsel %vm650, %v601, 0
      %v745 = vsel %vm650, %v602, 0
      %v748 = vsel %vm650, %v603, 0
      %v751 = vsel %vm650, %v604, 0
      %v754 = vsel %vm650, %v605, 0
      %v757 = vsel %vm650, %v606, 0
      %v760 = vsel %vm650, %v607, 0
      %v763 = vsel %vm650, %v608, 0
      %v766 = vsel %vm650, %v609, 0
      %v769 = vsel %vm650, %v610, 0
      %v772 = vsel %vm650, %v611, 0
      %v775 = vsel %vm650, %v612, 0
      %v778 = vsel %vm650, %v613, 0
      %v781 = vsel %vm650, %v614, 0
      %v784 = vsel %vm650, %v615, 0
      %v787 = vsel %vm650, %v616, 0
      %v790 = vsel %vm650, %v617, 0
      %v793 = vsel %vm650, %v618, 0
      %v796 = vsel %vm650, %v619, 0
      %v799 = vsel %vm650, %v620, 0
      %v802 = vsel %vm650, %v621, 0
      %v805 = vsel %vm650, %v622, 0
      %v808 = vsel %vm650, %v623, 0
      %v811 = vsel %vm650, %v624, 0
      %v814 = vsel %vm650, %v625, 0
      %v817 = vsel %vm650, %v626, 0
      %v820 = vsel %vm650, %v627, 0
      %v823 = vsel %vm650, %v628, 0
      %v826 = vsel %vm650, %v629, 0
      %v829 = vsel %vm650, %v630, 0
      %v832 = vsel %vm650, %v631, 0
      %v835 = vsel %vm650, %v632, 0
      %v838 = vsel %vm650, %v633, 0
      %v841 = vsel %vm650, %v634, 0
      %vm843 = vcmask 1041408
      %v845 = vsel %vm843, %v647, 0
      %847 = vmatprep.subr.bf16.mxu0 0
      %848 = vmatpush1.bf16.msra.mxu0 %v645
      %849 = vmatprep.subr.bf16.mxu0 0
      %850 = vmatpush1.bf16.msra.mxu0 %v646
      %851 = vmatprep.subr.bf16.mxu0 0
      %852 = vmatpush1.bf16.msra.mxu0 %v845
      %853 = vmatprep.subr.bf16.mxu0 0
      %854 = vmatpush1.bf16.msra.mxu0 0
      %855 = vmatprep.subr.bf16.mxu0 0
      %856 = vmatpush1.bf16.msra.mxu0 0
      %857 = vmatprep.subr.bf16.mxu0 0
      %858 = vmatpush1.bf16.msra.mxu0 0
      %859 = vmatprep.subr.bf16.mxu0 0
      %860 = vmatpush1.bf16.msra.mxu0 0
      %861 = vmatprep.subr.bf16.mxu0 0
      %862 = vmatpush1.bf16.msra.mxu0 0
      %863 = vmatprep.subr.bf16.mxu0 0
      %864 = vmatpush1.bf16.msra.mxu0 0
      %865 = vmatprep.subr.bf16.mxu0 0
      %866 = vmatpush1.bf16.msra.mxu0 0
      %867 = vmatprep.subr.bf16.mxu0 0
      %868 = vmatpush1.bf16.msra.mxu0 0
      %869 = vmatprep.subr.bf16.mxu0 0
      %870 = vmatpush1.bf16.msra.mxu0 0
      %871 = vmatprep.subr.bf16.mxu0 0
      %872 = vmatpush1.bf16.msra.mxu0 0
      %873 = vmatprep.subr.bf16.mxu0 0
      %874 = vmatpush1.bf16.msra.mxu0 0
      %875 = vmatprep.subr.bf16.mxu0 0
      %876 = vmatpush1.bf16.msra.mxu0 0
      %877 = vmatprep.subr.bf16.mxu0 0
      %878 = vmatpush1.bf16.msra.mxu0 0
      %879 = vmatprep.mubr.bf16.mxu0 0
      %880 = vmatmul.mubr.bf16.gmra.mrb[0].mxu0 %v652
      %v881 = vpop.f32.mrb[0].mxu0
      %v882 = vadd.f32 %v313, %v881
      %v883 = vpop.f32.mrb[0].mxu0
      %v884 = vpop.f32.mrb[0].mxu0
      %v885 = vadd.f32 %v313, %v884
      %v886 = vpop.f32.mrb[0].mxu0
      %887 = vmatprep.mubr.bf16.mxu0 0
      %888 = vmatmul.mubr.bf16.gmra.mrb[0].mxu0 %v655
      %v889 = vpop.f32.mrb[0].mxu0
      %v890 = vadd.f32 %v313, %v889
      %v891 = vpop.f32.mrb[0].mxu0
      %v892 = vpop.f32.mrb[0].mxu0
      %v893 = vadd.f32 %v313, %v892
      %v894 = vpop.f32.mrb[0].mxu0
      %895 = vmatprep.mubr.bf16.mxu0 0
      %896 = vmatmul.mubr.bf16.gmra.mrb[0].mxu0 %v658
      %v897 = vpop.f32.mrb[0].mxu0
      %v898 = vadd.f32 %v313, %v897
      %v899 = vpop.f32.mrb[0].mxu0
      %v900 = vpop.f32.mrb[0].mxu0
      %v901 = vadd.f32 %v313, %v900
      %v902 = vpop.f32.mrb[0].mxu0
      %903 = vmatprep.mubr.bf16.mxu0 0
      %904 = vmatmul.mubr.bf16.gmra.mrb[0].mxu0 %v661
      %v905 = vpop.f32.mrb[0].mxu0
      %v906 = vadd.f32 %v313, %v905
      %v907 = vpop.f32.mrb[0].mxu0
      %v908 = vpop.f32.mrb[0].mxu0
      %v909 = vadd.f32 %v313, %v908
      %v910 = vpop.f32.mrb[0].mxu0
      %911 = vmatprep.mubr.bf16.mxu0 0
      %912 = vmatmul.mubr.bf16.gmra.mrb[0].mxu0 %v664
      %v913 = vpop.f32.mrb[0].mxu0
      %v914 = vadd.f32 %v313, %v913
      %v915 = vpop.f32.mrb[0].mxu0
      %v916 = vpop.f32.mrb[0].mxu0
      %v917 = vadd.f32 %v313, %v916
      %v918 = vpop.f32.mrb[0].mxu0
      %919 = vmatprep.mubr.bf16.mxu0 0
      %920 = vmatmul.mubr.bf16.gmra.mrb[0].mxu0 %v667
      %v921 = vpop.f32.mrb[0].mxu0
      %v922 = vadd.f32 %v313, %v921
      %v923 = vpop.f32.mrb[0].mxu0
      %v924 = vpop.f32.mrb[0].mxu0
      %v925 = vadd.f32 %v313, %v924
      %v926 = vpop.f32.mrb[0].mxu0
      %927 = vmatprep.mubr.bf16.mxu0 0
      %928 = vmatmul.mubr.bf16.gmra.mrb[0].mxu0 %v670
      %v929 = vpop.f32.mrb[0].mxu0
      %v930 = vadd.f32 %v313, %v929
      %v931 = vpop.f32.mrb[0].mxu0
      %v932 = vpop.f32.mrb[0].mxu0
      %v933 = vadd.f32 %v313, %v932
      %v934 = vpop.f32.mrb[0].mxu0
      %935 = vmatprep.mubr.bf16.mxu0 0
      %936 = vmatmul.mubr.bf16.gmra.mrb[0].mxu0 %v673
      %v937 = vpop.f32.mrb[0].mxu0
      %v938 = vadd.f32 %v313, %v937
      %v939 = vpop.f32.mrb[0].mxu0
      %v940 = vpop.f32.mrb[0].mxu0
      %v941 = vadd.f32 %v313, %v940
      %v942 = vpop.f32.mrb[0].mxu0
      %943 = vmatprep.mubr.bf16.mxu0 0
      %944 = vmatmul.mubr.bf16.gmra.mrb[0].mxu0 %v676
      %v945 = vpop.f32.mrb[0].mxu0
      %v946 = vadd.f32 %v313, %v945
      %v947 = vpop.f32.mrb[0].mxu0
      %v948 = vpop.f32.mrb[0].mxu0
      %v949 = vadd.f32 %v313, %v948
      %v950 = vpop.f32.mrb[0].mxu0
      %951 = vmatprep.mubr.bf16.mxu0 0
      %952 = vmatmul.mubr.bf16.gmra.mrb[0].mxu0 %v679
      %v953 = vpop.f32.mrb[0].mxu0
      %v954 = vadd.f32 %v313, %v953
      %v955 = vpop.f32.mrb[0].mxu0
      %v956 = vpop.f32.mrb[0].mxu0
      %v957 = vadd.f32 %v313, %v956
      %v958 = vpop.f32.mrb[0].mxu0
      %959 = vmatprep.mubr.bf16.mxu0 0
      %960 = vmatmul.mubr.bf16.gmra.mrb[0].mxu0 %v682
      %v961 = vpop.f32.mrb[0].mxu0
      %v962 = vadd.f32 %v313, %v961
      %v963 = vpop.f32.mrb[0].mxu0
      %v964 = vpop.f32.mrb[0].mxu0
      %v965 = vadd.f32 %v313, %v964
      %v966 = vpop.f32.mrb[0].mxu0
      %967 = vmatprep.mubr.bf16.mxu0 0
      %968 = vmatmul.mubr.bf16.gmra.mrb[0].mxu0 %v685
      %v969 = vpop.f32.mrb[0].mxu0
      %v970 = vadd.f32 %v313, %v969
      %v971 = vpop.f32.mrb[0].mxu0
      %v972 = vpop.f32.mrb[0].mxu0
      %v973 = vadd.f32 %v313, %v972
      %v974 = vpop.f32.mrb[0].mxu0
      %975 = vmatprep.mubr.bf16.mxu0 0
      %976 = vmatmul.mubr.bf16.gmra.mrb[0].mxu0 %v688
      %v977 = vpop.f32.mrb[0].mxu0
      %v978 = vadd.f32 %v313, %v977
      %v979 = vpop.f32.mrb[0].mxu0
      %v980 = vpop.f32.mrb[0].mxu0
      %v981 = vadd.f32 %v313, %v980
      %v982 = vpop.f32.mrb[0].mxu0
      %983 = vmatprep.mubr.bf16.mxu0 0
      %984 = vmatmul.mubr.bf16.gmra.mrb[0].mxu0 %v691
      %v985 = vpop.f32.mrb[0].mxu0
      %v986 = vadd.f32 %v313, %v985
      %v987 = vpop.f32.mrb[0].mxu0
      %v988 = vpop.f32.mrb[0].mxu0
      %v989 = vadd.f32 %v313, %v988
      %v990 = vpop.f32.mrb[0].mxu0
      %991 = vmatprep.mubr.bf16.mxu0 0
      %992 = vmatmul.mubr.bf16.gmra.mrb[0].mxu0 %v694
      %v993 = vpop.f32.mrb[0].mxu0
      %v994 = vadd.f32 %v313, %v993
      %v995 = vpop.f32.mrb[0].mxu0
      %v996 = vpop.f32.mrb[0].mxu0
      %v997 = vadd.f32 %v313, %v996
      %v998 = vpop.f32.mrb[0].mxu0
      %999 = vmatprep.mubr.bf16.mxu0 0
      %1000 = vmatmul.mubr.bf16.gmra.mrb[0].mxu0 %v697
      %v1001 = vpop.f32.mrb[0].mxu0
      %v1002 = vadd.f32 %v313, %v1001
      %v1003 = vpop.f32.mrb[0].mxu0
      %v1004 = vpop.f32.mrb[0].mxu0
      %v1005 = vadd.f32 %v313, %v1004
      %v1006 = vpop.f32.mrb[0].mxu0
      %1007 = vmatprep.mubr.bf16.mxu0 0
      %1008 = vmatmul.mubr.bf16.gmra.mrb[0].mxu0 %v700
      %v1009 = vpop.f32.mrb[0].mxu0
      %v1010 = vadd.f32 %v313, %v1009
      %v1011 = vpop.f32.mrb[0].mxu0
      %v1012 = vpop.f32.mrb[0].mxu0
      %v1013 = vadd.f32 %v313, %v1012
      %v1014 = vpop.f32.mrb[0].mxu0
      %1015 = vmatprep.mubr.bf16.mxu0 0
      %1016 = vmatmul.mubr.bf16.gmra.mrb[0].mxu0 %v703
      %v1017 = vpop.f32.mrb[0].mxu0
      %v1018 = vadd.f32 %v313, %v1017
      %v1019 = vpop.f32.mrb[0].mxu0
      %v1020 = vpop.f32.mrb[0].mxu0
      %v1021 = vadd.f32 %v313, %v1020
      %v1022 = vpop.f32.mrb[0].mxu0
      %1023 = vmatprep.mubr.bf16.mxu0 0
      %1024 = vmatmul.mubr.bf16.gmra.mrb[0].mxu0 %v706
      %v1025 = vpop.f32.mrb[0].mxu0
      %v1026 = vadd.f32 %v313, %v1025
      %v1027 = vpop.f32.mrb[0].mxu0
      %v1028 = vpop.f32.mrb[0].mxu0
      %v1029 = vadd.f32 %v313, %v1028
      %v1030 = vpop.f32.mrb[0].mxu0
      %1031 = vmatprep.mubr.bf16.mxu0 0
      %1032 = vmatmul.mubr.bf16.gmra.mrb[0].mxu0 %v709
      %v1033 = vpop.f32.mrb[0].mxu0
      %v1034 = vadd.f32 %v313, %v1033
      %v1035 = vpop.f32.mrb[0].mxu0
      %v1036 = vpop.f32.mrb[0].mxu0
      %v1037 = vadd.f32 %v313, %v1036
      %v1038 = vpop.f32.mrb[0].mxu0
      %1039 = vmatprep.mubr.bf16.mxu0 0
      %1040 = vmatmul.mubr.bf16.gmra.mrb[0].mxu0 %v712
      %v1041 = vpop.f32.mrb[0].mxu0
      %v1042 = vadd.f32 %v313, %v1041
      %v1043 = vpop.f32.mrb[0].mxu0
      %v1044 = vpop.f32.mrb[0].mxu0
      %v1045 = vadd.f32 %v313, %v1044
      %v1046 = vpop.f32.mrb[0].mxu0
      %1047 = vmatprep.mubr.bf16.mxu0 0
      %1048 = vmatmul.mubr.bf16.gmra.mrb[0].mxu0 %v715
      %v1049 = vpop.f32.mrb[0].mxu0
      %v1050 = vadd.f32 %v313, %v1049
      %v1051 = vpop.f32.mrb[0].mxu0
      %v1052 = vpop.f32.mrb[0].mxu0
      %v1053 = vadd.f32 %v313, %v1052
      %v1054 = vpop.f32.mrb[0].mxu0
      %1055 = vmatprep.mubr.bf16.mxu0 0
      %1056 = vmatmul.mubr.bf16.gmra.mrb[0].mxu0 %v718
      %v1057 = vpop.f32.mrb[0].mxu0
      %v1058 = vadd.f32 %v313, %v1057
      %v1059 = vpop.f32.mrb[0].mxu0
      %v1060 = vpop.f32.mrb[0].mxu0
      %v1061 = vadd.f32 %v313, %v1060
      %v1062 = vpop.f32.mrb[0].mxu0
      %1063 = vmatprep.mubr.bf16.mxu0 0
      %1064 = vmatmul.mubr.bf16.gmra.mrb[0].mxu0 %v721
      %v1065 = vpop.f32.mrb[0].mxu0
      %v1066 = vadd.f32 %v313, %v1065
      %v1067 = vpop.f32.mrb[0].mxu0
      %v1068 = vpop.f32.mrb[0].mxu0
      %v1069 = vadd.f32 %v313, %v1068
      %v1070 = vpop.f32.mrb[0].mxu0
      %1071 = vmatprep.mubr.bf16.mxu0 0
      %1072 = vmatmul.mubr.bf16.gmra.mrb[0].mxu0 %v724
      %v1073 = vpop.f32.mrb[0].mxu0
      %v1074 = vadd.f32 %v313, %v1073
      %v1075 = vpop.f32.mrb[0].mxu0
      %v1076 = vpop.f32.mrb[0].mxu0
      %v1077 = vadd.f32 %v313, %v1076
      %v1078 = vpop.f32.mrb[0].mxu0
      %1079 = vmatprep.mubr.bf16.mxu0 0
      %1080 = vmatmul.mubr.bf16.gmra.mrb[0].mxu0 %v727
      %v1081 = vpop.f32.mrb[0].mxu0
      %v1082 = vadd.f32 %v313, %v1081
      %v1083 = vpop.f32.mrb[0].mxu0
      %v1084 = vpop.f32.mrb[0].mxu0
      %v1085 = vadd.f32 %v313, %v1084
      %v1086 = vpop.f32.mrb[0].mxu0
      %1087 = vmatprep.mubr.bf16.mxu0 0
      %1088 = vmatmul.mubr.bf16.gmra.mrb[0].mxu0 %v730
      %v1089 = vpop.f32.mrb[0].mxu0
      %v1090 = vadd.f32 %v313, %v1089
      %v1091 = vpop.f32.mrb[0].mxu0
      %v1092 = vpop.f32.mrb[0].mxu0
      %v1093 = vadd.f32 %v313, %v1092
      %v1094 = vpop.f32.mrb[0].mxu0
      %1095 = vmatprep.mubr.bf16.mxu0 0
      %1096 = vmatmul.mubr.bf16.gmra.mrb[0].mxu0 %v733
      %v1097 = vpop.f32.mrb[0].mxu0
      %v1098 = vadd.f32 %v313, %v1097
      %v1099 = vpop.f32.mrb[0].mxu0
      %v1100 = vpop.f32.mrb[0].mxu0
      %v1101 = vadd.f32 %v313, %v1100
      %v1102 = vpop.f32.mrb[0].mxu0
      %1103 = vmatprep.mubr.bf16.mxu0 0
      %1104 = vmatmul.mubr.bf16.gmra.mrb[0].mxu0 %v736
      %v1105 = vpop.f32.mrb[0].mxu0
      %v1106 = vadd.f32 %v313, %v1105
      %v1107 = vpop.f32.mrb[0].mxu0
      %v1108 = vpop.f32.mrb[0].mxu0
      %v1109 = vadd.f32 %v313, %v1108
      %v1110 = vpop.f32.mrb[0].mxu0
      %1111 = vmatprep.mubr.bf16.mxu0 0
      %1112 = vmatmul.mubr.bf16.gmra.mrb[0].mxu0 %v739
      %v1113 = vpop.f32.mrb[0].mxu0
      %v1114 = vadd.f32 %v313, %v1113
      %v1115 = vpop.f32.mrb[0].mxu0
      %v1116 = vpop.f32.mrb[0].mxu0
      %v1117 = vadd.f32 %v313, %v1116
      %v1118 = vpop.f32.mrb[0].mxu0
      %1119 = vmatprep.mubr.bf16.mxu0 0
      %1120 = vmatmul.mubr.bf16.gmra.mrb[0].mxu0 %v742
      %v1121 = vpop.f32.mrb[0].mxu0
      %v1122 = vadd.f32 %v313, %v1121
      %v1123 = vpop.f32.mrb[0].mxu0
      %v1124 = vpop.f32.mrb[0].mxu0
      %v1125 = vadd.f32 %v313, %v1124
      %v1126 = vpop.f32.mrb[0].mxu0
      %1127 = vmatprep.mubr.bf16.mxu0 0
      %1128 = vmatmul.mubr.bf16.gmra.mrb[0].mxu0 %v745
      %v1129 = vpop.f32.mrb[0].mxu0
      %v1130 = vadd.f32 %v313, %v1129
      %v1131 = vpop.f32.mrb[0].mxu0
      %v1132 = vpop.f32.mrb[0].mxu0
      %v1133 = vadd.f32 %v313, %v1132
      %v1134 = vpop.f32.mrb[0].mxu0
      %1135 = vmatprep.mubr.bf16.mxu0 0
      %1136 = vmatmul.mubr.bf16.gmra.mrb[0].mxu0 %v748
      %v1137 = vpop.f32.mrb[0].mxu0
      %v1138 = vadd.f32 %v313, %v1137
      %v1139 = vpop.f32.mrb[0].mxu0
      %v1140 = vpop.f32.mrb[0].mxu0
      %v1141 = vadd.f32 %v313, %v1140
      %v1142 = vpop.f32.mrb[0].mxu0
      %1143 = vmatprep.mubr.bf16.mxu0 0
      %1144 = vmatmul.mubr.bf16.gmra.mrb[0].mxu0 %v751
      %v1145 = vpop.f32.mrb[0].mxu0
      %v1146 = vadd.f32 %v313, %v1145
      %v1147 = vpop.f32.mrb[0].mxu0
      %v1148 = vpop.f32.mrb[0].mxu0
      %v1149 = vadd.f32 %v313, %v1148
      %v1150 = vpop.f32.mrb[0].mxu0
      %1151 = vmatprep.mubr.bf16.mxu0 0
      %1152 = vmatmul.mubr.bf16.gmra.mrb[0].mxu0 %v754
      %v1153 = vpop.f32.mrb[0].mxu0
      %v1154 = vadd.f32 %v313, %v1153
      %v1155 = vpop.f32.mrb[0].mxu0
      %v1156 = vpop.f32.mrb[0].mxu0
      %v1157 = vadd.f32 %v313, %v1156
      %v1158 = vpop.f32.mrb[0].mxu0
      %1159 = vmatprep.mubr.bf16.mxu0 0
      %1160 = vmatmul.mubr.bf16.gmra.mrb[0].mxu0 %v757
      %v1161 = vpop.f32.mrb[0].mxu0
      %v1162 = vadd.f32 %v313, %v1161
      %v1163 = vpop.f32.mrb[0].mxu0
      %v1164 = vpop.f32.mrb[0].mxu0
      %v1165 = vadd.f32 %v313, %v1164
      %v1166 = vpop.f32.mrb[0].mxu0
      %1167 = vmatprep.mubr.bf16.mxu0 0
      %1168 = vmatmul.mubr.bf16.gmra.mrb[0].mxu0 %v760
      %v1169 = vpop.f32.mrb[0].mxu0
      %v1170 = vadd.f32 %v313, %v1169
      %v1171 = vpop.f32.mrb[0].mxu0
      %v1172 = vpop.f32.mrb[0].mxu0
      %v1173 = vadd.f32 %v313, %v1172
      %v1174 = vpop.f32.mrb[0].mxu0
      %1175 = vmatprep.mubr.bf16.mxu0 0
      %1176 = vmatmul.mubr.bf16.gmra.mrb[0].mxu0 %v763
      %v1177 = vpop.f32.mrb[0].mxu0
      %v1178 = vadd.f32 %v313, %v1177
      %v1179 = vpop.f32.mrb[0].mxu0
      %v1180 = vpop.f32.mrb[0].mxu0
      %v1181 = vadd.f32 %v313, %v1180
      %v1182 = vpop.f32.mrb[0].mxu0
      %1183 = vmatprep.mubr.bf16.mxu0 0
      %1184 = vmatmul.mubr.bf16.gmra.mrb[0].mxu0 %v766
      %v1185 = vpop.f32.mrb[0].mxu0
      %v1186 = vadd.f32 %v313, %v1185
      %v1187 = vpop.f32.mrb[0].mxu0
      %v1188 = vpop.f32.mrb[0].mxu0
      %v1189 = vadd.f32 %v313, %v1188
      %v1190 = vpop.f32.mrb[0].mxu0
      %1191 = vmatprep.mubr.bf16.mxu0 0
      %1192 = vmatmul.mubr.bf16.gmra.mrb[0].mxu0 %v769
      %v1193 = vpop.f32.mrb[0].mxu0
      %v1194 = vadd.f32 %v313, %v1193
      %v1195 = vpop.f32.mrb[0].mxu0
      %v1196 = vpop.f32.mrb[0].mxu0
      %v1197 = vadd.f32 %v313, %v1196
      %v1198 = vpop.f32.mrb[0].mxu0
      %1199 = vmatprep.mubr.bf16.mxu0 0
      %1200 = vmatmul.mubr.bf16.gmra.mrb[0].mxu0 %v772
      %v1201 = vpop.f32.mrb[0].mxu0
      %v1202 = vadd.f32 %v313, %v1201
      %v1203 = vpop.f32.mrb[0].mxu0
      %v1204 = vpop.f32.mrb[0].mxu0
      %v1205 = vadd.f32 %v313, %v1204
      %v1206 = vpop.f32.mrb[0].mxu0
      %1207 = vmatprep.mubr.bf16.mxu0 0
      %1208 = vmatmul.mubr.bf16.gmra.mrb[0].mxu0 %v775
      %v1209 = vpop.f32.mrb[0].mxu0
      %v1210 = vadd.f32 %v313, %v1209
      %v1211 = vpop.f32.mrb[0].mxu0
      %v1212 = vpop.f32.mrb[0].mxu0
      %v1213 = vadd.f32 %v313, %v1212
      %v1214 = vpop.f32.mrb[0].mxu0
      %1215 = vmatprep.mubr.bf16.mxu0 0
      %1216 = vmatmul.mubr.bf16.gmra.mrb[0].mxu0 %v778
      %v1217 = vpop.f32.mrb[0].mxu0
      %v1218 = vadd.f32 %v313, %v1217
      %v1219 = vpop.f32.mrb[0].mxu0
      %v1220 = vpop.f32.mrb[0].mxu0
      %v1221 = vadd.f32 %v313, %v1220
      %v1222 = vpop.f32.mrb[0].mxu0
      %1223 = vmatprep.mubr.bf16.mxu0 0
      %1224 = vmatmul.mubr.bf16.gmra.mrb[0].mxu0 %v781
      %v1225 = vpop.f32.mrb[0].mxu0
      %v1226 = vadd.f32 %v313, %v1225
      %v1227 = vpop.f32.mrb[0].mxu0
      %v1228 = vpop.f32.mrb[0].mxu0
      %v1229 = vadd.f32 %v313, %v1228
      %v1230 = vpop.f32.mrb[0].mxu0
      %1231 = vmatprep.mubr.bf16.mxu0 0
      %1232 = vmatmul.mubr.bf16.gmra.mrb[0].mxu0 %v784
      %v1233 = vpop.f32.mrb[0].mxu0
      %v1234 = vadd.f32 %v313, %v1233
      %v1235 = vpop.f32.mrb[0].mxu0
      %v1236 = vpop.f32.mrb[0].mxu0
      %v1237 = vadd.f32 %v313, %v1236
      %v1238 = vpop.f32.mrb[0].mxu0
      %1239 = vmatprep.mubr.bf16.mxu0 0
      %1240 = vmatmul.mubr.bf16.gmra.mrb[0].mxu0 %v787
      %v1241 = vpop.f32.mrb[0].mxu0
      %v1242 = vadd.f32 %v313, %v1241
      %v1243 = vpop.f32.mrb[0].mxu0
      %v1244 = vpop.f32.mrb[0].mxu0
      %v1245 = vadd.f32 %v313, %v1244
      %v1246 = vpop.f32.mrb[0].mxu0
      %1247 = vmatprep.mubr.bf16.mxu0 0
      %1248 = vmatmul.mubr.bf16.gmra.mrb[0].mxu0 %v790
      %v1249 = vpop.f32.mrb[0].mxu0
      %v1250 = vadd.f32 %v313, %v1249
      %v1251 = vpop.f32.mrb[0].mxu0
      %v1252 = vpop.f32.mrb[0].mxu0
      %v1253 = vadd.f32 %v313, %v1252
      %v1254 = vpop.f32.mrb[0].mxu0
      %1255 = vmatprep.mubr.bf16.mxu0 0
      %1256 = vmatmul.mubr.bf16.gmra.mrb[0].mxu0 %v793
      %v1257 = vpop.f32.mrb[0].mxu0
      %v1258 = vadd.f32 %v313, %v1257
      %v1259 = vpop.f32.mrb[0].mxu0
      %v1260 = vpop.f32.mrb[0].mxu0
      %v1261 = vadd.f32 %v313, %v1260
      %v1262 = vpop.f32.mrb[0].mxu0
      %1263 = vmatprep.mubr.bf16.mxu0 0
      %1264 = vmatmul.mubr.bf16.gmra.mrb[0].mxu0 %v796
      %v1265 = vpop.f32.mrb[0].mxu0
      %v1266 = vadd.f32 %v313, %v1265
      %v1267 = vpop.f32.mrb[0].mxu0
      %v1268 = vpop.f32.mrb[0].mxu0
      %v1269 = vadd.f32 %v313, %v1268
      %v1270 = vpop.f32.mrb[0].mxu0
      %1271 = vmatprep.mubr.bf16.mxu0 0
      %1272 = vmatmul.mubr.bf16.gmra.mrb[0].mxu0 %v799
      %v1273 = vpop.f32.mrb[0].mxu0
      %v1274 = vadd.f32 %v313, %v1273
      %v1275 = vpop.f32.mrb[0].mxu0
      %v1276 = vpop.f32.mrb[0].mxu0
      %v1277 = vadd.f32 %v313, %v1276
      %v1278 = vpop.f32.mrb[0].mxu0
      %1279 = vmatprep.mubr.bf16.mxu0 0
      %1280 = vmatmul.mubr.bf16.gmra.mrb[0].mxu0 %v802
      %v1281 = vpop.f32.mrb[0].mxu0
      %v1282 = vadd.f32 %v313, %v1281
      %v1283 = vpop.f32.mrb[0].mxu0
      %v1284 = vpop.f32.mrb[0].mxu0
      %v1285 = vadd.f32 %v313, %v1284
      %v1286 = vpop.f32.mrb[0].mxu0
      %1287 = vmatprep.mubr.bf16.mxu0 0
      %1288 = vmatmul.mubr.bf16.gmra.mrb[0].mxu0 %v805
      %v1289 = vpop.f32.mrb[0].mxu0
      %v1290 = vadd.f32 %v313, %v1289
      %v1291 = vpop.f32.mrb[0].mxu0
      %v1292 = vpop.f32.mrb[0].mxu0
      %v1293 = vadd.f32 %v313, %v1292
      %v1294 = vpop.f32.mrb[0].mxu0
      %1295 = vmatprep.mubr.bf16.mxu0 0
      %1296 = vmatmul.mubr.bf16.gmra.mrb[0].mxu0 %v808
      %v1297 = vpop.f32.mrb[0].mxu0
      %v1298 = vadd.f32 %v313, %v1297
      %v1299 = vpop.f32.mrb[0].mxu0
      %v1300 = vpop.f32.mrb[0].mxu0
      %v1301 = vadd.f32 %v313, %v1300
      %v1302 = vpop.f32.mrb[0].mxu0
      %1303 = vmatprep.mubr.bf16.mxu0 0
      %1304 = vmatmul.mubr.bf16.gmra.mrb[0].mxu0 %v811
      %v1305 = vpop.f32.mrb[0].mxu0
      %v1306 = vadd.f32 %v313, %v1305
      %v1307 = vpop.f32.mrb[0].mxu0
      %v1308 = vpop.f32.mrb[0].mxu0
      %v1309 = vadd.f32 %v313, %v1308
      %v1310 = vpop.f32.mrb[0].mxu0
      %1311 = vmatprep.mubr.bf16.mxu0 0
      %1312 = vmatmul.mubr.bf16.gmra.mrb[0].mxu0 %v814
      %v1313 = vpop.f32.mrb[0].mxu0
      %v1314 = vadd.f32 %v313, %v1313
      %v1315 = vpop.f32.mrb[0].mxu0
      %v1316 = vpop.f32.mrb[0].mxu0
      %v1317 = vadd.f32 %v313, %v1316
      %v1318 = vpop.f32.mrb[0].mxu0
      %1319 = vmatprep.mubr.bf16.mxu0 0
      %1320 = vmatmul.mubr.bf16.gmra.mrb[0].mxu0 %v817
      %v1321 = vpop.f32.mrb[0].mxu0
      %v1322 = vadd.f32 %v313, %v1321
      %v1323 = vpop.f32.mrb[0].mxu0
      %v1324 = vpop.f32.mrb[0].mxu0
      %v1325 = vadd.f32 %v313, %v1324
      %v1326 = vpop.f32.mrb[0].mxu0
      %1327 = vmatprep.mubr.bf16.mxu0 0
      %1328 = vmatmul.mubr.bf16.gmra.mrb[0].mxu0 %v820
      %v1329 = vpop.f32.mrb[0].mxu0
      %v1330 = vadd.f32 %v313, %v1329
      %v1331 = vpop.f32.mrb[0].mxu0
      %v1332 = vpop.f32.mrb[0].mxu0
      %v1333 = vadd.f32 %v313, %v1332
      %v1334 = vpop.f32.mrb[0].mxu0
      %1335 = vmatprep.mubr.bf16.mxu0 0
      %1336 = vmatmul.mubr.bf16.gmra.mrb[0].mxu0 %v823
      %v1337 = vpop.f32.mrb[0].mxu0
      %v1338 = vadd.f32 %v313, %v1337
      %v1339 = vpop.f32.mrb[0].mxu0
      %v1340 = vpop.f32.mrb[0].mxu0
      %v1341 = vadd.f32 %v313, %v1340
      %v1342 = vpop.f32.mrb[0].mxu0
      %1343 = vmatprep.mubr.bf16.mxu0 0
      %1344 = vmatmul.mubr.bf16.gmra.mrb[0].mxu0 %v826
      %v1345 = vpop.f32.mrb[0].mxu0
      %v1346 = vadd.f32 %v313, %v1345
      %v1347 = vpop.f32.mrb[0].mxu0
      %v1348 = vpop.f32.mrb[0].mxu0
      %v1349 = vadd.f32 %v313, %v1348
      %v1350 = vpop.f32.mrb[0].mxu0
      %1351 = vmatprep.mubr.bf16.mxu0 0
      %1352 = vmatmul.mubr.bf16.gmra.mrb[0].mxu0 %v829
      %v1353 = vpop.f32.mrb[0].mxu0
      %v1354 = vadd.f32 %v313, %v1353
      %v1355 = vpop.f32.mrb[0].mxu0
      %v1356 = vpop.f32.mrb[0].mxu0
      %v1357 = vadd.f32 %v313, %v1356
      %v1358 = vpop.f32.mrb[0].mxu0
      %1359 = vmatprep.mubr.bf16.mxu0 0
      %1360 = vmatmul.mubr.bf16.gmra.mrb[0].mxu0 %v832
      %v1361 = vpop.f32.mrb[0].mxu0
      %v1362 = vadd.f32 %v313, %v1361
      %v1363 = vpop.f32.mrb[0].mxu0
      %v1364 = vpop.f32.mrb[0].mxu0
      %v1365 = vadd.f32 %v313, %v1364
      %v1366 = vpop.f32.mrb[0].mxu0
      %1367 = vmatprep.mubr.bf16.mxu0 0
      %1368 = vmatmul.mubr.bf16.gmra.mrb[0].mxu0 %v835
      %v1369 = vpop.f32.mrb[0].mxu0
      %v1370 = vadd.f32 %v313, %v1369
      %v1371 = vpop.f32.mrb[0].mxu0
      %v1372 = vpop.f32.mrb[0].mxu0
      %v1373 = vadd.f32 %v313, %v1372
      %v1374 = vpop.f32.mrb[0].mxu0
      %1375 = vmatprep.mubr.bf16.mxu0 0
      %1376 = vmatmul.mubr.bf16.gmra.mrb[0].mxu0 %v838
      %v1377 = vpop.f32.mrb[0].mxu0
      %v1378 = vadd.f32 %v313, %v1377
      %v1379 = vpop.f32.mrb[0].mxu0
      %v1380 = vpop.f32.mrb[0].mxu0
      %v1381 = vadd.f32 %v313, %v1380
      %v1382 = vpop.f32.mrb[0].mxu0
      %1383 = vmatprep.mubr.bf16.mxu0 0
      %1384 = vmatmul.mubr.bf16.gmra.mrb[0].mxu0 %v841
      %v1385 = vpop.f32.mrb[0].mxu0
      %v1386 = vadd.f32 %v313, %v1385
      %v1387 = vpop.f32.mrb[0].mxu0
      %v1388 = vpop.f32.mrb[0].mxu0
      %v1389 = vadd.f32 %v313, %v1388
      %v1390 = vpop.f32.mrb[0].mxu0
      %1391 = vdwg.mxu0
      %v1392 = vmax.f32 %v882, 0.0
      %v1393 = vmax.f32 %v885, 0.0
      %v1394 = vmax.f32 %v890, 0.0
      %v1395 = vmax.f32 %v893, 0.0
      %v1396 = vmax.f32 %v898, 0.0
      %v1397 = vmax.f32 %v901, 0.0
      %v1398 = vmax.f32 %v906, 0.0
      %v1399 = vmax.f32 %v909, 0.0
      %v1400 = vmax.f32 %v914, 0.0
      %v1401 = vmax.f32 %v917, 0.0
      %v1402 = vmax.f32 %v922, 0.0
      %v1403 = vmax.f32 %v925, 0.0
      %v1404 = vmax.f32 %v930, 0.0
      %v1405 = vmax.f32 %v933, 0.0
      %v1406 = vmax.f32 %v938, 0.0
      %v1407 = vmax.f32 %v941, 0.0
      %v1408 = vmax.f32 %v946, 0.0
      %v1409 = vmax.f32 %v949, 0.0
      %v1410 = vmax.f32 %v954, 0.0
      %v1411 = vmax.f32 %v957, 0.0
      %v1412 = vmax.f32 %v962, 0.0
      %v1413 = vmax.f32 %v965, 0.0
      %v1414 = vmax.f32 %v970, 0.0
      %v1415 = vmax.f32 %v973, 0.0
      %v1416 = vmax.f32 %v978, 0.0
      %v1417 = vmax.f32 %v981, 0.0
      %v1418 = vmax.f32 %v986, 0.0
      %v1419 = vmax.f32 %v989, 0.0
      %v1420 = vmax.f32 %v994, 0.0
      %v1421 = vmax.f32 %v997, 0.0
      %v1422 = vmax.f32 %v1002, 0.0
      %v1423 = vmax.f32 %v1005, 0.0
      %v1424 = vmax.f32 %v1010, 0.0
      %v1425 = vmax.f32 %v1013, 0.0
      %v1426 = vmax.f32 %v1018, 0.0
      %v1427 = vmax.f32 %v1021, 0.0
      %v1428 = vmax.f32 %v1026, 0.0
      %v1429 = vmax.f32 %v1029, 0.0
      %v1430 = vmax.f32 %v1034, 0.0
      %v1431 = vmax.f32 %v1037, 0.0
      %v1432 = vmax.f32 %v1042, 0.0
      %v1433 = vmax.f32 %v1045, 0.0
      %v1434 = vmax.f32 %v1050, 0.0
      %v1435 = vmax.f32 %v1053, 0.0
      %v1436 = vmax.f32 %v1058, 0.0
      %v1437 = vmax.f32 %v1061, 0.0
      %v1438 = vmax.f32 %v1066, 0.0
      %v1439 = vmax.f32 %v1069, 0.0
      %v1440 = vmax.f32 %v1074, 0.0
      %v1441 = vmax.f32 %v1077, 0.0
      %v1442 = vmax.f32 %v1082, 0.0
      %v1443 = vmax.f32 %v1085, 0.0
      %v1444 = vmax.f32 %v1090, 0.0
      %v1445 = vmax.f32 %v1093, 0.0
      %v1446 = vmax.f32 %v1098, 0.0
      %v1447 = vmax.f32 %v1101, 0.0
      %v1448 = vmax.f32 %v1106, 0.0
      %v1449 = vmax.f32 %v1109, 0.0
      %v1450 = vmax.f32 %v1114, 0.0
      %v1451 = vmax.f32 %v1117, 0.0
      %v1452 = vmax.f32 %v1122, 0.0
      %v1453 = vmax.f32 %v1125, 0.0
      %v1454 = vmax.f32 %v1130, 0.0
      %v1455 = vmax.f32 %v1133, 0.0
      %v1456 = vmax.f32 %v1138, 0.0
      %v1457 = vmax.f32 %v1141, 0.0
      %v1458 = vmax.f32 %v1146, 0.0
      %v1459 = vmax.f32 %v1149, 0.0
      %v1460 = vmax.f32 %v1154, 0.0
      %v1461 = vmax.f32 %v1157, 0.0
      %v1462 = vmax.f32 %v1162, 0.0
      %v1463 = vmax.f32 %v1165, 0.0
      %v1464 = vmax.f32 %v1170, 0.0
      %v1465 = vmax.f32 %v1173, 0.0
      %v1466 = vmax.f32 %v1178, 0.0
      %v1467 = vmax.f32 %v1181, 0.0
      %v1468 = vmax.f32 %v1186, 0.0
      %v1469 = vmax.f32 %v1189, 0.0
      %v1470 = vmax.f32 %v1194, 0.0
      %v1471 = vmax.f32 %v1197, 0.0
      %v1472 = vmax.f32 %v1202, 0.0
      %v1473 = vmax.f32 %v1205, 0.0
      %v1474 = vmax.f32 %v1210, 0.0
      %v1475 = vmax.f32 %v1213, 0.0
      %v1476 = vmax.f32 %v1218, 0.0
      %v1477 = vmax.f32 %v1221, 0.0
      %v1478 = vmax.f32 %v1226, 0.0
      %v1479 = vmax.f32 %v1229, 0.0
      %v1480 = vmax.f32 %v1234, 0.0
      %v1481 = vmax.f32 %v1237, 0.0
      %v1482 = vmax.f32 %v1242, 0.0
      %v1483 = vmax.f32 %v1245, 0.0
      %v1484 = vmax.f32 %v1250, 0.0
      %v1485 = vmax.f32 %v1253, 0.0
      %v1486 = vmax.f32 %v1258, 0.0
      %v1487 = vmax.f32 %v1261, 0.0
      %v1488 = vmax.f32 %v1266, 0.0
      %v1489 = vmax.f32 %v1269, 0.0
      %v1490 = vmax.f32 %v1274, 0.0
      %v1491 = vmax.f32 %v1277, 0.0
      %v1492 = vmax.f32 %v1282, 0.0
      %v1493 = vmax.f32 %v1285, 0.0
      %v1494 = vmax.f32 %v1290, 0.0
      %v1495 = vmax.f32 %v1293, 0.0
      %v1496 = vmax.f32 %v1298, 0.0
      %v1497 = vmax.f32 %v1301, 0.0
      %v1498 = vmax.f32 %v1306, 0.0
      %v1499 = vmax.f32 %v1309, 0.0
      %v1500 = vmax.f32 %v1314, 0.0
      %v1501 = vmax.f32 %v1317, 0.0
      %v1502 = vmax.f32 %v1322, 0.0
      %v1503 = vmax.f32 %v1325, 0.0
      %v1504 = vmax.f32 %v1330, 0.0
      %v1505 = vmax.f32 %v1333, 0.0
      %v1506 = vmax.f32 %v1338, 0.0
      %v1507 = vmax.f32 %v1341, 0.0
      %v1508 = vmax.f32 %v1346, 0.0
      %v1509 = vmax.f32 %v1349, 0.0
      %v1510 = vmax.f32 %v1354, 0.0
      %v1511 = vmax.f32 %v1357, 0.0
      %v1512 = vmax.f32 %v1362, 0.0
      %v1513 = vmax.f32 %v1365, 0.0
      %v1514 = vmax.f32 %v1370, 0.0
      %v1515 = vmax.f32 %v1373, 0.0
      %v1516 = vmax.f32 %v1378, 0.0
      %v1517 = vmax.f32 %v1381, 0.0
      %v1518 = vmax.f32 %v1386, 0.0
      %v1519 = vmax.f32 %v1389, 0.0
      %v1520 = vpack.c.bf16 %v1393, %v1392
      %v1521 = vpack.c.bf16 %v1395, %v1394
      %v1522 = vpack.c.bf16 %v1397, %v1396
      %v1523 = vpack.c.bf16 %v1399, %v1398
      %v1524 = vpack.c.bf16 %v1401, %v1400
      %v1525 = vpack.c.bf16 %v1403, %v1402
      %v1526 = vpack.c.bf16 %v1405, %v1404
      %v1527 = vpack.c.bf16 %v1407, %v1406
      %v1528 = vpack.c.bf16 %v1409, %v1408
      %v1529 = vpack.c.bf16 %v1411, %v1410
      %v1530 = vpack.c.bf16 %v1413, %v1412
      %v1531 = vpack.c.bf16 %v1415, %v1414
      %v1532 = vpack.c.bf16 %v1417, %v1416
      %v1533 = vpack.c.bf16 %v1419, %v1418
      %v1534 = vpack.c.bf16 %v1421, %v1420
      %v1535 = vpack.c.bf16 %v1423, %v1422
      %v1536 = vpack.c.bf16 %v1425, %v1424
      %v1537 = vpack.c.bf16 %v1427, %v1426
      %v1538 = vpack.c.bf16 %v1429, %v1428
      %v1539 = vpack.c.bf16 %v1431, %v1430
      %v1540 = vpack.c.bf16 %v1433, %v1432
      %v1541 = vpack.c.bf16 %v1435, %v1434
      %v1542 = vpack.c.bf16 %v1437, %v1436
      %v1543 = vpack.c.bf16 %v1439, %v1438
      %v1544 = vpack.c.bf16 %v1441, %v1440
      %v1545 = vpack.c.bf16 %v1443, %v1442
      %v1546 = vpack.c.bf16 %v1445, %v1444
      %v1547 = vpack.c.bf16 %v1447, %v1446
      %v1548 = vpack.c.bf16 %v1449, %v1448
      %v1549 = vpack.c.bf16 %v1451, %v1450
      %v1550 = vpack.c.bf16 %v1453, %v1452
      %v1551 = vpack.c.bf16 %v1455, %v1454
      %v1552 = vpack.c.bf16 %v1457, %v1456
      %v1553 = vpack.c.bf16 %v1459, %v1458
      %v1554 = vpack.c.bf16 %v1461, %v1460
      %v1555 = vpack.c.bf16 %v1463, %v1462
      %v1556 = vpack.c.bf16 %v1465, %v1464
      %v1557 = vpack.c.bf16 %v1467, %v1466
      %v1558 = vpack.c.bf16 %v1469, %v1468
      %v1559 = vpack.c.bf16 %v1471, %v1470
      %v1560 = vpack.c.bf16 %v1473, %v1472
      %v1561 = vpack.c.bf16 %v1475, %v1474
      %v1562 = vpack.c.bf16 %v1477, %v1476
      %v1563 = vpack.c.bf16 %v1479, %v1478
      %v1564 = vpack.c.bf16 %v1481, %v1480
      %v1565 = vpack.c.bf16 %v1483, %v1482
      %v1566 = vpack.c.bf16 %v1485, %v1484
      %v1567 = vpack.c.bf16 %v1487, %v1486
      %v1568 = vpack.c.bf16 %v1489, %v1488
      %v1569 = vpack.c.bf16 %v1491, %v1490
      %v1570 = vpack.c.bf16 %v1493, %v1492
      %v1571 = vpack.c.bf16 %v1495, %v1494
      %v1572 = vpack.c.bf16 %v1497, %v1496
      %v1573 = vpack.c.bf16 %v1499, %v1498
      %v1574 = vpack.c.bf16 %v1501, %v1500
      %v1575 = vpack.c.bf16 %v1503, %v1502
      %v1576 = vpack.c.bf16 %v1505, %v1504
      %v1577 = vpack.c.bf16 %v1507, %v1506
      %v1578 = vpack.c.bf16 %v1509, %v1508
      %v1579 = vpack.c.bf16 %v1511, %v1510
      %v1580 = vpack.c.bf16 %v1513, %v1512
      %v1581 = vpack.c.bf16 %v1515, %v1514
      %v1582 = vpack.c.bf16 %v1517, %v1516
      %v1583 = vpack.c.bf16 %v1519, %v1518
      %v1648 = vunpack.c.l.b16 %v1520
      %v1649 = vunpack.c.h.b16 %v1520
      %v1650 = vunpack.c.l.b16 %v1521
      %v1651 = vunpack.c.h.b16 %v1521
      %v1652 = vunpack.c.l.b16 %v1522
      %v1653 = vunpack.c.h.b16 %v1522
      %v1654 = vunpack.c.l.b16 %v1523
      %v1655 = vunpack.c.h.b16 %v1523
      %v1656 = vunpack.c.l.b16 %v1524
      %v1657 = vunpack.c.h.b16 %v1524
      %v1658 = vunpack.c.l.b16 %v1525
      %v1659 = vunpack.c.h.b16 %v1525
      %v1660 = vunpack.c.l.b16 %v1526
      %v1661 = vunpack.c.h.b16 %v1526
      %v1662 = vunpack.c.l.b16 %v1527
      %v1663 = vunpack.c.h.b16 %v1527
      %v1664 = vunpack.c.l.b16 %v1528
      %v1665 = vunpack.c.h.b16 %v1528
      %v1666 = vunpack.c.l.b16 %v1529
      %v1667 = vunpack.c.h.b16 %v1529
      %v1668 = vunpack.c.l.b16 %v1530
      %v1669 = vunpack.c.h.b16 %v1530
      %v1670 = vunpack.c.l.b16 %v1531
      %v1671 = vunpack.c.h.b16 %v1531
      %v1672 = vunpack.c.l.b16 %v1532
      %v1673 = vunpack.c.h.b16 %v1532
      %v1674 = vunpack.c.l.b16 %v1533
      %v1675 = vunpack.c.h.b16 %v1533
      %v1676 = vunpack.c.l.b16 %v1534
      %v1677 = vunpack.c.h.b16 %v1534
      %v1678 = vunpack.c.l.b16 %v1535
      %v1679 = vunpack.c.h.b16 %v1535
      %v1680 = vunpack.c.l.b16 %v1536
      %v1681 = vunpack.c.h.b16 %v1536
      %v1682 = vunpack.c.l.b16 %v1537
      %v1683 = vunpack.c.h.b16 %v1537
      %v1684 = vunpack.c.l.b16 %v1538
      %v1685 = vunpack.c.h.b16 %v1538
      %v1686 = vunpack.c.l.b16 %v1539
      %v1687 = vunpack.c.h.b16 %v1539
      %v1688 = vunpack.c.l.b16 %v1540
      %v1689 = vunpack.c.h.b16 %v1540
      %v1690 = vunpack.c.l.b16 %v1541
      %v1691 = vunpack.c.h.b16 %v1541
      %v1692 = vunpack.c.l.b16 %v1542
      %v1693 = vunpack.c.h.b16 %v1542
      %v1694 = vunpack.c.l.b16 %v1543
      %v1695 = vunpack.c.h.b16 %v1543
      %v1696 = vunpack.c.l.b16 %v1544
      %v1697 = vunpack.c.h.b16 %v1544
      %v1698 = vunpack.c.l.b16 %v1545
      %v1699 = vunpack.c.h.b16 %v1545
      %v1700 = vunpack.c.l.b16 %v1546
      %v1701 = vunpack.c.h.b16 %v1546
      %v1702 = vunpack.c.l.b16 %v1547
      %v1703 = vunpack.c.h.b16 %v1547
      %v1704 = vunpack.c.l.b16 %v1548
      %v1705 = vunpack.c.h.b16 %v1548
      %v1706 = vunpack.c.l.b16 %v1549
      %v1707 = vunpack.c.h.b16 %v1549
      %v1708 = vunpack.c.l.b16 %v1550
      %v1709 = vunpack.c.h.b16 %v1550
      %v1710 = vunpack.c.l.b16 %v1551
      %v1711 = vunpack.c.h.b16 %v1551
      %v1712 = vunpack.c.l.b16 %v1552
      %v1713 = vunpack.c.h.b16 %v1552
      %v1714 = vunpack.c.l.b16 %v1553
      %v1715 = vunpack.c.h.b16 %v1553
      %v1716 = vunpack.c.l.b16 %v1554
      %v1717 = vunpack.c.h.b16 %v1554
      %v1718 = vunpack.c.l.b16 %v1555
      %v1719 = vunpack.c.h.b16 %v1555
      %v1720 = vunpack.c.l.b16 %v1556
      %v1721 = vunpack.c.h.b16 %v1556
      %v1722 = vunpack.c.l.b16 %v1557
      %v1723 = vunpack.c.h.b16 %v1557
      %v1724 = vunpack.c.l.b16 %v1558
      %v1725 = vunpack.c.h.b16 %v1558
      %v1726 = vunpack.c.l.b16 %v1559
      %v1727 = vunpack.c.h.b16 %v1559
      %v1728 = vunpack.c.l.b16 %v1560
      %v1729 = vunpack.c.h.b16 %v1560
      %v1730 = vunpack.c.l.b16 %v1561
      %v1731 = vunpack.c.h.b16 %v1561
      %v1732 = vunpack.c.l.b16 %v1562
      %v1733 = vunpack.c.h.b16 %v1562
      %v1734 = vunpack.c.l.b16 %v1563
      %v1735 = vunpack.c.h.b16 %v1563
      %v1736 = vunpack.c.l.b16 %v1564
      %v1737 = vunpack.c.h.b16 %v1564
      %v1738 = vunpack.c.l.b16 %v1565
      %v1739 = vunpack.c.h.b16 %v1565
      %v1740 = vunpack.c.l.b16 %v1566
      %v1741 = vunpack.c.h.b16 %v1566
      %v1742 = vunpack.c.l.b16 %v1567
      %v1743 = vunpack.c.h.b16 %v1567
      %v1744 = vunpack.c.l.b16 %v1568
      %v1745 = vunpack.c.h.b16 %v1568
      %v1746 = vunpack.c.l.b16 %v1569
      %v1747 = vunpack.c.h.b16 %v1569
      %v1748 = vunpack.c.l.b16 %v1570
      %v1749 = vunpack.c.h.b16 %v1570
      %v1750 = vunpack.c.l.b16 %v1571
      %v1751 = vunpack.c.h.b16 %v1571
      %v1752 = vunpack.c.l.b16 %v1572
      %v1753 = vunpack.c.h.b16 %v1572
      %v1754 = vunpack.c.l.b16 %v1573
      %v1755 = vunpack.c.h.b16 %v1573
      %v1756 = vunpack.c.l.b16 %v1574
      %v1757 = vunpack.c.h.b16 %v1574
      %v1758 = vunpack.c.l.b16 %v1575
      %v1759 = vunpack.c.h.b16 %v1575
      %v1760 = vunpack.c.l.b16 %v1576
      %v1761 = vunpack.c.h.b16 %v1576
      %v1762 = vunpack.c.l.b16 %v1577
      %v1763 = vunpack.c.h.b16 %v1577
      %v1764 = vunpack.c.l.b16 %v1578
      %v1765 = vunpack.c.h.b16 %v1578
      %v1766 = vunpack.c.l.b16 %v1579
      %v1767 = vunpack.c.h.b16 %v1579
      %v1768 = vunpack.c.l.b16 %v1580
      %v1769 = vunpack.c.h.b16 %v1580
      %v1770 = vunpack.c.l.b16 %v1581
      %v1771 = vunpack.c.h.b16 %v1581
      %v1772 = vunpack.c.l.b16 %v1582
      %v1773 = vunpack.c.h.b16 %v1582
      %v1774 = vunpack.c.l.b16 %v1583
      %v1775 = vunpack.c.h.b16 %v1583
      %v1776 = vpack.c.b16 %v1648, %v1648
      %v1777 = vpack.c.b16 %v1649, %v1649
      %v1778 = vpack.c.b16 %v1650, %v1650
      %v1779 = vpack.c.b16 %v1651, %v1651
      %v1780 = vpack.c.b16 %v1652, %v1652
      %v1781 = vpack.c.b16 %v1653, %v1653
      %v1782 = vpack.c.b16 %v1654, %v1654
      %v1783 = vpack.c.b16 %v1655, %v1655
      %v1784 = vpack.c.b16 %v1656, %v1656
      %v1785 = vpack.c.b16 %v1657, %v1657
      %v1786 = vpack.c.b16 %v1658, %v1658
      %v1787 = vpack.c.b16 %v1659, %v1659
      %v1788 = vpack.c.b16 %v1660, %v1660
      %v1789 = vpack.c.b16 %v1661, %v1661
      %v1790 = vpack.c.b16 %v1662, %v1662
      %v1791 = vpack.c.b16 %v1663, %v1663
      %v1792 = vpack.c.b16 %v1664, %v1664
      %v1793 = vpack.c.b16 %v1665, %v1665
      %v1794 = vpack.c.b16 %v1666, %v1666
      %v1795 = vpack.c.b16 %v1667, %v1667
      %v1796 = vpack.c.b16 %v1668, %v1668
      %v1797 = vpack.c.b16 %v1669, %v1669
      %v1798 = vpack.c.b16 %v1670, %v1670
      %v1799 = vpack.c.b16 %v1671, %v1671
      %v1800 = vpack.c.b16 %v1672, %v1672
      %v1801 = vpack.c.b16 %v1673, %v1673
      %v1802 = vpack.c.b16 %v1674, %v1674
      %v1803 = vpack.c.b16 %v1675, %v1675
      %v1804 = vpack.c.b16 %v1676, %v1676
      %v1805 = vpack.c.b16 %v1677, %v1677
      %v1806 = vpack.c.b16 %v1678, %v1678
      %v1807 = vpack.c.b16 %v1679, %v1679
      %v1808 = vpack.c.b16 %v1680, %v1680
      %v1809 = vpack.c.b16 %v1681, %v1681
      %v1810 = vpack.c.b16 %v1682, %v1682
      %v1811 = vpack.c.b16 %v1683, %v1683
      %v1812 = vpack.c.b16 %v1684, %v1684
      %v1813 = vpack.c.b16 %v1685, %v1685
      %v1814 = vpack.c.b16 %v1686, %v1686
      %v1815 = vpack.c.b16 %v1687, %v1687
      %v1816 = vpack.c.b16 %v1688, %v1688
      %v1817 = vpack.c.b16 %v1689, %v1689
      %v1818 = vpack.c.b16 %v1690, %v1690
      %v1819 = vpack.c.b16 %v1691, %v1691
      %v1820 = vpack.c.b16 %v1692, %v1692
      %v1821 = vpack.c.b16 %v1693, %v1693
      %v1822 = vpack.c.b16 %v1694, %v1694
      %v1823 = vpack.c.b16 %v1695, %v1695
      %v1824 = vpack.c.b16 %v1696, %v1696
      %v1825 = vpack.c.b16 %v1697, %v1697
      %v1826 = vpack.c.b16 %v1698, %v1698
      %v1827 = vpack.c.b16 %v1699, %v1699
      %v1828 = vpack.c.b16 %v1700, %v1700
      %v1829 = vpack.c.b16 %v1701, %v1701
      %v1830 = vpack.c.b16 %v1702, %v1702
      %v1831 = vpack.c.b16 %v1703, %v1703
      %v1832 = vpack.c.b16 %v1704, %v1704
      %v1833 = vpack.c.b16 %v1705, %v1705
      %v1834 = vpack.c.b16 %v1706, %v1706
      %v1835 = vpack.c.b16 %v1707, %v1707
      %v1836 = vpack.c.b16 %v1708, %v1708
      %v1837 = vpack.c.b16 %v1709, %v1709
      %v1838 = vpack.c.b16 %v1710, %v1710
      %v1839 = vpack.c.b16 %v1711, %v1711
      %v1840 = vpack.c.b16 %v1712, %v1712
      %v1841 = vpack.c.b16 %v1713, %v1713
      %v1842 = vpack.c.b16 %v1714, %v1714
      %v1843 = vpack.c.b16 %v1715, %v1715
      %v1844 = vpack.c.b16 %v1716, %v1716
      %v1845 = vpack.c.b16 %v1717, %v1717
      %v1846 = vpack.c.b16 %v1718, %v1718
      %v1847 = vpack.c.b16 %v1719, %v1719
      %v1848 = vpack.c.b16 %v1720, %v1720
      %v1849 = vpack.c.b16 %v1721, %v1721
      %v1850 = vpack.c.b16 %v1722, %v1722
      %v1851 = vpack.c.b16 %v1723, %v1723
      %v1852 = vpack.c.b16 %v1724, %v1724
      %v1853 = vpack.c.b16 %v1725, %v1725
      %v1854 = vpack.c.b16 %v1726, %v1726
      %v1855 = vpack.c.b16 %v1727, %v1727
      %v1856 = vpack.c.b16 %v1728, %v1728
      %v1857 = vpack.c.b16 %v1729, %v1729
      %v1858 = vpack.c.b16 %v1730, %v1730
      %v1859 = vpack.c.b16 %v1731, %v1731
      %v1860 = vpack.c.b16 %v1732, %v1732
      %v1861 = vpack.c.b16 %v1733, %v1733
      %v1862 = vpack.c.b16 %v1734, %v1734
      %v1863 = vpack.c.b16 %v1735, %v1735
      %v1864 = vpack.c.b16 %v1736, %v1736
      %v1865 = vpack.c.b16 %v1737, %v1737
      %v1866 = vpack.c.b16 %v1738, %v1738
      %v1867 = vpack.c.b16 %v1739, %v1739
      %v1868 = vpack.c.b16 %v1740, %v1740
      %v1869 = vpack.c.b16 %v1741, %v1741
      %v1870 = vpack.c.b16 %v1742, %v1742
      %v1871 = vpack.c.b16 %v1743, %v1743
      %v1872 = vpack.c.b16 %v1744, %v1744
      %v1873 = vpack.c.b16 %v1745, %v1745
      %v1874 = vpack.c.b16 %v1746, %v1746
      %v1875 = vpack.c.b16 %v1747, %v1747
      %v1876 = vpack.c.b16 %v1748, %v1748
      %v1877 = vpack.c.b16 %v1749, %v1749
      %v1878 = vpack.c.b16 %v1750, %v1750
      %v1879 = vpack.c.b16 %v1751, %v1751
      %v1880 = vpack.c.b16 %v1752, %v1752
      %v1881 = vpack.c.b16 %v1753, %v1753
      %v1882 = vpack.c.b16 %v1754, %v1754
      %v1883 = vpack.c.b16 %v1755, %v1755
      %v1884 = vpack.c.b16 %v1756, %v1756
      %v1885 = vpack.c.b16 %v1757, %v1757
      %v1886 = vpack.c.b16 %v1758, %v1758
      %v1887 = vpack.c.b16 %v1759, %v1759
      %v1888 = vpack.c.b16 %v1760, %v1760
      %v1889 = vpack.c.b16 %v1761, %v1761
      %v1890 = vpack.c.b16 %v1762, %v1762
      %v1891 = vpack.c.b16 %v1763, %v1763
      %v1892 = vpack.c.b16 %v1764, %v1764
      %v1893 = vpack.c.b16 %v1765, %v1765
      %v1894 = vpack.c.b16 %v1766, %v1766
      %v1895 = vpack.c.b16 %v1767, %v1767
      %v1896 = vpack.c.b16 %v1768, %v1768
      %v1897 = vpack.c.b16 %v1769, %v1769
      %v1898 = vpack.c.b16 %v1770, %v1770
      %v1899 = vpack.c.b16 %v1771, %v1771
      %v1900 = vpack.c.b16 %v1772, %v1772
      %v1901 = vpack.c.b16 %v1773, %v1773
      %v1902 = vpack.c.b16 %v1774, %v1774
      %v1903 = vpack.c.b16 %v1775, %v1775
      %vm2032 = vcmask 60416
      %2033 = vst.msk [vmem:[%s172] sm:$0xf] %vm2032, %v1776
      %2034 = vst.msk [vmem:[%s172 + $0x4] sm:$0xf] %vm2032, %v1777
      %2035 = vst.msk [vmem:[%s172 + $0x8] sm:$0xf] %vm2032, %v1778
      %2036 = vst.msk [vmem:[%s172 + $0xc] sm:$0xf] %vm2032, %v1779
      %2037 = vst.msk [vmem:[%s172 + $0x10] sm:$0xf] %vm2032, %v1780
      %2038 = vst.msk [vmem:[%s172 + $0x14] sm:$0xf] %vm2032, %v1781
      %2039 = vst.msk [vmem:[%s172 + $0x18] sm:$0xf] %vm2032, %v1782
      %2040 = vst.msk [vmem:[%s172 + $0x1c] sm:$0xf] %vm2032, %v1783
      %2041 = vst.msk [vmem:[%s172 + $0x20] sm:$0xf] %vm2032, %v1784
      %2042 = vst.msk [vmem:[%s172 + $0x24] sm:$0xf] %vm2032, %v1785
      %2043 = vst.msk [vmem:[%s172 + $0x28] sm:$0xf] %vm2032, %v1786
      %2044 = vst.msk [vmem:[%s172 + $0x2c] sm:$0xf] %vm2032, %v1787
      %2045 = vst.msk [vmem:[%s172 + $0x30] sm:$0xf] %vm2032, %v1788
      %2046 = vst.msk [vmem:[%s172 + $0x34] sm:$0xf] %vm2032, %v1789
      %2047 = vst.msk [vmem:[%s172 + $0x38] sm:$0xf] %vm2032, %v1790
      %2048 = vst.msk [vmem:[%s172 + $0x3c] sm:$0xf] %vm2032, %v1791
      %2049 = vst.msk [vmem:[%s172 + $0x40] sm:$0xf] %vm2032, %v1792
      %2050 = vst.msk [vmem:[%s172 + $0x44] sm:$0xf] %vm2032, %v1793
      %2051 = vst.msk [vmem:[%s172 + $0x48] sm:$0xf] %vm2032, %v1794
      %2052 = vst.msk [vmem:[%s172 + $0x4c] sm:$0xf] %vm2032, %v1795
      %2053 = vst.msk [vmem:[%s172 + $0x50] sm:$0xf] %vm2032, %v1796
      %2054 = vst.msk [vmem:[%s172 + $0x54] sm:$0xf] %vm2032, %v1797
      %2055 = vst.msk [vmem:[%s172 + $0x58] sm:$0xf] %vm2032, %v1798
      %2056 = vst.msk [vmem:[%s172 + $0x5c] sm:$0xf] %vm2032, %v1799
      %2057 = vst.msk [vmem:[%s172 + $0x60] sm:$0xf] %vm2032, %v1800
      %2058 = vst.msk [vmem:[%s172 + $0x64] sm:$0xf] %vm2032, %v1801
      %2059 = vst.msk [vmem:[%s172 + $0x68] sm:$0xf] %vm2032, %v1802
      %2060 = vst.msk [vmem:[%s172 + $0x6c] sm:$0xf] %vm2032, %v1803
      %2061 = vst.msk [vmem:[%s172 + $0x70] sm:$0xf] %vm2032, %v1804
      %2062 = vst.msk [vmem:[%s172 + $0x74] sm:$0xf] %vm2032, %v1805
      %2063 = vst.msk [vmem:[%s172 + $0x78] sm:$0xf] %vm2032, %v1806
      %2064 = vst.msk [vmem:[%s172 + $0x7c] sm:$0xf] %vm2032, %v1807
      %2065 = vst.msk [vmem:[%s172 + $0x80] sm:$0xf] %vm2032, %v1808
      %2066 = vst.msk [vmem:[%s172 + $0x84] sm:$0xf] %vm2032, %v1809
      %2067 = vst.msk [vmem:[%s172 + $0x88] sm:$0xf] %vm2032, %v1810
      %2068 = vst.msk [vmem:[%s172 + $0x8c] sm:$0xf] %vm2032, %v1811
      %2069 = vst.msk [vmem:[%s172 + $0x90] sm:$0xf] %vm2032, %v1812
      %2070 = vst.msk [vmem:[%s172 + $0x94] sm:$0xf] %vm2032, %v1813
      %2071 = vst.msk [vmem:[%s172 + $0x98] sm:$0xf] %vm2032, %v1814
      %2072 = vst.msk [vmem:[%s172 + $0x9c] sm:$0xf] %vm2032, %v1815
      %2073 = vst.msk [vmem:[%s172 + $0xa0] sm:$0xf] %vm2032, %v1816
      %2074 = vst.msk [vmem:[%s172 + $0xa4] sm:$0xf] %vm2032, %v1817
      %2075 = vst.msk [vmem:[%s172 + $0xa8] sm:$0xf] %vm2032, %v1818
      %2076 = vst.msk [vmem:[%s172 + $0xac] sm:$0xf] %vm2032, %v1819
      %2077 = vst.msk [vmem:[%s172 + $0xb0] sm:$0xf] %vm2032, %v1820
      %2078 = vst.msk [vmem:[%s172 + $0xb4] sm:$0xf] %vm2032, %v1821
      %2079 = vst.msk [vmem:[%s172 + $0xb8] sm:$0xf] %vm2032, %v1822
      %2080 = vst.msk [vmem:[%s172 + $0xbc] sm:$0xf] %vm2032, %v1823
      %2081 = vst.msk [vmem:[%s172 + $0xc0] sm:$0xf] %vm2032, %v1824
      %2082 = vst.msk [vmem:[%s172 + $0xc4] sm:$0xf] %vm2032, %v1825
      %2083 = vst.msk [vmem:[%s172 + $0xc8] sm:$0xf] %vm2032, %v1826
      %2084 = vst.msk [vmem:[%s172 + $0xcc] sm:$0xf] %vm2032, %v1827
      %2085 = vst.msk [vmem:[%s172 + $0xd0] sm:$0xf] %vm2032, %v1828
      %2086 = vst.msk [vmem:[%s172 + $0xd4] sm:$0xf] %vm2032, %v1829
      %2087 = vst.msk [vmem:[%s172 + $0xd8] sm:$0xf] %vm2032, %v1830
      %2088 = vst.msk [vmem:[%s172 + $0xdc] sm:$0xf] %vm2032, %v1831
      %2089 = vst.msk [vmem:[%s172 + $0xe0] sm:$0xf] %vm2032, %v1832
      %2090 = vst.msk [vmem:[%s172 + $0xe4] sm:$0xf] %vm2032, %v1833
      %2091 = vst.msk [vmem:[%s172 + $0xe8] sm:$0xf] %vm2032, %v1834
      %2092 = vst.msk [vmem:[%s172 + $0xec] sm:$0xf] %vm2032, %v1835
      %2093 = vst.msk [vmem:[%s172 + $0xf0] sm:$0xf] %vm2032, %v1836
      %2094 = vst.msk [vmem:[%s172 + $0xf4] sm:$0xf] %vm2032, %v1837
      %2095 = vst.msk [vmem:[%s172 + $0xf8] sm:$0xf] %vm2032, %v1838
      %2096 = vst.msk [vmem:[%s172 + $0xfc] sm:$0xf] %vm2032, %v1839
      %2097 = vst.msk [vmem:[%s172 + $0x100] sm:$0xf] %vm2032, %v1840
      %2098 = vst.msk [vmem:[%s172 + $0x104] sm:$0xf] %vm2032, %v1841
      %2099 = vst.msk [vmem:[%s172 + $0x108] sm:$0xf] %vm2032, %v1842
      %2100 = vst.msk [vmem:[%s172 + $0x10c] sm:$0xf] %vm2032, %v1843
      %2101 = vst.msk [vmem:[%s172 + $0x110] sm:$0xf] %vm2032, %v1844
      %2102 = vst.msk [vmem:[%s172 + $0x114] sm:$0xf] %vm2032, %v1845
      %2103 = vst.msk [vmem:[%s172 + $0x118] sm:$0xf] %vm2032, %v1846
      %2104 = vst.msk [vmem:[%s172 + $0x11c] sm:$0xf] %vm2032, %v1847
      %2105 = vst.msk [vmem:[%s172 + $0x120] sm:$0xf] %vm2032, %v1848
      %2106 = vst.msk [vmem:[%s172 + $0x124] sm:$0xf] %vm2032, %v1849
      %2107 = vst.msk [vmem:[%s172 + $0x128] sm:$0xf] %vm2032, %v1850
      %2108 = vst.msk [vmem:[%s172 + $0x12c] sm:$0xf] %vm2032, %v1851
      %2109 = vst.msk [vmem:[%s172 + $0x130] sm:$0xf] %vm2032, %v1852
      %2110 = vst.msk [vmem:[%s172 + $0x134] sm:$0xf] %vm2032, %v1853
      %2111 = vst.msk [vmem:[%s172 + $0x138] sm:$0xf] %vm2032, %v1854
      %2112 = vst.msk [vmem:[%s172 + $0x13c] sm:$0xf] %vm2032, %v1855
      %2113 = vst.msk [vmem:[%s172 + $0x140] sm:$0xf] %vm2032, %v1856
      %2114 = vst.msk [vmem:[%s172 + $0x144] sm:$0xf] %vm2032, %v1857
      %2115 = vst.msk [vmem:[%s172 + $0x148] sm:$0xf] %vm2032, %v1858
      %2116 = vst.msk [vmem:[%s172 + $0x14c] sm:$0xf] %vm2032, %v1859
      %2117 = vst.msk [vmem:[%s172 + $0x150] sm:$0xf] %vm2032, %v1860
      %2118 = vst.msk [vmem:[%s172 + $0x154] sm:$0xf] %vm2032, %v1861
      %2119 = vst.msk [vmem:[%s172 + $0x158] sm:$0xf] %vm2032, %v1862
      %2120 = vst.msk [vmem:[%s172 + $0x15c] sm:$0xf] %vm2032, %v1863
      %2121 = vst.msk [vmem:[%s172 + $0x160] sm:$0xf] %vm2032, %v1864
      %2122 = vst.msk [vmem:[%s172 + $0x164] sm:$0xf] %vm2032, %v1865
      %2123 = vst.msk [vmem:[%s172 + $0x168] sm:$0xf] %vm2032, %v1866
      %2124 = vst.msk [vmem:[%s172 + $0x16c] sm:$0xf] %vm2032, %v1867
      %2125 = vst.msk [vmem:[%s172 + $0x170] sm:$0xf] %vm2032, %v1868
      %2126 = vst.msk [vmem:[%s172 + $0x174] sm:$0xf] %vm2032, %v1869
      %2127 = vst.msk [vmem:[%s172 + $0x178] sm:$0xf] %vm2032, %v1870
      %2128 = vst.msk [vmem:[%s172 + $0x17c] sm:$0xf] %vm2032, %v1871
      %2129 = vst.msk [vmem:[%s172 + $0x180] sm:$0xf] %vm2032, %v1872
      %2130 = vst.msk [vmem:[%s172 + $0x184] sm:$0xf] %vm2032, %v1873
      %2131 = vst.msk [vmem:[%s172 + $0x188] sm:$0xf] %vm2032, %v1874
      %2132 = vst.msk [vmem:[%s172 + $0x18c] sm:$0xf] %vm2032, %v1875
      %2133 = vst.msk [vmem:[%s172 + $0x190] sm:$0xf] %vm2032, %v1876
      %2134 = vst.msk [vmem:[%s172 + $0x194] sm:$0xf] %vm2032, %v1877
      %2135 = vst.msk [vmem:[%s172 + $0x198] sm:$0xf] %vm2032, %v1878
      %2136 = vst.msk [vmem:[%s172 + $0x19c] sm:$0xf] %vm2032, %v1879
      %2137 = vst.msk [vmem:[%s172 + $0x1a0] sm:$0xf] %vm2032, %v1880
      %2138 = vst.msk [vmem:[%s172 + $0x1a4] sm:$0xf] %vm2032, %v1881
      %2139 = vst.msk [vmem:[%s172 + $0x1a8] sm:$0xf] %vm2032, %v1882
      %2140 = vst.msk [vmem:[%s172 + $0x1ac] sm:$0xf] %vm2032, %v1883
      %2141 = vst.msk [vmem:[%s172 + $0x1b0] sm:$0xf] %vm2032, %v1884
      %2142 = vst.msk [vmem:[%s172 + $0x1b4] sm:$0xf] %vm2032, %v1885
      %2143 = vst.msk [vmem:[%s172 + $0x1b8] sm:$0xf] %vm2032, %v1886
      %2144 = vst.msk [vmem:[%s172 + $0x1bc] sm:$0xf] %vm2032, %v1887
      %2145 = vst.msk [vmem:[%s172 + $0x1c0] sm:$0xf] %vm2032, %v1888
      %2146 = vst.msk [vmem:[%s172 + $0x1c4] sm:$0xf] %vm2032, %v1889
      %2147 = vst.msk [vmem:[%s172 + $0x1c8] sm:$0xf] %vm2032, %v1890
      %2148 = vst.msk [vmem:[%s172 + $0x1cc] sm:$0xf] %vm2032, %v1891
      %2149 = vst.msk [vmem:[%s172 + $0x1d0] sm:$0xf] %vm2032, %v1892
      %2150 = vst.msk [vmem:[%s172 + $0x1d4] sm:$0xf] %vm2032, %v1893
      %2151 = vst.msk [vmem:[%s172 + $0x1d8] sm:$0xf] %vm2032, %v1894
      %2152 = vst.msk [vmem:[%s172 + $0x1dc] sm:$0xf] %vm2032, %v1895
      %2153 = vst.msk [vmem:[%s172 + $0x1e0] sm:$0xf] %vm2032, %v1896
      %2154 = vst.msk [vmem:[%s172 + $0x1e4] sm:$0xf] %vm2032, %v1897
      %2155 = vst.msk [vmem:[%s172 + $0x1e8] sm:$0xf] %vm2032, %v1898
      %2156 = vst.msk [vmem:[%s172 + $0x1ec] sm:$0xf] %vm2032, %v1899
      %2157 = vst.msk [vmem:[%s172 + $0x1f0] sm:$0xf] %vm2032, %v1900
      %2158 = vst.msk [vmem:[%s172 + $0x1f4] sm:$0xf] %vm2032, %v1901
      %2159 = vst.msk [vmem:[%s172 + $0x1f8] sm:$0xf] %vm2032, %v1902
      %2160 = vst.msk [vmem:[%s172 + $0x1fc] sm:$0xf] %vm2032, %v1903
      %s2161 = smul.u32 128, %s14
      %p2162 = scmp.lt.s32.totalorder %s2161, 255
      %s2163 = scalar_select %p2162, %s2161, 255
      %s2164 = smul.addr %s2163, 4
      %s2165 = scalar_lea.vmem %s3, %s2164
      // Predicated region
      $region33: #{two_branch_net_forward.10} parent=31 // pred_check
        %p2166 = pneg %p100
      $region34: #{two_branch_net_forward.10} parent=31 // pred_check_branch
        %2168 = sbr.rel (%p2166) target = $region36
      $region35: #{two_branch_net_forward.10} parent=31 // pred_region
        %s2169 = smul.u32 128, %s14
      $region36: #{two_branch_net_forward.10} parent=31 // pred_fallthru
        _
    $region32: #{two_branch_net_forward.10} parent=5 // pred_fallthru
      _
    %p2170 = scmp.le.s32.totalorder 2, %s9
    // Predicated region
    $region37: #{two_branch_net_forward.10} parent=5 // pred_check
      %p2171 = pneg %p2170
    $region38: #{two_branch_net_forward.10} parent=5 // pred_check_branch
      %2173 = sbr.rel (%p2171) target = $region40
    $region39: #{two_branch_net_forward.10} parent=5 // pred_region
      %s2174 = ssub.s32 %s9, 2
      // Predicated region
      $region41: #{two_branch_net_forward.10} parent=39 // pred_check
        %p2175 = pneg %p106
      $region42: #{two_branch_net_forward.10} parent=39 // pred_check_branch
        %2177 = sbr.rel (%p2175) target = $region44
      $region43: #{two_branch_net_forward.10} parent=39 // pred_region
        %s2178 = smul.u32 128, %s15
        %p2179 = scmp.lt.s32.totalorder %s2178, 255
        %s2180 = scalar_select %p2179, %s2178, 255
        %s2181 = smul.addr %s2180, 4
        %s2182 = scalar_lea.vmem %s3, %s2181
      $region44: #{two_branch_net_forward.10} parent=39 // pred_fallthru
        _
    $region40: #{two_branch_net_forward.10} parent=5 // pred_fallthru
      _
  $region6: #{two_branch_net_forward.10} parent=0 // loop_footer
    %s13 = sadd.s32 1, %s9
  $region7: #{two_branch_net_forward.10} parent=0 // loop_footer_branch
    %8 = sbr.rel target = $region3
  $region8: #{two_branch_net_forward.10} parent=0 // loop_exit
    _

// kernel: two_branch_net_forward.11
$region0: #{two_branch_net_forward.11}
  #allocation0 [shape = 'u32[]', space=smem, size = 0x4, offset = 0x4, fixed_abs, tag = 'smem constant byte address 0x4 - core index']
  #allocation1 [shape = 'u32[144,128]{1,0:T(1,128)}', space=vmem, size = 0x12000, scoped, tag = 'internal scratch']
  %s0 = inlined_call_operand.vmem [shape: bf16[512,72], index: 0, kind: input, shape index: {}]
  %s1 = inlined_call_operand.vmem [shape: bf16[72,16], index: 1, kind: input, shape index: {}]
  %s2 = inlined_call_operand.vmem [shape: f32[1,16], index: 2, kind: input, shape index: {}]
  %s3 = inlined_call_operand.vmem [shape: bf16[512,16], index: 3, kind: output, shape index: {}]
  %s4 = sld [smem:[#allocation0]]
  $region22: #{two_branch_net_forward.11} parent=0
    _
  %s6 = ssub.s32 1, %s4
  %s7 = scalar_select 0, %s6, %s4
  // Predicated region
  $region2: #{two_branch_net_forward.11} parent=0 // pred_check
    _
  $region3: #{two_branch_net_forward.11} parent=0 // pred_check_branch
    %9 = sbr.rel (0) target = $region5
  $region4: #{two_branch_net_forward.11} parent=0 // pred_region
    _
  $region5: #{two_branch_net_forward.11} parent=0 // pred_fallthru
    _
  // Predicated region
  $region6: #{two_branch_net_forward.11} parent=0 // pred_check
    _
  $region7: #{two_branch_net_forward.11} parent=0 // pred_check_branch
    %11 = sbr.rel (0) target = $region9
  $region8: #{two_branch_net_forward.11} parent=0 // pred_region
    _
  $region9: #{two_branch_net_forward.11} parent=0 // pred_fallthru
    _
  // Predicated region
  $region10: #{two_branch_net_forward.11} parent=0 // pred_check
    _
  $region11: #{two_branch_net_forward.11} parent=0 // pred_check_branch
    %13 = sbr.rel (0) target = $region13
  $region12: #{two_branch_net_forward.11} parent=0 // pred_region
    _
  $region13: #{two_branch_net_forward.11} parent=0 // pred_fallthru
    _
  %v15 = vld [vmem:[%s0] sm:$0xf]
  %v16 = vld [vmem:[%s0 + $0x4] sm:$0xf]
  %v17 = vld [vmem:[%s0 + $0x8] sm:$0xf]
  %v18 = vld [vmem:[%s0 + $0xc] sm:$0xf]
  %v19 = vld [vmem:[%s0 + $0x10] sm:$0xf]
  %v20 = vld [vmem:[%s0 + $0x14] sm:$0xf]
  %v21 = vld [vmem:[%s0 + $0x18] sm:$0xf]
  %v22 = vld [vmem:[%s0 + $0x1c] sm:$0xf]
  %v23 = vld [vmem:[%s0 + $0x20] sm:$0xf]
  %v24 = vld [vmem:[%s0 + $0x24] sm:$0xf]
  %v25 = vld [vmem:[%s0 + $0x28] sm:$0xf]
  %v26 = vld [vmem:[%s0 + $0x2c] sm:$0xf]
  %v27 = vld [vmem:[%s0 + $0x30] sm:$0xf]
  %v28 = vld [vmem:[%s0 + $0x34] sm:$0xf]
  %v29 = vld [vmem:[%s0 + $0x38] sm:$0xf]
  %v30 = vld [vmem:[%s0 + $0x3c] sm:$0xf]
  %v31 = vld [vmem:[%s0 + $0x40] sm:$0xf]
  %v32 = vld [vmem:[%s0 + $0x44] sm:$0xf]
  %v33 = vld [vmem:[%s0 + $0x48] sm:$0xf]
  %v34 = vld [vmem:[%s0 + $0x4c] sm:$0xf]
  %v35 = vld [vmem:[%s0 + $0x50] sm:$0xf]
  %v36 = vld [vmem:[%s0 + $0x54] sm:$0xf]
  %v37 = vld [vmem:[%s0 + $0x58] sm:$0xf]
  %v38 = vld [vmem:[%s0 + $0x5c] sm:$0xf]
  %v39 = vld [vmem:[%s0 + $0x60] sm:$0xf]
  %v40 = vld [vmem:[%s0 + $0x64] sm:$0xf]
  %v41 = vld [vmem:[%s0 + $0x68] sm:$0xf]
  %v42 = vld [vmem:[%s0 + $0x6c] sm:$0xf]
  %v43 = vld [vmem:[%s0 + $0x70] sm:$0xf]
  %v44 = vld [vmem:[%s0 + $0x74] sm:$0xf]
  %v45 = vld [vmem:[%s0 + $0x78] sm:$0xf]
  %v46 = vld [vmem:[%s0 + $0x7c] sm:$0xf]
  %v47 = vld [vmem:[%s0 + $0x80] sm:$0xf]
  %v48 = vld [vmem:[%s0 + $0x84] sm:$0xf]
  %v49 = vld [vmem:[%s0 + $0x88] sm:$0xf]
  %v50 = vld [vmem:[%s0 + $0x8c] sm:$0xf]
  %v51 = vld [vmem:[%s0 + $0x90] sm:$0xf]
  %v52 = vld [vmem:[%s0 + $0x94] sm:$0xf]
  %v53 = vld [vmem:[%s0 + $0x98] sm:$0xf]
  %v54 = vld [vmem:[%s0 + $0x9c] sm:$0xf]
  %v55 = vld [vmem:[%s0 + $0xa0] sm:$0xf]
  %v56 = vld [vmem:[%s0 + $0xa4] sm:$0xf]
  %v57 = vld [vmem:[%s0 + $0xa8] sm:$0xf]
  %v58 = vld [vmem:[%s0 + $0xac] sm:$0xf]
  %v59 = vld [vmem:[%s0 + $0xb0] sm:$0xf]
  %v60 = vld [vmem:[%s0 + $0xb4] sm:$0xf]
  %v61 = vld [vmem:[%s0 + $0xb8] sm:$0xf]
  %v62 = vld [vmem:[%s0 + $0xbc] sm:$0xf]
  %v63 = vld [vmem:[%s0 + $0xc0] sm:$0xf]
  %v64 = vld [vmem:[%s0 + $0xc4] sm:$0xf]
  %v65 = vld [vmem:[%s0 + $0xc8] sm:$0xf]
  %v66 = vld [vmem:[%s0 + $0xcc] sm:$0xf]
  %v67 = vld [vmem:[%s0 + $0xd0] sm:$0xf]
  %v68 = vld [vmem:[%s0 + $0xd4] sm:$0xf]
  %v69 = vld [vmem:[%s0 + $0xd8] sm:$0xf]
  %v70 = vld [vmem:[%s0 + $0xdc] sm:$0xf]
  %v71 = vld [vmem:[%s0 + $0xe0] sm:$0xf]
  %v72 = vld [vmem:[%s0 + $0xe4] sm:$0xf]
  %v73 = vld [vmem:[%s0 + $0xe8] sm:$0xf]
  %v74 = vld [vmem:[%s0 + $0xec] sm:$0xf]
  %v75 = vld [vmem:[%s0 + $0xf0] sm:$0xf]
  %v76 = vld [vmem:[%s0 + $0xf4] sm:$0xf]
  %v77 = vld [vmem:[%s0 + $0xf8] sm:$0xf]
  %v78 = vld [vmem:[%s0 + $0xfc] sm:$0xf]
  %v79 = vld [vmem:[%s1] sm:$0xf]
  %v80 = vld [vmem:[%s1 + $0x4] sm:$0xf]
  %v81 = vld [vmem:[%s1 + $0x8] sm:$0xf]
  %v82 = vld [vmem:[%s1 + $0xc] sm:$0xf]
  %v83 = vld [vmem:[%s1 + $0x10] sm:$0xf]
  %v84 = vld [vmem:[%s1 + $0x14] sm:$0xf]
  %v85 = vld [vmem:[%s1 + $0x18] sm:$0xf]
  %v86 = vld [vmem:[%s1 + $0x1c] sm:$0xf]
  %v87 = vld [vmem:[%s1 + $0x20] sm:$0xf]
  %v88 = vld [vmem:[%s2] sm:$0x1]
  %v90 = vlaneseq
  %v91 = vshrl.u32 %v90, 7
  %v92 = vsub.s32 0, %v91
  %v93 = vrot.slane %v88, %v92
  %v159 = vunpack.c.l.b16 %v15
  %v160 = vunpack.c.l.b16 %v16
  %v161 = vunpack.c.l.b16 %v17
  %v162 = vunpack.c.l.b16 %v18
  %v163 = vunpack.c.l.b16 %v19
  %v164 = vunpack.c.l.b16 %v20
  %v165 = vunpack.c.l.b16 %v21
  %v166 = vunpack.c.l.b16 %v22
  %v167 = vunpack.c.l.b16 %v23
  %v168 = vunpack.c.l.b16 %v24
  %v169 = vunpack.c.l.b16 %v25
  %v170 = vunpack.c.l.b16 %v26
  %v171 = vunpack.c.l.b16 %v27
  %v172 = vunpack.c.l.b16 %v28
  %v173 = vunpack.c.l.b16 %v29
  %v174 = vunpack.c.l.b16 %v30
  %v175 = vunpack.c.l.b16 %v31
  %v176 = vunpack.c.l.b16 %v32
  %v177 = vunpack.c.l.b16 %v33
  %v178 = vunpack.c.l.b16 %v34
  %v179 = vunpack.c.l.b16 %v35
  %v180 = vunpack.c.l.b16 %v36
  %v181 = vunpack.c.l.b16 %v37
  %v182 = vunpack.c.l.b16 %v38
  %v183 = vunpack.c.l.b16 %v39
  %v184 = vunpack.c.l.b16 %v40
  %v185 = vunpack.c.l.b16 %v41
  %v186 = vunpack.c.l.b16 %v42
  %v187 = vunpack.c.l.b16 %v43
  %v188 = vunpack.c.l.b16 %v44
  %v189 = vunpack.c.l.b16 %v45
  %v190 = vunpack.c.l.b16 %v46
  %v191 = vunpack.c.l.b16 %v47
  %v192 = vunpack.c.l.b16 %v48
  %v193 = vunpack.c.l.b16 %v49
  %v194 = vunpack.c.l.b16 %v50
  %v195 = vunpack.c.l.b16 %v51
  %v196 = vunpack.c.l.b16 %v52
  %v197 = vunpack.c.l.b16 %v53
  %v198 = vunpack.c.l.b16 %v54
  %v199 = vunpack.c.l.b16 %v55
  %v200 = vunpack.c.l.b16 %v56
  %v201 = vunpack.c.l.b16 %v57
  %v202 = vunpack.c.l.b16 %v58
  %v203 = vunpack.c.l.b16 %v59
  %v204 = vunpack.c.l.b16 %v60
  %v205 = vunpack.c.l.b16 %v61
  %v206 = vunpack.c.l.b16 %v62
  %v207 = vunpack.c.l.b16 %v63
  %v208 = vunpack.c.l.b16 %v64
  %v209 = vunpack.c.l.b16 %v65
  %v210 = vunpack.c.l.b16 %v66
  %v211 = vunpack.c.l.b16 %v67
  %v212 = vunpack.c.l.b16 %v68
  %v213 = vunpack.c.l.b16 %v69
  %v214 = vunpack.c.l.b16 %v70
  %v215 = vunpack.c.l.b16 %v71
  %v216 = vunpack.c.l.b16 %v72
  %v217 = vunpack.c.l.b16 %v73
  %v218 = vunpack.c.l.b16 %v74
  %v219 = vunpack.c.l.b16 %v75
  %v220 = vunpack.c.l.b16 %v76
  %v221 = vunpack.c.l.b16 %v77
  %v222 = vunpack.c.l.b16 %v78
  %v223 = vpack.c.b16 %v160, %v159
  %v224 = vpack.c.b16 %v162, %v161
  %v225 = vpack.c.b16 %v164, %v163
  %v226 = vpack.c.b16 %v166, %v165
  %v227 = vpack.c.b16 %v168, %v167
  %v228 = vpack.c.b16 %v170, %v169
  %v229 = vpack.c.b16 %v172, %v171
  %v230 = vpack.c.b16 %v174, %v173
  %v231 = vpack.c.b16 %v176, %v175
  %v232 = vpack.c.b16 %v178, %v177
  %v233 = vpack.c.b16 %v180, %v179
  %v234 = vpack.c.b16 %v182, %v181
  %v235 = vpack.c.b16 %v184, %v183
  %v236 = vpack.c.b16 %v186, %v185
  %v237 = vpack.c.b16 %v188, %v187
  %v238 = vpack.c.b16 %v190, %v189
  %v239 = vpack.c.b16 %v192, %v191
  %v240 = vpack.c.b16 %v194, %v193
  %v241 = vpack.c.b16 %v196, %v195
  %v242 = vpack.c.b16 %v198, %v197
  %v243 = vpack.c.b16 %v200, %v199
  %v244 = vpack.c.b16 %v202, %v201
  %v245 = vpack.c.b16 %v204, %v203
  %v246 = vpack.c.b16 %v206, %v205
  %v247 = vpack.c.b16 %v208, %v207
  %v248 = vpack.c.b16 %v210, %v209
  %v249 = vpack.c.b16 %v212, %v211
  %v250 = vpack.c.b16 %v214, %v213
  %v251 = vpack.c.b16 %v216, %v215
  %v252 = vpack.c.b16 %v218, %v217
  %v253 = vpack.c.b16 %v220, %v219
  %v254 = vpack.c.b16 %v222, %v221
  %v264 = vunpack.c.l.b16 %v79
  %v265 = vunpack.c.l.b16 %v80
  %v266 = vunpack.c.l.b16 %v81
  %v267 = vunpack.c.l.b16 %v82
  %v268 = vunpack.c.l.b16 %v83
  %v269 = vunpack.c.l.b16 %v84
  %v270 = vunpack.c.l.b16 %v85
  %v271 = vunpack.c.l.b16 %v86
  %v272 = vunpack.c.l.b16 %v87
  %v273 = vpack.c.b16 %v265, %v264
  %v274 = vpack.c.b16 %v267, %v266
  %v275 = vpack.c.b16 %v269, %v268
  %v276 = vpack.c.b16 %v271, %v270
  %v277 = vpack.c.b16 %v272, %v272
  %vm282 = vcmask 588800
  %v284 = vsel %vm282, %v223, 0
  %v287 = vsel %vm282, %v224, 0
  %v290 = vsel %vm282, %v225, 0
  %v293 = vsel %vm282, %v226, 0
  %v296 = vsel %vm282, %v227, 0
  %v299 = vsel %vm282, %v228, 0
  %v302 = vsel %vm282, %v229, 0
  %v305 = vsel %vm282, %v230, 0
  %v308 = vsel %vm282, %v231, 0
  %v311 = vsel %vm282, %v232, 0
  %v314 = vsel %vm282, %v233, 0
  %v317 = vsel %vm282, %v234, 0
  %v320 = vsel %vm282, %v235, 0
  %v323 = vsel %vm282, %v236, 0
  %v326 = vsel %vm282, %v237, 0
  %v329 = vsel %vm282, %v238, 0
  %v332 = vsel %vm282, %v239, 0
  %v335 = vsel %vm282, %v240, 0
  %v338 = vsel %vm282, %v241, 0
  %v341 = vsel %vm282, %v242, 0
  %v344 = vsel %vm282, %v243, 0
  %v347 = vsel %vm282, %v244, 0
  %v350 = vsel %vm282, %v245, 0
  %v353 = vsel %vm282, %v246, 0
  %v356 = vsel %vm282, %v247, 0
  %v359 = vsel %vm282, %v248, 0
  %v362 = vsel %vm282, %v249, 0
  %v365 = vsel %vm282, %v250, 0
  %v368 = vsel %vm282, %v251, 0
  %v371 = vsel %vm282, %v252, 0
  %v374 = vsel %vm282, %v253, 0
  %v377 = vsel %vm282, %v254, 0
  %vm379 = vcmask 1043456
  %v381 = vsel %vm379, %v277, 0
  %383 = vmatprep.subr.bf16.mxu0 0
  %384 = vmatpush1.bf16.msra.mxu0 %v273
  %385 = vmatprep.subr.bf16.mxu0 0
  %386 = vmatpush1.bf16.msra.mxu0 %v274
  %387 = vmatprep.subr.bf16.mxu0 0
  %388 = vmatpush1.bf16.msra.mxu0 %v275
  %389 = vmatprep.subr.bf16.mxu0 0
  %390 = vmatpush1.bf16.msra.mxu0 %v276
  %391 = vmatprep.subr.bf16.mxu0 0
  %392 = vmatpush1.bf16.msra.mxu0 %v381
  %393 = vmatprep.subr.bf16.mxu0 0
  %394 = vmatpush1.bf16.msra.mxu0 0
  %395 = vmatprep.subr.bf16.mxu0 0
  %396 = vmatpush1.bf16.msra.mxu0 0
  %397 = vmatprep.subr.bf16.mxu0 0
  %398 = vmatpush1.bf16.msra.mxu0 0
  %399 = vmatprep.subr.bf16.mxu0 0
  %400 = vmatpush1.bf16.msra.mxu0 0
  %401 = vmatprep.subr.bf16.mxu0 0
  %402 = vmatpush1.bf16.msra.mxu0 0
  %403 = vmatprep.subr.bf16.mxu0 0
  %404 = vmatpush1.bf16.msra.mxu0 0
  %405 = vmatprep.subr.bf16.mxu0 0
  %406 = vmatpush1.bf16.msra.mxu0 0
  %407 = vmatprep.subr.bf16.mxu0 0
  %408 = vmatpush1.bf16.msra.mxu0 0
  %409 = vmatprep.subr.bf16.mxu0 0
  %410 = vmatpush1.bf16.msra.mxu0 0
  %411 = vmatprep.subr.bf16.mxu0 0
  %412 = vmatpush1.bf16.msra.mxu0 0
  %413 = vmatprep.subr.bf16.mxu0 0
  %414 = vmatpush1.bf16.msra.mxu0 0
  %415 = vmatprep.mubr.bf16.mxu0 0
  %416 = vmatmul.mubr.bf16.gmra.mrb[0].mxu0 %v284
  %v417 = vpop.f32.mrb[0].mxu0
  %v418 = vadd.f32 %v93, %v417
  %v419 = vpop.f32.mrb[0].mxu0
  %v420 = vpop.f32.mrb[0].mxu0
  %v421 = vadd.f32 %v93, %v420
  %v422 = vpop.f32.mrb[0].mxu0
  %423 = vmatprep.mubr.bf16.mxu0 0
  %424 = vmatmul.mubr.bf16.gmra.mrb[0].mxu0 %v287
  %v425 = vpop.f32.mrb[0].mxu0
  %v426 = vadd.f32 %v93, %v425
  %v427 = vpop.f32.mrb[0].mxu0
  %v428 = vpop.f32.mrb[0].mxu0
  %v429 = vadd.f32 %v93, %v428
  %v430 = vpop.f32.mrb[0].mxu0
  %431 = vmatprep.mubr.bf16.mxu0 0
  %432 = vmatmul.mubr.bf16.gmra.mrb[0].mxu0 %v290
  %v433 = vpop.f32.mrb[0].mxu0
  %v434 = vadd.f32 %v93, %v433
  %v435 = vpop.f32.mrb[0].mxu0
  %v436 = vpop.f32.mrb[0].mxu0
  %v437 = vadd.f32 %v93, %v436
  %v438 = vpop.f32.mrb[0].mxu0
  %439 = vmatprep.mubr.bf16.mxu0 0
  %440 = vmatmul.mubr.bf16.gmra.mrb[0].mxu0 %v293
  %v441 = vpop.f32.mrb[0].mxu0
  %v442 = vadd.f32 %v93, %v441
  %v443 = vpop.f32.mrb[0].mxu0
  %v444 = vpop.f32.mrb[0].mxu0
  %v445 = vadd.f32 %v93, %v444
  %v446 = vpop.f32.mrb[0].mxu0
  %447 = vmatprep.mubr.bf16.mxu0 0
  %448 = vmatmul.mubr.bf16.gmra.mrb[0].mxu0 %v296
  %v449 = vpop.f32.mrb[0].mxu0
  %v450 = vadd.f32 %v93, %v449
  %v451 = vpop.f32.mrb[0].mxu0
  %v452 = vpop.f32.mrb[0].mxu0
  %v453 = vadd.f32 %v93, %v452
  %v454 = vpop.f32.mrb[0].mxu0
  %455 = vmatprep.mubr.bf16.mxu0 0
  %456 = vmatmul.mubr.bf16.gmra.mrb[0].mxu0 %v299
  %v457 = vpop.f32.mrb[0].mxu0
  %v458 = vadd.f32 %v93, %v457
  %v459 = vpop.f32.mrb[0].mxu0
  %v460 = vpop.f32.mrb[0].mxu0
  %v461 = vadd.f32 %v93, %v460
  %v462 = vpop.f32.mrb[0].mxu0
  %463 = vmatprep.mubr.bf16.mxu0 0
  %464 = vmatmul.mubr.bf16.gmra.mrb[0].mxu0 %v302
  %v465 = vpop.f32.mrb[0].mxu0
  %v466 = vadd.f32 %v93, %v465
  %v467 = vpop.f32.mrb[0].mxu0
  %v468 = vpop.f32.mrb[0].mxu0
  %v469 = vadd.f32 %v93, %v468
  %v470 = vpop.f32.mrb[0].mxu0
  %471 = vmatprep.mubr.bf16.mxu0 0
  %472 = vmatmul.mubr.bf16.gmra.mrb[0].mxu0 %v305
  %v473 = vpop.f32.mrb[0].mxu0
  %v474 = vadd.f32 %v93, %v473
  %v475 = vpop.f32.mrb[0].mxu0
  %v476 = vpop.f32.mrb[0].mxu0
  %v477 = vadd.f32 %v93, %v476
  %v478 = vpop.f32.mrb[0].mxu0
  %479 = vmatprep.mubr.bf16.mxu0 0
  %480 = vmatmul.mubr.bf16.gmra.mrb[0].mxu0 %v308
  %v481 = vpop.f32.mrb[0].mxu0
  %v482 = vadd.f32 %v93, %v481
  %v483 = vpop.f32.mrb[0].mxu0
  %v484 = vpop.f32.mrb[0].mxu0
  %v485 = vadd.f32 %v93, %v484
  %v486 = vpop.f32.mrb[0].mxu0
  %487 = vmatprep.mubr.bf16.mxu0 0
  %488 = vmatmul.mubr.bf16.gmra.mrb[0].mxu0 %v311
  %v489 = vpop.f32.mrb[0].mxu0
  %v490 = vadd.f32 %v93, %v489
  %v491 = vpop.f32.mrb[0].mxu0
  %v492 = vpop.f32.mrb[0].mxu0
  %v493 = vadd.f32 %v93, %v492
  %v494 = vpop.f32.mrb[0].mxu0
  %495 = vmatprep.mubr.bf16.mxu0 0
  %496 = vmatmul.mubr.bf16.gmra.mrb[0].mxu0 %v314
  %v497 = vpop.f32.mrb[0].mxu0
  %v498 = vadd.f32 %v93, %v497
  %v499 = vpop.f32.mrb[0].mxu0
  %v500 = vpop.f32.mrb[0].mxu0
  %v501 = vadd.f32 %v93, %v500
  %v502 = vpop.f32.mrb[0].mxu0
  %503 = vmatprep.mubr.bf16.mxu0 0
  %504 = vmatmul.mubr.bf16.gmra.mrb[0].mxu0 %v317
  %v505 = vpop.f32.mrb[0].mxu0
  %v506 = vadd.f32 %v93, %v505
  %v507 = vpop.f32.mrb[0].mxu0
  %v508 = vpop.f32.mrb[0].mxu0
  %v509 = vadd.f32 %v93, %v508
  %v510 = vpop.f32.mrb[0].mxu0
  %511 = vmatprep.mubr.bf16.mxu0 0
  %512 = vmatmul.mubr.bf16.gmra.mrb[0].mxu0 %v320
  %v513 = vpop.f32.mrb[0].mxu0
  %v514 = vadd.f32 %v93, %v513
  %v515 = vpop.f32.mrb[0].mxu0
  %v516 = vpop.f32.mrb[0].mxu0
  %v517 = vadd.f32 %v93, %v516
  %v518 = vpop.f32.mrb[0].mxu0
  %519 = vmatprep.mubr.bf16.mxu0 0
  %520 = vmatmul.mubr.bf16.gmra.mrb[0].mxu0 %v323
  %v521 = vpop.f32.mrb[0].mxu0
  %v522 = vadd.f32 %v93, %v521
  %v523 = vpop.f32.mrb[0].mxu0
  %v524 = vpop.f32.mrb[0].mxu0
  %v525 = vadd.f32 %v93, %v524
  %v526 = vpop.f32.mrb[0].mxu0
  %527 = vmatprep.mubr.bf16.mxu0 0
  %528 = vmatmul.mubr.bf16.gmra.mrb[0].mxu0 %v326
  %v529 = vpop.f32.mrb[0].mxu0
  %v530 = vadd.f32 %v93, %v529
  %v531 = vpop.f32.mrb[0].mxu0
  %v532 = vpop.f32.mrb[0].mxu0
  %v533 = vadd.f32 %v93, %v532
  %v534 = vpop.f32.mrb[0].mxu0
  %535 = vmatprep.mubr.bf16.mxu0 0
  %536 = vmatmul.mubr.bf16.gmra.mrb[0].mxu0 %v329
  %v537 = vpop.f32.mrb[0].mxu0
  %v538 = vadd.f32 %v93, %v537
  %v539 = vpop.f32.mrb[0].mxu0
  %v540 = vpop.f32.mrb[0].mxu0
  %v541 = vadd.f32 %v93, %v540
  %v542 = vpop.f32.mrb[0].mxu0
  %543 = vmatprep.mubr.bf16.mxu0 0
  %544 = vmatmul.mubr.bf16.gmra.mrb[0].mxu0 %v332
  %v545 = vpop.f32.mrb[0].mxu0
  %v546 = vadd.f32 %v93, %v545
  %v547 = vpop.f32.mrb[0].mxu0
  %v548 = vpop.f32.mrb[0].mxu0
  %v549 = vadd.f32 %v93, %v548
  %v550 = vpop.f32.mrb[0].mxu0
  %551 = vmatprep.mubr.bf16.mxu0 0
  %552 = vmatmul.mubr.bf16.gmra.mrb[0].mxu0 %v335
  %v553 = vpop.f32.mrb[0].mxu0
  %v554 = vadd.f32 %v93, %v553
  %v555 = vpop.f32.mrb[0].mxu0
  %v556 = vpop.f32.mrb[0].mxu0
  %v557 = vadd.f32 %v93, %v556
  %v558 = vpop.f32.mrb[0].mxu0
  %559 = vmatprep.mubr.bf16.mxu0 0
  %560 = vmatmul.mubr.bf16.gmra.mrb[0].mxu0 %v338
  %v561 = vpop.f32.mrb[0].mxu0
  %v562 = vadd.f32 %v93, %v561
  %v563 = vpop.f32.mrb[0].mxu0
  %v564 = vpop.f32.mrb[0].mxu0
  %v565 = vadd.f32 %v93, %v564
  %v566 = vpop.f32.mrb[0].mxu0
  %567 = vmatprep.mubr.bf16.mxu0 0
  %568 = vmatmul.mubr.bf16.gmra.mrb[0].mxu0 %v341
  %v569 = vpop.f32.mrb[0].mxu0
  %v570 = vadd.f32 %v93, %v569
  %v571 = vpop.f32.mrb[0].mxu0
  %v572 = vpop.f32.mrb[0].mxu0
  %v573 = vadd.f32 %v93, %v572
  %v574 = vpop.f32.mrb[0].mxu0
  %575 = vmatprep.mubr.bf16.mxu0 0
  %576 = vmatmul.mubr.bf16.gmra.mrb[0].mxu0 %v344
  %v577 = vpop.f32.mrb[0].mxu0
  %v578 = vadd.f32 %v93, %v577
  %v579 = vpop.f32.mrb[0].mxu0
  %v580 = vpop.f32.mrb[0].mxu0
  %v581 = vadd.f32 %v93, %v580
  %v582 = vpop.f32.mrb[0].mxu0
  %583 = vmatprep.mubr.bf16.mxu0 0
  %584 = vmatmul.mubr.bf16.gmra.mrb[0].mxu0 %v347
  %v585 = vpop.f32.mrb[0].mxu0
  %v586 = vadd.f32 %v93, %v585
  %v587 = vpop.f32.mrb[0].mxu0
  %v588 = vpop.f32.mrb[0].mxu0
  %v589 = vadd.f32 %v93, %v588
  %v590 = vpop.f32.mrb[0].mxu0
  %591 = vmatprep.mubr.bf16.mxu0 0
  %592 = vmatmul.mubr.bf16.gmra.mrb[0].mxu0 %v350
  %v593 = vpop.f32.mrb[0].mxu0
  %v594 = vadd.f32 %v93, %v593
  %v595 = vpop.f32.mrb[0].mxu0
  %v596 = vpop.f32.mrb[0].mxu0
  %v597 = vadd.f32 %v93, %v596
  %v598 = vpop.f32.mrb[0].mxu0
  %599 = vmatprep.mubr.bf16.mxu0 0
  %600 = vmatmul.mubr.bf16.gmra.mrb[0].mxu0 %v353
  %v601 = vpop.f32.mrb[0].mxu0
  %v602 = vadd.f32 %v93, %v601
  %v603 = vpop.f32.mrb[0].mxu0
  %v604 = vpop.f32.mrb[0].mxu0
  %v605 = vadd.f32 %v93, %v604
  %v606 = vpop.f32.mrb[0].mxu0
  %607 = vmatprep.mubr.bf16.mxu0 0
  %608 = vmatmul.mubr.bf16.gmra.mrb[0].mxu0 %v356
  %v609 = vpop.f32.mrb[0].mxu0
  %v610 = vadd.f32 %v93, %v609
  %v611 = vpop.f32.mrb[0].mxu0
  %v612 = vpop.f32.mrb[0].mxu0
  %v613 = vadd.f32 %v93, %v612
  %v614 = vpop.f32.mrb[0].mxu0
  %615 = vmatprep.mubr.bf16.mxu0 0
  %616 = vmatmul.mubr.bf16.gmra.mrb[0].mxu0 %v359
  %v617 = vpop.f32.mrb[0].mxu0
  %v618 = vadd.f32 %v93, %v617
  %v619 = vpop.f32.mrb[0].mxu0
  %v620 = vpop.f32.mrb[0].mxu0
  %v621 = vadd.f32 %v93, %v620
  %v622 = vpop.f32.mrb[0].mxu0
  %623 = vmatprep.mubr.bf16.mxu0 0
  %624 = vmatmul.mubr.bf16.gmra.mrb[0].mxu0 %v362
  %v625 = vpop.f32.mrb[0].mxu0
  %v626 = vadd.f32 %v93, %v625
  %v627 = vpop.f32.mrb[0].mxu0
  %v628 = vpop.f32.mrb[0].mxu0
  %v629 = vadd.f32 %v93, %v628
  %v630 = vpop.f32.mrb[0].mxu0
  %631 = vmatprep.mubr.bf16.mxu0 0
  %632 = vmatmul.mubr.bf16.gmra.mrb[0].mxu0 %v365
  %v633 = vpop.f32.mrb[0].mxu0
  %v634 = vadd.f32 %v93, %v633
  %v635 = vpop.f32.mrb[0].mxu0
  %v636 = vpop.f32.mrb[0].mxu0
  %v637 = vadd.f32 %v93, %v636
  %v638 = vpop.f32.mrb[0].mxu0
  %639 = vmatprep.mubr.bf16.mxu0 0
  %640 = vmatmul.mubr.bf16.gmra.mrb[0].mxu0 %v368
  %v641 = vpop.f32.mrb[0].mxu0
  %v642 = vadd.f32 %v93, %v641
  %v643 = vpop.f32.mrb[0].mxu0
  %v644 = vpop.f32.mrb[0].mxu0
  %v645 = vadd.f32 %v93, %v644
  %v646 = vpop.f32.mrb[0].mxu0
  %647 = vmatprep.mubr.bf16.mxu0 0
  %648 = vmatmul.mubr.bf16.gmra.mrb[0].mxu0 %v371
  %v649 = vpop.f32.mrb[0].mxu0
  %v650 = vadd.f32 %v93, %v649
  %v651 = vpop.f32.mrb[0].mxu0
  %v652 = vpop.f32.mrb[0].mxu0
  %v653 = vadd.f32 %v93, %v652
  %v654 = vpop.f32.mrb[0].mxu0
  %655 = vmatprep.mubr.bf16.mxu0 0
  %656 = vmatmul.mubr.bf16.gmra.mrb[0].mxu0 %v374
  %v657 = vpop.f32.mrb[0].mxu0
  %v658 = vadd.f32 %v93, %v657
  %v659 = vpop.f32.mrb[0].mxu0
  %v660 = vpop.f32.mrb[0].mxu0
  %v661 = vadd.f32 %v93, %v660
  %v662 = vpop.f32.mrb[0].mxu0
  %663 = vmatprep.mubr.bf16.mxu0 0
  %664 = vmatmul.mubr.bf16.gmra.mrb[0].mxu0 %v377
  %v665 = vpop.f32.mrb[0].mxu0
  %v666 = vadd.f32 %v93, %v665
  %v667 = vpop.f32.mrb[0].mxu0
  %v668 = vpop.f32.mrb[0].mxu0
  %v669 = vadd.f32 %v93, %v668
  %v670 = vpop.f32.mrb[0].mxu0
  %671 = vdwg.mxu0
  %v672 = vmax.f32 %v418, 0.0
  %v673 = vmax.f32 %v421, 0.0
  %v674 = vmax.f32 %v426, 0.0
  %v675 = vmax.f32 %v429, 0.0
  %v676 = vmax.f32 %v434, 0.0
  %v677 = vmax.f32 %v437, 0.0
  %v678 = vmax.f32 %v442, 0.0
  %v679 = vmax.f32 %v445, 0.0
  %v680 = vmax.f32 %v450, 0.0
  %v681 = vmax.f32 %v453, 0.0
  %v682 = vmax.f32 %v458, 0.0
  %v683 = vmax.f32 %v461, 0.0
  %v684 = vmax.f32 %v466, 0.0
  %v685 = vmax.f32 %v469, 0.0
  %v686 = vmax.f32 %v474, 0.0
  %v687 = vmax.f32 %v477, 0.0
  %v688 = vmax.f32 %v482, 0.0
  %v689 = vmax.f32 %v485, 0.0
  %v690 = vmax.f32 %v490, 0.0
  %v691 = vmax.f32 %v493, 0.0
  %v692 = vmax.f32 %v498, 0.0
  %v693 = vmax.f32 %v501, 0.0
  %v694 = vmax.f32 %v506, 0.0
  %v695 = vmax.f32 %v509, 0.0
  %v696 = vmax.f32 %v514, 0.0
  %v697 = vmax.f32 %v517, 0.0
  %v698 = vmax.f32 %v522, 0.0
  %v699 = vmax.f32 %v525, 0.0
  %v700 = vmax.f32 %v530, 0.0
  %v701 = vmax.f32 %v533, 0.0
  %v702 = vmax.f32 %v538, 0.0
  %v703 = vmax.f32 %v541, 0.0
  %v704 = vmax.f32 %v546, 0.0
  %v705 = vmax.f32 %v549, 0.0
  %v706 = vmax.f32 %v554, 0.0
  %v707 = vmax.f32 %v557, 0.0
  %v708 = vmax.f32 %v562, 0.0
  %v709 = vmax.f32 %v565, 0.0
  %v710 = vmax.f32 %v570, 0.0
  %v711 = vmax.f32 %v573, 0.0
  %v712 = vmax.f32 %v578, 0.0
  %v713 = vmax.f32 %v581, 0.0
  %v714 = vmax.f32 %v586, 0.0
  %v715 = vmax.f32 %v589, 0.0
  %v716 = vmax.f32 %v594, 0.0
  %v717 = vmax.f32 %v597, 0.0
  %v718 = vmax.f32 %v602, 0.0
  %v719 = vmax.f32 %v605, 0.0
  %v720 = vmax.f32 %v610, 0.0
  %v721 = vmax.f32 %v613, 0.0
  %v722 = vmax.f32 %v618, 0.0
  %v723 = vmax.f32 %v621, 0.0
  %v724 = vmax.f32 %v626, 0.0
  %v725 = vmax.f32 %v629, 0.0
  %v726 = vmax.f32 %v634, 0.0
  %v727 = vmax.f32 %v637, 0.0
  %v728 = vmax.f32 %v642, 0.0
  %v729 = vmax.f32 %v645, 0.0
  %v730 = vmax.f32 %v650, 0.0
  %v731 = vmax.f32 %v653, 0.0
  %v732 = vmax.f32 %v658, 0.0
  %v733 = vmax.f32 %v661, 0.0
  %v734 = vmax.f32 %v666, 0.0
  %v735 = vmax.f32 %v669, 0.0
  %v736 = vpack.c.bf16 %v673, %v672
  %v737 = vpack.c.bf16 %v675, %v674
  %v738 = vpack.c.bf16 %v677, %v676
  %v739 = vpack.c.bf16 %v679, %v678
  %v740 = vpack.c.bf16 %v681, %v680
  %v741 = vpack.c.bf16 %v683, %v682
  %v742 = vpack.c.bf16 %v685, %v684
  %v743 = vpack.c.bf16 %v687, %v686
  %v744 = vpack.c.bf16 %v689, %v688
  %v745 = vpack.c.bf16 %v691, %v690
  %v746 = vpack.c.bf16 %v693, %v692
  %v747 = vpack.c.bf16 %v695, %v694
  %v748 = vpack.c.bf16 %v697, %v696
  %v749 = vpack.c.bf16 %v699, %v698
  %v750 = vpack.c.bf16 %v701, %v700
  %v751 = vpack.c.bf16 %v703, %v702
  %v752 = vpack.c.bf16 %v705, %v704
  %v753 = vpack.c.bf16 %v707, %v706
  %v754 = vpack.c.bf16 %v709, %v708
  %v755 = vpack.c.bf16 %v711, %v710
  %v756 = vpack.c.bf16 %v713, %v712
  %v757 = vpack.c.bf16 %v715, %v714
  %v758 = vpack.c.bf16 %v717, %v716
  %v759 = vpack.c.bf16 %v719, %v718
  %v760 = vpack.c.bf16 %v721, %v720
  %v761 = vpack.c.bf16 %v723, %v722
  %v762 = vpack.c.bf16 %v725, %v724
  %v763 = vpack.c.bf16 %v727, %v726
  %v764 = vpack.c.bf16 %v729, %v728
  %v765 = vpack.c.bf16 %v731, %v730
  %v766 = vpack.c.bf16 %v733, %v732
  %v767 = vpack.c.bf16 %v735, %v734
  %v800 = vunpack.c.l.b16 %v736
  %v801 = vunpack.c.h.b16 %v736
  %v802 = vunpack.c.l.b16 %v737
  %v803 = vunpack.c.h.b16 %v737
  %v804 = vunpack.c.l.b16 %v738
  %v805 = vunpack.c.h.b16 %v738
  %v806 = vunpack.c.l.b16 %v739
  %v807 = vunpack.c.h.b16 %v739
  %v808 = vunpack.c.l.b16 %v740
  %v809 = vunpack.c.h.b16 %v740
  %v810 = vunpack.c.l.b16 %v741
  %v811 = vunpack.c.h.b16 %v741
  %v812 = vunpack.c.l.b16 %v742
  %v813 = vunpack.c.h.b16 %v742
  %v814 = vunpack.c.l.b16 %v743
  %v815 = vunpack.c.h.b16 %v743
  %v816 = vunpack.c.l.b16 %v744
  %v817 = vunpack.c.h.b16 %v744
  %v818 = vunpack.c.l.b16 %v745
  %v819 = vunpack.c.h.b16 %v745
  %v820 = vunpack.c.l.b16 %v746
  %v821 = vunpack.c.h.b16 %v746
  %v822 = vunpack.c.l.b16 %v747
  %v823 = vunpack.c.h.b16 %v747
  %v824 = vunpack.c.l.b16 %v748
  %v825 = vunpack.c.h.b16 %v748
  %v826 = vunpack.c.l.b16 %v749
  %v827 = vunpack.c.h.b16 %v749
  %v828 = vunpack.c.l.b16 %v750
  %v829 = vunpack.c.h.b16 %v750
  %v830 = vunpack.c.l.b16 %v751
  %v831 = vunpack.c.h.b16 %v751
  %v832 = vunpack.c.l.b16 %v752
  %v833 = vunpack.c.h.b16 %v752
  %v834 = vunpack.c.l.b16 %v753
  %v835 = vunpack.c.h.b16 %v753
  %v836 = vunpack.c.l.b16 %v754
  %v837 = vunpack.c.h.b16 %v754
  %v838 = vunpack.c.l.b16 %v755
  %v839 = vunpack.c.h.b16 %v755
  %v840 = vunpack.c.l.b16 %v756
  %v841 = vunpack.c.h.b16 %v756
  %v842 = vunpack.c.l.b16 %v757
  %v843 = vunpack.c.h.b16 %v757
  %v844 = vunpack.c.l.b16 %v758
  %v845 = vunpack.c.h.b16 %v758
  %v846 = vunpack.c.l.b16 %v759
  %v847 = vunpack.c.h.b16 %v759
  %v848 = vunpack.c.l.b16 %v760
  %v849 = vunpack.c.h.b16 %v760
  %v850 = vunpack.c.l.b16 %v761
  %v851 = vunpack.c.h.b16 %v761
  %v852 = vunpack.c.l.b16 %v762
  %v853 = vunpack.c.h.b16 %v762
  %v854 = vunpack.c.l.b16 %v763
  %v855 = vunpack.c.h.b16 %v763
  %v856 = vunpack.c.l.b16 %v764
  %v857 = vunpack.c.h.b16 %v764
  %v858 = vunpack.c.l.b16 %v765
  %v859 = vunpack.c.h.b16 %v765
  %v860 = vunpack.c.l.b16 %v766
  %v861 = vunpack.c.h.b16 %v766
  %v862 = vunpack.c.l.b16 %v767
  %v863 = vunpack.c.h.b16 %v767
  %v864 = vpack.c.b16 %v800, %v800
  %v865 = vpack.c.b16 %v801, %v801
  %v866 = vpack.c.b16 %v802, %v802
  %v867 = vpack.c.b16 %v803, %v803
  %v868 = vpack.c.b16 %v804, %v804
  %v869 = vpack.c.b16 %v805, %v805
  %v870 = vpack.c.b16 %v806, %v806
  %v871 = vpack.c.b16 %v807, %v807
  %v872 = vpack.c.b16 %v808, %v808
  %v873 = vpack.c.b16 %v809, %v809
  %v874 = vpack.c.b16 %v810, %v810
  %v875 = vpack.c.b16 %v811, %v811
  %v876 = vpack.c.b16 %v812, %v812
  %v877 = vpack.c.b16 %v813, %v813
  %v878 = vpack.c.b16 %v814, %v814
  %v879 = vpack.c.b16 %v815, %v815
  %v880 = vpack.c.b16 %v816, %v816
  %v881 = vpack.c.b16 %v817, %v817
  %v882 = vpack.c.b16 %v818, %v818
  %v883 = vpack.c.b16 %v819, %v819
  %v884 = vpack.c.b16 %v820, %v820
  %v885 = vpack.c.b16 %v821, %v821
  %v886 = vpack.c.b16 %v822, %v822
  %v887 = vpack.c.b16 %v823, %v823
  %v888 = vpack.c.b16 %v824, %v824
  %v889 = vpack.c.b16 %v825, %v825
  %v890 = vpack.c.b16 %v826, %v826
  %v891 = vpack.c.b16 %v827, %v827
  %v892 = vpack.c.b16 %v828, %v828
  %v893 = vpack.c.b16 %v829, %v829
  %v894 = vpack.c.b16 %v830, %v830
  %v895 = vpack.c.b16 %v831, %v831
  %v896 = vpack.c.b16 %v832, %v832
  %v897 = vpack.c.b16 %v833, %v833
  %v898 = vpack.c.b16 %v834, %v834
  %v899 = vpack.c.b16 %v835, %v835
  %v900 = vpack.c.b16 %v836, %v836
  %v901 = vpack.c.b16 %v837, %v837
  %v902 = vpack.c.b16 %v838, %v838
  %v903 = vpack.c.b16 %v839, %v839
  %v904 = vpack.c.b16 %v840, %v840
  %v905 = vpack.c.b16 %v841, %v841
  %v906 = vpack.c.b16 %v842, %v842
  %v907 = vpack.c.b16 %v843, %v843
  %v908 = vpack.c.b16 %v844, %v844
  %v909 = vpack.c.b16 %v845, %v845
  %v910 = vpack.c.b16 %v846, %v846
  %v911 = vpack.c.b16 %v847, %v847
  %v912 = vpack.c.b16 %v848, %v848
  %v913 = vpack.c.b16 %v849, %v849
  %v914 = vpack.c.b16 %v850, %v850
  %v915 = vpack.c.b16 %v851, %v851
  %v916 = vpack.c.b16 %v852, %v852
  %v917 = vpack.c.b16 %v853, %v853
  %v918 = vpack.c.b16 %v854, %v854
  %v919 = vpack.c.b16 %v855, %v855
  %v920 = vpack.c.b16 %v856, %v856
  %v921 = vpack.c.b16 %v857, %v857
  %v922 = vpack.c.b16 %v858, %v858
  %v923 = vpack.c.b16 %v859, %v859
  %v924 = vpack.c.b16 %v860, %v860
  %v925 = vpack.c.b16 %v861, %v861
  %v926 = vpack.c.b16 %v862, %v862
  %v927 = vpack.c.b16 %v863, %v863
  %vm992 = vcmask 125952
  %993 = vst.msk [vmem:[%s3] sm:$0xf] %vm992, %v864
  %994 = vst.msk [vmem:[%s3 + $0x4] sm:$0xf] %vm992, %v865
  %995 = vst.msk [vmem:[%s3 + $0x8] sm:$0xf] %vm992, %v866
  %996 = vst.msk [vmem:[%s3 + $0xc] sm:$0xf] %vm992, %v867
  %997 = vst.msk [vmem:[%s3 + $0x10] sm:$0xf] %vm992, %v868
  %998 = vst.msk [vmem:[%s3 + $0x14] sm:$0xf] %vm992, %v869
  %999 = vst.msk [vmem:[%s3 + $0x18] sm:$0xf] %vm992, %v870
  %1000 = vst.msk [vmem:[%s3 + $0x1c] sm:$0xf] %vm992, %v871
  %1001 = vst.msk [vmem:[%s3 + $0x20] sm:$0xf] %vm992, %v872
  %1002 = vst.msk [vmem:[%s3 + $0x24] sm:$0xf] %vm992, %v873
  %1003 = vst.msk [vmem:[%s3 + $0x28] sm:$0xf] %vm992, %v874
  %1004 = vst.msk [vmem:[%s3 + $0x2c] sm:$0xf] %vm992, %v875
  %1005 = vst.msk [vmem:[%s3 + $0x30] sm:$0xf] %vm992, %v876
  %1006 = vst.msk [vmem:[%s3 + $0x34] sm:$0xf] %vm992, %v877
  %1007 = vst.msk [vmem:[%s3 + $0x38] sm:$0xf] %vm992, %v878
  %1008 = vst.msk [vmem:[%s3 + $0x3c] sm:$0xf] %vm992, %v879
  %1009 = vst.msk [vmem:[%s3 + $0x40] sm:$0xf] %vm992, %v880
  %1010 = vst.msk [vmem:[%s3 + $0x44] sm:$0xf] %vm992, %v881
  %1011 = vst.msk [vmem:[%s3 + $0x48] sm:$0xf] %vm992, %v882
  %1012 = vst.msk [vmem:[%s3 + $0x4c] sm:$0xf] %vm992, %v883
  %1013 = vst.msk [vmem:[%s3 + $0x50] sm:$0xf] %vm992, %v884
  %1014 = vst.msk [vmem:[%s3 + $0x54] sm:$0xf] %vm992, %v885
  %1015 = vst.msk [vmem:[%s3 + $0x58] sm:$0xf] %vm992, %v886
  %1016 = vst.msk [vmem:[%s3 + $0x5c] sm:$0xf] %vm992, %v887
  %1017 = vst.msk [vmem:[%s3 + $0x60] sm:$0xf] %vm992, %v888
  %1018 = vst.msk [vmem:[%s3 + $0x64] sm:$0xf] %vm992, %v889
  %1019 = vst.msk [vmem:[%s3 + $0x68] sm:$0xf] %vm992, %v890
  %1020 = vst.msk [vmem:[%s3 + $0x6c] sm:$0xf] %vm992, %v891
  %1021 = vst.msk [vmem:[%s3 + $0x70] sm:$0xf] %vm992, %v892
  %1022 = vst.msk [vmem:[%s3 + $0x74] sm:$0xf] %vm992, %v893
  %1023 = vst.msk [vmem:[%s3 + $0x78] sm:$0xf] %vm992, %v894
  %1024 = vst.msk [vmem:[%s3 + $0x7c] sm:$0xf] %vm992, %v895
  %1025 = vst.msk [vmem:[%s3 + $0x80] sm:$0xf] %vm992, %v896
  %1026 = vst.msk [vmem:[%s3 + $0x84] sm:$0xf] %vm992, %v897
  %1027 = vst.msk [vmem:[%s3 + $0x88] sm:$0xf] %vm992, %v898
  %1028 = vst.msk [vmem:[%s3 + $0x8c] sm:$0xf] %vm992, %v899
  %1029 = vst.msk [vmem:[%s3 + $0x90] sm:$0xf] %vm992, %v900
  %1030 = vst.msk [vmem:[%s3 + $0x94] sm:$0xf] %vm992, %v901
  %1031 = vst.msk [vmem:[%s3 + $0x98] sm:$0xf] %vm992, %v902
  %1032 = vst.msk [vmem:[%s3 + $0x9c] sm:$0xf] %vm992, %v903
  %1033 = vst.msk [vmem:[%s3 + $0xa0] sm:$0xf] %vm992, %v904
  %1034 = vst.msk [vmem:[%s3 + $0xa4] sm:$0xf] %vm992, %v905
  %1035 = vst.msk [vmem:[%s3 + $0xa8] sm:$0xf] %vm992, %v906
  %1036 = vst.msk [vmem:[%s3 + $0xac] sm:$0xf] %vm992, %v907
  %1037 = vst.msk [vmem:[%s3 + $0xb0] sm:$0xf] %vm992, %v908
  %1038 = vst.msk [vmem:[%s3 + $0xb4] sm:$0xf] %vm992, %v909
  %1039 = vst.msk [vmem:[%s3 + $0xb8] sm:$0xf] %vm992, %v910
  %1040 = vst.msk [vmem:[%s3 + $0xbc] sm:$0xf] %vm992, %v911
  %1041 = vst.msk [vmem:[%s3 + $0xc0] sm:$0xf] %vm992, %v912
  %1042 = vst.msk [vmem:[%s3 + $0xc4] sm:$0xf] %vm992, %v913
  %1043 = vst.msk [vmem:[%s3 + $0xc8] sm:$0xf] %vm992, %v914
  %1044 = vst.msk [vmem:[%s3 + $0xcc] sm:$0xf] %vm992, %v915
  %1045 = vst.msk [vmem:[%s3 + $0xd0] sm:$0xf] %vm992, %v916
  %1046 = vst.msk [vmem:[%s3 + $0xd4] sm:$0xf] %vm992, %v917
  %1047 = vst.msk [vmem:[%s3 + $0xd8] sm:$0xf] %vm992, %v918
  %1048 = vst.msk [vmem:[%s3 + $0xdc] sm:$0xf] %vm992, %v919
  %1049 = vst.msk [vmem:[%s3 + $0xe0] sm:$0xf] %vm992, %v920
  %1050 = vst.msk [vmem:[%s3 + $0xe4] sm:$0xf] %vm992, %v921
  %1051 = vst.msk [vmem:[%s3 + $0xe8] sm:$0xf] %vm992, %v922
  %1052 = vst.msk [vmem:[%s3 + $0xec] sm:$0xf] %vm992, %v923
  %1053 = vst.msk [vmem:[%s3 + $0xf0] sm:$0xf] %vm992, %v924
  %1054 = vst.msk [vmem:[%s3 + $0xf4] sm:$0xf] %vm992, %v925
  %1055 = vst.msk [vmem:[%s3 + $0xf8] sm:$0xf] %vm992, %v926
  %1056 = vst.msk [vmem:[%s3 + $0xfc] sm:$0xf] %vm992, %v927
  // Predicated region
  $region14: #{two_branch_net_forward.11} parent=0 // pred_check
    _
  $region15: #{two_branch_net_forward.11} parent=0 // pred_check_branch
    %1058 = sbr.rel (0) target = $region17
  $region16: #{two_branch_net_forward.11} parent=0 // pred_region
    _
  $region17: #{two_branch_net_forward.11} parent=0 // pred_fallthru
    _
  // Predicated region
  $region18: #{two_branch_net_forward.11} parent=0 // pred_check
    _
  $region19: #{two_branch_net_forward.11} parent=0 // pred_check_branch
    %1060 = sbr.rel (0) target = $region21
  $region20: #{two_branch_net_forward.11} parent=0 // pred_region
    _
  $region21: #{two_branch_net_forward.11} parent=0 // pred_fallthru
    _

// kernel: two_branch_net_forward.12
$region0: #{two_branch_net_forward.12}
  #allocation0 [shape = 'u32[]', space=smem, size = 0x4, offset = 0x4, fixed_abs, tag = 'smem constant byte address 0x4 - core index']
  #allocation1 [shape = 'u32[144,128]{1,0:T(1,128)}', space=vmem, size = 0x12000, scoped, tag = 'internal scratch']
  %s0 = inlined_call_operand.vmem [shape: bf16[512,144], index: 0, kind: input, shape index: {}]
  %s1 = inlined_call_operand.vmem [shape: bf16[144,16], index: 1, kind: input, shape index: {}]
  %s2 = inlined_call_operand.vmem [shape: f32[1,16], index: 2, kind: input, shape index: {}]
  %s3 = inlined_call_operand.vmem [shape: bf16[512,16], index: 3, kind: output, shape index: {}]
  %s4 = sld [smem:[#allocation0]]
  $region22: #{two_branch_net_forward.12} parent=0
    _
  %s6 = ssub.s32 1, %s4
  %s7 = scalar_select 0, %s6, %s4
  // Predicated region
  $region2: #{two_branch_net_forward.12} parent=0 // pred_check
    _
  $region3: #{two_branch_net_forward.12} parent=0 // pred_check_branch
    %9 = sbr.rel (0) target = $region5
  $region4: #{two_branch_net_forward.12} parent=0 // pred_region
    _
  $region5: #{two_branch_net_forward.12} parent=0 // pred_fallthru
    _
  // Predicated region
  $region6: #{two_branch_net_forward.12} parent=0 // pred_check
    _
  $region7: #{two_branch_net_forward.12} parent=0 // pred_check_branch
    %11 = sbr.rel (0) target = $region9
  $region8: #{two_branch_net_forward.12} parent=0 // pred_region
    _
  $region9: #{two_branch_net_forward.12} parent=0 // pred_fallthru
    _
  // Predicated region
  $region10: #{two_branch_net_forward.12} parent=0 // pred_check
    _
  $region11: #{two_branch_net_forward.12} parent=0 // pred_check_branch
    %13 = sbr.rel (0) target = $region13
  $region12: #{two_branch_net_forward.12} parent=0 // pred_region
    _
  $region13: #{two_branch_net_forward.12} parent=0 // pred_fallthru
    _
  %v15 = vld [vmem:[%s0] sm:$0xff]
  %v16 = vld [vmem:[%s0 + $0x8] sm:$0xff]
  %v17 = vld [vmem:[%s0 + $0x10] sm:$0xff]
  %v18 = vld [vmem:[%s0 + $0x18] sm:$0xff]
  %v19 = vld [vmem:[%s0 + $0x20] sm:$0xff]
  %v20 = vld [vmem:[%s0 + $0x28] sm:$0xff]
  %v21 = vld [vmem:[%s0 + $0x30] sm:$0xff]
  %v22 = vld [vmem:[%s0 + $0x38] sm:$0xff]
  %v23 = vld [vmem:[%s0 + $0x40] sm:$0xff]
  %v24 = vld [vmem:[%s0 + $0x48] sm:$0xff]
  %v25 = vld [vmem:[%s0 + $0x50] sm:$0xff]
  %v26 = vld [vmem:[%s0 + $0x58] sm:$0xff]
  %v27 = vld [vmem:[%s0 + $0x60] sm:$0xff]
  %v28 = vld [vmem:[%s0 + $0x68] sm:$0xff]
  %v29 = vld [vmem:[%s0 + $0x70] sm:$0xff]
  %v30 = vld [vmem:[%s0 + $0x78] sm:$0xff]
  %v31 = vld [vmem:[%s0 + $0x80] sm:$0xff]
  %v32 = vld [vmem:[%s0 + $0x88] sm:$0xff]
  %v33 = vld [vmem:[%s0 + $0x90] sm:$0xff]
  %v34 = vld [vmem:[%s0 + $0x98] sm:$0xff]
  %v35 = vld [vmem:[%s0 + $0xa0] sm:$0xff]
  %v36 = vld [vmem:[%s0 + $0xa8] sm:$0xff]
  %v37 = vld [vmem:[%s0 + $0xb0] sm:$0xff]
  %v38 = vld [vmem:[%s0 + $0xb8] sm:$0xff]
  %v39 = vld [vmem:[%s0 + $0xc0] sm:$0xff]
  %v40 = vld [vmem:[%s0 + $0xc8] sm:$0xff]
  %v41 = vld [vmem:[%s0 + $0xd0] sm:$0xff]
  %v42 = vld [vmem:[%s0 + $0xd8] sm:$0xff]
  %v43 = vld [vmem:[%s0 + $0xe0] sm:$0xff]
  %v44 = vld [vmem:[%s0 + $0xe8] sm:$0xff]
  %v45 = vld [vmem:[%s0 + $0xf0] sm:$0xff]
  %v46 = vld [vmem:[%s0 + $0xf8] sm:$0xff]
  %v47 = vld [vmem:[%s0 + $0x100] sm:$0xff]
  %v48 = vld [vmem:[%s0 + $0x108] sm:$0xff]
  %v49 = vld [vmem:[%s0 + $0x110] sm:$0xff]
  %v50 = vld [vmem:[%s0 + $0x118] sm:$0xff]
  %v51 = vld [vmem:[%s0 + $0x120] sm:$0xff]
  %v52 = vld [vmem:[%s0 + $0x128] sm:$0xff]
  %v53 = vld [vmem:[%s0 + $0x130] sm:$0xff]
  %v54 = vld [vmem:[%s0 + $0x138] sm:$0xff]
  %v55 = vld [vmem:[%s0 + $0x140] sm:$0xff]
  %v56 = vld [vmem:[%s0 + $0x148] sm:$0xff]
  %v57 = vld [vmem:[%s0 + $0x150] sm:$0xff]
  %v58 = vld [vmem:[%s0 + $0x158] sm:$0xff]
  %v59 = vld [vmem:[%s0 + $0x160] sm:$0xff]
  %v60 = vld [vmem:[%s0 + $0x168] sm:$0xff]
  %v61 = vld [vmem:[%s0 + $0x170] sm:$0xff]
  %v62 = vld [vmem:[%s0 + $0x178] sm:$0xff]
  %v63 = vld [vmem:[%s0 + $0x180] sm:$0xff]
  %v64 = vld [vmem:[%s0 + $0x188] sm:$0xff]
  %v65 = vld [vmem:[%s0 + $0x190] sm:$0xff]
  %v66 = vld [vmem:[%s0 + $0x198] sm:$0xff]
  %v67 = vld [vmem:[%s0 + $0x1a0] sm:$0xff]
  %v68 = vld [vmem:[%s0 + $0x1a8] sm:$0xff]
  %v69 = vld [vmem:[%s0 + $0x1b0] sm:$0xff]
  %v70 = vld [vmem:[%s0 + $0x1b8] sm:$0xff]
  %v71 = vld [vmem:[%s0 + $0x1c0] sm:$0xff]
  %v72 = vld [vmem:[%s0 + $0x1c8] sm:$0xff]
  %v73 = vld [vmem:[%s0 + $0x1d0] sm:$0xff]
  %v74 = vld [vmem:[%s0 + $0x1d8] sm:$0xff]
  %v75 = vld [vmem:[%s0 + $0x1e0] sm:$0xff]
  %v76 = vld [vmem:[%s0 + $0x1e8] sm:$0xff]
  %v77 = vld [vmem:[%s0 + $0x1f0] sm:$0xff]
  %v78 = vld [vmem:[%s0 + $0x1f8] sm:$0xff]
  %v79 = vld [vmem:[%s1] sm:$0xf]
  %v80 = vld [vmem:[%s1 + $0x4] sm:$0xf]
  %v81 = vld [vmem:[%s1 + $0x8] sm:$0xf]
  %v82 = vld [vmem:[%s1 + $0xc] sm:$0xf]
  %v83 = vld [vmem:[%s1 + $0x10] sm:$0xf]
  %v84 = vld [vmem:[%s1 + $0x14] sm:$0xf]
  %v85 = vld [vmem:[%s1 + $0x18] sm:$0xf]
  %v86 = vld [vmem:[%s1 + $0x1c] sm:$0xf]
  %v87 = vld [vmem:[%s1 + $0x20] sm:$0xf]
  %v88 = vld [vmem:[%s1 + $0x24] sm:$0xf]
  %v89 = vld [vmem:[%s1 + $0x28] sm:$0xf]
  %v90 = vld [vmem:[%s1 + $0x2c] sm:$0xf]
  %v91 = vld [vmem:[%s1 + $0x30] sm:$0xf]
  %v92 = vld [vmem:[%s1 + $0x34] sm:$0xf]
  %v93 = vld [vmem:[%s1 + $0x38] sm:$0xf]
  %v94 = vld [vmem:[%s1 + $0x3c] sm:$0xf]
  %v95 = vld [vmem:[%s1 + $0x40] sm:$0xf]
  %v96 = vld [vmem:[%s1 + $0x44] sm:$0xf]
  %v97 = vld [vmem:[%s2] sm:$0x1]
  %v99 = vlaneseq
  %v100 = vshrl.u32 %v99, 7
  %v101 = vsub.s32 0, %v100
  %v102 = vrot.slane %v97, %v101
  %v168 = vunpack.c.l.b16 %v15
  %v169 = vunpack.c.h.b16 %v15
  %v170 = vunpack.c.l.b16 %v16
  %v171 = vunpack.c.h.b16 %v16
  %v172 = vunpack.c.l.b16 %v17
  %v173 = vunpack.c.h.b16 %v17
  %v174 = vunpack.c.l.b16 %v18
  %v175 = vunpack.c.h.b16 %v18
  %v176 = vunpack.c.l.b16 %v19
  %v177 = vunpack.c.h.b16 %v19
  %v178 = vunpack.c.l.b16 %v20
  %v179 = vunpack.c.h.b16 %v20
  %v180 = vunpack.c.l.b16 %v21
  %v181 = vunpack.c.h.b16 %v21
  %v182 = vunpack.c.l.b16 %v22
  %v183 = vunpack.c.h.b16 %v22
  %v184 = vunpack.c.l.b16 %v23
  %v185 = vunpack.c.h.b16 %v23
  %v186 = vunpack.c.l.b16 %v24
  %v187 = vunpack.c.h.b16 %v24
  %v188 = vunpack.c.l.b16 %v25
  %v189 = vunpack.c.h.b16 %v25
  %v190 = vunpack.c.l.b16 %v26
  %v191 = vunpack.c.h.b16 %v26
  %v192 = vunpack.c.l.b16 %v27
  %v193 = vunpack.c.h.b16 %v27
  %v194 = vunpack.c.l.b16 %v28
  %v195 = vunpack.c.h.b16 %v28
  %v196 = vunpack.c.l.b16 %v29
  %v197 = vunpack.c.h.b16 %v29
  %v198 = vunpack.c.l.b16 %v30
  %v199 = vunpack.c.h.b16 %v30
  %v200 = vunpack.c.l.b16 %v31
  %v201 = vunpack.c.h.b16 %v31
  %v202 = vunpack.c.l.b16 %v32
  %v203 = vunpack.c.h.b16 %v32
  %v204 = vunpack.c.l.b16 %v33
  %v205 = vunpack.c.h.b16 %v33
  %v206 = vunpack.c.l.b16 %v34
  %v207 = vunpack.c.h.b16 %v34
  %v208 = vunpack.c.l.b16 %v35
  %v209 = vunpack.c.h.b16 %v35
  %v210 = vunpack.c.l.b16 %v36
  %v211 = vunpack.c.h.b16 %v36
  %v212 = vunpack.c.l.b16 %v37
  %v213 = vunpack.c.h.b16 %v37
  %v214 = vunpack.c.l.b16 %v38
  %v215 = vunpack.c.h.b16 %v38
  %v216 = vunpack.c.l.b16 %v39
  %v217 = vunpack.c.h.b16 %v39
  %v218 = vunpack.c.l.b16 %v40
  %v219 = vunpack.c.h.b16 %v40
  %v220 = vunpack.c.l.b16 %v41
  %v221 = vunpack.c.h.b16 %v41
  %v222 = vunpack.c.l.b16 %v42
  %v223 = vunpack.c.h.b16 %v42
  %v224 = vunpack.c.l.b16 %v43
  %v225 = vunpack.c.h.b16 %v43
  %v226 = vunpack.c.l.b16 %v44
  %v227 = vunpack.c.h.b16 %v44
  %v228 = vunpack.c.l.b16 %v45
  %v229 = vunpack.c.h.b16 %v45
  %v230 = vunpack.c.l.b16 %v46
  %v231 = vunpack.c.h.b16 %v46
  %v232 = vunpack.c.l.b16 %v47
  %v233 = vunpack.c.h.b16 %v47
  %v234 = vunpack.c.l.b16 %v48
  %v235 = vunpack.c.h.b16 %v48
  %v236 = vunpack.c.l.b16 %v49
  %v237 = vunpack.c.h.b16 %v49
  %v238 = vunpack.c.l.b16 %v50
  %v239 = vunpack.c.h.b16 %v50
  %v240 = vunpack.c.l.b16 %v51
  %v241 = vunpack.c.h.b16 %v51
  %v242 = vunpack.c.l.b16 %v52
  %v243 = vunpack.c.h.b16 %v52
  %v244 = vunpack.c.l.b16 %v53
  %v245 = vunpack.c.h.b16 %v53
  %v246 = vunpack.c.l.b16 %v54
  %v247 = vunpack.c.h.b16 %v54
  %v248 = vunpack.c.l.b16 %v55
  %v249 = vunpack.c.h.b16 %v55
  %v250 = vunpack.c.l.b16 %v56
  %v251 = vunpack.c.h.b16 %v56
  %v252 = vunpack.c.l.b16 %v57
  %v253 = vunpack.c.h.b16 %v57
  %v254 = vunpack.c.l.b16 %v58
  %v255 = vunpack.c.h.b16 %v58
  %v256 = vunpack.c.l.b16 %v59
  %v257 = vunpack.c.h.b16 %v59
  %v258 = vunpack.c.l.b16 %v60
  %v259 = vunpack.c.h.b16 %v60
  %v260 = vunpack.c.l.b16 %v61
  %v261 = vunpack.c.h.b16 %v61
  %v262 = vunpack.c.l.b16 %v62
  %v263 = vunpack.c.h.b16 %v62
  %v264 = vunpack.c.l.b16 %v63
  %v265 = vunpack.c.h.b16 %v63
  %v266 = vunpack.c.l.b16 %v64
  %v267 = vunpack.c.h.b16 %v64
  %v268 = vunpack.c.l.b16 %v65
  %v269 = vunpack.c.h.b16 %v65
  %v270 = vunpack.c.l.b16 %v66
  %v271 = vunpack.c.h.b16 %v66
  %v272 = vunpack.c.l.b16 %v67
  %v273 = vunpack.c.h.b16 %v67
  %v274 = vunpack.c.l.b16 %v68
  %v275 = vunpack.c.h.b16 %v68
  %v276 = vunpack.c.l.b16 %v69
  %v277 = vunpack.c.h.b16 %v69
  %v278 = vunpack.c.l.b16 %v70
  %v279 = vunpack.c.h.b16 %v70
  %v280 = vunpack.c.l.b16 %v71
  %v281 = vunpack.c.h.b16 %v71
  %v282 = vunpack.c.l.b16 %v72
  %v283 = vunpack.c.h.b16 %v72
  %v284 = vunpack.c.l.b16 %v73
  %v285 = vunpack.c.h.b16 %v73
  %v286 = vunpack.c.l.b16 %v74
  %v287 = vunpack.c.h.b16 %v74
  %v288 = vunpack.c.l.b16 %v75
  %v289 = vunpack.c.h.b16 %v75
  %v290 = vunpack.c.l.b16 %v76
  %v291 = vunpack.c.h.b16 %v76
  %v292 = vunpack.c.l.b16 %v77
  %v293 = vunpack.c.h.b16 %v77
  %v294 = vunpack.c.l.b16 %v78
  %v295 = vunpack.c.h.b16 %v78
  %v296 = vpack.c.b16 %v170, %v168
  %v297 = vpack.c.b16 %v171, %v169
  %v298 = vpack.c.b16 %v174, %v172
  %v299 = vpack.c.b16 %v175, %v173
  %v300 = vpack.c.b16 %v178, %v176
  %v301 = vpack.c.b16 %v179, %v177
  %v302 = vpack.c.b16 %v182, %v180
  %v303 = vpack.c.b16 %v183, %v181
  %v304 = vpack.c.b16 %v186, %v184
  %v305 = vpack.c.b16 %v187, %v185
  %v306 = vpack.c.b16 %v190, %v188
  %v307 = vpack.c.b16 %v191, %v189
  %v308 = vpack.c.b16 %v194, %v192
  %v309 = vpack.c.b16 %v195, %v193
  %v310 = vpack.c.b16 %v198, %v196
  %v311 = vpack.c.b16 %v199, %v197
  %v312 = vpack.c.b16 %v202, %v200
  %v313 = vpack.c.b16 %v203, %v201
  %v314 = vpack.c.b16 %v206, %v204
  %v315 = vpack.c.b16 %v207, %v205
  %v316 = vpack.c.b16 %v210, %v208
  %v317 = vpack.c.b16 %v211, %v209
  %v318 = vpack.c.b16 %v214, %v212
  %v319 = vpack.c.b16 %v215, %v213
  %v320 = vpack.c.b16 %v218, %v216
  %v321 = vpack.c.b16 %v219, %v217
  %v322 = vpack.c.b16 %v222, %v220
  %v323 = vpack.c.b16 %v223, %v221
  %v324 = vpack.c.b16 %v226, %v224
  %v325 = vpack.c.b16 %v227, %v225
  %v326 = vpack.c.b16 %v230, %v228
  %v327 = vpack.c.b16 %v231, %v229
  %v328 = vpack.c.b16 %v234, %v232
  %v329 = vpack.c.b16 %v235, %v233
  %v330 = vpack.c.b16 %v238, %v236
  %v331 = vpack.c.b16 %v239, %v237
  %v332 = vpack.c.b16 %v242, %v240
  %v333 = vpack.c.b16 %v243, %v241
  %v334 = vpack.c.b16 %v246, %v244
  %v335 = vpack.c.b16 %v247, %v245
  %v336 = vpack.c.b16 %v250, %v248
  %v337 = vpack.c.b16 %v251, %v249
  %v338 = vpack.c.b16 %v254, %v252
  %v339 = vpack.c.b16 %v255, %v253
  %v340 = vpack.c.b16 %v258, %v256
  %v341 = vpack.c.b16 %v259, %v257
  %v342 = vpack.c.b16 %v262, %v260
  %v343 = vpack.c.b16 %v263, %v261
  %v344 = vpack.c.b16 %v266, %v264
  %v345 = vpack.c.b16 %v267, %v265
  %v346 = vpack.c.b16 %v270, %v268
  %v347 = vpack.c.b16 %v271, %v269
  %v348 = vpack.c.b16 %v274, %v272
  %v349 = vpack.c.b16 %v275, %v273
  %v350 = vpack.c.b16 %v278, %v276
  %v351 = vpack.c.b16 %v279, %v277
  %v352 = vpack.c.b16 %v282, %v280
  %v353 = vpack.c.b16 %v283, %v281
  %v354 = vpack.c.b16 %v286, %v284
  %v355 = vpack.c.b16 %v287, %v285
  %v356 = vpack.c.b16 %v290, %v288
  %v357 = vpack.c.b16 %v291, %v289
  %v358 = vpack.c.b16 %v294, %v292
  %v359 = vpack.c.b16 %v295, %v293
  %v410 = vunpack.c.l.b16 %v79
  %v411 = vunpack.c.l.b16 %v80
  %v412 = vunpack.c.l.b16 %v81
  %v413 = vunpack.c.l.b16 %v82
  %v414 = vunpack.c.l.b16 %v83
  %v415 = vunpack.c.l.b16 %v84
  %v416 = vunpack.c.l.b16 %v85
  %v417 = vunpack.c.l.b16 %v86
  %v418 = vunpack.c.l.b16 %v87
  %v419 = vunpack.c.l.b16 %v88
  %v420 = vunpack.c.l.b16 %v89
  %v421 = vunpack.c.l.b16 %v90
  %v422 = vunpack.c.l.b16 %v91
  %v423 = vunpack.c.l.b16 %v92
  %v424 = vunpack.c.l.b16 %v93
  %v425 = vunpack.c.l.b16 %v94
  %v426 = vunpack.c.l.b16 %v95
  %v427 = vunpack.c.l.b16 %v96
  %v428 = vpack.c.b16 %v411, %v410
  %v429 = vpack.c.b16 %v413, %v412
  %v430 = vpack.c.b16 %v415, %v414
  %v431 = vpack.c.b16 %v417, %v416
  %v432 = vpack.c.b16 %v419, %v418
  %v433 = vpack.c.b16 %v421, %v420
  %v434 = vpack.c.b16 %v423, %v422
  %v435 = vpack.c.b16 %v425, %v424
  %v436 = vpack.c.b16 %v427, %v426
  %vm446 = vcmask 130048
  %v448 = vsel %vm446, %v297, 0
  %v451 = vsel %vm446, %v299, 0
  %v454 = vsel %vm446, %v301, 0
  %v457 = vsel %vm446, %v303, 0
  %v460 = vsel %vm446, %v305, 0
  %v463 = vsel %vm446, %v307, 0
  %v466 = vsel %vm446, %v309, 0
  %v469 = vsel %vm446, %v311, 0
  %v472 = vsel %vm446, %v313, 0
  %v475 = vsel %vm446, %v315, 0
  %v478 = vsel %vm446, %v317, 0
  %v481 = vsel %vm446, %v319, 0
  %v484 = vsel %vm446, %v321, 0
  %v487 = vsel %vm446, %v323, 0
  %v490 = vsel %vm446, %v325, 0
  %v493 = vsel %vm446, %v327, 0
  %v496 = vsel %vm446, %v329, 0
  %v499 = vsel %vm446, %v331, 0
  %v502 = vsel %vm446, %v333, 0
  %v505 = vsel %vm446, %v335, 0
  %v508 = vsel %vm446, %v337, 0
  %v511 = vsel %vm446, %v339, 0
  %v514 = vsel %vm446, %v341, 0
  %v517 = vsel %vm446, %v343, 0
  %v520 = vsel %vm446, %v345, 0
  %v523 = vsel %vm446, %v347, 0
  %v526 = vsel %vm446, %v349, 0
  %v529 = vsel %vm446, %v351, 0
  %v532 = vsel %vm446, %v353, 0
  %v535 = vsel %vm446, %v355, 0
  %v538 = vsel %vm446, %v357, 0
  %v541 = vsel %vm446, %v359, 0
  %543 = vmatprep.subr.bf16.mxu0 0
  %544 = vmatpush1.bf16.msra.mxu0 %v428
  %545 = vmatprep.subr.bf16.mxu0 0
  %546 = vmatpush1.bf16.msra.mxu0 %v429
  %547 = vmatprep.subr.bf16.mxu0 0
  %548 = vmatpush1.bf16.msra.mxu0 %v430
  %549 = vmatprep.subr.bf16.mxu0 0
  %550 = vmatpush1.bf16.msra.mxu0 %v431
  %551 = vmatprep.subr.bf16.mxu0 0
  %552 = vmatpush1.bf16.msra.mxu0 %v432
  %553 = vmatprep.subr.bf16.mxu0 0
  %554 = vmatpush1.bf16.msra.mxu0 %v433
  %555 = vmatprep.subr.bf16.mxu0 0
  %556 = vmatpush1.bf16.msra.mxu0 %v434
  %557 = vmatprep.subr.bf16.mxu0 0
  %558 = vmatpush1.bf16.msra.mxu0 %v435
  %559 = vmatprep.subr.bf16.mxu0 0
  %560 = vmatpush1.bf16.msra.mxu0 %v436
  %561 = vmatprep.subr.bf16.mxu0 0
  %562 = vmatpush1.bf16.msra.mxu0 0
  %563 = vmatprep.subr.bf16.mxu0 0
  %564 = vmatpush1.bf16.msra.mxu0 0
  %565 = vmatprep.subr.bf16.mxu0 0
  %566 = vmatpush1.bf16.msra.mxu0 0
  %567 = vmatprep.subr.bf16.mxu0 0
  %568 = vmatpush1.bf16.msra.mxu0 0
  %569 = vmatprep.subr.bf16.mxu0 0
  %570 = vmatpush1.bf16.msra.mxu0 0
  %571 = vmatprep.subr.bf16.mxu0 0
  %572 = vmatpush1.bf16.msra.mxu0 0
  %573 = vmatprep.subr.bf16.mxu0 0
  %574 = vmatpush1.bf16.msra.mxu0 0
  %575 = vmatprep.mubr.bf16.mxu0 %v448
  %576 = vmatmul.mubr.bf16.gmra.mrb[0].mxu0 %v296
  %v577 = vpop.f32.mrb[0].mxu0
  %v578 = vadd.f32 %v102, %v577
  %v579 = vpop.f32.mrb[0].mxu0
  %v580 = vpop.f32.mrb[0].mxu0
  %v581 = vadd.f32 %v102, %v580
  %v582 = vpop.f32.mrb[0].mxu0
  %583 = vmatprep.mubr.bf16.mxu0 %v451
  %584 = vmatmul.mubr.bf16.gmra.mrb[0].mxu0 %v298
  %v585 = vpop.f32.mrb[0].mxu0
  %v586 = vadd.f32 %v102, %v585
  %v587 = vpop.f32.mrb[0].mxu0
  %v588 = vpop.f32.mrb[0].mxu0
  %v589 = vadd.f32 %v102, %v588
  %v590 = vpop.f32.mrb[0].mxu0
  %591 = vmatprep.mubr.bf16.mxu0 %v454
  %592 = vmatmul.mubr.bf16.gmra.mrb[0].mxu0 %v300
  %v593 = vpop.f32.mrb[0].mxu0
  %v594 = vadd.f32 %v102, %v593
  %v595 = vpop.f32.mrb[0].mxu0
  %v596 = vpop.f32.mrb[0].mxu0
  %v597 = vadd.f32 %v102, %v596
  %v598 = vpop.f32.mrb[0].mxu0
  %599 = vmatprep.mubr.bf16.mxu0 %v457
  %600 = vmatmul.mubr.bf16.gmra.mrb[0].mxu0 %v302
  %v601 = vpop.f32.mrb[0].mxu0
  %v602 = vadd.f32 %v102, %v601
  %v603 = vpop.f32.mrb[0].mxu0
  %v604 = vpop.f32.mrb[0].mxu0
  %v605 = vadd.f32 %v102, %v604
  %v606 = vpop.f32.mrb[0].mxu0
  %607 = vmatprep.mubr.bf16.mxu0 %v460
  %608 = vmatmul.mubr.bf16.gmra.mrb[0].mxu0 %v304
  %v609 = vpop.f32.mrb[0].mxu0
  %v610 = vadd.f32 %v102, %v609
  %v611 = vpop.f32.mrb[0].mxu0
  %v612 = vpop.f32.mrb[0].mxu0
  %v613 = vadd.f32 %v102, %v612
  %v614 = vpop.f32.mrb[0].mxu0
  %615 = vmatprep.mubr.bf16.mxu0 %v463
  %616 = vmatmul.mubr.bf16.gmra.mrb[0].mxu0 %v306
  %v617 = vpop.f32.mrb[0].mxu0
  %v618 = vadd.f32 %v102, %v617
  %v619 = vpop.f32.mrb[0].mxu0
  %v620 = vpop.f32.mrb[0].mxu0
  %v621 = vadd.f32 %v102, %v620
  %v622 = vpop.f32.mrb[0].mxu0
  %623 = vmatprep.mubr.bf16.mxu0 %v466
  %624 = vmatmul.mubr.bf16.gmra.mrb[0].mxu0 %v308
  %v625 = vpop.f32.mrb[0].mxu0
  %v626 = vadd.f32 %v102, %v625
  %v627 = vpop.f32.mrb[0].mxu0
  %v628 = vpop.f32.mrb[0].mxu0
  %v629 = vadd.f32 %v102, %v628
  %v630 = vpop.f32.mrb[0].mxu0
  %631 = vmatprep.mubr.bf16.mxu0 %v469
  %632 = vmatmul.mubr.bf16.gmra.mrb[0].mxu0 %v310
  %v633 = vpop.f32.mrb[0].mxu0
  %v634 = vadd.f32 %v102, %v633
  %v635 = vpop.f32.mrb[0].mxu0
  %v636 = vpop.f32.mrb[0].mxu0
  %v637 = vadd.f32 %v102, %v636
  %v638 = vpop.f32.mrb[0].mxu0
  %639 = vmatprep.mubr.bf16.mxu0 %v472
  %640 = vmatmul.mubr.bf16.gmra.mrb[0].mxu0 %v312
  %v641 = vpop.f32.mrb[0].mxu0
  %v642 = vadd.f32 %v102, %v641
  %v643 = vpop.f32.mrb[0].mxu0
  %v644 = vpop.f32.mrb[0].mxu0
  %v645 = vadd.f32 %v102, %v644
  %v646 = vpop.f32.mrb[0].mxu0
  %647 = vmatprep.mubr.bf16.mxu0 %v475
  %648 = vmatmul.mubr.bf16.gmra.mrb[0].mxu0 %v314
  %v649 = vpop.f32.mrb[0].mxu0
  %v650 = vadd.f32 %v102, %v649
  %v651 = vpop.f32.mrb[0].mxu0
  %v652 = vpop.f32.mrb[0].mxu0
  %v653 = vadd.f32 %v102, %v652
  %v654 = vpop.f32.mrb[0].mxu0
  %655 = vmatprep.mubr.bf16.mxu0 %v478
  %656 = vmatmul.mubr.bf16.gmra.mrb[0].mxu0 %v316
  %v657 = vpop.f32.mrb[0].mxu0
  %v658 = vadd.f32 %v102, %v657
  %v659 = vpop.f32.mrb[0].mxu0
  %v660 = vpop.f32.mrb[0].mxu0
  %v661 = vadd.f32 %v102, %v660
  %v662 = vpop.f32.mrb[0].mxu0
  %663 = vmatprep.mubr.bf16.mxu0 %v481
  %664 = vmatmul.mubr.bf16.gmra.mrb[0].mxu0 %v318
  %v665 = vpop.f32.mrb[0].mxu0
  %v666 = vadd.f32 %v102, %v665
  %v667 = vpop.f32.mrb[0].mxu0
  %v668 = vpop.f32.mrb[0].mxu0
  %v669 = vadd.f32 %v102, %v668
  %v670 = vpop.f32.mrb[0].mxu0
  %671 = vmatprep.mubr.bf16.mxu0 %v484
  %672 = vmatmul.mubr.bf16.gmra.mrb[0].mxu0 %v320
  %v673 = vpop.f32.mrb[0].mxu0
  %v674 = vadd.f32 %v102, %v673
  %v675 = vpop.f32.mrb[0].mxu0
  %v676 = vpop.f32.mrb[0].mxu0
  %v677 = vadd.f32 %v102, %v676
  %v678 = vpop.f32.mrb[0].mxu0
  %679 = vmatprep.mubr.bf16.mxu0 %v487
  %680 = vmatmul.mubr.bf16.gmra.mrb[0].mxu0 %v322
  %v681 = vpop.f32.mrb[0].mxu0
  %v682 = vadd.f32 %v102, %v681
  %v683 = vpop.f32.mrb[0].mxu0
  %v684 = vpop.f32.mrb[0].mxu0
  %v685 = vadd.f32 %v102, %v684
  %v686 = vpop.f32.mrb[0].mxu0
  %687 = vmatprep.mubr.bf16.mxu0 %v490
  %688 = vmatmul.mubr.bf16.gmra.mrb[0].mxu0 %v324
  %v689 = vpop.f32.mrb[0].mxu0
  %v690 = vadd.f32 %v102, %v689
  %v691 = vpop.f32.mrb[0].mxu0
  %v692 = vpop.f32.mrb[0].mxu0
  %v693 = vadd.f32 %v102, %v692
  %v694 = vpop.f32.mrb[0].mxu0
  %695 = vmatprep.mubr.bf16.mxu0 %v493
  %696 = vmatmul.mubr.bf16.gmra.mrb[0].mxu0 %v326
  %v697 = vpop.f32.mrb[0].mxu0
  %v698 = vadd.f32 %v102, %v697
  %v699 = vpop.f32.mrb[0].mxu0
  %v700 = vpop.f32.mrb[0].mxu0
  %v701 = vadd.f32 %v102, %v700
  %v702 = vpop.f32.mrb[0].mxu0
  %703 = vmatprep.mubr.bf16.mxu0 %v496
  %704 = vmatmul.mubr.bf16.gmra.mrb[0].mxu0 %v328
  %v705 = vpop.f32.mrb[0].mxu0
  %v706 = vadd.f32 %v102, %v705
  %v707 = vpop.f32.mrb[0].mxu0
  %v708 = vpop.f32.mrb[0].mxu0
  %v709 = vadd.f32 %v102, %v708
  %v710 = vpop.f32.mrb[0].mxu0
  %711 = vmatprep.mubr.bf16.mxu0 %v499
  %712 = vmatmul.mubr.bf16.gmra.mrb[0].mxu0 %v330
  %v713 = vpop.f32.mrb[0].mxu0
  %v714 = vadd.f32 %v102, %v713
  %v715 = vpop.f32.mrb[0].mxu0
  %v716 = vpop.f32.mrb[0].mxu0
  %v717 = vadd.f32 %v102, %v716
  %v718 = vpop.f32.mrb[0].mxu0
  %719 = vmatprep.mubr.bf16.mxu0 %v502
  %720 = vmatmul.mubr.bf16.gmra.mrb[0].mxu0 %v332
  %v721 = vpop.f32.mrb[0].mxu0
  %v722 = vadd.f32 %v102, %v721
  %v723 = vpop.f32.mrb[0].mxu0
  %v724 = vpop.f32.mrb[0].mxu0
  %v725 = vadd.f32 %v102, %v724
  %v726 = vpop.f32.mrb[0].mxu0
  %727 = vmatprep.mubr.bf16.mxu0 %v505
  %728 = vmatmul.mubr.bf16.gmra.mrb[0].mxu0 %v334
  %v729 = vpop.f32.mrb[0].mxu0
  %v730 = vadd.f32 %v102, %v729
  %v731 = vpop.f32.mrb[0].mxu0
  %v732 = vpop.f32.mrb[0].mxu0
  %v733 = vadd.f32 %v102, %v732
  %v734 = vpop.f32.mrb[0].mxu0
  %735 = vmatprep.mubr.bf16.mxu0 %v508
  %736 = vmatmul.mubr.bf16.gmra.mrb[0].mxu0 %v336
  %v737 = vpop.f32.mrb[0].mxu0
  %v738 = vadd.f32 %v102, %v737
  %v739 = vpop.f32.mrb[0].mxu0
  %v740 = vpop.f32.mrb[0].mxu0
  %v741 = vadd.f32 %v102, %v740
  %v742 = vpop.f32.mrb[0].mxu0
  %743 = vmatprep.mubr.bf16.mxu0 %v511
  %744 = vmatmul.mubr.bf16.gmra.mrb[0].mxu0 %v338
  %v745 = vpop.f32.mrb[0].mxu0
  %v746 = vadd.f32 %v102, %v745
  %v747 = vpop.f32.mrb[0].mxu0
  %v748 = vpop.f32.mrb[0].mxu0
  %v749 = vadd.f32 %v102, %v748
  %v750 = vpop.f32.mrb[0].mxu0
  %751 = vmatprep.mubr.bf16.mxu0 %v514
  %752 = vmatmul.mubr.bf16.gmra.mrb[0].mxu0 %v340
  %v753 = vpop.f32.mrb[0].mxu0
  %v754 = vadd.f32 %v102, %v753
  %v755 = vpop.f32.mrb[0].mxu0
  %v756 = vpop.f32.mrb[0].mxu0
  %v757 = vadd.f32 %v102, %v756
  %v758 = vpop.f32.mrb[0].mxu0
  %759 = vmatprep.mubr.bf16.mxu0 %v517
  %760 = vmatmul.mubr.bf16.gmra.mrb[0].mxu0 %v342
  %v761 = vpop.f32.mrb[0].mxu0
  %v762 = vadd.f32 %v102, %v761
  %v763 = vpop.f32.mrb[0].mxu0
  %v764 = vpop.f32.mrb[0].mxu0
  %v765 = vadd.f32 %v102, %v764
  %v766 = vpop.f32.mrb[0].mxu0
  %767 = vmatprep.mubr.bf16.mxu0 %v520
  %768 = vmatmul.mubr.bf16.gmra.mrb[0].mxu0 %v344
  %v769 = vpop.f32.mrb[0].mxu0
  %v770 = vadd.f32 %v102, %v769
  %v771 = vpop.f32.mrb[0].mxu0
  %v772 = vpop.f32.mrb[0].mxu0
  %v773 = vadd.f32 %v102, %v772
  %v774 = vpop.f32.mrb[0].mxu0
  %775 = vmatprep.mubr.bf16.mxu0 %v523
  %776 = vmatmul.mubr.bf16.gmra.mrb[0].mxu0 %v346
  %v777 = vpop.f32.mrb[0].mxu0
  %v778 = vadd.f32 %v102, %v777
  %v779 = vpop.f32.mrb[0].mxu0
  %v780 = vpop.f32.mrb[0].mxu0
  %v781 = vadd.f32 %v102, %v780
  %v782 = vpop.f32.mrb[0].mxu0
  %783 = vmatprep.mubr.bf16.mxu0 %v526
  %784 = vmatmul.mubr.bf16.gmra.mrb[0].mxu0 %v348
  %v785 = vpop.f32.mrb[0].mxu0
  %v786 = vadd.f32 %v102, %v785
  %v787 = vpop.f32.mrb[0].mxu0
  %v788 = vpop.f32.mrb[0].mxu0
  %v789 = vadd.f32 %v102, %v788
  %v790 = vpop.f32.mrb[0].mxu0
  %791 = vmatprep.mubr.bf16.mxu0 %v529
  %792 = vmatmul.mubr.bf16.gmra.mrb[0].mxu0 %v350
  %v793 = vpop.f32.mrb[0].mxu0
  %v794 = vadd.f32 %v102, %v793
  %v795 = vpop.f32.mrb[0].mxu0
  %v796 = vpop.f32.mrb[0].mxu0
  %v797 = vadd.f32 %v102, %v796
  %v798 = vpop.f32.mrb[0].mxu0
  %799 = vmatprep.mubr.bf16.mxu0 %v532
  %800 = vmatmul.mubr.bf16.gmra.mrb[0].mxu0 %v352
  %v801 = vpop.f32.mrb[0].mxu0
  %v802 = vadd.f32 %v102, %v801
  %v803 = vpop.f32.mrb[0].mxu0
  %v804 = vpop.f32.mrb[0].mxu0
  %v805 = vadd.f32 %v102, %v804
  %v806 = vpop.f32.mrb[0].mxu0
  %807 = vmatprep.mubr.bf16.mxu0 %v535
  %808 = vmatmul.mubr.bf16.gmra.mrb[0].mxu0 %v354
  %v809 = vpop.f32.mrb[0].mxu0
  %v810 = vadd.f32 %v102, %v809
  %v811 = vpop.f32.mrb[0].mxu0
  %v812 = vpop.f32.mrb[0].mxu0
  %v813 = vadd.f32 %v102, %v812
  %v814 = vpop.f32.mrb[0].mxu0
  %815 = vmatprep.mubr.bf16.mxu0 %v538
  %816 = vmatmul.mubr.bf16.gmra.mrb[0].mxu0 %v356
  %v817 = vpop.f32.mrb[0].mxu0
  %v818 = vadd.f32 %v102, %v817
  %v819 = vpop.f32.mrb[0].mxu0
  %v820 = vpop.f32.mrb[0].mxu0
  %v821 = vadd.f32 %v102, %v820
  %v822 = vpop.f32.mrb[0].mxu0
  %823 = vmatprep.mubr.bf16.mxu0 %v541
  %824 = vmatmul.mubr.bf16.gmra.mrb[0].mxu0 %v358
  %v825 = vpop.f32.mrb[0].mxu0
  %v826 = vadd.f32 %v102, %v825
  %v827 = vpop.f32.mrb[0].mxu0
  %v828 = vpop.f32.mrb[0].mxu0
  %v829 = vadd.f32 %v102, %v828
  %v830 = vpop.f32.mrb[0].mxu0
  %831 = vdwg.mxu0
  %v832 = vmax.f32 %v578, 0.0
  %v833 = vmax.f32 %v581, 0.0
  %v834 = vmax.f32 %v586, 0.0
  %v835 = vmax.f32 %v589, 0.0
  %v836 = vmax.f32 %v594, 0.0
  %v837 = vmax.f32 %v597, 0.0
  %v838 = vmax.f32 %v602, 0.0
  %v839 = vmax.f32 %v605, 0.0
  %v840 = vmax.f32 %v610, 0.0
  %v841 = vmax.f32 %v613, 0.0
  %v842 = vmax.f32 %v618, 0.0
  %v843 = vmax.f32 %v621, 0.0
  %v844 = vmax.f32 %v626, 0.0
  %v845 = vmax.f32 %v629, 0.0
  %v846 = vmax.f32 %v634, 0.0
  %v847 = vmax.f32 %v637, 0.0
  %v848 = vmax.f32 %v642, 0.0
  %v849 = vmax.f32 %v645, 0.0
  %v850 = vmax.f32 %v650, 0.0
  %v851 = vmax.f32 %v653, 0.0
  %v852 = vmax.f32 %v658, 0.0
  %v853 = vmax.f32 %v661, 0.0
  %v854 = vmax.f32 %v666, 0.0
  %v855 = vmax.f32 %v669, 0.0
  %v856 = vmax.f32 %v674, 0.0
  %v857 = vmax.f32 %v677, 0.0
  %v858 = vmax.f32 %v682, 0.0
  %v859 = vmax.f32 %v685, 0.0
  %v860 = vmax.f32 %v690, 0.0
  %v861 = vmax.f32 %v693, 0.0
  %v862 = vmax.f32 %v698, 0.0
  %v863 = vmax.f32 %v701, 0.0
  %v864 = vmax.f32 %v706, 0.0
  %v865 = vmax.f32 %v709, 0.0
  %v866 = vmax.f32 %v714, 0.0
  %v867 = vmax.f32 %v717, 0.0
  %v868 = vmax.f32 %v722, 0.0
  %v869 = vmax.f32 %v725, 0.0
  %v870 = vmax.f32 %v730, 0.0
  %v871 = vmax.f32 %v733, 0.0
  %v872 = vmax.f32 %v738, 0.0
  %v873 = vmax.f32 %v741, 0.0
  %v874 = vmax.f32 %v746, 0.0
  %v875 = vmax.f32 %v749, 0.0
  %v876 = vmax.f32 %v754, 0.0
  %v877 = vmax.f32 %v757, 0.0
  %v878 = vmax.f32 %v762, 0.0
  %v879 = vmax.f32 %v765, 0.0
  %v880 = vmax.f32 %v770, 0.0
  %v881 = vmax.f32 %v773, 0.0
  %v882 = vmax.f32 %v778, 0.0
  %v883 = vmax.f32 %v781, 0.0
  %v884 = vmax.f32 %v786, 0.0
  %v885 = vmax.f32 %v789, 0.0
  %v886 = vmax.f32 %v794, 0.0
  %v887 = vmax.f32 %v797, 0.0
  %v888 = vmax.f32 %v802, 0.0
  %v889 = vmax.f32 %v805, 0.0
  %v890 = vmax.f32 %v810, 0.0
  %v891 = vmax.f32 %v813, 0.0
  %v892 = vmax.f32 %v818, 0.0
  %v893 = vmax.f32 %v821, 0.0
  %v894 = vmax.f32 %v826, 0.0
  %v895 = vmax.f32 %v829, 0.0
  %v896 = vpack.c.bf16 %v833, %v832
  %v897 = vpack.c.bf16 %v835, %v834
  %v898 = vpack.c.bf16 %v837, %v836
  %v899 = vpack.c.bf16 %v839, %v838
  %v900 = vpack.c.bf16 %v841, %v840
  %v901 = vpack.c.bf16 %v843, %v842
  %v902 = vpack.c.bf16 %v845, %v844
  %v903 = vpack.c.bf16 %v847, %v846
  %v904 = vpack.c.bf16 %v849, %v848
  %v905 = vpack.c.bf16 %v851, %v850
  %v906 = vpack.c.bf16 %v853, %v852
  %v907 = vpack.c.bf16 %v855, %v854
  %v908 = vpack.c.bf16 %v857, %v856
  %v909 = vpack.c.bf16 %v859, %v858
  %v910 = vpack.c.bf16 %v861, %v860
  %v911 = vpack.c.bf16 %v863, %v862
  %v912 = vpack.c.bf16 %v865, %v864
  %v913 = vpack.c.bf16 %v867, %v866
  %v914 = vpack.c.bf16 %v869, %v868
  %v915 = vpack.c.bf16 %v871, %v870
  %v916 = vpack.c.bf16 %v873, %v872
  %v917 = vpack.c.bf16 %v875, %v874
  %v918 = vpack.c.bf16 %v877, %v876
  %v919 = vpack.c.bf16 %v879, %v878
  %v920 = vpack.c.bf16 %v881, %v880
  %v921 = vpack.c.bf16 %v883, %v882
  %v922 = vpack.c.bf16 %v885, %v884
  %v923 = vpack.c.bf16 %v887, %v886
  %v924 = vpack.c.bf16 %v889, %v888
  %v925 = vpack.c.bf16 %v891, %v890
  %v926 = vpack.c.bf16 %v893, %v892
  %v927 = vpack.c.bf16 %v895, %v894
  %v960 = vunpack.c.l.b16 %v896
  %v961 = vunpack.c.h.b16 %v896
  %v962 = vunpack.c.l.b16 %v897
  %v963 = vunpack.c.h.b16 %v897
  %v964 = vunpack.c.l.b16 %v898
  %v965 = vunpack.c.h.b16 %v898
  %v966 = vunpack.c.l.b16 %v899
  %v967 = vunpack.c.h.b16 %v899
  %v968 = vunpack.c.l.b16 %v900
  %v969 = vunpack.c.h.b16 %v900
  %v970 = vunpack.c.l.b16 %v901
  %v971 = vunpack.c.h.b16 %v901
  %v972 = vunpack.c.l.b16 %v902
  %v973 = vunpack.c.h.b16 %v902
  %v974 = vunpack.c.l.b16 %v903
  %v975 = vunpack.c.h.b16 %v903
  %v976 = vunpack.c.l.b16 %v904
  %v977 = vunpack.c.h.b16 %v904
  %v978 = vunpack.c.l.b16 %v905
  %v979 = vunpack.c.h.b16 %v905
  %v980 = vunpack.c.l.b16 %v906
  %v981 = vunpack.c.h.b16 %v906
  %v982 = vunpack.c.l.b16 %v907
  %v983 = vunpack.c.h.b16 %v907
  %v984 = vunpack.c.l.b16 %v908
  %v985 = vunpack.c.h.b16 %v908
  %v986 = vunpack.c.l.b16 %v909
  %v987 = vunpack.c.h.b16 %v909
  %v988 = vunpack.c.l.b16 %v910
  %v989 = vunpack.c.h.b16 %v910
  %v990 = vunpack.c.l.b16 %v911
  %v991 = vunpack.c.h.b16 %v911
  %v992 = vunpack.c.l.b16 %v912
  %v993 = vunpack.c.h.b16 %v912
  %v994 = vunpack.c.l.b16 %v913
  %v995 = vunpack.c.h.b16 %v913
  %v996 = vunpack.c.l.b16 %v914
  %v997 = vunpack.c.h.b16 %v914
  %v998 = vunpack.c.l.b16 %v915
  %v999 = vunpack.c.h.b16 %v915
  %v1000 = vunpack.c.l.b16 %v916
  %v1001 = vunpack.c.h.b16 %v916
  %v1002 = vunpack.c.l.b16 %v917
  %v1003 = vunpack.c.h.b16 %v917
  %v1004 = vunpack.c.l.b16 %v918
  %v1005 = vunpack.c.h.b16 %v918
  %v1006 = vunpack.c.l.b16 %v919
  %v1007 = vunpack.c.h.b16 %v919
  %v1008 = vunpack.c.l.b16 %v920
  %v1009 = vunpack.c.h.b16 %v920
  %v1010 = vunpack.c.l.b16 %v921
  %v1011 = vunpack.c.h.b16 %v921
  %v1012 = vunpack.c.l.b16 %v922
  %v1013 = vunpack.c.h.b16 %v922
  %v1014 = vunpack.c.l.b16 %v923
  %v1015 = vunpack.c.h.b16 %v923
  %v1016 = vunpack.c.l.b16 %v924
  %v1017 = vunpack.c.h.b16 %v924
  %v1018 = vunpack.c.l.b16 %v925
  %v1019 = vunpack.c.h.b16 %v925
  %v1020 = vunpack.c.l.b16 %v926
  %v1021 = vunpack.c.h.b16 %v926
  %v1022 = vunpack.c.l.b16 %v927
  %v1023 = vunpack.c.h.b16 %v927
  %v1024 = vpack.c.b16 %v960, %v960
  %v1025 = vpack.c.b16 %v961, %v961
  %v1026 = vpack.c.b16 %v962, %v962
  %v1027 = vpack.c.b16 %v963, %v963
  %v1028 = vpack.c.b16 %v964, %v964
  %v1029 = vpack.c.b16 %v965, %v965
  %v1030 = vpack.c.b16 %v966, %v966
  %v1031 = vpack.c.b16 %v967, %v967
  %v1032 = vpack.c.b16 %v968, %v968
  %v1033 = vpack.c.b16 %v969, %v969
  %v1034 = vpack.c.b16 %v970, %v970
  %v1035 = vpack.c.b16 %v971, %v971
  %v1036 = vpack.c.b16 %v972, %v972
  %v1037 = vpack.c.b16 %v973, %v973
  %v1038 = vpack.c.b16 %v974, %v974
  %v1039 = vpack.c.b16 %v975, %v975
  %v1040 = vpack.c.b16 %v976, %v976
  %v1041 = vpack.c.b16 %v977, %v977
  %v1042 = vpack.c.b16 %v978, %v978
  %v1043 = vpack.c.b16 %v979, %v979
  %v1044 = vpack.c.b16 %v980, %v980
  %v1045 = vpack.c.b16 %v981, %v981
  %v1046 = vpack.c.b16 %v982, %v982
  %v1047 = vpack.c.b16 %v983, %v983
  %v1048 = vpack.c.b16 %v984, %v984
  %v1049 = vpack.c.b16 %v985, %v985
  %v1050 = vpack.c.b16 %v986, %v986
  %v1051 = vpack.c.b16 %v987, %v987
  %v1052 = vpack.c.b16 %v988, %v988
  %v1053 = vpack.c.b16 %v989, %v989
  %v1054 = vpack.c.b16 %v990, %v990
  %v1055 = vpack.c.b16 %v991, %v991
  %v1056 = vpack.c.b16 %v992, %v992
  %v1057 = vpack.c.b16 %v993, %v993
  %v1058 = vpack.c.b16 %v994, %v994
  %v1059 = vpack.c.b16 %v995, %v995
  %v1060 = vpack.c.b16 %v996, %v996
  %v1061 = vpack.c.b16 %v997, %v997
  %v1062 = vpack.c.b16 %v998, %v998
  %v1063 = vpack.c.b16 %v999, %v999
  %v1064 = vpack.c.b16 %v1000, %v1000
  %v1065 = vpack.c.b16 %v1001, %v1001
  %v1066 = vpack.c.b16 %v1002, %v1002
  %v1067 = vpack.c.b16 %v1003, %v1003
  %v1068 = vpack.c.b16 %v1004, %v1004
  %v1069 = vpack.c.b16 %v1005, %v1005
  %v1070 = vpack.c.b16 %v1006, %v1006
  %v1071 = vpack.c.b16 %v1007, %v1007
  %v1072 = vpack.c.b16 %v1008, %v1008
  %v1073 = vpack.c.b16 %v1009, %v1009
  %v1074 = vpack.c.b16 %v1010, %v1010
  %v1075 = vpack.c.b16 %v1011, %v1011
  %v1076 = vpack.c.b16 %v1012, %v1012
  %v1077 = vpack.c.b16 %v1013, %v1013
  %v1078 = vpack.c.b16 %v1014, %v1014
  %v1079 = vpack.c.b16 %v1015, %v1015
  %v1080 = vpack.c.b16 %v1016, %v1016
  %v1081 = vpack.c.b16 %v1017, %v1017
  %v1082 = vpack.c.b16 %v1018, %v1018
  %v1083 = vpack.c.b16 %v1019, %v1019
  %v1084 = vpack.c.b16 %v1020, %v1020
  %v1085 = vpack.c.b16 %v1021, %v1021
  %v1086 = vpack.c.b16 %v1022, %v1022
  %v1087 = vpack.c.b16 %v1023, %v1023
  %vm1152 = vcmask 125952
  %1153 = vst.msk [vmem:[%s3] sm:$0xf] %vm1152, %v1024
  %1154 = vst.msk [vmem:[%s3 + $0x4] sm:$0xf] %vm1152, %v1025
  %1155 = vst.msk [vmem:[%s3 + $0x8] sm:$0xf] %vm1152, %v1026
  %1156 = vst.msk [vmem:[%s3 + $0xc] sm:$0xf] %vm1152, %v1027
  %1157 = vst.msk [vmem:[%s3 + $0x10] sm:$0xf] %vm1152, %v1028
  %1158 = vst.msk [vmem:[%s3 + $0x14] sm:$0xf] %vm1152, %v1029
  %1159 = vst.msk [vmem:[%s3 + $0x18] sm:$0xf] %vm1152, %v1030
  %1160 = vst.msk [vmem:[%s3 + $0x1c] sm:$0xf] %vm1152, %v1031
  %1161 = vst.msk [vmem:[%s3 + $0x20] sm:$0xf] %vm1152, %v1032
  %1162 = vst.msk [vmem:[%s3 + $0x24] sm:$0xf] %vm1152, %v1033
  %1163 = vst.msk [vmem:[%s3 + $0x28] sm:$0xf] %vm1152, %v1034
  %1164 = vst.msk [vmem:[%s3 + $0x2c] sm:$0xf] %vm1152, %v1035
  %1165 = vst.msk [vmem:[%s3 + $0x30] sm:$0xf] %vm1152, %v1036
  %1166 = vst.msk [vmem:[%s3 + $0x34] sm:$0xf] %vm1152, %v1037
  %1167 = vst.msk [vmem:[%s3 + $0x38] sm:$0xf] %vm1152, %v1038
  %1168 = vst.msk [vmem:[%s3 + $0x3c] sm:$0xf] %vm1152, %v1039
  %1169 = vst.msk [vmem:[%s3 + $0x40] sm:$0xf] %vm1152, %v1040
  %1170 = vst.msk [vmem:[%s3 + $0x44] sm:$0xf] %vm1152, %v1041
  %1171 = vst.msk [vmem:[%s3 + $0x48] sm:$0xf] %vm1152, %v1042
  %1172 = vst.msk [vmem:[%s3 + $0x4c] sm:$0xf] %vm1152, %v1043
  %1173 = vst.msk [vmem:[%s3 + $0x50] sm:$0xf] %vm1152, %v1044
  %1174 = vst.msk [vmem:[%s3 + $0x54] sm:$0xf] %vm1152, %v1045
  %1175 = vst.msk [vmem:[%s3 + $0x58] sm:$0xf] %vm1152, %v1046
  %1176 = vst.msk [vmem:[%s3 + $0x5c] sm:$0xf] %vm1152, %v1047
  %1177 = vst.msk [vmem:[%s3 + $0x60] sm:$0xf] %vm1152, %v1048
  %1178 = vst.msk [vmem:[%s3 + $0x64] sm:$0xf] %vm1152, %v1049
  %1179 = vst.msk [vmem:[%s3 + $0x68] sm:$0xf] %vm1152, %v1050
  %1180 = vst.msk [vmem:[%s3 + $0x6c] sm:$0xf] %vm1152, %v1051
  %1181 = vst.msk [vmem:[%s3 + $0x70] sm:$0xf] %vm1152, %v1052
  %1182 = vst.msk [vmem:[%s3 + $0x74] sm:$0xf] %vm1152, %v1053
  %1183 = vst.msk [vmem:[%s3 + $0x78] sm:$0xf] %vm1152, %v1054
  %1184 = vst.msk [vmem:[%s3 + $0x7c] sm:$0xf] %vm1152, %v1055
  %1185 = vst.msk [vmem:[%s3 + $0x80] sm:$0xf] %vm1152, %v1056
  %1186 = vst.msk [vmem:[%s3 + $0x84] sm:$0xf] %vm1152, %v1057
  %1187 = vst.msk [vmem:[%s3 + $0x88] sm:$0xf] %vm1152, %v1058
  %1188 = vst.msk [vmem:[%s3 + $0x8c] sm:$0xf] %vm1152, %v1059
  %1189 = vst.msk [vmem:[%s3 + $0x90] sm:$0xf] %vm1152, %v1060
  %1190 = vst.msk [vmem:[%s3 + $0x94] sm:$0xf] %vm1152, %v1061
  %1191 = vst.msk [vmem:[%s3 + $0x98] sm:$0xf] %vm1152, %v1062
  %1192 = vst.msk [vmem:[%s3 + $0x9c] sm:$0xf] %vm1152, %v1063
  %1193 = vst.msk [vmem:[%s3 + $0xa0] sm:$0xf] %vm1152, %v1064
  %1194 = vst.msk [vmem:[%s3 + $0xa4] sm:$0xf] %vm1152, %v1065
  %1195 = vst.msk [vmem:[%s3 + $0xa8] sm:$0xf] %vm1152, %v1066
  %1196 = vst.msk [vmem:[%s3 + $0xac] sm:$0xf] %vm1152, %v1067
  %1197 = vst.msk [vmem:[%s3 + $0xb0] sm:$0xf] %vm1152, %v1068
  %1198 = vst.msk [vmem:[%s3 + $0xb4] sm:$0xf] %vm1152, %v1069
  %1199 = vst.msk [vmem:[%s3 + $0xb8] sm:$0xf] %vm1152, %v1070
  %1200 = vst.msk [vmem:[%s3 + $0xbc] sm:$0xf] %vm1152, %v1071
  %1201 = vst.msk [vmem:[%s3 + $0xc0] sm:$0xf] %vm1152, %v1072
  %1202 = vst.msk [vmem:[%s3 + $0xc4] sm:$0xf] %vm1152, %v1073
  %1203 = vst.msk [vmem:[%s3 + $0xc8] sm:$0xf] %vm1152, %v1074
  %1204 = vst.msk [vmem:[%s3 + $0xcc] sm:$0xf] %vm1152, %v1075
  %1205 = vst.msk [vmem:[%s3 + $0xd0] sm:$0xf] %vm1152, %v1076
  %1206 = vst.msk [vmem:[%s3 + $0xd4] sm:$0xf] %vm1152, %v1077
  %1207 = vst.msk [vmem:[%s3 + $0xd8] sm:$0xf] %vm1152, %v1078
  %1208 = vst.msk [vmem:[%s3 + $0xdc] sm:$0xf] %vm1152, %v1079
  %1209 = vst.msk [vmem:[%s3 + $0xe0] sm:$0xf] %vm1152, %v1080
  %1210 = vst.msk [vmem:[%s3 + $0xe4] sm:$0xf] %vm1152, %v1081
  %1211 = vst.msk [vmem:[%s3 + $0xe8] sm:$0xf] %vm1152, %v1082
  %1212 = vst.msk [vmem:[%s3 + $0xec] sm:$0xf] %vm1152, %v1083
  %1213 = vst.msk [vmem:[%s3 + $0xf0] sm:$0xf] %vm1152, %v1084
  %1214 = vst.msk [vmem:[%s3 + $0xf4] sm:$0xf] %vm1152, %v1085
  %1215 = vst.msk [vmem:[%s3 + $0xf8] sm:$0xf] %vm1152, %v1086
  %1216 = vst.msk [vmem:[%s3 + $0xfc] sm:$0xf] %vm1152, %v1087
  // Predicated region
  $region14: #{two_branch_net_forward.12} parent=0 // pred_check
    _
  $region15: #{two_branch_net_forward.12} parent=0 // pred_check_branch
    %1218 = sbr.rel (0) target = $region17
  $region16: #{two_branch_net_forward.12} parent=0 // pred_region
    _
  $region17: #{two_branch_net_forward.12} parent=0 // pred_fallthru
    _
  // Predicated region
  $region18: #{two_branch_net_forward.12} parent=0 // pred_check
    _
  $region19: #{two_branch_net_forward.12} parent=0 // pred_check_branch
    %1220 = sbr.rel (0) target = $region21
  $region20: #{two_branch_net_forward.12} parent=0 // pred_region
    _
  $region21: #{two_branch_net_forward.12} parent=0 // pred_fallthru
    _

// kernel: two_branch_net_forward.13
$region0: #{two_branch_net_forward.13}
  #allocation0 [shape = 'u32[]', space=smem, size = 0x4, offset = 0x4, fixed_abs, tag = 'smem constant byte address 0x4 - core index']
  #allocation1 [shape = 'u32[144,128]{1,0:T(1,128)}', space=vmem, size = 0x12000, scoped, tag = 'internal scratch']
  %s0 = inlined_call_operand.vmem [shape: bf16[128,144], index: 0, kind: input, shape index: {}]
  %s1 = inlined_call_operand.vmem [shape: bf16[144,32], index: 1, kind: input, shape index: {}]
  %s2 = inlined_call_operand.vmem [shape: f32[1,32], index: 2, kind: input, shape index: {}]
  %s3 = inlined_call_operand.vmem [shape: bf16[128,32], index: 3, kind: output, shape index: {}]
  %s4 = sld [smem:[#allocation0]]
  $region22: #{two_branch_net_forward.13} parent=0
    _
  %s6 = ssub.s32 1, %s4
  %s7 = scalar_select 0, %s6, %s4
  // Predicated region
  $region2: #{two_branch_net_forward.13} parent=0 // pred_check
    _
  $region3: #{two_branch_net_forward.13} parent=0 // pred_check_branch
    %9 = sbr.rel (0) target = $region5
  $region4: #{two_branch_net_forward.13} parent=0 // pred_region
    _
  $region5: #{two_branch_net_forward.13} parent=0 // pred_fallthru
    _
  // Predicated region
  $region6: #{two_branch_net_forward.13} parent=0 // pred_check
    _
  $region7: #{two_branch_net_forward.13} parent=0 // pred_check_branch
    %11 = sbr.rel (0) target = $region9
  $region8: #{two_branch_net_forward.13} parent=0 // pred_region
    _
  $region9: #{two_branch_net_forward.13} parent=0 // pred_fallthru
    _
  // Predicated region
  $region10: #{two_branch_net_forward.13} parent=0 // pred_check
    _
  $region11: #{two_branch_net_forward.13} parent=0 // pred_check_branch
    %13 = sbr.rel (0) target = $region13
  $region12: #{two_branch_net_forward.13} parent=0 // pred_region
    _
  $region13: #{two_branch_net_forward.13} parent=0 // pred_fallthru
    _
  %v15 = vld [vmem:[%s0] sm:$0xff]
  %v16 = vld [vmem:[%s0 + $0x8] sm:$0xff]
  %v17 = vld [vmem:[%s0 + $0x10] sm:$0xff]
  %v18 = vld [vmem:[%s0 + $0x18] sm:$0xff]
  %v19 = vld [vmem:[%s0 + $0x20] sm:$0xff]
  %v20 = vld [vmem:[%s0 + $0x28] sm:$0xff]
  %v21 = vld [vmem:[%s0 + $0x30] sm:$0xff]
  %v22 = vld [vmem:[%s0 + $0x38] sm:$0xff]
  %v23 = vld [vmem:[%s0 + $0x40] sm:$0xff]
  %v24 = vld [vmem:[%s0 + $0x48] sm:$0xff]
  %v25 = vld [vmem:[%s0 + $0x50] sm:$0xff]
  %v26 = vld [vmem:[%s0 + $0x58] sm:$0xff]
  %v27 = vld [vmem:[%s0 + $0x60] sm:$0xff]
  %v28 = vld [vmem:[%s0 + $0x68] sm:$0xff]
  %v29 = vld [vmem:[%s0 + $0x70] sm:$0xff]
  %v30 = vld [vmem:[%s0 + $0x78] sm:$0xff]
  %v31 = vld [vmem:[%s1] sm:$0xf]
  %v32 = vld [vmem:[%s1 + $0x4] sm:$0xf]
  %v33 = vld [vmem:[%s1 + $0x8] sm:$0xf]
  %v34 = vld [vmem:[%s1 + $0xc] sm:$0xf]
  %v35 = vld [vmem:[%s1 + $0x10] sm:$0xf]
  %v36 = vld [vmem:[%s1 + $0x14] sm:$0xf]
  %v37 = vld [vmem:[%s1 + $0x18] sm:$0xf]
  %v38 = vld [vmem:[%s1 + $0x1c] sm:$0xf]
  %v39 = vld [vmem:[%s1 + $0x20] sm:$0xf]
  %v40 = vld [vmem:[%s1 + $0x24] sm:$0xf]
  %v41 = vld [vmem:[%s1 + $0x28] sm:$0xf]
  %v42 = vld [vmem:[%s1 + $0x2c] sm:$0xf]
  %v43 = vld [vmem:[%s1 + $0x30] sm:$0xf]
  %v44 = vld [vmem:[%s1 + $0x34] sm:$0xf]
  %v45 = vld [vmem:[%s1 + $0x38] sm:$0xf]
  %v46 = vld [vmem:[%s1 + $0x3c] sm:$0xf]
  %v47 = vld [vmem:[%s1 + $0x40] sm:$0xf]
  %v48 = vld [vmem:[%s1 + $0x44] sm:$0xf]
  %v49 = vld [vmem:[%s2] sm:$0x1]
  %v51 = vlaneseq
  %v52 = vshrl.u32 %v51, 7
  %v53 = vsub.s32 0, %v52
  %v54 = vrot.slane %v49, %v53
  %v72 = vunpack.c.l.b16 %v15
  %v73 = vunpack.c.h.b16 %v15
  %v74 = vunpack.c.l.b16 %v16
  %v75 = vunpack.c.h.b16 %v16
  %v76 = vunpack.c.l.b16 %v17
  %v77 = vunpack.c.h.b16 %v17
  %v78 = vunpack.c.l.b16 %v18
  %v79 = vunpack.c.h.b16 %v18
  %v80 = vunpack.c.l.b16 %v19
  %v81 = vunpack.c.h.b16 %v19
  %v82 = vunpack.c.l.b16 %v20
  %v83 = vunpack.c.h.b16 %v20
  %v84 = vunpack.c.l.b16 %v21
  %v85 = vunpack.c.h.b16 %v21
  %v86 = vunpack.c.l.b16 %v22
  %v87 = vunpack.c.h.b16 %v22
  %v88 = vunpack.c.l.b16 %v23
  %v89 = vunpack.c.h.b16 %v23
  %v90 = vunpack.c.l.b16 %v24
  %v91 = vunpack.c.h.b16 %v24
  %v92 = vunpack.c.l.b16 %v25
  %v93 = vunpack.c.h.b16 %v25
  %v94 = vunpack.c.l.b16 %v26
  %v95 = vunpack.c.h.b16 %v26
  %v96 = vunpack.c.l.b16 %v27
  %v97 = vunpack.c.h.b16 %v27
  %v98 = vunpack.c.l.b16 %v28
  %v99 = vunpack.c.h.b16 %v28
  %v100 = vunpack.c.l.b16 %v29
  %v101 = vunpack.c.h.b16 %v29
  %v102 = vunpack.c.l.b16 %v30
  %v103 = vunpack.c.h.b16 %v30
  %v104 = vpack.c.b16 %v74, %v72
  %v105 = vpack.c.b16 %v75, %v73
  %v106 = vpack.c.b16 %v78, %v76
  %v107 = vpack.c.b16 %v79, %v77
  %v108 = vpack.c.b16 %v82, %v80
  %v109 = vpack.c.b16 %v83, %v81
  %v110 = vpack.c.b16 %v86, %v84
  %v111 = vpack.c.b16 %v87, %v85
  %v112 = vpack.c.b16 %v90, %v88
  %v113 = vpack.c.b16 %v91, %v89
  %v114 = vpack.c.b16 %v94, %v92
  %v115 = vpack.c.b16 %v95, %v93
  %v116 = vpack.c.b16 %v98, %v96
  %v117 = vpack.c.b16 %v99, %v97
  %v118 = vpack.c.b16 %v102, %v100
  %v119 = vpack.c.b16 %v103, %v101
  %v146 = vunpack.c.l.b16 %v31
  %v147 = vunpack.c.l.b16 %v32
  %v148 = vunpack.c.l.b16 %v33
  %v149 = vunpack.c.l.b16 %v34
  %v150 = vunpack.c.l.b16 %v35
  %v151 = vunpack.c.l.b16 %v36
  %v152 = vunpack.c.l.b16 %v37
  %v153 = vunpack.c.l.b16 %v38
  %v154 = vunpack.c.l.b16 %v39
  %v155 = vunpack.c.l.b16 %v40
  %v156 = vunpack.c.l.b16 %v41
  %v157 = vunpack.c.l.b16 %v42
  %v158 = vunpack.c.l.b16 %v43
  %v159 = vunpack.c.l.b16 %v44
  %v160 = vunpack.c.l.b16 %v45
  %v161 = vunpack.c.l.b16 %v46
  %v162 = vunpack.c.l.b16 %v47
  %v163 = vunpack.c.l.b16 %v48
  %v164 = vpack.c.b16 %v147, %v146
  %v165 = vpack.c.b16 %v149, %v148
  %v166 = vpack.c.b16 %v151, %v150
  %v167 = vpack.c.b16 %v153, %v152
  %v168 = vpack.c.b16 %v155, %v154
  %v169 = vpack.c.b16 %v157, %v156
  %v170 = vpack.c.b16 %v159, %v158
  %v171 = vpack.c.b16 %v161, %v160
  %v172 = vpack.c.b16 %v163, %v162
  %vm182 = vcmask 130048
  %v184 = vsel %vm182, %v105, 0
  %v187 = vsel %vm182, %v107, 0
  %v190 = vsel %vm182, %v109, 0
  %v193 = vsel %vm182, %v111, 0
  %v196 = vsel %vm182, %v113, 0
  %v199 = vsel %vm182, %v115, 0
  %v202 = vsel %vm182, %v117, 0
  %v205 = vsel %vm182, %v119, 0
  %207 = vmatprep.subr.bf16.mxu0 0
  %208 = vmatpush1.bf16.msra.mxu0 %v164
  %209 = vmatprep.subr.bf16.mxu0 0
  %210 = vmatpush1.bf16.msra.mxu0 %v165
  %211 = vmatprep.subr.bf16.mxu0 0
  %212 = vmatpush1.bf16.msra.mxu0 %v166
  %213 = vmatprep.subr.bf16.mxu0 0
  %214 = vmatpush1.bf16.msra.mxu0 %v167
  %215 = vmatprep.subr.bf16.mxu0 0
  %216 = vmatpush1.bf16.msra.mxu0 %v168
  %217 = vmatprep.subr.bf16.mxu0 0
  %218 = vmatpush1.bf16.msra.mxu0 %v169
  %219 = vmatprep.subr.bf16.mxu0 0
  %220 = vmatpush1.bf16.msra.mxu0 %v170
  %221 = vmatprep.subr.bf16.mxu0 0
  %222 = vmatpush1.bf16.msra.mxu0 %v171
  %223 = vmatprep.subr.bf16.mxu0 0
  %224 = vmatpush1.bf16.msra.mxu0 %v172
  %225 = vmatprep.subr.bf16.mxu0 0
  %226 = vmatpush1.bf16.msra.mxu0 0
  %227 = vmatprep.subr.bf16.mxu0 0
  %228 = vmatpush1.bf16.msra.mxu0 0
  %229 = vmatprep.subr.bf16.mxu0 0
  %230 = vmatpush1.bf16.msra.mxu0 0
  %231 = vmatprep.subr.bf16.mxu0 0
  %232 = vmatpush1.bf16.msra.mxu0 0
  %233 = vmatprep.subr.bf16.mxu0 0
  %234 = vmatpush1.bf16.msra.mxu0 0
  %235 = vmatprep.subr.bf16.mxu0 0
  %236 = vmatpush1.bf16.msra.mxu0 0
  %237 = vmatprep.subr.bf16.mxu0 0
  %238 = vmatpush1.bf16.msra.mxu0 0
  %239 = vmatprep.mubr.bf16.mxu0 %v184
  %240 = vmatmul.mubr.bf16.gmra.mrb[0].mxu0 %v104
  %v241 = vpop.f32.mrb[0].mxu0
  %v242 = vadd.f32 %v54, %v241
  %v243 = vpop.f32.mrb[0].mxu0
  %v244 = vpop.f32.mrb[0].mxu0
  %v245 = vadd.f32 %v54, %v244
  %v246 = vpop.f32.mrb[0].mxu0
  %247 = vmatprep.mubr.bf16.mxu0 %v187
  %248 = vmatmul.mubr.bf16.gmra.mrb[0].mxu0 %v106
  %v249 = vpop.f32.mrb[0].mxu0
  %v250 = vadd.f32 %v54, %v249
  %v251 = vpop.f32.mrb[0].mxu0
  %v252 = vpop.f32.mrb[0].mxu0
  %v253 = vadd.f32 %v54, %v252
  %v254 = vpop.f32.mrb[0].mxu0
  %255 = vmatprep.mubr.bf16.mxu0 %v190
  %256 = vmatmul.mubr.bf16.gmra.mrb[0].mxu0 %v108
  %v257 = vpop.f32.mrb[0].mxu0
  %v258 = vadd.f32 %v54, %v257
  %v259 = vpop.f32.mrb[0].mxu0
  %v260 = vpop.f32.mrb[0].mxu0
  %v261 = vadd.f32 %v54, %v260
  %v262 = vpop.f32.mrb[0].mxu0
  %263 = vmatprep.mubr.bf16.mxu0 %v193
  %264 = vmatmul.mubr.bf16.gmra.mrb[0].mxu0 %v110
  %v265 = vpop.f32.mrb[0].mxu0
  %v266 = vadd.f32 %v54, %v265
  %v267 = vpop.f32.mrb[0].mxu0
  %v268 = vpop.f32.mrb[0].mxu0
  %v269 = vadd.f32 %v54, %v268
  %v270 = vpop.f32.mrb[0].mxu0
  %271 = vmatprep.mubr.bf16.mxu0 %v196
  %272 = vmatmul.mubr.bf16.gmra.mrb[0].mxu0 %v112
  %v273 = vpop.f32.mrb[0].mxu0
  %v274 = vadd.f32 %v54, %v273
  %v275 = vpop.f32.mrb[0].mxu0
  %v276 = vpop.f32.mrb[0].mxu0
  %v277 = vadd.f32 %v54, %v276
  %v278 = vpop.f32.mrb[0].mxu0
  %279 = vmatprep.mubr.bf16.mxu0 %v199
  %280 = vmatmul.mubr.bf16.gmra.mrb[0].mxu0 %v114
  %v281 = vpop.f32.mrb[0].mxu0
  %v282 = vadd.f32 %v54, %v281
  %v283 = vpop.f32.mrb[0].mxu0
  %v284 = vpop.f32.mrb[0].mxu0
  %v285 = vadd.f32 %v54, %v284
  %v286 = vpop.f32.mrb[0].mxu0
  %287 = vmatprep.mubr.bf16.mxu0 %v202
  %288 = vmatmul.mubr.bf16.gmra.mrb[0].mxu0 %v116
  %v289 = vpop.f32.mrb[0].mxu0
  %v290 = vadd.f32 %v54, %v289
  %v291 = vpop.f32.mrb[0].mxu0
  %v292 = vpop.f32.mrb[0].mxu0
  %v293 = vadd.f32 %v54, %v292
  %v294 = vpop.f32.mrb[0].mxu0
  %295 = vmatprep.mubr.bf16.mxu0 %v205
  %296 = vmatmul.mubr.bf16.gmra.mrb[0].mxu0 %v118
  %v297 = vpop.f32.mrb[0].mxu0
  %v298 = vadd.f32 %v54, %v297
  %v299 = vpop.f32.mrb[0].mxu0
  %v300 = vpop.f32.mrb[0].mxu0
  %v301 = vadd.f32 %v54, %v300
  %v302 = vpop.f32.mrb[0].mxu0
  %303 = vdwg.mxu0
  %v304 = vmax.f32 %v242, 0.0
  %v305 = vmax.f32 %v245, 0.0
  %v306 = vmax.f32 %v250, 0.0
  %v307 = vmax.f32 %v253, 0.0
  %v308 = vmax.f32 %v258, 0.0
  %v309 = vmax.f32 %v261, 0.0
  %v310 = vmax.f32 %v266, 0.0
  %v311 = vmax.f32 %v269, 0.0
  %v312 = vmax.f32 %v274, 0.0
  %v313 = vmax.f32 %v277, 0.0
  %v314 = vmax.f32 %v282, 0.0
  %v315 = vmax.f32 %v285, 0.0
  %v316 = vmax.f32 %v290, 0.0
  %v317 = vmax.f32 %v293, 0.0
  %v318 = vmax.f32 %v298, 0.0
  %v319 = vmax.f32 %v301, 0.0
  %v320 = vpack.c.bf16 %v305, %v304
  %v321 = vpack.c.bf16 %v307, %v306
  %v322 = vpack.c.bf16 %v309, %v308
  %v323 = vpack.c.bf16 %v311, %v310
  %v324 = vpack.c.bf16 %v313, %v312
  %v325 = vpack.c.bf16 %v315, %v314
  %v326 = vpack.c.bf16 %v317, %v316
  %v327 = vpack.c.bf16 %v319, %v318
  %v336 = vunpack.c.l.b16 %v320
  %v337 = vunpack.c.h.b16 %v320
  %v338 = vunpack.c.l.b16 %v321
  %v339 = vunpack.c.h.b16 %v321
  %v340 = vunpack.c.l.b16 %v322
  %v341 = vunpack.c.h.b16 %v322
  %v342 = vunpack.c.l.b16 %v323
  %v343 = vunpack.c.h.b16 %v323
  %v344 = vunpack.c.l.b16 %v324
  %v345 = vunpack.c.h.b16 %v324
  %v346 = vunpack.c.l.b16 %v325
  %v347 = vunpack.c.h.b16 %v325
  %v348 = vunpack.c.l.b16 %v326
  %v349 = vunpack.c.h.b16 %v326
  %v350 = vunpack.c.l.b16 %v327
  %v351 = vunpack.c.h.b16 %v327
  %v352 = vpack.c.b16 %v336, %v336
  %v353 = vpack.c.b16 %v337, %v337
  %v354 = vpack.c.b16 %v338, %v338
  %v355 = vpack.c.b16 %v339, %v339
  %v356 = vpack.c.b16 %v340, %v340
  %v357 = vpack.c.b16 %v341, %v341
  %v358 = vpack.c.b16 %v342, %v342
  %v359 = vpack.c.b16 %v343, %v343
  %v360 = vpack.c.b16 %v344, %v344
  %v361 = vpack.c.b16 %v345, %v345
  %v362 = vpack.c.b16 %v346, %v346
  %v363 = vpack.c.b16 %v347, %v347
  %v364 = vpack.c.b16 %v348, %v348
  %v365 = vpack.c.b16 %v349, %v349
  %v366 = vpack.c.b16 %v350, %v350
  %v367 = vpack.c.b16 %v351, %v351
  %vm384 = vcmask 257024
  %385 = vst.msk [vmem:[%s3] sm:$0xf] %vm384, %v352
  %386 = vst.msk [vmem:[%s3 + $0x4] sm:$0xf] %vm384, %v353
  %387 = vst.msk [vmem:[%s3 + $0x8] sm:$0xf] %vm384, %v354
  %388 = vst.msk [vmem:[%s3 + $0xc] sm:$0xf] %vm384, %v355
  %389 = vst.msk [vmem:[%s3 + $0x10] sm:$0xf] %vm384, %v356
  %390 = vst.msk [vmem:[%s3 + $0x14] sm:$0xf] %vm384, %v357
  %391 = vst.msk [vmem:[%s3 + $0x18] sm:$0xf] %vm384, %v358
  %392 = vst.msk [vmem:[%s3 + $0x1c] sm:$0xf] %vm384, %v359
  %393 = vst.msk [vmem:[%s3 + $0x20] sm:$0xf] %vm384, %v360
  %394 = vst.msk [vmem:[%s3 + $0x24] sm:$0xf] %vm384, %v361
  %395 = vst.msk [vmem:[%s3 + $0x28] sm:$0xf] %vm384, %v362
  %396 = vst.msk [vmem:[%s3 + $0x2c] sm:$0xf] %vm384, %v363
  %397 = vst.msk [vmem:[%s3 + $0x30] sm:$0xf] %vm384, %v364
  %398 = vst.msk [vmem:[%s3 + $0x34] sm:$0xf] %vm384, %v365
  %399 = vst.msk [vmem:[%s3 + $0x38] sm:$0xf] %vm384, %v366
  %400 = vst.msk [vmem:[%s3 + $0x3c] sm:$0xf] %vm384, %v367
  // Predicated region
  $region14: #{two_branch_net_forward.13} parent=0 // pred_check
    _
  $region15: #{two_branch_net_forward.13} parent=0 // pred_check_branch
    %402 = sbr.rel (0) target = $region17
  $region16: #{two_branch_net_forward.13} parent=0 // pred_region
    _
  $region17: #{two_branch_net_forward.13} parent=0 // pred_fallthru
    _
  // Predicated region
  $region18: #{two_branch_net_forward.13} parent=0 // pred_check
    _
  $region19: #{two_branch_net_forward.13} parent=0 // pred_check_branch
    %404 = sbr.rel (0) target = $region21
  $region20: #{two_branch_net_forward.13} parent=0 // pred_region
    _
  $region21: #{two_branch_net_forward.13} parent=0 // pred_fallthru
    _

// kernel: two_branch_net_forward.14
$region0: #{two_branch_net_forward.14}
  #allocation0 [shape = 'u32[]', space=smem, size = 0x4, offset = 0x4, fixed_abs, tag = 'smem constant byte address 0x4 - core index']
  #allocation1 [shape = 'u32[144,128]{1,0:T(1,128)}', space=vmem, size = 0x12000, scoped, tag = 'internal scratch']
  %s0 = inlined_call_operand.vmem [shape: bf16[128,288], index: 0, kind: input, shape index: {}]
  %s1 = inlined_call_operand.vmem [shape: bf16[288,32], index: 1, kind: input, shape index: {}]
  %s2 = inlined_call_operand.vmem [shape: f32[1,32], index: 2, kind: input, shape index: {}]
  %s3 = inlined_call_operand.vmem [shape: bf16[128,32], index: 3, kind: output, shape index: {}]
  %s4 = sld [smem:[#allocation0]]
  $region22: #{two_branch_net_forward.14} parent=0
    _
  %s6 = ssub.s32 1, %s4
  %s7 = scalar_select 0, %s6, %s4
  // Predicated region
  $region2: #{two_branch_net_forward.14} parent=0 // pred_check
    _
  $region3: #{two_branch_net_forward.14} parent=0 // pred_check_branch
    %9 = sbr.rel (0) target = $region5
  $region4: #{two_branch_net_forward.14} parent=0 // pred_region
    _
  $region5: #{two_branch_net_forward.14} parent=0 // pred_fallthru
    _
  // Predicated region
  $region6: #{two_branch_net_forward.14} parent=0 // pred_check
    _
  $region7: #{two_branch_net_forward.14} parent=0 // pred_check_branch
    %11 = sbr.rel (0) target = $region9
  $region8: #{two_branch_net_forward.14} parent=0 // pred_region
    _
  $region9: #{two_branch_net_forward.14} parent=0 // pred_fallthru
    _
  // Predicated region
  $region10: #{two_branch_net_forward.14} parent=0 // pred_check
    _
  $region11: #{two_branch_net_forward.14} parent=0 // pred_check_branch
    %13 = sbr.rel (0) target = $region13
  $region12: #{two_branch_net_forward.14} parent=0 // pred_region
    _
  $region13: #{two_branch_net_forward.14} parent=0 // pred_fallthru
    _
  %v15 = vld [vmem:[%s0] sm:$0xff]
  %v16 = vld [vmem:[%s0 + $0x8] sm:$0xf]
  %v17 = vld [vmem:[%s0 + $0xc] sm:$0xff]
  %v18 = vld [vmem:[%s0 + $0x14] sm:$0xf]
  %v19 = vld [vmem:[%s0 + $0x18] sm:$0xff]
  %v20 = vld [vmem:[%s0 + $0x20] sm:$0xf]
  %v21 = vld [vmem:[%s0 + $0x24] sm:$0xff]
  %v22 = vld [vmem:[%s0 + $0x2c] sm:$0xf]
  %v23 = vld [vmem:[%s0 + $0x30] sm:$0xff]
  %v24 = vld [vmem:[%s0 + $0x38] sm:$0xf]
  %v25 = vld [vmem:[%s0 + $0x3c] sm:$0xff]
  %v26 = vld [vmem:[%s0 + $0x44] sm:$0xf]
  %v27 = vld [vmem:[%s0 + $0x48] sm:$0xff]
  %v28 = vld [vmem:[%s0 + $0x50] sm:$0xf]
  %v29 = vld [vmem:[%s0 + $0x54] sm:$0xff]
  %v30 = vld [vmem:[%s0 + $0x5c] sm:$0xf]
  %v31 = vld [vmem:[%s0 + $0x60] sm:$0xff]
  %v32 = vld [vmem:[%s0 + $0x68] sm:$0xf]
  %v33 = vld [vmem:[%s0 + $0x6c] sm:$0xff]
  %v34 = vld [vmem:[%s0 + $0x74] sm:$0xf]
  %v35 = vld [vmem:[%s0 + $0x78] sm:$0xff]
  %v36 = vld [vmem:[%s0 + $0x80] sm:$0xf]
  %v37 = vld [vmem:[%s0 + $0x84] sm:$0xff]
  %v38 = vld [vmem:[%s0 + $0x8c] sm:$0xf]
  %v39 = vld [vmem:[%s0 + $0x90] sm:$0xff]
  %v40 = vld [vmem:[%s0 + $0x98] sm:$0xf]
  %v41 = vld [vmem:[%s0 + $0x9c] sm:$0xff]
  %v42 = vld [vmem:[%s0 + $0xa4] sm:$0xf]
  %v43 = vld [vmem:[%s0 + $0xa8] sm:$0xff]
  %v44 = vld [vmem:[%s0 + $0xb0] sm:$0xf]
  %v45 = vld [vmem:[%s0 + $0xb4] sm:$0xff]
  %v46 = vld [vmem:[%s0 + $0xbc] sm:$0xf]
  %v47 = vld [vmem:[%s1] sm:$0xf]
  %v48 = vld [vmem:[%s1 + $0x4] sm:$0xf]
  %v49 = vld [vmem:[%s1 + $0x8] sm:$0xf]
  %v50 = vld [vmem:[%s1 + $0xc] sm:$0xf]
  %v51 = vld [vmem:[%s1 + $0x10] sm:$0xf]
  %v52 = vld [vmem:[%s1 + $0x14] sm:$0xf]
  %v53 = vld [vmem:[%s1 + $0x18] sm:$0xf]
  %v54 = vld [vmem:[%s1 + $0x1c] sm:$0xf]
  %v55 = vld [vmem:[%s1 + $0x20] sm:$0xf]
  %v56 = vld [vmem:[%s1 + $0x24] sm:$0xf]
  %v57 = vld [vmem:[%s1 + $0x28] sm:$0xf]
  %v58 = vld [vmem:[%s1 + $0x2c] sm:$0xf]
  %v59 = vld [vmem:[%s1 + $0x30] sm:$0xf]
  %v60 = vld [vmem:[%s1 + $0x34] sm:$0xf]
  %v61 = vld [vmem:[%s1 + $0x38] sm:$0xf]
  %v62 = vld [vmem:[%s1 + $0x3c] sm:$0xf]
  %v63 = vld [vmem:[%s1 + $0x40] sm:$0xf]
  %v64 = vld [vmem:[%s1 + $0x44] sm:$0xf]
  %v65 = vld [vmem:[%s1 + $0x48] sm:$0xf]
  %v66 = vld [vmem:[%s1 + $0x4c] sm:$0xf]
  %v67 = vld [vmem:[%s1 + $0x50] sm:$0xf]
  %v68 = vld [vmem:[%s1 + $0x54] sm:$0xf]
  %v69 = vld [vmem:[%s1 + $0x58] sm:$0xf]
  %v70 = vld [vmem:[%s1 + $0x5c] sm:$0xf]
  %v71 = vld [vmem:[%s1 + $0x60] sm:$0xf]
  %v72 = vld [vmem:[%s1 + $0x64] sm:$0xf]
  %v73 = vld [vmem:[%s1 + $0x68] sm:$0xf]
  %v74 = vld [vmem:[%s1 + $0x6c] sm:$0xf]
  %v75 = vld [vmem:[%s1 + $0x70] sm:$0xf]
  %v76 = vld [vmem:[%s1 + $0x74] sm:$0xf]
  %v77 = vld [vmem:[%s1 + $0x78] sm:$0xf]
  %v78 = vld [vmem:[%s1 + $0x7c] sm:$0xf]
  %v79 = vld [vmem:[%s1 + $0x80] sm:$0xf]
  %v80 = vld [vmem:[%s1 + $0x84] sm:$0xf]
  %v81 = vld [vmem:[%s1 + $0x88] sm:$0xf]
  %v82 = vld [vmem:[%s1 + $0x8c] sm:$0xf]
  %v83 = vld [vmem:[%s2] sm:$0x1]
  %v85 = vlaneseq
  %v86 = vshrl.u32 %v85, 7
  %v87 = vsub.s32 0, %v86
  %v88 = vrot.slane %v83, %v87
  %v122 = vunpack.c.l.b16 %v15
  %v123 = vunpack.c.h.b16 %v15
  %v124 = vunpack.c.l.b16 %v16
  %v125 = vunpack.c.l.b16 %v17
  %v126 = vunpack.c.h.b16 %v17
  %v127 = vunpack.c.l.b16 %v18
  %v128 = vunpack.c.l.b16 %v19
  %v129 = vunpack.c.h.b16 %v19
  %v130 = vunpack.c.l.b16 %v20
  %v131 = vunpack.c.l.b16 %v21
  %v132 = vunpack.c.h.b16 %v21
  %v133 = vunpack.c.l.b16 %v22
  %v134 = vunpack.c.l.b16 %v23
  %v135 = vunpack.c.h.b16 %v23
  %v136 = vunpack.c.l.b16 %v24
  %v137 = vunpack.c.l.b16 %v25
  %v138 = vunpack.c.h.b16 %v25
  %v139 = vunpack.c.l.b16 %v26
  %v140 = vunpack.c.l.b16 %v27
  %v141 = vunpack.c.h.b16 %v27
  %v142 = vunpack.c.l.b16 %v28
  %v143 = vunpack.c.l.b16 %v29
  %v144 = vunpack.c.h.b16 %v29
  %v145 = vunpack.c.l.b16 %v30
  %v146 = vunpack.c.l.b16 %v31
  %v147 = vunpack.c.h.b16 %v31
  %v148 = vunpack.c.l.b16 %v32
  %v149 = vunpack.c.l.b16 %v33
  %v150 = vunpack.c.h.b16 %v33
  %v151 = vunpack.c.l.b16 %v34
  %v152 = vunpack.c.l.b16 %v35
  %v153 = vunpack.c.h.b16 %v35
  %v154 = vunpack.c.l.b16 %v36
  %v155 = vunpack.c.l.b16 %v37
  %v156 = vunpack.c.h.b16 %v37
  %v157 = vunpack.c.l.b16 %v38
  %v158 = vunpack.c.l.b16 %v39
  %v159 = vunpack.c.h.b16 %v39
  %v160 = vunpack.c.l.b16 %v40
  %v161 = vunpack.c.l.b16 %v41
  %v162 = vunpack.c.h.b16 %v41
  %v163 = vunpack.c.l.b16 %v42
  %v164 = vunpack.c.l.b16 %v43
  %v165 = vunpack.c.h.b16 %v43
  %v166 = vunpack.c.l.b16 %v44
  %v167 = vunpack.c.l.b16 %v45
  %v168 = vunpack.c.h.b16 %v45
  %v169 = vunpack.c.l.b16 %v46
  %v170 = vpack.c.b16 %v125, %v122
  %v171 = vpack.c.b16 %v126, %v123
  %v172 = vpack.c.b16 %v127, %v124
  %v173 = vpack.c.b16 %v131, %v128
  %v174 = vpack.c.b16 %v132, %v129
  %v175 = vpack.c.b16 %v133, %v130
  %v176 = vpack.c.b16 %v137, %v134
  %v177 = vpack.c.b16 %v138, %v135
  %v178 = vpack.c.b16 %v139, %v136
  %v179 = vpack.c.b16 %v143, %v140
  %v180 = vpack.c.b16 %v144, %v141
  %v181 = vpack.c.b16 %v145, %v142
  %v182 = vpack.c.b16 %v149, %v146
  %v183 = vpack.c.b16 %v150, %v147
  %v184 = vpack.c.b16 %v151, %v148
  %v185 = vpack.c.b16 %v155, %v152
  %v186 = vpack.c.b16 %v156, %v153
  %v187 = vpack.c.b16 %v157, %v154
  %v188 = vpack.c.b16 %v161, %v158
  %v189 = vpack.c.b16 %v162, %v159
  %v190 = vpack.c.b16 %v163, %v160
  %v191 = vpack.c.b16 %v167, %v164
  %v192 = vpack.c.b16 %v168, %v165
  %v193 = vpack.c.b16 %v169, %v166
  %v246 = vunpack.c.l.b16 %v47
  %v247 = vunpack.c.l.b16 %v48
  %v248 = vunpack.c.l.b16 %v49
  %v249 = vunpack.c.l.b16 %v50
  %v250 = vunpack.c.l.b16 %v51
  %v251 = vunpack.c.l.b16 %v52
  %v252 = vunpack.c.l.b16 %v53
  %v253 = vunpack.c.l.b16 %v54
  %v254 = vunpack.c.l.b16 %v55
  %v255 = vunpack.c.l.b16 %v56
  %v256 = vunpack.c.l.b16 %v57
  %v257 = vunpack.c.l.b16 %v58
  %v258 = vunpack.c.l.b16 %v59
  %v259 = vunpack.c.l.b16 %v60
  %v260 = vunpack.c.l.b16 %v61
  %v261 = vunpack.c.l.b16 %v62
  %v262 = vunpack.c.l.b16 %v63
  %v263 = vunpack.c.l.b16 %v64
  %v264 = vunpack.c.l.b16 %v65
  %v265 = vunpack.c.l.b16 %v66
  %v266 = vunpack.c.l.b16 %v67
  %v267 = vunpack.c.l.b16 %v68
  %v268 = vunpack.c.l.b16 %v69
  %v269 = vunpack.c.l.b16 %v70
  %v270 = vunpack.c.l.b16 %v71
  %v271 = vunpack.c.l.b16 %v72
  %v272 = vunpack.c.l.b16 %v73
  %v273 = vunpack.c.l.b16 %v74
  %v274 = vunpack.c.l.b16 %v75
  %v275 = vunpack.c.l.b16 %v76
  %v276 = vunpack.c.l.b16 %v77
  %v277 = vunpack.c.l.b16 %v78
  %v278 = vunpack.c.l.b16 %v79
  %v279 = vunpack.c.l.b16 %v80
  %v280 = vunpack.c.l.b16 %v81
  %v281 = vunpack.c.l.b16 %v82
  %v282 = vpack.c.b16 %v247, %v246
  %v283 = vpack.c.b16 %v249, %v248
  %v284 = vpack.c.b16 %v251, %v250
  %v285 = vpack.c.b16 %v253, %v252
  %v286 = vpack.c.b16 %v255, %v254
  %v287 = vpack.c.b16 %v257, %v256
  %v288 = vpack.c.b16 %v259, %v258
  %v289 = vpack.c.b16 %v261, %v260
  %v290 = vpack.c.b16 %v263, %v262
  %v291 = vpack.c.b16 %v265, %v264
  %v292 = vpack.c.b16 %v267, %v266
  %v293 = vpack.c.b16 %v269, %v268
  %v294 = vpack.c.b16 %v271, %v270
  %v295 = vpack.c.b16 %v273, %v272
  %v296 = vpack.c.b16 %v275, %v274
  %v297 = vpack.c.b16 %v277, %v276
  %v298 = vpack.c.b16 %v279, %v278
  %v299 = vpack.c.b16 %v281, %v280
  %vm318 = vcmask 261120
  %v320 = vsel %vm318, %v172, 0
  %v323 = vsel %vm318, %v175, 0
  %v326 = vsel %vm318, %v178, 0
  %v329 = vsel %vm318, %v181, 0
  %v332 = vsel %vm318, %v184, 0
  %v335 = vsel %vm318, %v187, 0
  %v338 = vsel %vm318, %v190, 0
  %v341 = vsel %vm318, %v193, 0
  %343 = vmatprep.subr.bf16.mxu0 0
  %344 = vmatpush1.bf16.msra.mxu0 %v282
  %345 = vmatprep.subr.bf16.mxu0 0
  %346 = vmatpush1.bf16.msra.mxu0 %v283
  %347 = vmatprep.subr.bf16.mxu0 0
  %348 = vmatpush1.bf16.msra.mxu0 %v284
  %349 = vmatprep.subr.bf16.mxu0 0
  %350 = vmatpush1.bf16.msra.mxu0 %v285
  %351 = vmatprep.subr.bf16.mxu0 0
  %352 = vmatpush1.bf16.msra.mxu0 %v286
  %353 = vmatprep.subr.bf16.mxu0 0
  %354 = vmatpush1.bf16.msra.mxu0 %v287
  %355 = vmatprep.subr.bf16.mxu0 0
  %356 = vmatpush1.bf16.msra.mxu0 %v288
  %357 = vmatprep.subr.bf16.mxu0 0
  %358 = vmatpush1.bf16.msra.mxu0 %v289
  %359 = vmatprep.subr.bf16.mxu0 0
  %360 = vmatpush1.bf16.msra.mxu0 %v290
  %361 = vmatprep.subr.bf16.mxu0 0
  %362 = vmatpush1.bf16.msra.mxu0 %v291
  %363 = vmatprep.subr.bf16.mxu0 0
  %364 = vmatpush1.bf16.msra.mxu0 %v292
  %365 = vmatprep.subr.bf16.mxu0 0
  %366 = vmatpush1.bf16.msra.mxu0 %v293
  %367 = vmatprep.subr.bf16.mxu0 0
  %368 = vmatpush1.bf16.msra.mxu0 %v294
  %369 = vmatprep.subr.bf16.mxu0 0
  %370 = vmatpush1.bf16.msra.mxu0 %v295
  %371 = vmatprep.subr.bf16.mxu0 0
  %372 = vmatpush1.bf16.msra.mxu0 %v296
  %373 = vmatprep.subr.bf16.mxu0 0
  %374 = vmatpush1.bf16.msra.mxu0 %v297
  %375 = vmatprep.mubr.bf16.mxu0 %v171
  %376 = vmatmul.mubr.bf16.gmra.mrb[0].mxu0 %v170
  %v377 = vpop.f32.mrb[0].mxu0
  %v378 = vadd.f32 %v88, %v377
  %v379 = vpop.f32.mrb[0].mxu0
  %v380 = vpop.f32.mrb[0].mxu0
  %v381 = vadd.f32 %v88, %v380
  %v382 = vpop.f32.mrb[0].mxu0
  %383 = vmatprep.mubr.bf16.mxu0 %v174
  %384 = vmatmul.mubr.bf16.gmra.mrb[0].mxu0 %v173
  %v385 = vpop.f32.mrb[0].mxu0
  %v386 = vadd.f32 %v88, %v385
  %v387 = vpop.f32.mrb[0].mxu0
  %v388 = vpop.f32.mrb[0].mxu0
  %v389 = vadd.f32 %v88, %v388
  %v390 = vpop.f32.mrb[0].mxu0
  %391 = vmatprep.mubr.bf16.mxu0 %v177
  %392 = vmatmul.mubr.bf16.gmra.mrb[0].mxu0 %v176
  %v393 = vpop.f32.mrb[0].mxu0
  %v394 = vadd.f32 %v88, %v393
  %v395 = vpop.f32.mrb[0].mxu0
  %v396 = vpop.f32.mrb[0].mxu0
  %v397 = vadd.f32 %v88, %v396
  %v398 = vpop.f32.mrb[0].mxu0
  %399 = vmatprep.mubr.bf16.mxu0 %v180
  %400 = vmatmul.mubr.bf16.gmra.mrb[0].mxu0 %v179
  %v401 = vpop.f32.mrb[0].mxu0
  %v402 = vadd.f32 %v88, %v401
  %v403 = vpop.f32.mrb[0].mxu0
  %v404 = vpop.f32.mrb[0].mxu0
  %v405 = vadd.f32 %v88, %v404
  %v406 = vpop.f32.mrb[0].mxu0
  %407 = vmatprep.mubr.bf16.mxu0 %v183
  %408 = vmatmul.mubr.bf16.gmra.mrb[0].mxu0 %v182
  %v409 = vpop.f32.mrb[0].mxu0
  %v410 = vadd.f32 %v88, %v409
  %v411 = vpop.f32.mrb[0].mxu0
  %v412 = vpop.f32.mrb[0].mxu0
  %v413 = vadd.f32 %v88, %v412
  %v414 = vpop.f32.mrb[0].mxu0
  %415 = vmatprep.mubr.bf16.mxu0 %v186
  %416 = vmatmul.mubr.bf16.gmra.mrb[0].mxu0 %v185
  %v417 = vpop.f32.mrb[0].mxu0
  %v418 = vadd.f32 %v88, %v417
  %v419 = vpop.f32.mrb[0].mxu0
  %v420 = vpop.f32.mrb[0].mxu0
  %v421 = vadd.f32 %v88, %v420
  %v422 = vpop.f32.mrb[0].mxu0
  %423 = vmatprep.mubr.bf16.mxu0 %v189
  %424 = vmatmul.mubr.bf16.gmra.mrb[0].mxu0 %v188
  %v425 = vpop.f32.mrb[0].mxu0
  %v426 = vadd.f32 %v88, %v425
  %v427 = vpop.f32.mrb[0].mxu0
  %v428 = vpop.f32.mrb[0].mxu0
  %v429 = vadd.f32 %v88, %v428
  %v430 = vpop.f32.mrb[0].mxu0
  %431 = vmatprep.mubr.bf16.mxu0 %v192
  %432 = vmatmul.mubr.bf16.gmra.mrb[0].mxu0 %v191
  %v433 = vpop.f32.mrb[0].mxu0
  %v434 = vadd.f32 %v88, %v433
  %v435 = vpop.f32.mrb[0].mxu0
  %v436 = vpop.f32.mrb[0].mxu0
  %v437 = vadd.f32 %v88, %v436
  %v438 = vpop.f32.mrb[0].mxu0
  %439 = vdwg.mxu0
  %440 = vmatprep.subr.bf16.mxu0 0
  %441 = vmatpush1.bf16.msra.mxu0 %v298
  %442 = vmatprep.subr.bf16.mxu0 0
  %443 = vmatpush1.bf16.msra.mxu0 %v299
  %444 = vmatprep.subr.bf16.mxu0 0
  %445 = vmatpush1.bf16.msra.mxu0 0
  %446 = vmatprep.subr.bf16.mxu0 0
  %447 = vmatpush1.bf16.msra.mxu0 0
  %448 = vmatprep.subr.bf16.mxu0 0
  %449 = vmatpush1.bf16.msra.mxu0 0
  %450 = vmatprep.subr.bf16.mxu0 0
  %451 = vmatpush1.bf16.msra.mxu0 0
  %452 = vmatprep.subr.bf16.mxu0 0
  %453 = vmatpush1.bf16.msra.mxu0 0
  %454 = vmatprep.subr.bf16.mxu0 0
  %455 = vmatpush1.bf16.msra.mxu0 0
  %456 = vmatprep.subr.bf16.mxu0 0
  %457 = vmatpush1.bf16.msra.mxu0 0
  %458 = vmatprep.subr.bf16.mxu0 0
  %459 = vmatpush1.bf16.msra.mxu0 0
  %460 = vmatprep.subr.bf16.mxu0 0
  %461 = vmatpush1.bf16.msra.mxu0 0
  %462 = vmatprep.subr.bf16.mxu0 0
  %463 = vmatpush1.bf16.msra.mxu0 0
  %464 = vmatprep.subr.bf16.mxu0 0
  %465 = vmatpush1.bf16.msra.mxu0 0
  %466 = vmatprep.subr.bf16.mxu0 0
  %467 = vmatpush1.bf16.msra.mxu0 0
  %468 = vmatprep.subr.bf16.mxu0 0
  %469 = vmatpush1.bf16.msra.mxu0 0
  %470 = vmatprep.subr.bf16.mxu0 0
  %471 = vmatpush1.bf16.msra.mxu0 0
  %472 = vmatprep.mubr.bf16.mxu0 0
  %473 = vmatmul.mubr.bf16.gmra.mrb[0].mxu0 %v320
  %v474 = vpop.f32.mrb[0].mxu0
  %v475 = vadd.f32 %v378, %v474
  %v476 = vpop.f32.mrb[0].mxu0
  %v477 = vpop.f32.mrb[0].mxu0
  %v478 = vadd.f32 %v381, %v477
  %v479 = vpop.f32.mrb[0].mxu0
  %480 = vmatprep.mubr.bf16.mxu0 0
  %481 = vmatmul.mubr.bf16.gmra.mrb[0].mxu0 %v323
  %v482 = vpop.f32.mrb[0].mxu0
  %v483 = vadd.f32 %v386, %v482
  %v484 = vpop.f32.mrb[0].mxu0
  %v485 = vpop.f32.mrb[0].mxu0
  %v486 = vadd.f32 %v389, %v485
  %v487 = vpop.f32.mrb[0].mxu0
  %488 = vmatprep.mubr.bf16.mxu0 0
  %489 = vmatmul.mubr.bf16.gmra.mrb[0].mxu0 %v326
  %v490 = vpop.f32.mrb[0].mxu0
  %v491 = vadd.f32 %v394, %v490
  %v492 = vpop.f32.mrb[0].mxu0
  %v493 = vpop.f32.mrb[0].mxu0
  %v494 = vadd.f32 %v397, %v493
  %v495 = vpop.f32.mrb[0].mxu0
  %496 = vmatprep.mubr.bf16.mxu0 0
  %497 = vmatmul.mubr.bf16.gmra.mrb[0].mxu0 %v329
  %v498 = vpop.f32.mrb[0].mxu0
  %v499 = vadd.f32 %v402, %v498
  %v500 = vpop.f32.mrb[0].mxu0
  %v501 = vpop.f32.mrb[0].mxu0
  %v502 = vadd.f32 %v405, %v501
  %v503 = vpop.f32.mrb[0].mxu0
  %504 = vmatprep.mubr.bf16.mxu0 0
  %505 = vmatmul.mubr.bf16.gmra.mrb[0].mxu0 %v332
  %v506 = vpop.f32.mrb[0].mxu0
  %v507 = vadd.f32 %v410, %v506
  %v508 = vpop.f32.mrb[0].mxu0
  %v509 = vpop.f32.mrb[0].mxu0
  %v510 = vadd.f32 %v413, %v509
  %v511 = vpop.f32.mrb[0].mxu0
  %512 = vmatprep.mubr.bf16.mxu0 0
  %513 = vmatmul.mubr.bf16.gmra.mrb[0].mxu0 %v335
  %v514 = vpop.f32.mrb[0].mxu0
  %v515 = vadd.f32 %v418, %v514
  %v516 = vpop.f32.mrb[0].mxu0
  %v517 = vpop.f32.mrb[0].mxu0
  %v518 = vadd.f32 %v421, %v517
  %v519 = vpop.f32.mrb[0].mxu0
  %520 = vmatprep.mubr.bf16.mxu0 0
  %521 = vmatmul.mubr.bf16.gmra.mrb[0].mxu0 %v338
  %v522 = vpop.f32.mrb[0].mxu0
  %v523 = vadd.f32 %v426, %v522
  %v524 = vpop.f32.mrb[0].mxu0
  %v525 = vpop.f32.mrb[0].mxu0
  %v526 = vadd.f32 %v429, %v525
  %v527 = vpop.f32.mrb[0].mxu0
  %528 = vmatprep.mubr.bf16.mxu0 0
  %529 = vmatmul.mubr.bf16.gmra.mrb[0].mxu0 %v341
  %v530 = vpop.f32.mrb[0].mxu0
  %v531 = vadd.f32 %v434, %v530
  %v532 = vpop.f32.mrb[0].mxu0
  %v533 = vpop.f32.mrb[0].mxu0
  %v534 = vadd.f32 %v437, %v533
  %v535 = vpop.f32.mrb[0].mxu0
  %536 = vdwg.mxu0
  %v537 = vmax.f32 %v475, 0.0
  %v538 = vmax.f32 %v478, 0.0
  %v539 = vmax.f32 %v483, 0.0
  %v540 = vmax.f32 %v486, 0.0
  %v541 = vmax.f32 %v491, 0.0
  %v542 = vmax.f32 %v494, 0.0
  %v543 = vmax.f32 %v499, 0.0
  %v544 = vmax.f32 %v502, 0.0
  %v545 = vmax.f32 %v507, 0.0
  %v546 = vmax.f32 %v510, 0.0
  %v547 = vmax.f32 %v515, 0.0
  %v548 = vmax.f32 %v518, 0.0
  %v549 = vmax.f32 %v523, 0.0
  %v550 = vmax.f32 %v526, 0.0
  %v551 = vmax.f32 %v531, 0.0
  %v552 = vmax.f32 %v534, 0.0
  %v553 = vpack.c.bf16 %v538, %v537
  %v554 = vpack.c.bf16 %v540, %v539
  %v555 = vpack.c.bf16 %v542, %v541
  %v556 = vpack.c.bf16 %v544, %v543
  %v557 = vpack.c.bf16 %v546, %v545
  %v558 = vpack.c.bf16 %v548, %v547
  %v559 = vpack.c.bf16 %v550, %v549
  %v560 = vpack.c.bf16 %v552, %v551
  %v569 = vunpack.c.l.b16 %v553
  %v570 = vunpack.c.h.b16 %v553
  %v571 = vunpack.c.l.b16 %v554
  %v572 = vunpack.c.h.b16 %v554
  %v573 = vunpack.c.l.b16 %v555
  %v574 = vunpack.c.h.b16 %v555
  %v575 = vunpack.c.l.b16 %v556
  %v576 = vunpack.c.h.b16 %v556
  %v577 = vunpack.c.l.b16 %v557
  %v578 = vunpack.c.h.b16 %v557
  %v579 = vunpack.c.l.b16 %v558
  %v580 = vunpack.c.h.b16 %v558
  %v581 = vunpack.c.l.b16 %v559
  %v582 = vunpack.c.h.b16 %v559
  %v583 = vunpack.c.l.b16 %v560
  %v584 = vunpack.c.h.b16 %v560
  %v585 = vpack.c.b16 %v569, %v569
  %v586 = vpack.c.b16 %v570, %v570
  %v587 = vpack.c.b16 %v571, %v571
  %v588 = vpack.c.b16 %v572, %v572
  %v589 = vpack.c.b16 %v573, %v573
  %v590 = vpack.c.b16 %v574, %v574
  %v591 = vpack.c.b16 %v575, %v575
  %v592 = vpack.c.b16 %v576, %v576
  %v593 = vpack.c.b16 %v577, %v577
  %v594 = vpack.c.b16 %v578, %v578
  %v595 = vpack.c.b16 %v579, %v579
  %v596 = vpack.c.b16 %v580, %v580
  %v597 = vpack.c.b16 %v581, %v581
  %v598 = vpack.c.b16 %v582, %v582
  %v599 = vpack.c.b16 %v583, %v583
  %v600 = vpack.c.b16 %v584, %v584
  %vm617 = vcmask 257024
  %618 = vst.msk [vmem:[%s3] sm:$0xf] %vm617, %v585
  %619 = vst.msk [vmem:[%s3 + $0x4] sm:$0xf] %vm617, %v586
  %620 = vst.msk [vmem:[%s3 + $0x8] sm:$0xf] %vm617, %v587
  %621 = vst.msk [vmem:[%s3 + $0xc] sm:$0xf] %vm617, %v588
  %622 = vst.msk [vmem:[%s3 + $0x10] sm:$0xf] %vm617, %v589
  %623 = vst.msk [vmem:[%s3 + $0x14] sm:$0xf] %vm617, %v590
  %624 = vst.msk [vmem:[%s3 + $0x18] sm:$0xf] %vm617, %v591
  %625 = vst.msk [vmem:[%s3 + $0x1c] sm:$0xf] %vm617, %v592
  %626 = vst.msk [vmem:[%s3 + $0x20] sm:$0xf] %vm617, %v593
  %627 = vst.msk [vmem:[%s3 + $0x24] sm:$0xf] %vm617, %v594
  %628 = vst.msk [vmem:[%s3 + $0x28] sm:$0xf] %vm617, %v595
  %629 = vst.msk [vmem:[%s3 + $0x2c] sm:$0xf] %vm617, %v596
  %630 = vst.msk [vmem:[%s3 + $0x30] sm:$0xf] %vm617, %v597
  %631 = vst.msk [vmem:[%s3 + $0x34] sm:$0xf] %vm617, %v598
  %632 = vst.msk [vmem:[%s3 + $0x38] sm:$0xf] %vm617, %v599
  %633 = vst.msk [vmem:[%s3 + $0x3c] sm:$0xf] %vm617, %v600
  // Predicated region
  $region14: #{two_branch_net_forward.14} parent=0 // pred_check
    _
  $region15: #{two_branch_net_forward.14} parent=0 // pred_check_branch
    %635 = sbr.rel (0) target = $region17
  $region16: #{two_branch_net_forward.14} parent=0 // pred_region
    _
  $region17: #{two_branch_net_forward.14} parent=0 // pred_fallthru
    _
  // Predicated region
  $region18: #{two_branch_net_forward.14} parent=0 // pred_check
    _
  $region19: #{two_branch_net_forward.14} parent=0 // pred_check_branch
    %637 = sbr.rel (0) target = $region21
  $region20: #{two_branch_net_forward.14} parent=0 // pred_region
    _
  $region21: #{two_branch_net_forward.14} parent=0 // pred_fallthru
    _

// kernel: two_branch_net_forward.15
$region0: #{two_branch_net_forward.15}
  #allocation0 [shape = 'u32[]', space=smem, size = 0x4, offset = 0x4, fixed_abs, tag = 'smem constant byte address 0x4 - core index']
  #allocation1 [shape = 'u32[144,128]{1,0:T(1,128)}', space=vmem, size = 0x12000, scoped, tag = 'internal scratch']
  %s0 = inlined_call_operand.vmem [shape: bf16[32,288], index: 0, kind: input, shape index: {}]
  %s1 = inlined_call_operand.vmem [shape: bf16[288,32], index: 1, kind: input, shape index: {}]
  %s2 = inlined_call_operand.vmem [shape: f32[1,32], index: 2, kind: input, shape index: {}]
  %s3 = inlined_call_operand.vmem [shape: bf16[32,32], index: 3, kind: output, shape index: {}]
  %s4 = sld [smem:[#allocation0]]
  $region22: #{two_branch_net_forward.15} parent=0
    _
  %s6 = ssub.s32 1, %s4
  %s7 = scalar_select 0, %s6, %s4
  // Predicated region
  $region2: #{two_branch_net_forward.15} parent=0 // pred_check
    _
  $region3: #{two_branch_net_forward.15} parent=0 // pred_check_branch
    %9 = sbr.rel (0) target = $region5
  $region4: #{two_branch_net_forward.15} parent=0 // pred_region
    _
  $region5: #{two_branch_net_forward.15} parent=0 // pred_fallthru
    _
  // Predicated region
  $region6: #{two_branch_net_forward.15} parent=0 // pred_check
    _
  $region7: #{two_branch_net_forward.15} parent=0 // pred_check_branch
    %11 = sbr.rel (0) target = $region9
  $region8: #{two_branch_net_forward.15} parent=0 // pred_region
    _
  $region9: #{two_branch_net_forward.15} parent=0 // pred_fallthru
    _
  // Predicated region
  $region10: #{two_branch_net_forward.15} parent=0 // pred_check
    _
  $region11: #{two_branch_net_forward.15} parent=0 // pred_check_branch
    %13 = sbr.rel (0) target = $region13
  $region12: #{two_branch_net_forward.15} parent=0 // pred_region
    _
  $region13: #{two_branch_net_forward.15} parent=0 // pred_fallthru
    _
  %v15 = vld [vmem:[%s0] sm:$0xff]
  %v16 = vld [vmem:[%s0 + $0x8] sm:$0xf]
  %v17 = vld [vmem:[%s0 + $0xc] sm:$0xff]
  %v18 = vld [vmem:[%s0 + $0x14] sm:$0xf]
  %v19 = vld [vmem:[%s0 + $0x18] sm:$0xff]
  %v20 = vld [vmem:[%s0 + $0x20] sm:$0xf]
  %v21 = vld [vmem:[%s0 + $0x24] sm:$0xff]
  %v22 = vld [vmem:[%s0 + $0x2c] sm:$0xf]
  %v23 = vld [vmem:[%s1] sm:$0xf]
  %v24 = vld [vmem:[%s1 + $0x4] sm:$0xf]
  %v25 = vld [vmem:[%s1 + $0x8] sm:$0xf]
  %v26 = vld [vmem:[%s1 + $0xc] sm:$0xf]
  %v27 = vld [vmem:[%s1 + $0x10] sm:$0xf]
  %v28 = vld [vmem:[%s1 + $0x14] sm:$0xf]
  %v29 = vld [vmem:[%s1 + $0x18] sm:$0xf]
  %v30 = vld [vmem:[%s1 + $0x1c] sm:$0xf]
  %v31 = vld [vmem:[%s1 + $0x20] sm:$0xf]
  %v32 = vld [vmem:[%s1 + $0x24] sm:$0xf]
  %v33 = vld [vmem:[%s1 + $0x28] sm:$0xf]
  %v34 = vld [vmem:[%s1 + $0x2c] sm:$0xf]
  %v35 = vld [vmem:[%s1 + $0x30] sm:$0xf]
  %v36 = vld [vmem:[%s1 + $0x34] sm:$0xf]
  %v37 = vld [vmem:[%s1 + $0x38] sm:$0xf]
  %v38 = vld [vmem:[%s1 + $0x3c] sm:$0xf]
  %v39 = vld [vmem:[%s1 + $0x40] sm:$0xf]
  %v40 = vld [vmem:[%s1 + $0x44] sm:$0xf]
  %v41 = vld [vmem:[%s1 + $0x48] sm:$0xf]
  %v42 = vld [vmem:[%s1 + $0x4c] sm:$0xf]
  %v43 = vld [vmem:[%s1 + $0x50] sm:$0xf]
  %v44 = vld [vmem:[%s1 + $0x54] sm:$0xf]
  %v45 = vld [vmem:[%s1 + $0x58] sm:$0xf]
  %v46 = vld [vmem:[%s1 + $0x5c] sm:$0xf]
  %v47 = vld [vmem:[%s1 + $0x60] sm:$0xf]
  %v48 = vld [vmem:[%s1 + $0x64] sm:$0xf]
  %v49 = vld [vmem:[%s1 + $0x68] sm:$0xf]
  %v50 = vld [vmem:[%s1 + $0x6c] sm:$0xf]
  %v51 = vld [vmem:[%s1 + $0x70] sm:$0xf]
  %v52 = vld [vmem:[%s1 + $0x74] sm:$0xf]
  %v53 = vld [vmem:[%s1 + $0x78] sm:$0xf]
  %v54 = vld [vmem:[%s1 + $0x7c] sm:$0xf]
  %v55 = vld [vmem:[%s1 + $0x80] sm:$0xf]
  %v56 = vld [vmem:[%s1 + $0x84] sm:$0xf]
  %v57 = vld [vmem:[%s1 + $0x88] sm:$0xf]
  %v58 = vld [vmem:[%s1 + $0x8c] sm:$0xf]
  %v59 = vld [vmem:[%s2] sm:$0x1]
  %v61 = vlaneseq
  %v62 = vshrl.u32 %v61, 7
  %v63 = vsub.s32 0, %v62
  %v64 = vrot.slane %v59, %v63
  %v74 = vunpack.c.l.b16 %v15
  %v75 = vunpack.c.h.b16 %v15
  %v76 = vunpack.c.l.b16 %v16
  %v77 = vunpack.c.l.b16 %v17
  %v78 = vunpack.c.h.b16 %v17
  %v79 = vunpack.c.l.b16 %v18
  %v80 = vunpack.c.l.b16 %v19
  %v81 = vunpack.c.h.b16 %v19
  %v82 = vunpack.c.l.b16 %v20
  %v83 = vunpack.c.l.b16 %v21
  %v84 = vunpack.c.h.b16 %v21
  %v85 = vunpack.c.l.b16 %v22
  %v86 = vpack.c.b16 %v77, %v74
  %v87 = vpack.c.b16 %v78, %v75
  %v88 = vpack.c.b16 %v79, %v76
  %v89 = vpack.c.b16 %v83, %v80
  %v90 = vpack.c.b16 %v84, %v81
  %v91 = vpack.c.b16 %v85, %v82
  %v132 = vunpack.c.l.b16 %v23
  %v133 = vunpack.c.l.b16 %v24
  %v134 = vunpack.c.l.b16 %v25
  %v135 = vunpack.c.l.b16 %v26
  %v136 = vunpack.c.l.b16 %v27
  %v137 = vunpack.c.l.b16 %v28
  %v138 = vunpack.c.l.b16 %v29
  %v139 = vunpack.c.l.b16 %v30
  %v140 = vunpack.c.l.b16 %v31
  %v141 = vunpack.c.l.b16 %v32
  %v142 = vunpack.c.l.b16 %v33
  %v143 = vunpack.c.l.b16 %v34
  %v144 = vunpack.c.l.b16 %v35
  %v145 = vunpack.c.l.b16 %v36
  %v146 = vunpack.c.l.b16 %v37
  %v147 = vunpack.c.l.b16 %v38
  %v148 = vunpack.c.l.b16 %v39
  %v149 = vunpack.c.l.b16 %v40
  %v150 = vunpack.c.l.b16 %v41
  %v151 = vunpack.c.l.b16 %v42
  %v152 = vunpack.c.l.b16 %v43
  %v153 = vunpack.c.l.b16 %v44
  %v154 = vunpack.c.l.b16 %v45
  %v155 = vunpack.c.l.b16 %v46
  %v156 = vunpack.c.l.b16 %v47
  %v157 = vunpack.c.l.b16 %v48
  %v158 = vunpack.c.l.b16 %v49
  %v159 = vunpack.c.l.b16 %v50
  %v160 = vunpack.c.l.b16 %v51
  %v161 = vunpack.c.l.b16 %v52
  %v162 = vunpack.c.l.b16 %v53
  %v163 = vunpack.c.l.b16 %v54
  %v164 = vunpack.c.l.b16 %v55
  %v165 = vunpack.c.l.b16 %v56
  %v166 = vunpack.c.l.b16 %v57
  %v167 = vunpack.c.l.b16 %v58
  %v168 = vpack.c.b16 %v133, %v132
  %v169 = vpack.c.b16 %v135, %v134
  %v170 = vpack.c.b16 %v137, %v136
  %v171 = vpack.c.b16 %v139, %v138
  %v172 = vpack.c.b16 %v141, %v140
  %v173 = vpack.c.b16 %v143, %v142
  %v174 = vpack.c.b16 %v145, %v144
  %v175 = vpack.c.b16 %v147, %v146
  %v176 = vpack.c.b16 %v149, %v148
  %v177 = vpack.c.b16 %v151, %v150
  %v178 = vpack.c.b16 %v153, %v152
  %v179 = vpack.c.b16 %v155, %v154
  %v180 = vpack.c.b16 %v157, %v156
  %v181 = vpack.c.b16 %v159, %v158
  %v182 = vpack.c.b16 %v161, %v160
  %v183 = vpack.c.b16 %v163, %v162
  %v184 = vpack.c.b16 %v165, %v164
  %v185 = vpack.c.b16 %v167, %v166
  %vm204 = vcmask 261120
  %v206 = vsel %vm204, %v88, 0
  %v209 = vsel %vm204, %v91, 0
  %211 = vmatprep.subr.bf16.mxu0 0
  %212 = vmatpush1.bf16.msra.mxu0 %v168
  %213 = vmatprep.subr.bf16.mxu0 0
  %214 = vmatpush1.bf16.msra.mxu0 %v169
  %215 = vmatprep.subr.bf16.mxu0 0
  %216 = vmatpush1.bf16.msra.mxu0 %v170
  %217 = vmatprep.subr.bf16.mxu0 0
  %218 = vmatpush1.bf16.msra.mxu0 %v171
  %219 = vmatprep.subr.bf16.mxu0 0
  %220 = vmatpush1.bf16.msra.mxu0 %v172
  %221 = vmatprep.subr.bf16.mxu0 0
  %222 = vmatpush1.bf16.msra.mxu0 %v173
  %223 = vmatprep.subr.bf16.mxu0 0
  %224 = vmatpush1.bf16.msra.mxu0 %v174
  %225 = vmatprep.subr.bf16.mxu0 0
  %226 = vmatpush1.bf16.msra.mxu0 %v175
  %227 = vmatprep.subr.bf16.mxu0 0
  %228 = vmatpush1.bf16.msra.mxu0 %v176
  %229 = vmatprep.subr.bf16.mxu0 0
  %230 = vmatpush1.bf16.msra.mxu0 %v177
  %231 = vmatprep.subr.bf16.mxu0 0
  %232 = vmatpush1.bf16.msra.mxu0 %v178
  %233 = vmatprep.subr.bf16.mxu0 0
  %234 = vmatpush1.bf16.msra.mxu0 %v179
  %235 = vmatprep.subr.bf16.mxu0 0
  %236 = vmatpush1.bf16.msra.mxu0 %v180
  %237 = vmatprep.subr.bf16.mxu0 0
  %238 = vmatpush1.bf16.msra.mxu0 %v181
  %239 = vmatprep.subr.bf16.mxu0 0
  %240 = vmatpush1.bf16.msra.mxu0 %v182
  %241 = vmatprep.subr.bf16.mxu0 0
  %242 = vmatpush1.bf16.msra.mxu0 %v183
  %243 = vmatprep.mubr.bf16.mxu0 %v87
  %244 = vmatmul.mubr.bf16.gmra.mrb[0].mxu0 %v86
  %v245 = vpop.f32.mrb[0].mxu0
  %v246 = vadd.f32 %v64, %v245
  %v247 = vpop.f32.mrb[0].mxu0
  %v248 = vpop.f32.mrb[0].mxu0
  %v249 = vadd.f32 %v64, %v248
  %v250 = vpop.f32.mrb[0].mxu0
  %251 = vmatprep.mubr.bf16.mxu0 %v90
  %252 = vmatmul.mubr.bf16.gmra.mrb[0].mxu0 %v89
  %v253 = vpop.f32.mrb[0].mxu0
  %v254 = vadd.f32 %v64, %v253
  %v255 = vpop.f32.mrb[0].mxu0
  %v256 = vpop.f32.mrb[0].mxu0
  %v257 = vadd.f32 %v64, %v256
  %v258 = vpop.f32.mrb[0].mxu0
  %259 = vdwg.mxu0
  %260 = vmatprep.subr.bf16.mxu0 0
  %261 = vmatpush1.bf16.msra.mxu0 %v184
  %262 = vmatprep.subr.bf16.mxu0 0
  %263 = vmatpush1.bf16.msra.mxu0 %v185
  %264 = vmatprep.subr.bf16.mxu0 0
  %265 = vmatpush1.bf16.msra.mxu0 0
  %266 = vmatprep.subr.bf16.mxu0 0
  %267 = vmatpush1.bf16.msra.mxu0 0
  %268 = vmatprep.subr.bf16.mxu0 0
  %269 = vmatpush1.bf16.msra.mxu0 0
  %270 = vmatprep.subr.bf16.mxu0 0
  %271 = vmatpush1.bf16.msra.mxu0 0
  %272 = vmatprep.subr.bf16.mxu0 0
  %273 = vmatpush1.bf16.msra.mxu0 0
  %274 = vmatprep.subr.bf16.mxu0 0
  %275 = vmatpush1.bf16.msra.mxu0 0
  %276 = vmatprep.subr.bf16.mxu0 0
  %277 = vmatpush1.bf16.msra.mxu0 0
  %278 = vmatprep.subr.bf16.mxu0 0
  %279 = vmatpush1.bf16.msra.mxu0 0
  %280 = vmatprep.subr.bf16.mxu0 0
  %281 = vmatpush1.bf16.msra.mxu0 0
  %282 = vmatprep.subr.bf16.mxu0 0
  %283 = vmatpush1.bf16.msra.mxu0 0
  %284 = vmatprep.subr.bf16.mxu0 0
  %285 = vmatpush1.bf16.msra.mxu0 0
  %286 = vmatprep.subr.bf16.mxu0 0
  %287 = vmatpush1.bf16.msra.mxu0 0
  %288 = vmatprep.subr.bf16.mxu0 0
  %289 = vmatpush1.bf16.msra.mxu0 0
  %290 = vmatprep.subr.bf16.mxu0 0
  %291 = vmatpush1.bf16.msra.mxu0 0
  %292 = vmatprep.mubr.bf16.mxu0 0
  %293 = vmatmul.mubr.bf16.gmra.mrb[0].mxu0 %v206
  %v294 = vpop.f32.mrb[0].mxu0
  %v295 = vadd.f32 %v246, %v294
  %v296 = vpop.f32.mrb[0].mxu0
  %v297 = vpop.f32.mrb[0].mxu0
  %v298 = vadd.f32 %v249, %v297
  %v299 = vpop.f32.mrb[0].mxu0
  %300 = vmatprep.mubr.bf16.mxu0 0
  %301 = vmatmul.mubr.bf16.gmra.mrb[0].mxu0 %v209
  %v302 = vpop.f32.mrb[0].mxu0
  %v303 = vadd.f32 %v254, %v302
  %v304 = vpop.f32.mrb[0].mxu0
  %v305 = vpop.f32.mrb[0].mxu0
  %v306 = vadd.f32 %v257, %v305
  %v307 = vpop.f32.mrb[0].mxu0
  %308 = vdwg.mxu0
  %v309 = vmax.f32 %v295, 0.0
  %v310 = vmax.f32 %v298, 0.0
  %v311 = vmax.f32 %v303, 0.0
  %v312 = vmax.f32 %v306, 0.0
  %v313 = vpack.c.bf16 %v310, %v309
  %v314 = vpack.c.bf16 %v312, %v311
  %v317 = vunpack.c.l.b16 %v313
  %v318 = vunpack.c.h.b16 %v313
  %v319 = vunpack.c.l.b16 %v314
  %v320 = vunpack.c.h.b16 %v314
  %v321 = vpack.c.b16 %v317, %v317
  %v322 = vpack.c.b16 %v318, %v318
  %v323 = vpack.c.b16 %v319, %v319
  %v324 = vpack.c.b16 %v320, %v320
  %vm329 = vcmask 257024
  %330 = vst.msk [vmem:[%s3] sm:$0xf] %vm329, %v321
  %331 = vst.msk [vmem:[%s3 + $0x4] sm:$0xf] %vm329, %v322
  %332 = vst.msk [vmem:[%s3 + $0x8] sm:$0xf] %vm329, %v323
  %333 = vst.msk [vmem:[%s3 + $0xc] sm:$0xf] %vm329, %v324
  // Predicated region
  $region14: #{two_branch_net_forward.15} parent=0 // pred_check
    _
  $region15: #{two_branch_net_forward.15} parent=0 // pred_check_branch
    %335 = sbr.rel (0) target = $region17
  $region16: #{two_branch_net_forward.15} parent=0 // pred_region
    _
  $region17: #{two_branch_net_forward.15} parent=0 // pred_fallthru
    _
  // Predicated region
  $region18: #{two_branch_net_forward.15} parent=0 // pred_check
    _
  $region19: #{two_branch_net_forward.15} parent=0 // pred_check_branch
    %337 = sbr.rel (0) target = $region21
  $region20: #{two_branch_net_forward.15} parent=0 // pred_region
    _
  $region21: #{two_branch_net_forward.15} parent=0 // pred_fallthru
    _

// kernel: two_branch_net_forward.17
$region0: #{two_branch_net_forward.17}
  #allocation0 [shape = 'u32[]', space=smem, size = 0x4, offset = 0x4, fixed_abs, tag = 'smem constant byte address 0x4 - core index']
  #allocation1 [shape = 'u32[144,128]{1,0:T(1,128)}', space=vmem, size = 0x12000, scoped, tag = 'internal scratch']
  %s0 = inlined_call_operand.vmem [shape: bf16[8,1568], index: 0, kind: input, shape index: {}]
  %s1 = inlined_call_operand.vmem [shape: bf16[1568,256], index: 1, kind: input, shape index: {}]
  %s2 = inlined_call_operand.vmem [shape: f32[1,256], index: 2, kind: input, shape index: {}]
  %s3 = inlined_call_operand.vmem [shape: bf16[256,256], index: 3, kind: input, shape index: {}]
  %s4 = inlined_call_operand.vmem [shape: f32[1,256], index: 4, kind: input, shape index: {}]
  %s5 = inlined_call_operand.vmem [shape: bf16[256,16], index: 5, kind: input, shape index: {}]
  %s6 = inlined_call_operand.vmem [shape: f32[1,16], index: 6, kind: input, shape index: {}]
  %s7 = inlined_call_operand.vmem [shape: bf16[1568,256], index: 7, kind: input, shape index: {}]
  %s8 = inlined_call_operand.vmem [shape: f32[1,256], index: 8, kind: input, shape index: {}]
  %s9 = inlined_call_operand.vmem [shape: bf16[256,256], index: 9, kind: input, shape index: {}]
  %s10 = inlined_call_operand.vmem [shape: f32[1,256], index: 10, kind: input, shape index: {}]
  %s11 = inlined_call_operand.vmem [shape: bf16[256,4], index: 11, kind: input, shape index: {}]
  %s12 = inlined_call_operand.vmem [shape: f32[1,4], index: 12, kind: input, shape index: {}]
  %s13 = inlined_call_operand.vmem [shape: f32[8,16], index: 13, kind: output, shape index: {0}]
  %s14 = inlined_call_operand.vmem [shape: f32[8,4], index: 14, kind: output, shape index: {1}]
  %15 = xla_tuple %s13, %s14
  %s16 = sld [smem:[#allocation0]]
  $region70: #{two_branch_net_forward.17} parent=0
    _
  %s18 = ssub.s32 1, %s16
  %s19 = scalar_select 0, %s18, %s16
  // Predicated region
  $region2: #{two_branch_net_forward.17} parent=0 // pred_check
    _
  $region3: #{two_branch_net_forward.17} parent=0 // pred_check_branch
    %21 = sbr.rel (0) target = $region5
  $region4: #{two_branch_net_forward.17} parent=0 // pred_region
    _
  $region5: #{two_branch_net_forward.17} parent=0 // pred_fallthru
    _
  // Predicated region
  $region6: #{two_branch_net_forward.17} parent=0 // pred_check
    _
  $region7: #{two_branch_net_forward.17} parent=0 // pred_check_branch
    %23 = sbr.rel (0) target = $region9
  $region8: #{two_branch_net_forward.17} parent=0 // pred_region
    _
  $region9: #{two_branch_net_forward.17} parent=0 // pred_fallthru
    _
  // Predicated region
  $region10: #{two_branch_net_forward.17} parent=0 // pred_check
    _
  $region11: #{two_branch_net_forward.17} parent=0 // pred_check_branch
    %25 = sbr.rel (0) target = $region13
  $region12: #{two_branch_net_forward.17} parent=0 // pred_region
    _
  $region13: #{two_branch_net_forward.17} parent=0 // pred_fallthru
    _
  // Predicated region
  $region14: #{two_branch_net_forward.17} parent=0 // pred_check
    _
  $region15: #{two_branch_net_forward.17} parent=0 // pred_check_branch
    %27 = sbr.rel (0) target = $region17
  $region16: #{two_branch_net_forward.17} parent=0 // pred_region
    _
  $region17: #{two_branch_net_forward.17} parent=0 // pred_fallthru
    _
  // Predicated region
  $region18: #{two_branch_net_forward.17} parent=0 // pred_check
    _
  $region19: #{two_branch_net_forward.17} parent=0 // pred_check_branch
    %29 = sbr.rel (0) target = $region21
  $region20: #{two_branch_net_forward.17} parent=0 // pred_region
    _
  $region21: #{two_branch_net_forward.17} parent=0 // pred_fallthru
    _
  // Predicated region
  $region22: #{two_branch_net_forward.17} parent=0 // pred_check
    _
  $region23: #{two_branch_net_forward.17} parent=0 // pred_check_branch
    %31 = sbr.rel (0) target = $region25
  $region24: #{two_branch_net_forward.17} parent=0 // pred_region
    _
  $region25: #{two_branch_net_forward.17} parent=0 // pred_fallthru
    _
  // Predicated region
  $region26: #{two_branch_net_forward.17} parent=0 // pred_check
    _
  $region27: #{two_branch_net_forward.17} parent=0 // pred_check_branch
    %33 = sbr.rel (0) target = $region29
  $region28: #{two_branch_net_forward.17} parent=0 // pred_region
    _
  $region29: #{two_branch_net_forward.17} parent=0 // pred_fallthru
    _
  // Predicated region
  $region30: #{two_branch_net_forward.17} parent=0 // pred_check
    _
  $region31: #{two_branch_net_forward.17} parent=0 // pred_check_branch
    %35 = sbr.rel (0) target = $region33
  $region32: #{two_branch_net_forward.17} parent=0 // pred_region
    _
  $region33: #{two_branch_net_forward.17} parent=0 // pred_fallthru
    _
  // Predicated region
  $region34: #{two_branch_net_forward.17} parent=0 // pred_check
    _
  $region35: #{two_branch_net_forward.17} parent=0 // pred_check_branch
    %37 = sbr.rel (0) target = $region37
  $region36: #{two_branch_net_forward.17} parent=0 // pred_region
    _
  $region37: #{two_branch_net_forward.17} parent=0 // pred_fallthru
    _
  // Predicated region
  $region38: #{two_branch_net_forward.17} parent=0 // pred_check
    _
  $region39: #{two_branch_net_forward.17} parent=0 // pred_check_branch
    %39 = sbr.rel (0) target = $region41
  $region40: #{two_branch_net_forward.17} parent=0 // pred_region
    _
  $region41: #{two_branch_net_forward.17} parent=0 // pred_fallthru
    _
  // Predicated region
  $region42: #{two_branch_net_forward.17} parent=0 // pred_check
    _
  $region43: #{two_branch_net_forward.17} parent=0 // pred_check_branch
    %41 = sbr.rel (0) target = $region45
  $region44: #{two_branch_net_forward.17} parent=0 // pred_region
    _
  $region45: #{two_branch_net_forward.17} parent=0 // pred_fallthru
    _
  // Predicated region
  $region46: #{two_branch_net_forward.17} parent=0 // pred_check
    _
  $region47: #{two_branch_net_forward.17} parent=0 // pred_check_branch
    %43 = sbr.rel (0) target = $region49
  $region48: #{two_branch_net_forward.17} parent=0 // pred_region
    _
  $region49: #{two_branch_net_forward.17} parent=0 // pred_fallthru
    _
  // Predicated region
  $region50: #{two_branch_net_forward.17} parent=0 // pred_check
    _
  $region51: #{two_branch_net_forward.17} parent=0 // pred_check_branch
    %45 = sbr.rel (0) target = $region53
  $region52: #{two_branch_net_forward.17} parent=0 // pred_region
    _
  $region53: #{two_branch_net_forward.17} parent=0 // pred_fallthru
    _
  %v47 = vld [vmem:[%s0] sm:$0xff]
  %v48 = vld [vmem:[%s0 + $0x8] sm:$0xff]
  %v49 = vld [vmem:[%s0 + $0x10] sm:$0xff]
  %v50 = vld [vmem:[%s0 + $0x18] sm:$0xff]
  %v51 = vld [vmem:[%s0 + $0x20] sm:$0xff]
  %v52 = vld [vmem:[%s0 + $0x28] sm:$0xff]
  %v53 = vld [vmem:[%s0 + $0x30] sm:$0xf]
  %v54 = vld [vmem:[%s1] sm:$0xff]
  %v55 = vld [vmem:[%s1 + $0x8] sm:$0xff]
  %v56 = vld [vmem:[%s1 + $0x10] sm:$0xff]
  %v57 = vld [vmem:[%s1 + $0x18] sm:$0xff]
  %v58 = vld [vmem:[%s1 + $0x20] sm:$0xff]
  %v59 = vld [vmem:[%s1 + $0x28] sm:$0xff]
  %v60 = vld [vmem:[%s1 + $0x30] sm:$0xff]
  %v61 = vld [vmem:[%s1 + $0x38] sm:$0xff]
  %v62 = vld [vmem:[%s1 + $0x40] sm:$0xff]
  %v63 = vld [vmem:[%s1 + $0x48] sm:$0xff]
  %v64 = vld [vmem:[%s1 + $0x50] sm:$0xff]
  %v65 = vld [vmem:[%s1 + $0x58] sm:$0xff]
  %v66 = vld [vmem:[%s1 + $0x60] sm:$0xff]
  %v67 = vld [vmem:[%s1 + $0x68] sm:$0xff]
  %v68 = vld [vmem:[%s1 + $0x70] sm:$0xff]
  %v69 = vld [vmem:[%s1 + $0x78] sm:$0xff]
  %v70 = vld [vmem:[%s1 + $0x80] sm:$0xff]
  %v71 = vld [vmem:[%s1 + $0x88] sm:$0xff]
  %v72 = vld [vmem:[%s1 + $0x90] sm:$0xff]
  %v73 = vld [vmem:[%s1 + $0x98] sm:$0xff]
  %v74 = vld [vmem:[%s1 + $0xa0] sm:$0xff]
  %v75 = vld [vmem:[%s1 + $0xa8] sm:$0xff]
  %v76 = vld [vmem:[%s1 + $0xb0] sm:$0xff]
  %v77 = vld [vmem:[%s1 + $0xb8] sm:$0xff]
  %v78 = vld [vmem:[%s1 + $0xc0] sm:$0xff]
  %v79 = vld [vmem:[%s1 + $0xc8] sm:$0xff]
  %v80 = vld [vmem:[%s1 + $0xd0] sm:$0xff]
  %v81 = vld [vmem:[%s1 + $0xd8] sm:$0xff]
  %v82 = vld [vmem:[%s1 + $0xe0] sm:$0xff]
  %v83 = vld [vmem:[%s1 + $0xe8] sm:$0xff]
  %v84 = vld [vmem:[%s1 + $0xf0] sm:$0xff]
  %v85 = vld [vmem:[%s1 + $0xf8] sm:$0xff]
  %v86 = vld [vmem:[%s1 + $0x100] sm:$0xff]
  %v87 = vld [vmem:[%s1 + $0x108] sm:$0xff]
  %v88 = vld [vmem:[%s1 + $0x110] sm:$0xff]
  %v89 = vld [vmem:[%s1 + $0x118] sm:$0xff]
  %v90 = vld [vmem:[%s1 + $0x120] sm:$0xff]
  %v91 = vld [vmem:[%s1 + $0x128] sm:$0xff]
  %v92 = vld [vmem:[%s1 + $0x130] sm:$0xff]
  %v93 = vld [vmem:[%s1 + $0x138] sm:$0xff]
  %v94 = vld [vmem:[%s1 + $0x140] sm:$0xff]
  %v95 = vld [vmem:[%s1 + $0x148] sm:$0xff]
  %v96 = vld [vmem:[%s1 + $0x150] sm:$0xff]
  %v97 = vld [vmem:[%s1 + $0x158] sm:$0xff]
  %v98 = vld [vmem:[%s1 + $0x160] sm:$0xff]
  %v99 = vld [vmem:[%s1 + $0x168] sm:$0xff]
  %v100 = vld [vmem:[%s1 + $0x170] sm:$0xff]
  %v101 = vld [vmem:[%s1 + $0x178] sm:$0xff]
  %v102 = vld [vmem:[%s1 + $0x180] sm:$0xff]
  %v103 = vld [vmem:[%s1 + $0x188] sm:$0xff]
  %v104 = vld [vmem:[%s1 + $0x190] sm:$0xff]
  %v105 = vld [vmem:[%s1 + $0x198] sm:$0xff]
  %v106 = vld [vmem:[%s1 + $0x1a0] sm:$0xff]
  %v107 = vld [vmem:[%s1 + $0x1a8] sm:$0xff]
  %v108 = vld [vmem:[%s1 + $0x1b0] sm:$0xff]
  %v109 = vld [vmem:[%s1 + $0x1b8] sm:$0xff]
  %v110 = vld [vmem:[%s1 + $0x1c0] sm:$0xff]
  %v111 = vld [vmem:[%s1 + $0x1c8] sm:$0xff]
  %v112 = vld [vmem:[%s1 + $0x1d0] sm:$0xff]
  %v113 = vld [vmem:[%s1 + $0x1d8] sm:$0xff]
  %v114 = vld [vmem:[%s1 + $0x1e0] sm:$0xff]
  %v115 = vld [vmem:[%s1 + $0x1e8] sm:$0xff]
  %v116 = vld [vmem:[%s1 + $0x1f0] sm:$0xff]
  %v117 = vld [vmem:[%s1 + $0x1f8] sm:$0xff]
  %v118 = vld [vmem:[%s1 + $0x200] sm:$0xff]
  %v119 = vld [vmem:[%s1 + $0x208] sm:$0xff]
  %v120 = vld [vmem:[%s1 + $0x210] sm:$0xff]
  %v121 = vld [vmem:[%s1 + $0x218] sm:$0xff]
  %v122 = vld [vmem:[%s1 + $0x220] sm:$0xff]
  %v123 = vld [vmem:[%s1 + $0x228] sm:$0xff]
  %v124 = vld [vmem:[%s1 + $0x230] sm:$0xff]
  %v125 = vld [vmem:[%s1 + $0x238] sm:$0xff]
  %v126 = vld [vmem:[%s1 + $0x240] sm:$0xff]
  %v127 = vld [vmem:[%s1 + $0x248] sm:$0xff]
  %v128 = vld [vmem:[%s1 + $0x250] sm:$0xff]
  %v129 = vld [vmem:[%s1 + $0x258] sm:$0xff]
  %v130 = vld [vmem:[%s1 + $0x260] sm:$0xff]
  %v131 = vld [vmem:[%s1 + $0x268] sm:$0xff]
  %v132 = vld [vmem:[%s1 + $0x270] sm:$0xff]
  %v133 = vld [vmem:[%s1 + $0x278] sm:$0xff]
  %v134 = vld [vmem:[%s1 + $0x280] sm:$0xff]
  %v135 = vld [vmem:[%s1 + $0x288] sm:$0xff]
  %v136 = vld [vmem:[%s1 + $0x290] sm:$0xff]
  %v137 = vld [vmem:[%s1 + $0x298] sm:$0xff]
  %v138 = vld [vmem:[%s1 + $0x2a0] sm:$0xff]
  %v139 = vld [vmem:[%s1 + $0x2a8] sm:$0xff]
  %v140 = vld [vmem:[%s1 + $0x2b0] sm:$0xff]
  %v141 = vld [vmem:[%s1 + $0x2b8] sm:$0xff]
  %v142 = vld [vmem:[%s1 + $0x2c0] sm:$0xff]
  %v143 = vld [vmem:[%s1 + $0x2c8] sm:$0xff]
  %v144 = vld [vmem:[%s1 + $0x2d0] sm:$0xff]
  %v145 = vld [vmem:[%s1 + $0x2d8] sm:$0xff]
  %v146 = vld [vmem:[%s1 + $0x2e0] sm:$0xff]
  %v147 = vld [vmem:[%s1 + $0x2e8] sm:$0xff]
  %v148 = vld [vmem:[%s1 + $0x2f0] sm:$0xff]
  %v149 = vld [vmem:[%s1 + $0x2f8] sm:$0xff]
  %v150 = vld [vmem:[%s1 + $0x300] sm:$0xff]
  %v151 = vld [vmem:[%s1 + $0x308] sm:$0xff]
  %v152 = vld [vmem:[%s1 + $0x310] sm:$0xff]
  %v153 = vld [vmem:[%s1 + $0x318] sm:$0xff]
  %v154 = vld [vmem:[%s1 + $0x320] sm:$0xff]
  %v155 = vld [vmem:[%s1 + $0x328] sm:$0xff]
  %v156 = vld [vmem:[%s1 + $0x330] sm:$0xff]
  %v157 = vld [vmem:[%s1 + $0x338] sm:$0xff]
  %v158 = vld [vmem:[%s1 + $0x340] sm:$0xff]
  %v159 = vld [vmem:[%s1 + $0x348] sm:$0xff]
  %v160 = vld [vmem:[%s1 + $0x350] sm:$0xff]
  %v161 = vld [vmem:[%s1 + $0x358] sm:$0xff]
  %v162 = vld [vmem:[%s1 + $0x360] sm:$0xff]
  %v163 = vld [vmem:[%s1 + $0x368] sm:$0xff]
  %v164 = vld [vmem:[%s1 + $0x370] sm:$0xff]
  %v165 = vld [vmem:[%s1 + $0x378] sm:$0xff]
  %v166 = vld [vmem:[%s1 + $0x380] sm:$0xff]
  %v167 = vld [vmem:[%s1 + $0x388] sm:$0xff]
  %v168 = vld [vmem:[%s1 + $0x390] sm:$0xff]
  %v169 = vld [vmem:[%s1 + $0x398] sm:$0xff]
  %v170 = vld [vmem:[%s1 + $0x3a0] sm:$0xff]
  %v171 = vld [vmem:[%s1 + $0x3a8] sm:$0xff]
  %v172 = vld [vmem:[%s1 + $0x3b0] sm:$0xff]
  %v173 = vld [vmem:[%s1 + $0x3b8] sm:$0xff]
  %v174 = vld [vmem:[%s1 + $0x3c0] sm:$0xff]
  %v175 = vld [vmem:[%s1 + $0x3c8] sm:$0xff]
  %v176 = vld [vmem:[%s1 + $0x3d0] sm:$0xff]
  %v177 = vld [vmem:[%s1 + $0x3d8] sm:$0xff]
  %v178 = vld [vmem:[%s1 + $0x3e0] sm:$0xff]
  %v179 = vld [vmem:[%s1 + $0x3e8] sm:$0xff]
  %v180 = vld [vmem:[%s1 + $0x3f0] sm:$0xff]
  %v181 = vld [vmem:[%s1 + $0x3f8] sm:$0xff]
  %v182 = vld [vmem:[%s1 + $0x400] sm:$0xff]
  %v183 = vld [vmem:[%s1 + $0x408] sm:$0xff]
  %v184 = vld [vmem:[%s1 + $0x410] sm:$0xff]
  %v185 = vld [vmem:[%s1 + $0x418] sm:$0xff]
  %v186 = vld [vmem:[%s1 + $0x420] sm:$0xff]
  %v187 = vld [vmem:[%s1 + $0x428] sm:$0xff]
  %v188 = vld [vmem:[%s1 + $0x430] sm:$0xff]
  %v189 = vld [vmem:[%s1 + $0x438] sm:$0xff]
  %v190 = vld [vmem:[%s1 + $0x440] sm:$0xff]
  %v191 = vld [vmem:[%s1 + $0x448] sm:$0xff]
  %v192 = vld [vmem:[%s1 + $0x450] sm:$0xff]
  %v193 = vld [vmem:[%s1 + $0x458] sm:$0xff]
  %v194 = vld [vmem:[%s1 + $0x460] sm:$0xff]
  %v195 = vld [vmem:[%s1 + $0x468] sm:$0xff]
  %v196 = vld [vmem:[%s1 + $0x470] sm:$0xff]
  %v197 = vld [vmem:[%s1 + $0x478] sm:$0xff]
  %v198 = vld [vmem:[%s1 + $0x480] sm:$0xff]
  %v199 = vld [vmem:[%s1 + $0x488] sm:$0xff]
  %v200 = vld [vmem:[%s1 + $0x490] sm:$0xff]
  %v201 = vld [vmem:[%s1 + $0x498] sm:$0xff]
  %v202 = vld [vmem:[%s1 + $0x4a0] sm:$0xff]
  %v203 = vld [vmem:[%s1 + $0x4a8] sm:$0xff]
  %v204 = vld [vmem:[%s1 + $0x4b0] sm:$0xff]
  %v205 = vld [vmem:[%s1 + $0x4b8] sm:$0xff]
  %v206 = vld [vmem:[%s1 + $0x4c0] sm:$0xff]
  %v207 = vld [vmem:[%s1 + $0x4c8] sm:$0xff]
  %v208 = vld [vmem:[%s1 + $0x4d0] sm:$0xff]
  %v209 = vld [vmem:[%s1 + $0x4d8] sm:$0xff]
  %v210 = vld [vmem:[%s1 + $0x4e0] sm:$0xff]
  %v211 = vld [vmem:[%s1 + $0x4e8] sm:$0xff]
  %v212 = vld [vmem:[%s1 + $0x4f0] sm:$0xff]
  %v213 = vld [vmem:[%s1 + $0x4f8] sm:$0xff]
  %v214 = vld [vmem:[%s1 + $0x500] sm:$0xff]
  %v215 = vld [vmem:[%s1 + $0x508] sm:$0xff]
  %v216 = vld [vmem:[%s1 + $0x510] sm:$0xff]
  %v217 = vld [vmem:[%s1 + $0x518] sm:$0xff]
  %v218 = vld [vmem:[%s1 + $0x520] sm:$0xff]
  %v219 = vld [vmem:[%s1 + $0x528] sm:$0xff]
  %v220 = vld [vmem:[%s1 + $0x530] sm:$0xff]
  %v221 = vld [vmem:[%s1 + $0x538] sm:$0xff]
  %v222 = vld [vmem:[%s1 + $0x540] sm:$0xff]
  %v223 = vld [vmem:[%s1 + $0x548] sm:$0xff]
  %v224 = vld [vmem:[%s1 + $0x550] sm:$0xff]
  %v225 = vld [vmem:[%s1 + $0x558] sm:$0xff]
  %v226 = vld [vmem:[%s1 + $0x560] sm:$0xff]
  %v227 = vld [vmem:[%s1 + $0x568] sm:$0xff]
  %v228 = vld [vmem:[%s1 + $0x570] sm:$0xff]
  %v229 = vld [vmem:[%s1 + $0x578] sm:$0xff]
  %v230 = vld [vmem:[%s1 + $0x580] sm:$0xff]
  %v231 = vld [vmem:[%s1 + $0x588] sm:$0xff]
  %v232 = vld [vmem:[%s1 + $0x590] sm:$0xff]
  %v233 = vld [vmem:[%s1 + $0x598] sm:$0xff]
  %v234 = vld [vmem:[%s1 + $0x5a0] sm:$0xff]
  %v235 = vld [vmem:[%s1 + $0x5a8] sm:$0xff]
  %v236 = vld [vmem:[%s1 + $0x5b0] sm:$0xff]
  %v237 = vld [vmem:[%s1 + $0x5b8] sm:$0xff]
  %v238 = vld [vmem:[%s1 + $0x5c0] sm:$0xff]
  %v239 = vld [vmem:[%s1 + $0x5c8] sm:$0xff]
  %v240 = vld [vmem:[%s1 + $0x5d0] sm:$0xff]
  %v241 = vld [vmem:[%s1 + $0x5d8] sm:$0xff]
  %v242 = vld [vmem:[%s1 + $0x5e0] sm:$0xff]
  %v243 = vld [vmem:[%s1 + $0x5e8] sm:$0xff]
  %v244 = vld [vmem:[%s1 + $0x5f0] sm:$0xff]
  %v245 = vld [vmem:[%s1 + $0x5f8] sm:$0xff]
  %v246 = vld [vmem:[%s1 + $0x600] sm:$0xff]
  %v247 = vld [vmem:[%s1 + $0x608] sm:$0xff]
  %v248 = vld [vmem:[%s1 + $0x610] sm:$0xff]
  %v249 = vld [vmem:[%s1 + $0x618] sm:$0xff]
  %v250 = vld [vmem:[%s2] sm:$0x3]
  %v252 = vlaneseq
  %v253 = vshrl.u32 %v252, 7
  %v254 = vsub.s32 0, %v253
  %v255 = vrot.slane %v250, %v254
  %v256 = vlaneseq
  %v257 = vshrl.u32 %v256, 7
  %v258 = vsub.s32 1, %v257
  %v259 = vrot.slane %v250, %v258
  %v269 = vunpack.c.l.b16 %v47
  %v270 = vunpack.c.h.b16 %v47
  %v271 = vunpack.c.l.b16 %v48
  %v272 = vunpack.c.h.b16 %v48
  %v273 = vunpack.c.l.b16 %v49
  %v274 = vunpack.c.h.b16 %v49
  %v275 = vunpack.c.l.b16 %v50
  %v276 = vunpack.c.h.b16 %v50
  %v277 = vunpack.c.l.b16 %v51
  %v278 = vunpack.c.h.b16 %v51
  %v279 = vunpack.c.l.b16 %v52
  %v280 = vunpack.c.h.b16 %v52
  %v281 = vunpack.c.l.b16 %v53
  %v282 = vpack.c.b16 %v269, %v269
  %v283 = vpack.c.b16 %v270, %v270
  %v284 = vpack.c.b16 %v271, %v271
  %v285 = vpack.c.b16 %v272, %v272
  %v286 = vpack.c.b16 %v273, %v273
  %v287 = vpack.c.b16 %v274, %v274
  %v288 = vpack.c.b16 %v275, %v275
  %v289 = vpack.c.b16 %v276, %v276
  %v290 = vpack.c.b16 %v277, %v277
  %v291 = vpack.c.b16 %v278, %v278
  %v292 = vpack.c.b16 %v279, %v279
  %v293 = vpack.c.b16 %v280, %v280
  %v294 = vpack.c.b16 %v281, %v281
  %v503 = vunpack.c.l.b16 %v54
  %v504 = vunpack.c.h.b16 %v54
  %v505 = vunpack.c.l.b16 %v55
  %v506 = vunpack.c.h.b16 %v55
  %v507 = vunpack.c.l.b16 %v56
  %v508 = vunpack.c.h.b16 %v56
  %v509 = vunpack.c.l.b16 %v57
  %v510 = vunpack.c.h.b16 %v57
  %v511 = vunpack.c.l.b16 %v58
  %v512 = vunpack.c.h.b16 %v58
  %v513 = vunpack.c.l.b16 %v59
  %v514 = vunpack.c.h.b16 %v59
  %v515 = vunpack.c.l.b16 %v60
  %v516 = vunpack.c.h.b16 %v60
  %v517 = vunpack.c.l.b16 %v61
  %v518 = vunpack.c.h.b16 %v61
  %v519 = vunpack.c.l.b16 %v62
  %v520 = vunpack.c.h.b16 %v62
  %v521 = vunpack.c.l.b16 %v63
  %v522 = vunpack.c.h.b16 %v63
  %v523 = vunpack.c.l.b16 %v64
  %v524 = vunpack.c.h.b16 %v64
  %v525 = vunpack.c.l.b16 %v65
  %v526 = vunpack.c.h.b16 %v65
  %v527 = vunpack.c.l.b16 %v66
  %v528 = vunpack.c.h.b16 %v66
  %v529 = vunpack.c.l.b16 %v67
  %v530 = vunpack.c.h.b16 %v67
  %v531 = vunpack.c.l.b16 %v68
  %v532 = vunpack.c.h.b16 %v68
  %v533 = vunpack.c.l.b16 %v69
  %v534 = vunpack.c.h.b16 %v69
  %v535 = vunpack.c.l.b16 %v70
  %v536 = vunpack.c.h.b16 %v70
  %v537 = vunpack.c.l.b16 %v71
  %v538 = vunpack.c.h.b16 %v71
  %v539 = vunpack.c.l.b16 %v72
  %v540 = vunpack.c.h.b16 %v72
  %v541 = vunpack.c.l.b16 %v73
  %v542 = vunpack.c.h.b16 %v73
  %v543 = vunpack.c.l.b16 %v74
  %v544 = vunpack.c.h.b16 %v74
  %v545 = vunpack.c.l.b16 %v75
  %v546 = vunpack.c.h.b16 %v75
  %v547 = vunpack.c.l.b16 %v76
  %v548 = vunpack.c.h.b16 %v76
  %v549 = vunpack.c.l.b16 %v77
  %v550 = vunpack.c.h.b16 %v77
  %v551 = vunpack.c.l.b16 %v78
  %v552 = vunpack.c.h.b16 %v78
  %v553 = vunpack.c.l.b16 %v79
  %v554 = vunpack.c.h.b16 %v79
  %v555 = vunpack.c.l.b16 %v80
  %v556 = vunpack.c.h.b16 %v80
  %v557 = vunpack.c.l.b16 %v81
  %v558 = vunpack.c.h.b16 %v81
  %v559 = vunpack.c.l.b16 %v82
  %v560 = vunpack.c.h.b16 %v82
  %v561 = vunpack.c.l.b16 %v83
  %v562 = vunpack.c.h.b16 %v83
  %v563 = vunpack.c.l.b16 %v84
  %v564 = vunpack.c.h.b16 %v84
  %v565 = vunpack.c.l.b16 %v85
  %v566 = vunpack.c.h.b16 %v85
  %v567 = vunpack.c.l.b16 %v86
  %v568 = vunpack.c.h.b16 %v86
  %v569 = vunpack.c.l.b16 %v87
  %v570 = vunpack.c.h.b16 %v87
  %v571 = vunpack.c.l.b16 %v88
  %v572 = vunpack.c.h.b16 %v88
  %v573 = vunpack.c.l.b16 %v89
  %v574 = vunpack.c.h.b16 %v89
  %v575 = vunpack.c.l.b16 %v90
  %v576 = vunpack.c.h.b16 %v90
  %v577 = vunpack.c.l.b16 %v91
  %v578 = vunpack.c.h.b16 %v91
  %v579 = vunpack.c.l.b16 %v92
  %v580 = vunpack.c.h.b16 %v92
  %v581 = vunpack.c.l.b16 %v93
  %v582 = vunpack.c.h.b16 %v93
  %v583 = vunpack.c.l.b16 %v94
  %v584 = vunpack.c.h.b16 %v94
  %v585 = vunpack.c.l.b16 %v95
  %v586 = vunpack.c.h.b16 %v95
  %v587 = vunpack.c.l.b16 %v96
  %v588 = vunpack.c.h.b16 %v96
  %v589 = vunpack.c.l.b16 %v97
  %v590 = vunpack.c.h.b16 %v97
  %v591 = vunpack.c.l.b16 %v98
  %v592 = vunpack.c.h.b16 %v98
  %v593 = vunpack.c.l.b16 %v99
  %v594 = vunpack.c.h.b16 %v99
  %v595 = vunpack.c.l.b16 %v100
  %v596 = vunpack.c.h.b16 %v100
  %v597 = vunpack.c.l.b16 %v101
  %v598 = vunpack.c.h.b16 %v101
  %v599 = vunpack.c.l.b16 %v102
  %v600 = vunpack.c.h.b16 %v102
  %v601 = vunpack.c.l.b16 %v103
  %v602 = vunpack.c.h.b16 %v103
  %v603 = vunpack.c.l.b16 %v104
  %v604 = vunpack.c.h.b16 %v104
  %v605 = vunpack.c.l.b16 %v105
  %v606 = vunpack.c.h.b16 %v105
  %v607 = vunpack.c.l.b16 %v106
  %v608 = vunpack.c.h.b16 %v106
  %v609 = vunpack.c.l.b16 %v107
  %v610 = vunpack.c.h.b16 %v107
  %v611 = vunpack.c.l.b16 %v108
  %v612 = vunpack.c.h.b16 %v108
  %v613 = vunpack.c.l.b16 %v109
  %v614 = vunpack.c.h.b16 %v109
  %v615 = vunpack.c.l.b16 %v110
  %v616 = vunpack.c.h.b16 %v110
  %v617 = vunpack.c.l.b16 %v111
  %v618 = vunpack.c.h.b16 %v111
  %v619 = vunpack.c.l.b16 %v112
  %v620 = vunpack.c.h.b16 %v112
  %v621 = vunpack.c.l.b16 %v113
  %v622 = vunpack.c.h.b16 %v113
  %v623 = vunpack.c.l.b16 %v114
  %v624 = vunpack.c.h.b16 %v114
  %v625 = vunpack.c.l.b16 %v115
  %v626 = vunpack.c.h.b16 %v115
  %v627 = vunpack.c.l.b16 %v116
  %v628 = vunpack.c.h.b16 %v116
  %v629 = vunpack.c.l.b16 %v117
  %v630 = vunpack.c.h.b16 %v117
  %v631 = vunpack.c.l.b16 %v118
  %v632 = vunpack.c.h.b16 %v118
  %v633 = vunpack.c.l.b16 %v119
  %v634 = vunpack.c.h.b16 %v119
  %v635 = vunpack.c.l.b16 %v120
  %v636 = vunpack.c.h.b16 %v120
  %v637 = vunpack.c.l.b16 %v121
  %v638 = vunpack.c.h.b16 %v121
  %v639 = vunpack.c.l.b16 %v122
  %v640 = vunpack.c.h.b16 %v122
  %v641 = vunpack.c.l.b16 %v123
  %v642 = vunpack.c.h.b16 %v123
  %v643 = vunpack.c.l.b16 %v124
  %v644 = vunpack.c.h.b16 %v124
  %v645 = vunpack.c.l.b16 %v125
  %v646 = vunpack.c.h.b16 %v125
  %v647 = vunpack.c.l.b16 %v126
  %v648 = vunpack.c.h.b16 %v126
  %v649 = vunpack.c.l.b16 %v127
  %v650 = vunpack.c.h.b16 %v127
  %v651 = vunpack.c.l.b16 %v128
  %v652 = vunpack.c.h.b16 %v128
  %v653 = vunpack.c.l.b16 %v129
  %v654 = vunpack.c.h.b16 %v129
  %v655 = vunpack.c.l.b16 %v130
  %v656 = vunpack.c.h.b16 %v130
  %v657 = vunpack.c.l.b16 %v131
  %v658 = vunpack.c.h.b16 %v131
  %v659 = vunpack.c.l.b16 %v132
  %v660 = vunpack.c.h.b16 %v132
  %v661 = vunpack.c.l.b16 %v133
  %v662 = vunpack.c.h.b16 %v133
  %v663 = vunpack.c.l.b16 %v134
  %v664 = vunpack.c.h.b16 %v134
  %v665 = vunpack.c.l.b16 %v135
  %v666 = vunpack.c.h.b16 %v135
  %v667 = vunpack.c.l.b16 %v136
  %v668 = vunpack.c.h.b16 %v136
  %v669 = vunpack.c.l.b16 %v137
  %v670 = vunpack.c.h.b16 %v137
  %v671 = vunpack.c.l.b16 %v138
  %v672 = vunpack.c.h.b16 %v138
  %v673 = vunpack.c.l.b16 %v139
  %v674 = vunpack.c.h.b16 %v139
  %v675 = vunpack.c.l.b16 %v140
  %v676 = vunpack.c.h.b16 %v140
  %v677 = vunpack.c.l.b16 %v141
  %v678 = vunpack.c.h.b16 %v141
  %v679 = vunpack.c.l.b16 %v142
  %v680 = vunpack.c.h.b16 %v142
  %v681 = vunpack.c.l.b16 %v143
  %v682 = vunpack.c.h.b16 %v143
  %v683 = vunpack.c.l.b16 %v144
  %v684 = vunpack.c.h.b16 %v144
  %v685 = vunpack.c.l.b16 %v145
  %v686 = vunpack.c.h.b16 %v145
  %v687 = vunpack.c.l.b16 %v146
  %v688 = vunpack.c.h.b16 %v146
  %v689 = vunpack.c.l.b16 %v147
  %v690 = vunpack.c.h.b16 %v147
  %v691 = vunpack.c.l.b16 %v148
  %v692 = vunpack.c.h.b16 %v148
  %v693 = vunpack.c.l.b16 %v149
  %v694 = vunpack.c.h.b16 %v149
  %v695 = vunpack.c.l.b16 %v150
  %v696 = vunpack.c.h.b16 %v150
  %v697 = vunpack.c.l.b16 %v151
  %v698 = vunpack.c.h.b16 %v151
  %v699 = vunpack.c.l.b16 %v152
  %v700 = vunpack.c.h.b16 %v152
  %v701 = vunpack.c.l.b16 %v153
  %v702 = vunpack.c.h.b16 %v153
  %v703 = vunpack.c.l.b16 %v154
  %v704 = vunpack.c.h.b16 %v154
  %v705 = vunpack.c.l.b16 %v155
  %v706 = vunpack.c.h.b16 %v155
  %v707 = vunpack.c.l.b16 %v156
  %v708 = vunpack.c.h.b16 %v156
  %v709 = vunpack.c.l.b16 %v157
  %v710 = vunpack.c.h.b16 %v157
  %v711 = vunpack.c.l.b16 %v158
  %v712 = vunpack.c.h.b16 %v158
  %v713 = vunpack.c.l.b16 %v159
  %v714 = vunpack.c.h.b16 %v159
  %v715 = vunpack.c.l.b16 %v160
  %v716 = vunpack.c.h.b16 %v160
  %v717 = vunpack.c.l.b16 %v161
  %v718 = vunpack.c.h.b16 %v161
  %v719 = vunpack.c.l.b16 %v162
  %v720 = vunpack.c.h.b16 %v162
  %v721 = vunpack.c.l.b16 %v163
  %v722 = vunpack.c.h.b16 %v163
  %v723 = vunpack.c.l.b16 %v164
  %v724 = vunpack.c.h.b16 %v164
  %v725 = vunpack.c.l.b16 %v165
  %v726 = vunpack.c.h.b16 %v165
  %v727 = vunpack.c.l.b16 %v166
  %v728 = vunpack.c.h.b16 %v166
  %v729 = vunpack.c.l.b16 %v167
  %v730 = vunpack.c.h.b16 %v167
  %v731 = vunpack.c.l.b16 %v168
  %v732 = vunpack.c.h.b16 %v168
  %v733 = vunpack.c.l.b16 %v169
  %v734 = vunpack.c.h.b16 %v169
  %v735 = vunpack.c.l.b16 %v170
  %v736 = vunpack.c.h.b16 %v170
  %v737 = vunpack.c.l.b16 %v171
  %v738 = vunpack.c.h.b16 %v171
  %v739 = vunpack.c.l.b16 %v172
  %v740 = vunpack.c.h.b16 %v172
  %v741 = vunpack.c.l.b16 %v173
  %v742 = vunpack.c.h.b16 %v173
  %v743 = vunpack.c.l.b16 %v174
  %v744 = vunpack.c.h.b16 %v174
  %v745 = vunpack.c.l.b16 %v175
  %v746 = vunpack.c.h.b16 %v175
  %v747 = vunpack.c.l.b16 %v176
  %v748 = vunpack.c.h.b16 %v176
  %v749 = vunpack.c.l.b16 %v177
  %v750 = vunpack.c.h.b16 %v177
  %v751 = vunpack.c.l.b16 %v178
  %v752 = vunpack.c.h.b16 %v178
  %v753 = vunpack.c.l.b16 %v179
  %v754 = vunpack.c.h.b16 %v179
  %v755 = vunpack.c.l.b16 %v180
  %v756 = vunpack.c.h.b16 %v180
  %v757 = vunpack.c.l.b16 %v181
  %v758 = vunpack.c.h.b16 %v181
  %v759 = vunpack.c.l.b16 %v182
  %v760 = vunpack.c.h.b16 %v182
  %v761 = vunpack.c.l.b16 %v183
  %v762 = vunpack.c.h.b16 %v183
  %v763 = vunpack.c.l.b16 %v184
  %v764 = vunpack.c.h.b16 %v184
  %v765 = vunpack.c.l.b16 %v185
  %v766 = vunpack.c.h.b16 %v185
  %v767 = vunpack.c.l.b16 %v186
  %v768 = vunpack.c.h.b16 %v186
  %v769 = vunpack.c.l.b16 %v187
  %v770 = vunpack.c.h.b16 %v187
  %v771 = vunpack.c.l.b16 %v188
  %v772 = vunpack.c.h.b16 %v188
  %v773 = vunpack.c.l.b16 %v189
  %v774 = vunpack.c.h.b16 %v189
  %v775 = vunpack.c.l.b16 %v190
  %v776 = vunpack.c.h.b16 %v190
  %v777 = vunpack.c.l.b16 %v191
  %v778 = vunpack.c.h.b16 %v191
  %v779 = vunpack.c.l.b16 %v192
  %v780 = vunpack.c.h.b16 %v192
  %v781 = vunpack.c.l.b16 %v193
  %v782 = vunpack.c.h.b16 %v193
  %v783 = vunpack.c.l.b16 %v194
  %v784 = vunpack.c.h.b16 %v194
  %v785 = vunpack.c.l.b16 %v195
  %v786 = vunpack.c.h.b16 %v195
  %v787 = vunpack.c.l.b16 %v196
  %v788 = vunpack.c.h.b16 %v196
  %v789 = vunpack.c.l.b16 %v197
  %v790 = vunpack.c.h.b16 %v197
  %v791 = vunpack.c.l.b16 %v198
  %v792 = vunpack.c.h.b16 %v198
  %v793 = vunpack.c.l.b16 %v199
  %v794 = vunpack.c.h.b16 %v199
  %v795 = vunpack.c.l.b16 %v200
  %v796 = vunpack.c.h.b16 %v200
  %v797 = vunpack.c.l.b16 %v201
  %v798 = vunpack.c.h.b16 %v201
  %v799 = vunpack.c.l.b16 %v202
  %v800 = vunpack.c.h.b16 %v202
  %v801 = vunpack.c.l.b16 %v203
  %v802 = vunpack.c.h.b16 %v203
  %v803 = vunpack.c.l.b16 %v204
  %v804 = vunpack.c.h.b16 %v204
  %v805 = vunpack.c.l.b16 %v205
  %v806 = vunpack.c.h.b16 %v205
  %v807 = vunpack.c.l.b16 %v206
  %v808 = vunpack.c.h.b16 %v206
  %v809 = vunpack.c.l.b16 %v207
  %v810 = vunpack.c.h.b16 %v207
  %v811 = vunpack.c.l.b16 %v208
  %v812 = vunpack.c.h.b16 %v208
  %v813 = vunpack.c.l.b16 %v209
  %v814 = vunpack.c.h.b16 %v209
  %v815 = vunpack.c.l.b16 %v210
  %v816 = vunpack.c.h.b16 %v210
  %v817 = vunpack.c.l.b16 %v211
  %v818 = vunpack.c.h.b16 %v211
  %v819 = vunpack.c.l.b16 %v212
  %v820 = vunpack.c.h.b16 %v212
  %v821 = vunpack.c.l.b16 %v213
  %v822 = vunpack.c.h.b16 %v213
  %v823 = vunpack.c.l.b16 %v214
  %v824 = vunpack.c.h.b16 %v214
  %v825 = vunpack.c.l.b16 %v215
  %v826 = vunpack.c.h.b16 %v215
  %v827 = vunpack.c.l.b16 %v216
  %v828 = vunpack.c.h.b16 %v216
  %v829 = vunpack.c.l.b16 %v217
  %v830 = vunpack.c.h.b16 %v217
  %v831 = vunpack.c.l.b16 %v218
  %v832 = vunpack.c.h.b16 %v218
  %v833 = vunpack.c.l.b16 %v219
  %v834 = vunpack.c.h.b16 %v219
  %v835 = vunpack.c.l.b16 %v220
  %v836 = vunpack.c.h.b16 %v220
  %v837 = vunpack.c.l.b16 %v221
  %v838 = vunpack.c.h.b16 %v221
  %v839 = vunpack.c.l.b16 %v222
  %v840 = vunpack.c.h.b16 %v222
  %v841 = vunpack.c.l.b16 %v223
  %v842 = vunpack.c.h.b16 %v223
  %v843 = vunpack.c.l.b16 %v224
  %v844 = vunpack.c.h.b16 %v224
  %v845 = vunpack.c.l.b16 %v225
  %v846 = vunpack.c.h.b16 %v225
  %v847 = vunpack.c.l.b16 %v226
  %v848 = vunpack.c.h.b16 %v226
  %v849 = vunpack.c.l.b16 %v227
  %v850 = vunpack.c.h.b16 %v227
  %v851 = vunpack.c.l.b16 %v228
  %v852 = vunpack.c.h.b16 %v228
  %v853 = vunpack.c.l.b16 %v229
  %v854 = vunpack.c.h.b16 %v229
  %v855 = vunpack.c.l.b16 %v230
  %v856 = vunpack.c.h.b16 %v230
  %v857 = vunpack.c.l.b16 %v231
  %v858 = vunpack.c.h.b16 %v231
  %v859 = vunpack.c.l.b16 %v232
  %v860 = vunpack.c.h.b16 %v232
  %v861 = vunpack.c.l.b16 %v233
  %v862 = vunpack.c.h.b16 %v233
  %v863 = vunpack.c.l.b16 %v234
  %v864 = vunpack.c.h.b16 %v234
  %v865 = vunpack.c.l.b16 %v235
  %v866 = vunpack.c.h.b16 %v235
  %v867 = vunpack.c.l.b16 %v236
  %v868 = vunpack.c.h.b16 %v236
  %v869 = vunpack.c.l.b16 %v237
  %v870 = vunpack.c.h.b16 %v237
  %v871 = vunpack.c.l.b16 %v238
  %v872 = vunpack.c.h.b16 %v238
  %v873 = vunpack.c.l.b16 %v239
  %v874 = vunpack.c.h.b16 %v239
  %v875 = vunpack.c.l.b16 %v240
  %v876 = vunpack.c.h.b16 %v240
  %v877 = vunpack.c.l.b16 %v241
  %v878 = vunpack.c.h.b16 %v241
  %v879 = vunpack.c.l.b16 %v242
  %v880 = vunpack.c.h.b16 %v242
  %v881 = vunpack.c.l.b16 %v243
  %v882 = vunpack.c.h.b16 %v243
  %v883 = vunpack.c.l.b16 %v244
  %v884 = vunpack.c.h.b16 %v244
  %v885 = vunpack.c.l.b16 %v245
  %v886 = vunpack.c.h.b16 %v245
  %v887 = vunpack.c.l.b16 %v246
  %v888 = vunpack.c.h.b16 %v246
  %v889 = vunpack.c.l.b16 %v247
  %v890 = vunpack.c.h.b16 %v247
  %v891 = vunpack.c.l.b16 %v248
  %v892 = vunpack.c.h.b16 %v248
  %v893 = vunpack.c.l.b16 %v249
  %v894 = vunpack.c.h.b16 %v249
  %v895 = vpack.c.b16 %v505, %v503
  %v896 = vpack.c.b16 %v506, %v504
  %v897 = vpack.c.b16 %v509, %v507
  %v898 = vpack.c.b16 %v510, %v508
  %v899 = vpack.c.b16 %v513, %v511
  %v900 = vpack.c.b16 %v514, %v512
  %v901 = vpack.c.b16 %v517, %v515
  %v902 = vpack.c.b16 %v518, %v516
  %v903 = vpack.c.b16 %v521, %v519
  %v904 = vpack.c.b16 %v522, %v520
  %v905 = vpack.c.b16 %v525, %v523
  %v906 = vpack.c.b16 %v526, %v524
  %v907 = vpack.c.b16 %v529, %v527
  %v908 = vpack.c.b16 %v530, %v528
  %v909 = vpack.c.b16 %v533, %v531
  %v910 = vpack.c.b16 %v534, %v532
  %v911 = vpack.c.b16 %v537, %v535
  %v912 = vpack.c.b16 %v538, %v536
  %v913 = vpack.c.b16 %v541, %v539
  %v914 = vpack.c.b16 %v542, %v540
  %v915 = vpack.c.b16 %v545, %v543
  %v916 = vpack.c.b16 %v546, %v544
  %v917 = vpack.c.b16 %v549, %v547
  %v918 = vpack.c.b16 %v550, %v548
  %v919 = vpack.c.b16 %v553, %v551
  %v920 = vpack.c.b16 %v554, %v552
  %v921 = vpack.c.b16 %v557, %v555
  %v922 = vpack.c.b16 %v558, %v556
  %v923 = vpack.c.b16 %v561, %v559
  %v924 = vpack.c.b16 %v562, %v560
  %v925 = vpack.c.b16 %v565, %v563
  %v926 = vpack.c.b16 %v566, %v564
  %v927 = vpack.c.b16 %v569, %v567
  %v928 = vpack.c.b16 %v570, %v568
  %v929 = vpack.c.b16 %v573, %v571
  %v930 = vpack.c.b16 %v574, %v572
  %v931 = vpack.c.b16 %v577, %v575
  %v932 = vpack.c.b16 %v578, %v576
  %v933 = vpack.c.b16 %v581, %v579
  %v934 = vpack.c.b16 %v582, %v580
  %v935 = vpack.c.b16 %v585, %v583
  %v936 = vpack.c.b16 %v586, %v584
  %v937 = vpack.c.b16 %v589, %v587
  %v938 = vpack.c.b16 %v590, %v588
  %v939 = vpack.c.b16 %v593, %v591
  %v940 = vpack.c.b16 %v594, %v592
  %v941 = vpack.c.b16 %v597, %v595
  %v942 = vpack.c.b16 %v598, %v596
  %v943 = vpack.c.b16 %v601, %v599
  %v944 = vpack.c.b16 %v602, %v600
  %v945 = vpack.c.b16 %v605, %v603
  %v946 = vpack.c.b16 %v606, %v604
  %v947 = vpack.c.b16 %v609, %v607
  %v948 = vpack.c.b16 %v610, %v608
  %v949 = vpack.c.b16 %v613, %v611
  %v950 = vpack.c.b16 %v614, %v612
  %v951 = vpack.c.b16 %v617, %v615
  %v952 = vpack.c.b16 %v618, %v616
  %v953 = vpack.c.b16 %v621, %v619
  %v954 = vpack.c.b16 %v622, %v620
  %v955 = vpack.c.b16 %v625, %v623
  %v956 = vpack.c.b16 %v626, %v624
  %v957 = vpack.c.b16 %v629, %v627
  %v958 = vpack.c.b16 %v630, %v628
  %v959 = vpack.c.b16 %v633, %v631
  %v960 = vpack.c.b16 %v634, %v632
  %v961 = vpack.c.b16 %v637, %v635
  %v962 = vpack.c.b16 %v638, %v636
  %v963 = vpack.c.b16 %v641, %v639
  %v964 = vpack.c.b16 %v642, %v640
  %v965 = vpack.c.b16 %v645, %v643
  %v966 = vpack.c.b16 %v646, %v644
  %v967 = vpack.c.b16 %v649, %v647
  %v968 = vpack.c.b16 %v650, %v648
  %v969 = vpack.c.b16 %v653, %v651
  %v970 = vpack.c.b16 %v654, %v652
  %v971 = vpack.c.b16 %v657, %v655
  %v972 = vpack.c.b16 %v658, %v656
  %v973 = vpack.c.b16 %v661, %v659
  %v974 = vpack.c.b16 %v662, %v660
  %v975 = vpack.c.b16 %v665, %v663
  %v976 = vpack.c.b16 %v666, %v664
  %v977 = vpack.c.b16 %v669, %v667
  %v978 = vpack.c.b16 %v670, %v668
  %v979 = vpack.c.b16 %v673, %v671
  %v980 = vpack.c.b16 %v674, %v672
  %v981 = vpack.c.b16 %v677, %v675
  %v982 = vpack.c.b16 %v678, %v676
  %v983 = vpack.c.b16 %v681, %v679
  %v984 = vpack.c.b16 %v682, %v680
  %v985 = vpack.c.b16 %v685, %v683
  %v986 = vpack.c.b16 %v686, %v684
  %v987 = vpack.c.b16 %v689, %v687
  %v988 = vpack.c.b16 %v690, %v688
  %v989 = vpack.c.b16 %v693, %v691
  %v990 = vpack.c.b16 %v694, %v692
  %v991 = vpack.c.b16 %v697, %v695
  %v992 = vpack.c.b16 %v698, %v696
  %v993 = vpack.c.b16 %v701, %v699
  %v994 = vpack.c.b16 %v702, %v700
  %v995 = vpack.c.b16 %v705, %v703
  %v996 = vpack.c.b16 %v706, %v704
  %v997 = vpack.c.b16 %v709, %v707
  %v998 = vpack.c.b16 %v710, %v708
  %v999 = vpack.c.b16 %v713, %v711
  %v1000 = vpack.c.b16 %v714, %v712
  %v1001 = vpack.c.b16 %v717, %v715
  %v1002 = vpack.c.b16 %v718, %v716
  %v1003 = vpack.c.b16 %v721, %v719
  %v1004 = vpack.c.b16 %v722, %v720
  %v1005 = vpack.c.b16 %v725, %v723
  %v1006 = vpack.c.b16 %v726, %v724
  %v1007 = vpack.c.b16 %v729, %v727
  %v1008 = vpack.c.b16 %v730, %v728
  %v1009 = vpack.c.b16 %v733, %v731
  %v1010 = vpack.c.b16 %v734, %v732
  %v1011 = vpack.c.b16 %v737, %v735
  %v1012 = vpack.c.b16 %v738, %v736
  %v1013 = vpack.c.b16 %v741, %v739
  %v1014 = vpack.c.b16 %v742, %v740
  %v1015 = vpack.c.b16 %v745, %v743
  %v1016 = vpack.c.b16 %v746, %v744
  %v1017 = vpack.c.b16 %v749, %v747
  %v1018 = vpack.c.b16 %v750, %v748
  %v1019 = vpack.c.b16 %v753, %v751
  %v1020 = vpack.c.b16 %v754, %v752
  %v1021 = vpack.c.b16 %v757, %v755
  %v1022 = vpack.c.b16 %v758, %v756
  %v1023 = vpack.c.b16 %v761, %v759
  %v1024 = vpack.c.b16 %v762, %v760
  %v1025 = vpack.c.b16 %v765, %v763
  %v1026 = vpack.c.b16 %v766, %v764
  %v1027 = vpack.c.b16 %v769, %v767
  %v1028 = vpack.c.b16 %v770, %v768
  %v1029 = vpack.c.b16 %v773, %v771
  %v1030 = vpack.c.b16 %v774, %v772
  %v1031 = vpack.c.b16 %v777, %v775
  %v1032 = vpack.c.b16 %v778, %v776
  %v1033 = vpack.c.b16 %v781, %v779
  %v1034 = vpack.c.b16 %v782, %v780
  %v1035 = vpack.c.b16 %v785, %v783
  %v1036 = vpack.c.b16 %v786, %v784
  %v1037 = vpack.c.b16 %v789, %v787
  %v1038 = vpack.c.b16 %v790, %v788
  %v1039 = vpack.c.b16 %v793, %v791
  %v1040 = vpack.c.b16 %v794, %v792
  %v1041 = vpack.c.b16 %v797, %v795
  %v1042 = vpack.c.b16 %v798, %v796
  %v1043 = vpack.c.b16 %v801, %v799
  %v1044 = vpack.c.b16 %v802, %v800
  %v1045 = vpack.c.b16 %v805, %v803
  %v1046 = vpack.c.b16 %v806, %v804
  %v1047 = vpack.c.b16 %v809, %v807
  %v1048 = vpack.c.b16 %v810, %v808
  %v1049 = vpack.c.b16 %v813, %v811
  %v1050 = vpack.c.b16 %v814, %v812
  %v1051 = vpack.c.b16 %v817, %v815
  %v1052 = vpack.c.b16 %v818, %v816
  %v1053 = vpack.c.b16 %v821, %v819
  %v1054 = vpack.c.b16 %v822, %v820
  %v1055 = vpack.c.b16 %v825, %v823
  %v1056 = vpack.c.b16 %v826, %v824
  %v1057 = vpack.c.b16 %v829, %v827
  %v1058 = vpack.c.b16 %v830, %v828
  %v1059 = vpack.c.b16 %v833, %v831
  %v1060 = vpack.c.b16 %v834, %v832
  %v1061 = vpack.c.b16 %v837, %v835
  %v1062 = vpack.c.b16 %v838, %v836
  %v1063 = vpack.c.b16 %v841, %v839
  %v1064 = vpack.c.b16 %v842, %v840
  %v1065 = vpack.c.b16 %v845, %v843
  %v1066 = vpack.c.b16 %v846, %v844
  %v1067 = vpack.c.b16 %v849, %v847
  %v1068 = vpack.c.b16 %v850, %v848
  %v1069 = vpack.c.b16 %v853, %v851
  %v1070 = vpack.c.b16 %v854, %v852
  %v1071 = vpack.c.b16 %v857, %v855
  %v1072 = vpack.c.b16 %v858, %v856
  %v1073 = vpack.c.b16 %v861, %v859
  %v1074 = vpack.c.b16 %v862, %v860
  %v1075 = vpack.c.b16 %v865, %v863
  %v1076 = vpack.c.b16 %v866, %v864
  %v1077 = vpack.c.b16 %v869, %v867
  %v1078 = vpack.c.b16 %v870, %v868
  %v1079 = vpack.c.b16 %v873, %v871
  %v1080 = vpack.c.b16 %v874, %v872
  %v1081 = vpack.c.b16 %v877, %v875
  %v1082 = vpack.c.b16 %v878, %v876
  %v1083 = vpack.c.b16 %v881, %v879
  %v1084 = vpack.c.b16 %v882, %v880
  %v1085 = vpack.c.b16 %v885, %v883
  %v1086 = vpack.c.b16 %v886, %v884
  %v1087 = vpack.c.b16 %v889, %v887
  %v1088 = vpack.c.b16 %v890, %v888
  %v1089 = vpack.c.b16 %v893, %v891
  %v1090 = vpack.c.b16 %v894, %v892
  %vm1287 = vcmask 261120
  %v1289 = vsel %vm1287, %v294, 0
  %1291 = vmatprep.subr.bf16.mxu0 %v896
  %1292 = vmatpush1.bf16.msra.mxu0 %v895
  %1293 = vmatprep.subr.bf16.mxu0 %v898
  %1294 = vmatpush1.bf16.msra.mxu0 %v897
  %1295 = vmatprep.subr.bf16.mxu0 %v900
  %1296 = vmatpush1.bf16.msra.mxu0 %v899
  %1297 = vmatprep.subr.bf16.mxu0 %v902
  %1298 = vmatpush1.bf16.msra.mxu0 %v901
  %1299 = vmatprep.subr.bf16.mxu0 %v904
  %1300 = vmatpush1.bf16.msra.mxu0 %v903
  %1301 = vmatprep.subr.bf16.mxu0 %v906
  %1302 = vmatpush1.bf16.msra.mxu0 %v905
  %1303 = vmatprep.subr.bf16.mxu0 %v908
  %1304 = vmatpush1.bf16.msra.mxu0 %v907
  %1305 = vmatprep.subr.bf16.mxu0 %v910
  %1306 = vmatpush1.bf16.msra.mxu0 %v909
  %1307 = vmatprep.subr.bf16.mxu0 %v912
  %1308 = vmatpush1.bf16.msra.mxu0 %v911
  %1309 = vmatprep.subr.bf16.mxu0 %v914
  %1310 = vmatpush1.bf16.msra.mxu0 %v913
  %1311 = vmatprep.subr.bf16.mxu0 %v916
  %1312 = vmatpush1.bf16.msra.mxu0 %v915
  %1313 = vmatprep.subr.bf16.mxu0 %v918
  %1314 = vmatpush1.bf16.msra.mxu0 %v917
  %1315 = vmatprep.subr.bf16.mxu0 %v920
  %1316 = vmatpush1.bf16.msra.mxu0 %v919
  %1317 = vmatprep.subr.bf16.mxu0 %v922
  %1318 = vmatpush1.bf16.msra.mxu0 %v921
  %1319 = vmatprep.subr.bf16.mxu0 %v924
  %1320 = vmatpush1.bf16.msra.mxu0 %v923
  %1321 = vmatprep.subr.bf16.mxu0 %v926
  %1322 = vmatpush1.bf16.msra.mxu0 %v925
  %1323 = vmatprep.mubr.bf16.mxu0 %v283
  %1324 = vmatmul.mubr.bf16.gmra.mrb[0].mxu0 %v282
  %v1325 = vpop.f32.mrb[0].mxu0
  %v1326 = vadd.f32 %v255, %v1325
  %v1327 = vpop.f32.mrb[0].mxu0
  %v1328 = vadd.f32 %v259, %v1327
  %v1329 = vpop.f32.mrb[0].mxu0
  %v1330 = vpop.f32.mrb[0].mxu0
  %1331 = vdwg.mxu0
  %1332 = vmatprep.subr.bf16.mxu0 %v928
  %1333 = vmatpush1.bf16.msra.mxu0 %v927
  %1334 = vmatprep.subr.bf16.mxu0 %v930
  %1335 = vmatpush1.bf16.msra.mxu0 %v929
  %1336 = vmatprep.subr.bf16.mxu0 %v932
  %1337 = vmatpush1.bf16.msra.mxu0 %v931
  %1338 = vmatprep.subr.bf16.mxu0 %v934
  %1339 = vmatpush1.bf16.msra.mxu0 %v933
  %1340 = vmatprep.subr.bf16.mxu0 %v936
  %1341 = vmatpush1.bf16.msra.mxu0 %v935
  %1342 = vmatprep.subr.bf16.mxu0 %v938
  %1343 = vmatpush1.bf16.msra.mxu0 %v937
  %1344 = vmatprep.subr.bf16.mxu0 %v940
  %1345 = vmatpush1.bf16.msra.mxu0 %v939
  %1346 = vmatprep.subr.bf16.mxu0 %v942
  %1347 = vmatpush1.bf16.msra.mxu0 %v941
  %1348 = vmatprep.subr.bf16.mxu0 %v944
  %1349 = vmatpush1.bf16.msra.mxu0 %v943
  %1350 = vmatprep.subr.bf16.mxu0 %v946
  %1351 = vmatpush1.bf16.msra.mxu0 %v945
  %1352 = vmatprep.subr.bf16.mxu0 %v948
  %1353 = vmatpush1.bf16.msra.mxu0 %v947
  %1354 = vmatprep.subr.bf16.mxu0 %v950
  %1355 = vmatpush1.bf16.msra.mxu0 %v949
  %1356 = vmatprep.subr.bf16.mxu0 %v952
  %1357 = vmatpush1.bf16.msra.mxu0 %v951
  %1358 = vmatprep.subr.bf16.mxu0 %v954
  %1359 = vmatpush1.bf16.msra.mxu0 %v953
  %1360 = vmatprep.subr.bf16.mxu0 %v956
  %1361 = vmatpush1.bf16.msra.mxu0 %v955
  %1362 = vmatprep.subr.bf16.mxu0 %v958
  %1363 = vmatpush1.bf16.msra.mxu0 %v957
  %1364 = vmatprep.mubr.bf16.mxu0 %v285
  %1365 = vmatmul.mubr.bf16.gmra.mrb[0].mxu0 %v284
  %v1366 = vpop.f32.mrb[0].mxu0
  %v1367 = vadd.f32 %v1326, %v1366
  %v1368 = vpop.f32.mrb[0].mxu0
  %v1369 = vadd.f32 %v1328, %v1368
  %v1370 = vpop.f32.mrb[0].mxu0
  %v1371 = vpop.f32.mrb[0].mxu0
  %1372 = vdwg.mxu0
  %1373 = vmatprep.subr.bf16.mxu0 %v960
  %1374 = vmatpush1.bf16.msra.mxu0 %v959
  %1375 = vmatprep.subr.bf16.mxu0 %v962
  %1376 = vmatpush1.bf16.msra.mxu0 %v961
  %1377 = vmatprep.subr.bf16.mxu0 %v964
  %1378 = vmatpush1.bf16.msra.mxu0 %v963
  %1379 = vmatprep.subr.bf16.mxu0 %v966
  %1380 = vmatpush1.bf16.msra.mxu0 %v965
  %1381 = vmatprep.subr.bf16.mxu0 %v968
  %1382 = vmatpush1.bf16.msra.mxu0 %v967
  %1383 = vmatprep.subr.bf16.mxu0 %v970
  %1384 = vmatpush1.bf16.msra.mxu0 %v969
  %1385 = vmatprep.subr.bf16.mxu0 %v972
  %1386 = vmatpush1.bf16.msra.mxu0 %v971
  %1387 = vmatprep.subr.bf16.mxu0 %v974
  %1388 = vmatpush1.bf16.msra.mxu0 %v973
  %1389 = vmatprep.subr.bf16.mxu0 %v976
  %1390 = vmatpush1.bf16.msra.mxu0 %v975
  %1391 = vmatprep.subr.bf16.mxu0 %v978
  %1392 = vmatpush1.bf16.msra.mxu0 %v977
  %1393 = vmatprep.subr.bf16.mxu0 %v980
  %1394 = vmatpush1.bf16.msra.mxu0 %v979
  %1395 = vmatprep.subr.bf16.mxu0 %v982
  %1396 = vmatpush1.bf16.msra.mxu0 %v981
  %1397 = vmatprep.subr.bf16.mxu0 %v984
  %1398 = vmatpush1.bf16.msra.mxu0 %v983
  %1399 = vmatprep.subr.bf16.mxu0 %v986
  %1400 = vmatpush1.bf16.msra.mxu0 %v985
  %1401 = vmatprep.subr.bf16.mxu0 %v988
  %1402 = vmatpush1.bf16.msra.mxu0 %v987
  %1403 = vmatprep.subr.bf16.mxu0 %v990
  %1404 = vmatpush1.bf16.msra.mxu0 %v989
  %1405 = vmatprep.mubr.bf16.mxu0 %v287
  %1406 = vmatmul.mubr.bf16.gmra.mrb[0].mxu0 %v286
  %v1407 = vpop.f32.mrb[0].mxu0
  %v1408 = vadd.f32 %v1367, %v1407
  %v1409 = vpop.f32.mrb[0].mxu0
  %v1410 = vadd.f32 %v1369, %v1409
  %v1411 = vpop.f32.mrb[0].mxu0
  %v1412 = vpop.f32.mrb[0].mxu0
  %1413 = vdwg.mxu0
  %1414 = vmatprep.subr.bf16.mxu0 %v992
  %1415 = vmatpush1.bf16.msra.mxu0 %v991
  %1416 = vmatprep.subr.bf16.mxu0 %v994
  %1417 = vmatpush1.bf16.msra.mxu0 %v993
  %1418 = vmatprep.subr.bf16.mxu0 %v996
  %1419 = vmatpush1.bf16.msra.mxu0 %v995
  %1420 = vmatprep.subr.bf16.mxu0 %v998
  %1421 = vmatpush1.bf16.msra.mxu0 %v997
  %1422 = vmatprep.subr.bf16.mxu0 %v1000
  %1423 = vmatpush1.bf16.msra.mxu0 %v999
  %1424 = vmatprep.subr.bf16.mxu0 %v1002
  %1425 = vmatpush1.bf16.msra.mxu0 %v1001
  %1426 = vmatprep.subr.bf16.mxu0 %v1004
  %1427 = vmatpush1.bf16.msra.mxu0 %v1003
  %1428 = vmatprep.subr.bf16.mxu0 %v1006
  %1429 = vmatpush1.bf16.msra.mxu0 %v1005
  %1430 = vmatprep.subr.bf16.mxu0 %v1008
  %1431 = vmatpush1.bf16.msra.mxu0 %v1007
  %1432 = vmatprep.subr.bf16.mxu0 %v1010
  %1433 = vmatpush1.bf16.msra.mxu0 %v1009
  %1434 = vmatprep.subr.bf16.mxu0 %v1012
  %1435 = vmatpush1.bf16.msra.mxu0 %v1011
  %1436 = vmatprep.subr.bf16.mxu0 %v1014
  %1437 = vmatpush1.bf16.msra.mxu0 %v1013
  %1438 = vmatprep.subr.bf16.mxu0 %v1016
  %1439 = vmatpush1.bf16.msra.mxu0 %v1015
  %1440 = vmatprep.subr.bf16.mxu0 %v1018
  %1441 = vmatpush1.bf16.msra.mxu0 %v1017
  %1442 = vmatprep.subr.bf16.mxu0 %v1020
  %1443 = vmatpush1.bf16.msra.mxu0 %v1019
  %1444 = vmatprep.subr.bf16.mxu0 %v1022
  %1445 = vmatpush1.bf16.msra.mxu0 %v1021
  %1446 = vmatprep.mubr.bf16.mxu0 %v289
  %1447 = vmatmul.mubr.bf16.gmra.mrb[0].mxu0 %v288
  %v1448 = vpop.f32.mrb[0].mxu0
  %v1449 = vadd.f32 %v1408, %v1448
  %v1450 = vpop.f32.mrb[0].mxu0
  %v1451 = vadd.f32 %v1410, %v1450
  %v1452 = vpop.f32.mrb[0].mxu0
  %v1453 = vpop.f32.mrb[0].mxu0
  %1454 = vdwg.mxu0
  %1455 = vmatprep.subr.bf16.mxu0 %v1024
  %1456 = vmatpush1.bf16.msra.mxu0 %v1023
  %1457 = vmatprep.subr.bf16.mxu0 %v1026
  %1458 = vmatpush1.bf16.msra.mxu0 %v1025
  %1459 = vmatprep.subr.bf16.mxu0 %v1028
  %1460 = vmatpush1.bf16.msra.mxu0 %v1027
  %1461 = vmatprep.subr.bf16.mxu0 %v1030
  %1462 = vmatpush1.bf16.msra.mxu0 %v1029
  %1463 = vmatprep.subr.bf16.mxu0 %v1032
  %1464 = vmatpush1.bf16.msra.mxu0 %v1031
  %1465 = vmatprep.subr.bf16.mxu0 %v1034
  %1466 = vmatpush1.bf16.msra.mxu0 %v1033
  %1467 = vmatprep.subr.bf16.mxu0 %v1036
  %1468 = vmatpush1.bf16.msra.mxu0 %v1035
  %1469 = vmatprep.subr.bf16.mxu0 %v1038
  %1470 = vmatpush1.bf16.msra.mxu0 %v1037
  %1471 = vmatprep.subr.bf16.mxu0 %v1040
  %1472 = vmatpush1.bf16.msra.mxu0 %v1039
  %1473 = vmatprep.subr.bf16.mxu0 %v1042
  %1474 = vmatpush1.bf16.msra.mxu0 %v1041
  %1475 = vmatprep.subr.bf16.mxu0 %v1044
  %1476 = vmatpush1.bf16.msra.mxu0 %v1043
  %1477 = vmatprep.subr.bf16.mxu0 %v1046
  %1478 = vmatpush1.bf16.msra.mxu0 %v1045
  %1479 = vmatprep.subr.bf16.mxu0 %v1048
  %1480 = vmatpush1.bf16.msra.mxu0 %v1047
  %1481 = vmatprep.subr.bf16.mxu0 %v1050
  %1482 = vmatpush1.bf16.msra.mxu0 %v1049
  %1483 = vmatprep.subr.bf16.mxu0 %v1052
  %1484 = vmatpush1.bf16.msra.mxu0 %v1051
  %1485 = vmatprep.subr.bf16.mxu0 %v1054
  %1486 = vmatpush1.bf16.msra.mxu0 %v1053
  %1487 = vmatprep.mubr.bf16.mxu0 %v291
  %1488 = vmatmul.mubr.bf16.gmra.mrb[0].mxu0 %v290
  %v1489 = vpop.f32.mrb[0].mxu0
  %v1490 = vadd.f32 %v1449, %v1489
  %v1491 = vpop.f32.mrb[0].mxu0
  %v1492 = vadd.f32 %v1451, %v1491
  %v1493 = vpop.f32.mrb[0].mxu0
  %v1494 = vpop.f32.mrb[0].mxu0
  %1495 = vdwg.mxu0
  %1496 = vmatprep.subr.bf16.mxu0 %v1056
  %1497 = vmatpush1.bf16.msra.mxu0 %v1055
  %1498 = vmatprep.subr.bf16.mxu0 %v1058
  %1499 = vmatpush1.bf16.msra.mxu0 %v1057
  %1500 = vmatprep.subr.bf16.mxu0 %v1060
  %1501 = vmatpush1.bf16.msra.mxu0 %v1059
  %1502 = vmatprep.subr.bf16.mxu0 %v1062
  %1503 = vmatpush1.bf16.msra.mxu0 %v1061
  %1504 = vmatprep.subr.bf16.mxu0 %v1064
  %1505 = vmatpush1.bf16.msra.mxu0 %v1063
  %1506 = vmatprep.subr.bf16.mxu0 %v1066
  %1507 = vmatpush1.bf16.msra.mxu0 %v1065
  %1508 = vmatprep.subr.bf16.mxu0 %v1068
  %1509 = vmatpush1.bf16.msra.mxu0 %v1067
  %1510 = vmatprep.subr.bf16.mxu0 %v1070
  %1511 = vmatpush1.bf16.msra.mxu0 %v1069
  %1512 = vmatprep.subr.bf16.mxu0 %v1072
  %1513 = vmatpush1.bf16.msra.mxu0 %v1071
  %1514 = vmatprep.subr.bf16.mxu0 %v1074
  %1515 = vmatpush1.bf16.msra.mxu0 %v1073
  %1516 = vmatprep.subr.bf16.mxu0 %v1076
  %1517 = vmatpush1.bf16.msra.mxu0 %v1075
  %1518 = vmatprep.subr.bf16.mxu0 %v1078
  %1519 = vmatpush1.bf16.msra.mxu0 %v1077
  %1520 = vmatprep.subr.bf16.mxu0 %v1080
  %1521 = vmatpush1.bf16.msra.mxu0 %v1079
  %1522 = vmatprep.subr.bf16.mxu0 %v1082
  %1523 = vmatpush1.bf16.msra.mxu0 %v1081
  %1524 = vmatprep.subr.bf16.mxu0 %v1084
  %1525 = vmatpush1.bf16.msra.mxu0 %v1083
  %1526 = vmatprep.subr.bf16.mxu0 %v1086
  %1527 = vmatpush1.bf16.msra.mxu0 %v1085
  %1528 = vmatprep.mubr.bf16.mxu0 %v293
  %1529 = vmatmul.mubr.bf16.gmra.mrb[0].mxu0 %v292
  %v1530 = vpop.f32.mrb[0].mxu0
  %v1531 = vadd.f32 %v1490, %v1530
  %v1532 = vpop.f32.mrb[0].mxu0
  %v1533 = vadd.f32 %v1492, %v1532
  %v1534 = vpop.f32.mrb[0].mxu0
  %v1535 = vpop.f32.mrb[0].mxu0
  %1536 = vdwg.mxu0
  %1537 = vmatprep.subr.bf16.mxu0 %v1088
  %1538 = vmatpush1.bf16.msra.mxu0 %v1087
  %1539 = vmatprep.subr.bf16.mxu0 %v1090
  %1540 = vmatpush1.bf16.msra.mxu0 %v1089
  %1541 = vmatprep.subr.bf16.mxu0 0
  %1542 = vmatpush1.bf16.msra.mxu0 0
  %1543 = vmatprep.subr.bf16.mxu0 0
  %1544 = vmatpush1.bf16.msra.mxu0 0
  %1545 = vmatprep.subr.bf16.mxu0 0
  %1546 = vmatpush1.bf16.msra.mxu0 0
  %1547 = vmatprep.subr.bf16.mxu0 0
  %1548 = vmatpush1.bf16.msra.mxu0 0
  %1549 = vmatprep.subr.bf16.mxu0 0
  %1550 = vmatpush1.bf16.msra.mxu0 0
  %1551 = vmatprep.subr.bf16.mxu0 0
  %1552 = vmatpush1.bf16.msra.mxu0 0
  %1553 = vmatprep.subr.bf16.mxu0 0
  %1554 = vmatpush1.bf16.msra.mxu0 0
  %1555 = vmatprep.subr.bf16.mxu0 0
  %1556 = vmatpush1.bf16.msra.mxu0 0
  %1557 = vmatprep.subr.bf16.mxu0 0
  %1558 = vmatpush1.bf16.msra.mxu0 0
  %1559 = vmatprep.subr.bf16.mxu0 0
  %1560 = vmatpush1.bf16.msra.mxu0 0
  %1561 = vmatprep.subr.bf16.mxu0 0
  %1562 = vmatpush1.bf16.msra.mxu0 0
  %1563 = vmatprep.subr.bf16.mxu0 0
  %1564 = vmatpush1.bf16.msra.mxu0 0
  %1565 = vmatprep.subr.bf16.mxu0 0
  %1566 = vmatpush1.bf16.msra.mxu0 0
  %1567 = vmatprep.subr.bf16.mxu0 0
  %1568 = vmatpush1.bf16.msra.mxu0 0
  %1569 = vmatprep.mubr.bf16.mxu0 0
  %1570 = vmatmul.mubr.bf16.gmra.mrb[0].mxu0 %v1289
  %v1571 = vpop.f32.mrb[0].mxu0
  %v1572 = vadd.f32 %v1531, %v1571
  %v1573 = vpop.f32.mrb[0].mxu0
  %v1574 = vadd.f32 %v1533, %v1573
  %v1575 = vpop.f32.mrb[0].mxu0
  %v1576 = vpop.f32.mrb[0].mxu0
  %1577 = vdwg.mxu0
  %v1578 = vmax.f32 %v1572, 0.0
  %v1579 = vmax.f32 %v1574, 0.0
  %v1580 = vpack.c.bf16 %v1578, %v1578
  %v1581 = vpack.c.bf16 %v1579, %v1579
  %v1582 = vld [vmem:[%s3] sm:$0xff]
  %v1583 = vld [vmem:[%s3 + $0x8] sm:$0xff]
  %v1584 = vld [vmem:[%s3 + $0x10] sm:$0xff]
  %v1585 = vld [vmem:[%s3 + $0x18] sm:$0xff]
  %v1586 = vld [vmem:[%s3 + $0x20] sm:$0xff]
  %v1587 = vld [vmem:[%s3 + $0x28] sm:$0xff]
  %v1588 = vld [vmem:[%s3 + $0x30] sm:$0xff]
  %v1589 = vld [vmem:[%s3 + $0x38] sm:$0xff]
  %v1590 = vld [vmem:[%s3 + $0x40] sm:$0xff]
  %v1591 = vld [vmem:[%s3 + $0x48] sm:$0xff]
  %v1592 = vld [vmem:[%s3 + $0x50] sm:$0xff]
  %v1593 = vld [vmem:[%s3 + $0x58] sm:$0xff]
  %v1594 = vld [vmem:[%s3 + $0x60] sm:$0xff]
  %v1595 = vld [vmem:[%s3 + $0x68] sm:$0xff]
  %v1596 = vld [vmem:[%s3 + $0x70] sm:$0xff]
  %v1597 = vld [vmem:[%s3 + $0x78] sm:$0xff]
  %v1598 = vld [vmem:[%s3 + $0x80] sm:$0xff]
  %v1599 = vld [vmem:[%s3 + $0x88] sm:$0xff]
  %v1600 = vld [vmem:[%s3 + $0x90] sm:$0xff]
  %v1601 = vld [vmem:[%s3 + $0x98] sm:$0xff]
  %v1602 = vld [vmem:[%s3 + $0xa0] sm:$0xff]
  %v1603 = vld [vmem:[%s3 + $0xa8] sm:$0xff]
  %v1604 = vld [vmem:[%s3 + $0xb0] sm:$0xff]
  %v1605 = vld [vmem:[%s3 + $0xb8] sm:$0xff]
  %v1606 = vld [vmem:[%s3 + $0xc0] sm:$0xff]
  %v1607 = vld [vmem:[%s3 + $0xc8] sm:$0xff]
  %v1608 = vld [vmem:[%s3 + $0xd0] sm:$0xff]
  %v1609 = vld [vmem:[%s3 + $0xd8] sm:$0xff]
  %v1610 = vld [vmem:[%s3 + $0xe0] sm:$0xff]
  %v1611 = vld [vmem:[%s3 + $0xe8] sm:$0xff]
  %v1612 = vld [vmem:[%s3 + $0xf0] sm:$0xff]
  %v1613 = vld [vmem:[%s3 + $0xf8] sm:$0xff]
  %v1614 = vld [vmem:[%s4] sm:$0x3]
  %v1616 = vlaneseq
  %v1617 = vshrl.u32 %v1616, 7
  %v1618 = vsub.s32 0, %v1617
  %v1619 = vrot.slane %v1614, %v1618
  %v1620 = vlaneseq
  %v1621 = vshrl.u32 %v1620, 7
  %v1622 = vsub.s32 1, %v1621
  %v1623 = vrot.slane %v1614, %v1622
  %v1658 = vunpack.c.l.b16 %v1582
  %v1659 = vunpack.c.h.b16 %v1582
  %v1660 = vunpack.c.l.b16 %v1583
  %v1661 = vunpack.c.h.b16 %v1583
  %v1662 = vunpack.c.l.b16 %v1584
  %v1663 = vunpack.c.h.b16 %v1584
  %v1664 = vunpack.c.l.b16 %v1585
  %v1665 = vunpack.c.h.b16 %v1585
  %v1666 = vunpack.c.l.b16 %v1586
  %v1667 = vunpack.c.h.b16 %v1586
  %v1668 = vunpack.c.l.b16 %v1587
  %v1669 = vunpack.c.h.b16 %v1587
  %v1670 = vunpack.c.l.b16 %v1588
  %v1671 = vunpack.c.h.b16 %v1588
  %v1672 = vunpack.c.l.b16 %v1589
  %v1673 = vunpack.c.h.b16 %v1589
  %v1674 = vunpack.c.l.b16 %v1590
  %v1675 = vunpack.c.h.b16 %v1590
  %v1676 = vunpack.c.l.b16 %v1591
  %v1677 = vunpack.c.h.b16 %v1591
  %v1678 = vunpack.c.l.b16 %v1592
  %v1679 = vunpack.c.h.b16 %v1592
  %v1680 = vunpack.c.l.b16 %v1593
  %v1681 = vunpack.c.h.b16 %v1593
  %v1682 = vunpack.c.l.b16 %v1594
  %v1683 = vunpack.c.h.b16 %v1594
  %v1684 = vunpack.c.l.b16 %v1595
  %v1685 = vunpack.c.h.b16 %v1595
  %v1686 = vunpack.c.l.b16 %v1596
  %v1687 = vunpack.c.h.b16 %v1596
  %v1688 = vunpack.c.l.b16 %v1597
  %v1689 = vunpack.c.h.b16 %v1597
  %v1690 = vunpack.c.l.b16 %v1598
  %v1691 = vunpack.c.h.b16 %v1598
  %v1692 = vunpack.c.l.b16 %v1599
  %v1693 = vunpack.c.h.b16 %v1599
  %v1694 = vunpack.c.l.b16 %v1600
  %v1695 = vunpack.c.h.b16 %v1600
  %v1696 = vunpack.c.l.b16 %v1601
  %v1697 = vunpack.c.h.b16 %v1601
  %v1698 = vunpack.c.l.b16 %v1602
  %v1699 = vunpack.c.h.b16 %v1602
  %v1700 = vunpack.c.l.b16 %v1603
  %v1701 = vunpack.c.h.b16 %v1603
  %v1702 = vunpack.c.l.b16 %v1604
  %v1703 = vunpack.c.h.b16 %v1604
  %v1704 = vunpack.c.l.b16 %v1605
  %v1705 = vunpack.c.h.b16 %v1605
  %v1706 = vunpack.c.l.b16 %v1606
  %v1707 = vunpack.c.h.b16 %v1606
  %v1708 = vunpack.c.l.b16 %v1607
  %v1709 = vunpack.c.h.b16 %v1607
  %v1710 = vunpack.c.l.b16 %v1608
  %v1711 = vunpack.c.h.b16 %v1608
  %v1712 = vunpack.c.l.b16 %v1609
  %v1713 = vunpack.c.h.b16 %v1609
  %v1714 = vunpack.c.l.b16 %v1610
  %v1715 = vunpack.c.h.b16 %v1610
  %v1716 = vunpack.c.l.b16 %v1611
  %v1717 = vunpack.c.h.b16 %v1611
  %v1718 = vunpack.c.l.b16 %v1612
  %v1719 = vunpack.c.h.b16 %v1612
  %v1720 = vunpack.c.l.b16 %v1613
  %v1721 = vunpack.c.h.b16 %v1613
  %v1722 = vpack.c.b16 %v1660, %v1658
  %v1723 = vpack.c.b16 %v1661, %v1659
  %v1724 = vpack.c.b16 %v1664, %v1662
  %v1725 = vpack.c.b16 %v1665, %v1663
  %v1726 = vpack.c.b16 %v1668, %v1666
  %v1727 = vpack.c.b16 %v1669, %v1667
  %v1728 = vpack.c.b16 %v1672, %v1670
  %v1729 = vpack.c.b16 %v1673, %v1671
  %v1730 = vpack.c.b16 %v1676, %v1674
  %v1731 = vpack.c.b16 %v1677, %v1675
  %v1732 = vpack.c.b16 %v1680, %v1678
  %v1733 = vpack.c.b16 %v1681, %v1679
  %v1734 = vpack.c.b16 %v1684, %v1682
  %v1735 = vpack.c.b16 %v1685, %v1683
  %v1736 = vpack.c.b16 %v1688, %v1686
  %v1737 = vpack.c.b16 %v1689, %v1687
  %v1738 = vpack.c.b16 %v1692, %v1690
  %v1739 = vpack.c.b16 %v1693, %v1691
  %v1740 = vpack.c.b16 %v1696, %v1694
  %v1741 = vpack.c.b16 %v1697, %v1695
  %v1742 = vpack.c.b16 %v1700, %v1698
  %v1743 = vpack.c.b16 %v1701, %v1699
  %v1744 = vpack.c.b16 %v1704, %v1702
  %v1745 = vpack.c.b16 %v1705, %v1703
  %v1746 = vpack.c.b16 %v1708, %v1706
  %v1747 = vpack.c.b16 %v1709, %v1707
  %v1748 = vpack.c.b16 %v1712, %v1710
  %v1749 = vpack.c.b16 %v1713, %v1711
  %v1750 = vpack.c.b16 %v1716, %v1714
  %v1751 = vpack.c.b16 %v1717, %v1715
  %v1752 = vpack.c.b16 %v1720, %v1718
  %v1753 = vpack.c.b16 %v1721, %v1719
  %1786 = vmatprep.subr.bf16.mxu0 %v1723
  %1787 = vmatpush1.bf16.msra.mxu0 %v1722
  %1788 = vmatprep.subr.bf16.mxu0 %v1725
  %1789 = vmatpush1.bf16.msra.mxu0 %v1724
  %1790 = vmatprep.subr.bf16.mxu0 %v1727
  %1791 = vmatpush1.bf16.msra.mxu0 %v1726
  %1792 = vmatprep.subr.bf16.mxu0 %v1729
  %1793 = vmatpush1.bf16.msra.mxu0 %v1728
  %1794 = vmatprep.subr.bf16.mxu0 %v1731
  %1795 = vmatpush1.bf16.msra.mxu0 %v1730
  %1796 = vmatprep.subr.bf16.mxu0 %v1733
  %1797 = vmatpush1.bf16.msra.mxu0 %v1732
  %1798 = vmatprep.subr.bf16.mxu0 %v1735
  %1799 = vmatpush1.bf16.msra.mxu0 %v1734
  %1800 = vmatprep.subr.bf16.mxu0 %v1737
  %1801 = vmatpush1.bf16.msra.mxu0 %v1736
  %1802 = vmatprep.subr.bf16.mxu0 %v1739
  %1803 = vmatpush1.bf16.msra.mxu0 %v1738
  %1804 = vmatprep.subr.bf16.mxu0 %v1741
  %1805 = vmatpush1.bf16.msra.mxu0 %v1740
  %1806 = vmatprep.subr.bf16.mxu0 %v1743
  %1807 = vmatpush1.bf16.msra.mxu0 %v1742
  %1808 = vmatprep.subr.bf16.mxu0 %v1745
  %1809 = vmatpush1.bf16.msra.mxu0 %v1744
  %1810 = vmatprep.subr.bf16.mxu0 %v1747
  %1811 = vmatpush1.bf16.msra.mxu0 %v1746
  %1812 = vmatprep.subr.bf16.mxu0 %v1749
  %1813 = vmatpush1.bf16.msra.mxu0 %v1748
  %1814 = vmatprep.subr.bf16.mxu0 %v1751
  %1815 = vmatpush1.bf16.msra.mxu0 %v1750
  %1816 = vmatprep.subr.bf16.mxu0 %v1753
  %1817 = vmatpush1.bf16.msra.mxu0 %v1752
  %1818 = vmatprep.mubr.bf16.mxu0 %v1581
  %1819 = vmatmul.mubr.bf16.gmra.mrb[0].mxu0 %v1580
  %v1820 = vpop.f32.mrb[0].mxu0
  %v1821 = vadd.f32 %v1619, %v1820
  %v1822 = vpop.f32.mrb[0].mxu0
  %v1823 = vadd.f32 %v1623, %v1822
  %v1824 = vpop.f32.mrb[0].mxu0
  %v1825 = vpop.f32.mrb[0].mxu0
  %1826 = vdwg.mxu0
  %v1827 = vmax.f32 %v1821, 0.0
  %v1828 = vmax.f32 %v1823, 0.0
  %v1829 = vpack.c.bf16 %v1827, %v1827
  %v1830 = vpack.c.bf16 %v1828, %v1828
  %v1831 = vld [vmem:[%s5] sm:$0xf]
  %v1832 = vld [vmem:[%s5 + $0x4] sm:$0xf]
  %v1833 = vld [vmem:[%s5 + $0x8] sm:$0xf]
  %v1834 = vld [vmem:[%s5 + $0xc] sm:$0xf]
  %v1835 = vld [vmem:[%s5 + $0x10] sm:$0xf]
  %v1836 = vld [vmem:[%s5 + $0x14] sm:$0xf]
  %v1837 = vld [vmem:[%s5 + $0x18] sm:$0xf]
  %v1838 = vld [vmem:[%s5 + $0x1c] sm:$0xf]
  %v1839 = vld [vmem:[%s5 + $0x20] sm:$0xf]
  %v1840 = vld [vmem:[%s5 + $0x24] sm:$0xf]
  %v1841 = vld [vmem:[%s5 + $0x28] sm:$0xf]
  %v1842 = vld [vmem:[%s5 + $0x2c] sm:$0xf]
  %v1843 = vld [vmem:[%s5 + $0x30] sm:$0xf]
  %v1844 = vld [vmem:[%s5 + $0x34] sm:$0xf]
  %v1845 = vld [vmem:[%s5 + $0x38] sm:$0xf]
  %v1846 = vld [vmem:[%s5 + $0x3c] sm:$0xf]
  %v1847 = vld [vmem:[%s5 + $0x40] sm:$0xf]
  %v1848 = vld [vmem:[%s5 + $0x44] sm:$0xf]
  %v1849 = vld [vmem:[%s5 + $0x48] sm:$0xf]
  %v1850 = vld [vmem:[%s5 + $0x4c] sm:$0xf]
  %v1851 = vld [vmem:[%s5 + $0x50] sm:$0xf]
  %v1852 = vld [vmem:[%s5 + $0x54] sm:$0xf]
  %v1853 = vld [vmem:[%s5 + $0x58] sm:$0xf]
  %v1854 = vld [vmem:[%s5 + $0x5c] sm:$0xf]
  %v1855 = vld [vmem:[%s5 + $0x60] sm:$0xf]
  %v1856 = vld [vmem:[%s5 + $0x64] sm:$0xf]
  %v1857 = vld [vmem:[%s5 + $0x68] sm:$0xf]
  %v1858 = vld [vmem:[%s5 + $0x6c] sm:$0xf]
  %v1859 = vld [vmem:[%s5 + $0x70] sm:$0xf]
  %v1860 = vld [vmem:[%s5 + $0x74] sm:$0xf]
  %v1861 = vld [vmem:[%s5 + $0x78] sm:$0xf]
  %v1862 = vld [vmem:[%s5 + $0x7c] sm:$0xf]
  %v1863 = vld [vmem:[%s6] sm:$0x1]
  %v1865 = vlaneseq
  %v1866 = vshrl.u32 %v1865, 7
  %v1867 = vsub.s32 0, %v1866
  %v1868 = vrot.slane %v1863, %v1867
  %v1902 = vunpack.c.l.b16 %v1831
  %v1903 = vunpack.c.l.b16 %v1832
  %v1904 = vunpack.c.l.b16 %v1833
  %v1905 = vunpack.c.l.b16 %v1834
  %v1906 = vunpack.c.l.b16 %v1835
  %v1907 = vunpack.c.l.b16 %v1836
  %v1908 = vunpack.c.l.b16 %v1837
  %v1909 = vunpack.c.l.b16 %v1838
  %v1910 = vunpack.c.l.b16 %v1839
  %v1911 = vunpack.c.l.b16 %v1840
  %v1912 = vunpack.c.l.b16 %v1841
  %v1913 = vunpack.c.l.b16 %v1842
  %v1914 = vunpack.c.l.b16 %v1843
  %v1915 = vunpack.c.l.b16 %v1844
  %v1916 = vunpack.c.l.b16 %v1845
  %v1917 = vunpack.c.l.b16 %v1846
  %v1918 = vunpack.c.l.b16 %v1847
  %v1919 = vunpack.c.l.b16 %v1848
  %v1920 = vunpack.c.l.b16 %v1849
  %v1921 = vunpack.c.l.b16 %v1850
  %v1922 = vunpack.c.l.b16 %v1851
  %v1923 = vunpack.c.l.b16 %v1852
  %v1924 = vunpack.c.l.b16 %v1853
  %v1925 = vunpack.c.l.b16 %v1854
  %v1926 = vunpack.c.l.b16 %v1855
  %v1927 = vunpack.c.l.b16 %v1856
  %v1928 = vunpack.c.l.b16 %v1857
  %v1929 = vunpack.c.l.b16 %v1858
  %v1930 = vunpack.c.l.b16 %v1859
  %v1931 = vunpack.c.l.b16 %v1860
  %v1932 = vunpack.c.l.b16 %v1861
  %v1933 = vunpack.c.l.b16 %v1862
  %v1934 = vpack.c.b16 %v1903, %v1902
  %v1935 = vpack.c.b16 %v1905, %v1904
  %v1936 = vpack.c.b16 %v1907, %v1906
  %v1937 = vpack.c.b16 %v1909, %v1908
  %v1938 = vpack.c.b16 %v1911, %v1910
  %v1939 = vpack.c.b16 %v1913, %v1912
  %v1940 = vpack.c.b16 %v1915, %v1914
  %v1941 = vpack.c.b16 %v1917, %v1916
  %v1942 = vpack.c.b16 %v1919, %v1918
  %v1943 = vpack.c.b16 %v1921, %v1920
  %v1944 = vpack.c.b16 %v1923, %v1922
  %v1945 = vpack.c.b16 %v1925, %v1924
  %v1946 = vpack.c.b16 %v1927, %v1926
  %v1947 = vpack.c.b16 %v1929, %v1928
  %v1948 = vpack.c.b16 %v1931, %v1930
  %v1949 = vpack.c.b16 %v1933, %v1932
  %1966 = vmatprep.subr.bf16.mxu0 0
  %1967 = vmatpush1.bf16.msra.mxu0 %v1934
  %1968 = vmatprep.subr.bf16.mxu0 0
  %1969 = vmatpush1.bf16.msra.mxu0 %v1935
  %1970 = vmatprep.subr.bf16.mxu0 0
  %1971 = vmatpush1.bf16.msra.mxu0 %v1936
  %1972 = vmatprep.subr.bf16.mxu0 0
  %1973 = vmatpush1.bf16.msra.mxu0 %v1937
  %1974 = vmatprep.subr.bf16.mxu0 0
  %1975 = vmatpush1.bf16.msra.mxu0 %v1938
  %1976 = vmatprep.subr.bf16.mxu0 0
  %1977 = vmatpush1.bf16.msra.mxu0 %v1939
  %1978 = vmatprep.subr.bf16.mxu0 0
  %1979 = vmatpush1.bf16.msra.mxu0 %v1940
  %1980 = vmatprep.subr.bf16.mxu0 0
  %1981 = vmatpush1.bf16.msra.mxu0 %v1941
  %1982 = vmatprep.subr.bf16.mxu0 0
  %1983 = vmatpush1.bf16.msra.mxu0 %v1942
  %1984 = vmatprep.subr.bf16.mxu0 0
  %1985 = vmatpush1.bf16.msra.mxu0 %v1943
  %1986 = vmatprep.subr.bf16.mxu0 0
  %1987 = vmatpush1.bf16.msra.mxu0 %v1944
  %1988 = vmatprep.subr.bf16.mxu0 0
  %1989 = vmatpush1.bf16.msra.mxu0 %v1945
  %1990 = vmatprep.subr.bf16.mxu0 0
  %1991 = vmatpush1.bf16.msra.mxu0 %v1946
  %1992 = vmatprep.subr.bf16.mxu0 0
  %1993 = vmatpush1.bf16.msra.mxu0 %v1947
  %1994 = vmatprep.subr.bf16.mxu0 0
  %1995 = vmatpush1.bf16.msra.mxu0 %v1948
  %1996 = vmatprep.subr.bf16.mxu0 0
  %1997 = vmatpush1.bf16.msra.mxu0 %v1949
  %1998 = vmatprep.mubr.bf16.mxu0 %v1830
  %1999 = vmatmul.mubr.bf16.gmra.mrb[0].mxu0 %v1829
  %v2000 = vpop.f32.mrb[0].mxu0
  %v2001 = vadd.f32 %v1868, %v2000
  %v2002 = vpop.f32.mrb[0].mxu0
  %v2003 = vpop.f32.mrb[0].mxu0
  %v2004 = vpop.f32.mrb[0].mxu0
  %2005 = vdwg.mxu0
  %vm2006 = vcmask 130048
  %2007 = vst.msk [vmem:[%s13] sm:$0xff] %vm2006, %v2001
  %v2008 = vld [vmem:[%s7] sm:$0xff]
  %v2009 = vld [vmem:[%s7 + $0x8] sm:$0xff]
  %v2010 = vld [vmem:[%s7 + $0x10] sm:$0xff]
  %v2011 = vld [vmem:[%s7 + $0x18] sm:$0xff]
  %v2012 = vld [vmem:[%s7 + $0x20] sm:$0xff]
  %v2013 = vld [vmem:[%s7 + $0x28] sm:$0xff]
  %v2014 = vld [vmem:[%s7 + $0x30] sm:$0xff]
  %v2015 = vld [vmem:[%s7 + $0x38] sm:$0xff]
  %v2016 = vld [vmem:[%s7 + $0x40] sm:$0xff]
  %v2017 = vld [vmem:[%s7 + $0x48] sm:$0xff]
  %v2018 = vld [vmem:[%s7 + $0x50] sm:$0xff]
  %v2019 = vld [vmem:[%s7 + $0x58] sm:$0xff]
  %v2020 = vld [vmem:[%s7 + $0x60] sm:$0xff]
  %v2021 = vld [vmem:[%s7 + $0x68] sm:$0xff]
  %v2022 = vld [vmem:[%s7 + $0x70] sm:$0xff]
  %v2023 = vld [vmem:[%s7 + $0x78] sm:$0xff]
  %v2024 = vld [vmem:[%s7 + $0x80] sm:$0xff]
  %v2025 = vld [vmem:[%s7 + $0x88] sm:$0xff]
  %v2026 = vld [vmem:[%s7 + $0x90] sm:$0xff]
  %v2027 = vld [vmem:[%s7 + $0x98] sm:$0xff]
  %v2028 = vld [vmem:[%s7 + $0xa0] sm:$0xff]
  %v2029 = vld [vmem:[%s7 + $0xa8] sm:$0xff]
  %v2030 = vld [vmem:[%s7 + $0xb0] sm:$0xff]
  %v2031 = vld [vmem:[%s7 + $0xb8] sm:$0xff]
  %v2032 = vld [vmem:[%s7 + $0xc0] sm:$0xff]
  %v2033 = vld [vmem:[%s7 + $0xc8] sm:$0xff]
  %v2034 = vld [vmem:[%s7 + $0xd0] sm:$0xff]
  %v2035 = vld [vmem:[%s7 + $0xd8] sm:$0xff]
  %v2036 = vld [vmem:[%s7 + $0xe0] sm:$0xff]
  %v2037 = vld [vmem:[%s7 + $0xe8] sm:$0xff]
  %v2038 = vld [vmem:[%s7 + $0xf0] sm:$0xff]
  %v2039 = vld [vmem:[%s7 + $0xf8] sm:$0xff]
  %v2040 = vld [vmem:[%s7 + $0x100] sm:$0xff]
  %v2041 = vld [vmem:[%s7 + $0x108] sm:$0xff]
  %v2042 = vld [vmem:[%s7 + $0x110] sm:$0xff]
  %v2043 = vld [vmem:[%s7 + $0x118] sm:$0xff]
  %v2044 = vld [vmem:[%s7 + $0x120] sm:$0xff]
  %v2045 = vld [vmem:[%s7 + $0x128] sm:$0xff]
  %v2046 = vld [vmem:[%s7 + $0x130] sm:$0xff]
  %v2047 = vld [vmem:[%s7 + $0x138] sm:$0xff]
  %v2048 = vld [vmem:[%s7 + $0x140] sm:$0xff]
  %v2049 = vld [vmem:[%s7 + $0x148] sm:$0xff]
  %v2050 = vld [vmem:[%s7 + $0x150] sm:$0xff]
  %v2051 = vld [vmem:[%s7 + $0x158] sm:$0xff]
  %v2052 = vld [vmem:[%s7 + $0x160] sm:$0xff]
  %v2053 = vld [vmem:[%s7 + $0x168] sm:$0xff]
  %v2054 = vld [vmem:[%s7 + $0x170] sm:$0xff]
  %v2055 = vld [vmem:[%s7 + $0x178] sm:$0xff]
  %v2056 = vld [vmem:[%s7 + $0x180] sm:$0xff]
  %v2057 = vld [vmem:[%s7 + $0x188] sm:$0xff]
  %v2058 = vld [vmem:[%s7 + $0x190] sm:$0xff]
  %v2059 = vld [vmem:[%s7 + $0x198] sm:$0xff]
  %v2060 = vld [vmem:[%s7 + $0x1a0] sm:$0xff]
  %v2061 = vld [vmem:[%s7 + $0x1a8] sm:$0xff]
  %v2062 = vld [vmem:[%s7 + $0x1b0] sm:$0xff]
  %v2063 = vld [vmem:[%s7 + $0x1b8] sm:$0xff]
  %v2064 = vld [vmem:[%s7 + $0x1c0] sm:$0xff]
  %v2065 = vld [vmem:[%s7 + $0x1c8] sm:$0xff]
  %v2066 = vld [vmem:[%s7 + $0x1d0] sm:$0xff]
  %v2067 = vld [vmem:[%s7 + $0x1d8] sm:$0xff]
  %v2068 = vld [vmem:[%s7 + $0x1e0] sm:$0xff]
  %v2069 = vld [vmem:[%s7 + $0x1e8] sm:$0xff]
  %v2070 = vld [vmem:[%s7 + $0x1f0] sm:$0xff]
  %v2071 = vld [vmem:[%s7 + $0x1f8] sm:$0xff]
  %v2072 = vld [vmem:[%s7 + $0x200] sm:$0xff]
  %v2073 = vld [vmem:[%s7 + $0x208] sm:$0xff]
  %v2074 = vld [vmem:[%s7 + $0x210] sm:$0xff]
  %v2075 = vld [vmem:[%s7 + $0x218] sm:$0xff]
  %v2076 = vld [vmem:[%s7 + $0x220] sm:$0xff]
  %v2077 = vld [vmem:[%s7 + $0x228] sm:$0xff]
  %v2078 = vld [vmem:[%s7 + $0x230] sm:$0xff]
  %v2079 = vld [vmem:[%s7 + $0x238] sm:$0xff]
  %v2080 = vld [vmem:[%s7 + $0x240] sm:$0xff]
  %v2081 = vld [vmem:[%s7 + $0x248] sm:$0xff]
  %v2082 = vld [vmem:[%s7 + $0x250] sm:$0xff]
  %v2083 = vld [vmem:[%s7 + $0x258] sm:$0xff]
  %v2084 = vld [vmem:[%s7 + $0x260] sm:$0xff]
  %v2085 = vld [vmem:[%s7 + $0x268] sm:$0xff]
  %v2086 = vld [vmem:[%s7 + $0x270] sm:$0xff]
  %v2087 = vld [vmem:[%s7 + $0x278] sm:$0xff]
  %v2088 = vld [vmem:[%s7 + $0x280] sm:$0xff]
  %v2089 = vld [vmem:[%s7 + $0x288] sm:$0xff]
  %v2090 = vld [vmem:[%s7 + $0x290] sm:$0xff]
  %v2091 = vld [vmem:[%s7 + $0x298] sm:$0xff]
  %v2092 = vld [vmem:[%s7 + $0x2a0] sm:$0xff]
  %v2093 = vld [vmem:[%s7 + $0x2a8] sm:$0xff]
  %v2094 = vld [vmem:[%s7 + $0x2b0] sm:$0xff]
  %v2095 = vld [vmem:[%s7 + $0x2b8] sm:$0xff]
  %v2096 = vld [vmem:[%s7 + $0x2c0] sm:$0xff]
  %v2097 = vld [vmem:[%s7 + $0x2c8] sm:$0xff]
  %v2098 = vld [vmem:[%s7 + $0x2d0] sm:$0xff]
  %v2099 = vld [vmem:[%s7 + $0x2d8] sm:$0xff]
  %v2100 = vld [vmem:[%s7 + $0x2e0] sm:$0xff]
  %v2101 = vld [vmem:[%s7 + $0x2e8] sm:$0xff]
  %v2102 = vld [vmem:[%s7 + $0x2f0] sm:$0xff]
  %v2103 = vld [vmem:[%s7 + $0x2f8] sm:$0xff]
  %v2104 = vld [vmem:[%s7 + $0x300] sm:$0xff]
  %v2105 = vld [vmem:[%s7 + $0x308] sm:$0xff]
  %v2106 = vld [vmem:[%s7 + $0x310] sm:$0xff]
  %v2107 = vld [vmem:[%s7 + $0x318] sm:$0xff]
  %v2108 = vld [vmem:[%s7 + $0x320] sm:$0xff]
  %v2109 = vld [vmem:[%s7 + $0x328] sm:$0xff]
  %v2110 = vld [vmem:[%s7 + $0x330] sm:$0xff]
  %v2111 = vld [vmem:[%s7 + $0x338] sm:$0xff]
  %v2112 = vld [vmem:[%s7 + $0x340] sm:$0xff]
  %v2113 = vld [vmem:[%s7 + $0x348] sm:$0xff]
  %v2114 = vld [vmem:[%s7 + $0x350] sm:$0xff]
  %v2115 = vld [vmem:[%s7 + $0x358] sm:$0xff]
  %v2116 = vld [vmem:[%s7 + $0x360] sm:$0xff]
  %v2117 = vld [vmem:[%s7 + $0x368] sm:$0xff]
  %v2118 = vld [vmem:[%s7 + $0x370] sm:$0xff]
  %v2119 = vld [vmem:[%s7 + $0x378] sm:$0xff]
  %v2120 = vld [vmem:[%s7 + $0x380] sm:$0xff]
  %v2121 = vld [vmem:[%s7 + $0x388] sm:$0xff]
  %v2122 = vld [vmem:[%s7 + $0x390] sm:$0xff]
  %v2123 = vld [vmem:[%s7 + $0x398] sm:$0xff]
  %v2124 = vld [vmem:[%s7 + $0x3a0] sm:$0xff]
  %v2125 = vld [vmem:[%s7 + $0x3a8] sm:$0xff]
  %v2126 = vld [vmem:[%s7 + $0x3b0] sm:$0xff]
  %v2127 = vld [vmem:[%s7 + $0x3b8] sm:$0xff]
  %v2128 = vld [vmem:[%s7 + $0x3c0] sm:$0xff]
  %v2129 = vld [vmem:[%s7 + $0x3c8] sm:$0xff]
  %v2130 = vld [vmem:[%s7 + $0x3d0] sm:$0xff]
  %v2131 = vld [vmem:[%s7 + $0x3d8] sm:$0xff]
  %v2132 = vld [vmem:[%s7 + $0x3e0] sm:$0xff]
  %v2133 = vld [vmem:[%s7 + $0x3e8] sm:$0xff]
  %v2134 = vld [vmem:[%s7 + $0x3f0] sm:$0xff]
  %v2135 = vld [vmem:[%s7 + $0x3f8] sm:$0xff]
  %v2136 = vld [vmem:[%s7 + $0x400] sm:$0xff]
  %v2137 = vld [vmem:[%s7 + $0x408] sm:$0xff]
  %v2138 = vld [vmem:[%s7 + $0x410] sm:$0xff]
  %v2139 = vld [vmem:[%s7 + $0x418] sm:$0xff]
  %v2140 = vld [vmem:[%s7 + $0x420] sm:$0xff]
  %v2141 = vld [vmem:[%s7 + $0x428] sm:$0xff]
  %v2142 = vld [vmem:[%s7 + $0x430] sm:$0xff]
  %v2143 = vld [vmem:[%s7 + $0x438] sm:$0xff]
  %v2144 = vld [vmem:[%s7 + $0x440] sm:$0xff]
  %v2145 = vld [vmem:[%s7 + $0x448] sm:$0xff]
  %v2146 = vld [vmem:[%s7 + $0x450] sm:$0xff]
  %v2147 = vld [vmem:[%s7 + $0x458] sm:$0xff]
  %v2148 = vld [vmem:[%s7 + $0x460] sm:$0xff]
  %v2149 = vld [vmem:[%s7 + $0x468] sm:$0xff]
  %v2150 = vld [vmem:[%s7 + $0x470] sm:$0xff]
  %v2151 = vld [vmem:[%s7 + $0x478] sm:$0xff]
  %v2152 = vld [vmem:[%s7 + $0x480] sm:$0xff]
  %v2153 = vld [vmem:[%s7 + $0x488] sm:$0xff]
  %v2154 = vld [vmem:[%s7 + $0x490] sm:$0xff]
  %v2155 = vld [vmem:[%s7 + $0x498] sm:$0xff]
  %v2156 = vld [vmem:[%s7 + $0x4a0] sm:$0xff]
  %v2157 = vld [vmem:[%s7 + $0x4a8] sm:$0xff]
  %v2158 = vld [vmem:[%s7 + $0x4b0] sm:$0xff]
  %v2159 = vld [vmem:[%s7 + $0x4b8] sm:$0xff]
  %v2160 = vld [vmem:[%s7 + $0x4c0] sm:$0xff]
  %v2161 = vld [vmem:[%s7 + $0x4c8] sm:$0xff]
  %v2162 = vld [vmem:[%s7 + $0x4d0] sm:$0xff]
  %v2163 = vld [vmem:[%s7 + $0x4d8] sm:$0xff]
  %v2164 = vld [vmem:[%s7 + $0x4e0] sm:$0xff]
  %v2165 = vld [vmem:[%s7 + $0x4e8] sm:$0xff]
  %v2166 = vld [vmem:[%s7 + $0x4f0] sm:$0xff]
  %v2167 = vld [vmem:[%s7 + $0x4f8] sm:$0xff]
  %v2168 = vld [vmem:[%s7 + $0x500] sm:$0xff]
  %v2169 = vld [vmem:[%s7 + $0x508] sm:$0xff]
  %v2170 = vld [vmem:[%s7 + $0x510] sm:$0xff]
  %v2171 = vld [vmem:[%s7 + $0x518] sm:$0xff]
  %v2172 = vld [vmem:[%s7 + $0x520] sm:$0xff]
  %v2173 = vld [vmem:[%s7 + $0x528] sm:$0xff]
  %v2174 = vld [vmem:[%s7 + $0x530] sm:$0xff]
  %v2175 = vld [vmem:[%s7 + $0x538] sm:$0xff]
  %v2176 = vld [vmem:[%s7 + $0x540] sm:$0xff]
  %v2177 = vld [vmem:[%s7 + $0x548] sm:$0xff]
  %v2178 = vld [vmem:[%s7 + $0x550] sm:$0xff]
  %v2179 = vld [vmem:[%s7 + $0x558] sm:$0xff]
  %v2180 = vld [vmem:[%s7 + $0x560] sm:$0xff]
  %v2181 = vld [vmem:[%s7 + $0x568] sm:$0xff]
  %v2182 = vld [vmem:[%s7 + $0x570] sm:$0xff]
  %v2183 = vld [vmem:[%s7 + $0x578] sm:$0xff]
  %v2184 = vld [vmem:[%s7 + $0x580] sm:$0xff]
  %v2185 = vld [vmem:[%s7 + $0x588] sm:$0xff]
  %v2186 = vld [vmem:[%s7 + $0x590] sm:$0xff]
  %v2187 = vld [vmem:[%s7 + $0x598] sm:$0xff]
  %v2188 = vld [vmem:[%s7 + $0x5a0] sm:$0xff]
  %v2189 = vld [vmem:[%s7 + $0x5a8] sm:$0xff]
  %v2190 = vld [vmem:[%s7 + $0x5b0] sm:$0xff]
  %v2191 = vld [vmem:[%s7 + $0x5b8] sm:$0xff]
  %v2192 = vld [vmem:[%s7 + $0x5c0] sm:$0xff]
  %v2193 = vld [vmem:[%s7 + $0x5c8] sm:$0xff]
  %v2194 = vld [vmem:[%s7 + $0x5d0] sm:$0xff]
  %v2195 = vld [vmem:[%s7 + $0x5d8] sm:$0xff]
  %v2196 = vld [vmem:[%s7 + $0x5e0] sm:$0xff]
  %v2197 = vld [vmem:[%s7 + $0x5e8] sm:$0xff]
  %v2198 = vld [vmem:[%s7 + $0x5f0] sm:$0xff]
  %v2199 = vld [vmem:[%s7 + $0x5f8] sm:$0xff]
  %v2200 = vld [vmem:[%s7 + $0x600] sm:$0xff]
  %v2201 = vld [vmem:[%s7 + $0x608] sm:$0xff]
  %v2202 = vld [vmem:[%s7 + $0x610] sm:$0xff]
  %v2203 = vld [vmem:[%s7 + $0x618] sm:$0xff]
  %v2204 = vld [vmem:[%s8] sm:$0x3]
  %v2206 = vlaneseq
  %v2207 = vshrl.u32 %v2206, 7
  %v2208 = vsub.s32 0, %v2207
  %v2209 = vrot.slane %v2204, %v2208
  %v2210 = vlaneseq
  %v2211 = vshrl.u32 %v2210, 7
  %v2212 = vsub.s32 1, %v2211
  %v2213 = vrot.slane %v2204, %v2212
  %v2412 = vunpack.c.l.b16 %v2008
  %v2413 = vunpack.c.h.b16 %v2008
  %v2414 = vunpack.c.l.b16 %v2009
  %v2415 = vunpack.c.h.b16 %v2009
  %v2416 = vunpack.c.l.b16 %v2010
  %v2417 = vunpack.c.h.b16 %v2010
  %v2418 = vunpack.c.l.b16 %v2011
  %v2419 = vunpack.c.h.b16 %v2011
  %v2420 = vunpack.c.l.b16 %v2012
  %v2421 = vunpack.c.h.b16 %v2012
  %v2422 = vunpack.c.l.b16 %v2013
  %v2423 = vunpack.c.h.b16 %v2013
  %v2424 = vunpack.c.l.b16 %v2014
  %v2425 = vunpack.c.h.b16 %v2014
  %v2426 = vunpack.c.l.b16 %v2015
  %v2427 = vunpack.c.h.b16 %v2015
  %v2428 = vunpack.c.l.b16 %v2016
  %v2429 = vunpack.c.h.b16 %v2016
  %v2430 = vunpack.c.l.b16 %v2017
  %v2431 = vunpack.c.h.b16 %v2017
  %v2432 = vunpack.c.l.b16 %v2018
  %v2433 = vunpack.c.h.b16 %v2018
  %v2434 = vunpack.c.l.b16 %v2019
  %v2435 = vunpack.c.h.b16 %v2019
  %v2436 = vunpack.c.l.b16 %v2020
  %v2437 = vunpack.c.h.b16 %v2020
  %v2438 = vunpack.c.l.b16 %v2021
  %v2439 = vunpack.c.h.b16 %v2021
  %v2440 = vunpack.c.l.b16 %v2022
  %v2441 = vunpack.c.h.b16 %v2022
  %v2442 = vunpack.c.l.b16 %v2023
  %v2443 = vunpack.c.h.b16 %v2023
  %v2444 = vunpack.c.l.b16 %v2024
  %v2445 = vunpack.c.h.b16 %v2024
  %v2446 = vunpack.c.l.b16 %v2025
  %v2447 = vunpack.c.h.b16 %v2025
  %v2448 = vunpack.c.l.b16 %v2026
  %v2449 = vunpack.c.h.b16 %v2026
  %v2450 = vunpack.c.l.b16 %v2027
  %v2451 = vunpack.c.h.b16 %v2027
  %v2452 = vunpack.c.l.b16 %v2028
  %v2453 = vunpack.c.h.b16 %v2028
  %v2454 = vunpack.c.l.b16 %v2029
  %v2455 = vunpack.c.h.b16 %v2029
  %v2456 = vunpack.c.l.b16 %v2030
  %v2457 = vunpack.c.h.b16 %v2030
  %v2458 = vunpack.c.l.b16 %v2031
  %v2459 = vunpack.c.h.b16 %v2031
  %v2460 = vunpack.c.l.b16 %v2032
  %v2461 = vunpack.c.h.b16 %v2032
  %v2462 = vunpack.c.l.b16 %v2033
  %v2463 = vunpack.c.h.b16 %v2033
  %v2464 = vunpack.c.l.b16 %v2034
  %v2465 = vunpack.c.h.b16 %v2034
  %v2466 = vunpack.c.l.b16 %v2035
  %v2467 = vunpack.c.h.b16 %v2035
  %v2468 = vunpack.c.l.b16 %v2036
  %v2469 = vunpack.c.h.b16 %v2036
  %v2470 = vunpack.c.l.b16 %v2037
  %v2471 = vunpack.c.h.b16 %v2037
  %v2472 = vunpack.c.l.b16 %v2038
  %v2473 = vunpack.c.h.b16 %v2038
  %v2474 = vunpack.c.l.b16 %v2039
  %v2475 = vunpack.c.h.b16 %v2039
  %v2476 = vunpack.c.l.b16 %v2040
  %v2477 = vunpack.c.h.b16 %v2040
  %v2478 = vunpack.c.l.b16 %v2041
  %v2479 = vunpack.c.h.b16 %v2041
  %v2480 = vunpack.c.l.b16 %v2042
  %v2481 = vunpack.c.h.b16 %v2042
  %v2482 = vunpack.c.l.b16 %v2043
  %v2483 = vunpack.c.h.b16 %v2043
  %v2484 = vunpack.c.l.b16 %v2044
  %v2485 = vunpack.c.h.b16 %v2044
  %v2486 = vunpack.c.l.b16 %v2045
  %v2487 = vunpack.c.h.b16 %v2045
  %v2488 = vunpack.c.l.b16 %v2046
  %v2489 = vunpack.c.h.b16 %v2046
  %v2490 = vunpack.c.l.b16 %v2047
  %v2491 = vunpack.c.h.b16 %v2047
  %v2492 = vunpack.c.l.b16 %v2048
  %v2493 = vunpack.c.h.b16 %v2048
  %v2494 = vunpack.c.l.b16 %v2049
  %v2495 = vunpack.c.h.b16 %v2049
  %v2496 = vunpack.c.l.b16 %v2050
  %v2497 = vunpack.c.h.b16 %v2050
  %v2498 = vunpack.c.l.b16 %v2051
  %v2499 = vunpack.c.h.b16 %v2051
  %v2500 = vunpack.c.l.b16 %v2052
  %v2501 = vunpack.c.h.b16 %v2052
  %v2502 = vunpack.c.l.b16 %v2053
  %v2503 = vunpack.c.h.b16 %v2053
  %v2504 = vunpack.c.l.b16 %v2054
  %v2505 = vunpack.c.h.b16 %v2054
  %v2506 = vunpack.c.l.b16 %v2055
  %v2507 = vunpack.c.h.b16 %v2055
  %v2508 = vunpack.c.l.b16 %v2056
  %v2509 = vunpack.c.h.b16 %v2056
  %v2510 = vunpack.c.l.b16 %v2057
  %v2511 = vunpack.c.h.b16 %v2057
  %v2512 = vunpack.c.l.b16 %v2058
  %v2513 = vunpack.c.h.b16 %v2058
  %v2514 = vunpack.c.l.b16 %v2059
  %v2515 = vunpack.c.h.b16 %v2059
  %v2516 = vunpack.c.l.b16 %v2060
  %v2517 = vunpack.c.h.b16 %v2060
  %v2518 = vunpack.c.l.b16 %v2061
  %v2519 = vunpack.c.h.b16 %v2061
  %v2520 = vunpack.c.l.b16 %v2062
  %v2521 = vunpack.c.h.b16 %v2062
  %v2522 = vunpack.c.l.b16 %v2063
  %v2523 = vunpack.c.h.b16 %v2063
  %v2524 = vunpack.c.l.b16 %v2064
  %v2525 = vunpack.c.h.b16 %v2064
  %v2526 = vunpack.c.l.b16 %v2065
  %v2527 = vunpack.c.h.b16 %v2065
  %v2528 = vunpack.c.l.b16 %v2066
  %v2529 = vunpack.c.h.b16 %v2066
  %v2530 = vunpack.c.l.b16 %v2067
  %v2531 = vunpack.c.h.b16 %v2067
  %v2532 = vunpack.c.l.b16 %v2068
  %v2533 = vunpack.c.h.b16 %v2068
  %v2534 = vunpack.c.l.b16 %v2069
  %v2535 = vunpack.c.h.b16 %v2069
  %v2536 = vunpack.c.l.b16 %v2070
  %v2537 = vunpack.c.h.b16 %v2070
  %v2538 = vunpack.c.l.b16 %v2071
  %v2539 = vunpack.c.h.b16 %v2071
  %v2540 = vunpack.c.l.b16 %v2072
  %v2541 = vunpack.c.h.b16 %v2072
  %v2542 = vunpack.c.l.b16 %v2073
  %v2543 = vunpack.c.h.b16 %v2073
  %v2544 = vunpack.c.l.b16 %v2074
  %v2545 = vunpack.c.h.b16 %v2074
  %v2546 = vunpack.c.l.b16 %v2075
  %v2547 = vunpack.c.h.b16 %v2075
  %v2548 = vunpack.c.l.b16 %v2076
  %v2549 = vunpack.c.h.b16 %v2076
  %v2550 = vunpack.c.l.b16 %v2077
  %v2551 = vunpack.c.h.b16 %v2077
  %v2552 = vunpack.c.l.b16 %v2078
  %v2553 = vunpack.c.h.b16 %v2078
  %v2554 = vunpack.c.l.b16 %v2079
  %v2555 = vunpack.c.h.b16 %v2079
  %v2556 = vunpack.c.l.b16 %v2080
  %v2557 = vunpack.c.h.b16 %v2080
  %v2558 = vunpack.c.l.b16 %v2081
  %v2559 = vunpack.c.h.b16 %v2081
  %v2560 = vunpack.c.l.b16 %v2082
  %v2561 = vunpack.c.h.b16 %v2082
  %v2562 = vunpack.c.l.b16 %v2083
  %v2563 = vunpack.c.h.b16 %v2083
  %v2564 = vunpack.c.l.b16 %v2084
  %v2565 = vunpack.c.h.b16 %v2084
  %v2566 = vunpack.c.l.b16 %v2085
  %v2567 = vunpack.c.h.b16 %v2085
  %v2568 = vunpack.c.l.b16 %v2086
  %v2569 = vunpack.c.h.b16 %v2086
  %v2570 = vunpack.c.l.b16 %v2087
  %v2571 = vunpack.c.h.b16 %v2087
  %v2572 = vunpack.c.l.b16 %v2088
  %v2573 = vunpack.c.h.b16 %v2088
  %v2574 = vunpack.c.l.b16 %v2089
  %v2575 = vunpack.c.h.b16 %v2089
  %v2576 = vunpack.c.l.b16 %v2090
  %v2577 = vunpack.c.h.b16 %v2090
  %v2578 = vunpack.c.l.b16 %v2091
  %v2579 = vunpack.c.h.b16 %v2091
  %v2580 = vunpack.c.l.b16 %v2092
  %v2581 = vunpack.c.h.b16 %v2092
  %v2582 = vunpack.c.l.b16 %v2093
  %v2583 = vunpack.c.h.b16 %v2093
  %v2584 = vunpack.c.l.b16 %v2094
  %v2585 = vunpack.c.h.b16 %v2094
  %v2586 = vunpack.c.l.b16 %v2095
  %v2587 = vunpack.c.h.b16 %v2095
  %v2588 = vunpack.c.l.b16 %v2096
  %v2589 = vunpack.c.h.b16 %v2096
  %v2590 = vunpack.c.l.b16 %v2097
  %v2591 = vunpack.c.h.b16 %v2097
  %v2592 = vunpack.c.l.b16 %v2098
  %v2593 = vunpack.c.h.b16 %v2098
  %v2594 = vunpack.c.l.b16 %v2099
  %v2595 = vunpack.c.h.b16 %v2099
  %v2596 = vunpack.c.l.b16 %v2100
  %v2597 = vunpack.c.h.b16 %v2100
  %v2598 = vunpack.c.l.b16 %v2101
  %v2599 = vunpack.c.h.b16 %v2101
  %v2600 = vunpack.c.l.b16 %v2102
  %v2601 = vunpack.c.h.b16 %v2102
  %v2602 = vunpack.c.l.b16 %v2103
  %v2603 = vunpack.c.h.b16 %v2103
  %v2604 = vunpack.c.l.b16 %v2104
  %v2605 = vunpack.c.h.b16 %v2104
  %v2606 = vunpack.c.l.b16 %v2105
  %v2607 = vunpack.c.h.b16 %v2105
  %v2608 = vunpack.c.l.b16 %v2106
  %v2609 = vunpack.c.h.b16 %v2106
  %v2610 = vunpack.c.l.b16 %v2107
  %v2611 = vunpack.c.h.b16 %v2107
  %v2612 = vunpack.c.l.b16 %v2108
  %v2613 = vunpack.c.h.b16 %v2108
  %v2614 = vunpack.c.l.b16 %v2109
  %v2615 = vunpack.c.h.b16 %v2109
  %v2616 = vunpack.c.l.b16 %v2110
  %v2617 = vunpack.c.h.b16 %v2110
  %v2618 = vunpack.c.l.b16 %v2111
  %v2619 = vunpack.c.h.b16 %v2111
  %v2620 = vunpack.c.l.b16 %v2112
  %v2621 = vunpack.c.h.b16 %v2112
  %v2622 = vunpack.c.l.b16 %v2113
  %v2623 = vunpack.c.h.b16 %v2113
  %v2624 = vunpack.c.l.b16 %v2114
  %v2625 = vunpack.c.h.b16 %v2114
  %v2626 = vunpack.c.l.b16 %v2115
  %v2627 = vunpack.c.h.b16 %v2115
  %v2628 = vunpack.c.l.b16 %v2116
  %v2629 = vunpack.c.h.b16 %v2116
  %v2630 = vunpack.c.l.b16 %v2117
  %v2631 = vunpack.c.h.b16 %v2117
  %v2632 = vunpack.c.l.b16 %v2118
  %v2633 = vunpack.c.h.b16 %v2118
  %v2634 = vunpack.c.l.b16 %v2119
  %v2635 = vunpack.c.h.b16 %v2119
  %v2636 = vunpack.c.l.b16 %v2120
  %v2637 = vunpack.c.h.b16 %v2120
  %v2638 = vunpack.c.l.b16 %v2121
  %v2639 = vunpack.c.h.b16 %v2121
  %v2640 = vunpack.c.l.b16 %v2122
  %v2641 = vunpack.c.h.b16 %v2122
  %v2642 = vunpack.c.l.b16 %v2123
  %v2643 = vunpack.c.h.b16 %v2123
  %v2644 = vunpack.c.l.b16 %v2124
  %v2645 = vunpack.c.h.b16 %v2124
  %v2646 = vunpack.c.l.b16 %v2125
  %v2647 = vunpack.c.h.b16 %v2125
  %v2648 = vunpack.c.l.b16 %v2126
  %v2649 = vunpack.c.h.b16 %v2126
  %v2650 = vunpack.c.l.b16 %v2127
  %v2651 = vunpack.c.h.b16 %v2127
  %v2652 = vunpack.c.l.b16 %v2128
  %v2653 = vunpack.c.h.b16 %v2128
  %v2654 = vunpack.c.l.b16 %v2129
  %v2655 = vunpack.c.h.b16 %v2129
  %v2656 = vunpack.c.l.b16 %v2130
  %v2657 = vunpack.c.h.b16 %v2130
  %v2658 = vunpack.c.l.b16 %v2131
  %v2659 = vunpack.c.h.b16 %v2131
  %v2660 = vunpack.c.l.b16 %v2132
  %v2661 = vunpack.c.h.b16 %v2132
  %v2662 = vunpack.c.l.b16 %v2133
  %v2663 = vunpack.c.h.b16 %v2133
  %v2664 = vunpack.c.l.b16 %v2134
  %v2665 = vunpack.c.h.b16 %v2134
  %v2666 = vunpack.c.l.b16 %v2135
  %v2667 = vunpack.c.h.b16 %v2135
  %v2668 = vunpack.c.l.b16 %v2136
  %v2669 = vunpack.c.h.b16 %v2136
  %v2670 = vunpack.c.l.b16 %v2137
  %v2671 = vunpack.c.h.b16 %v2137
  %v2672 = vunpack.c.l.b16 %v2138
  %v2673 = vunpack.c.h.b16 %v2138
  %v2674 = vunpack.c.l.b16 %v2139
  %v2675 = vunpack.c.h.b16 %v2139
  %v2676 = vunpack.c.l.b16 %v2140
  %v2677 = vunpack.c.h.b16 %v2140
  %v2678 = vunpack.c.l.b16 %v2141
  %v2679 = vunpack.c.h.b16 %v2141
  %v2680 = vunpack.c.l.b16 %v2142
  %v2681 = vunpack.c.h.b16 %v2142
  %v2682 = vunpack.c.l.b16 %v2143
  %v2683 = vunpack.c.h.b16 %v2143
  %v2684 = vunpack.c.l.b16 %v2144
  %v2685 = vunpack.c.h.b16 %v2144
  %v2686 = vunpack.c.l.b16 %v2145
  %v2687 = vunpack.c.h.b16 %v2145
  %v2688 = vunpack.c.l.b16 %v2146
  %v2689 = vunpack.c.h.b16 %v2146
  %v2690 = vunpack.c.l.b16 %v2147
  %v2691 = vunpack.c.h.b16 %v2147
  %v2692 = vunpack.c.l.b16 %v2148
  %v2693 = vunpack.c.h.b16 %v2148
  %v2694 = vunpack.c.l.b16 %v2149
  %v2695 = vunpack.c.h.b16 %v2149
  %v2696 = vunpack.c.l.b16 %v2150
  %v2697 = vunpack.c.h.b16 %v2150
  %v2698 = vunpack.c.l.b16 %v2151
  %v2699 = vunpack.c.h.b16 %v2151
  %v2700 = vunpack.c.l.b16 %v2152
  %v2701 = vunpack.c.h.b16 %v2152
  %v2702 = vunpack.c.l.b16 %v2153
  %v2703 = vunpack.c.h.b16 %v2153
  %v2704 = vunpack.c.l.b16 %v2154
  %v2705 = vunpack.c.h.b16 %v2154
  %v2706 = vunpack.c.l.b16 %v2155
  %v2707 = vunpack.c.h.b16 %v2155
  %v2708 = vunpack.c.l.b16 %v2156
  %v2709 = vunpack.c.h.b16 %v2156
  %v2710 = vunpack.c.l.b16 %v2157
  %v2711 = vunpack.c.h.b16 %v2157
  %v2712 = vunpack.c.l.b16 %v2158
  %v2713 = vunpack.c.h.b16 %v2158
  %v2714 = vunpack.c.l.b16 %v2159
  %v2715 = vunpack.c.h.b16 %v2159
  %v2716 = vunpack.c.l.b16 %v2160
  %v2717 = vunpack.c.h.b16 %v2160
  %v2718 = vunpack.c.l.b16 %v2161
  %v2719 = vunpack.c.h.b16 %v2161
  %v2720 = vunpack.c.l.b16 %v2162
  %v2721 = vunpack.c.h.b16 %v2162
  %v2722 = vunpack.c.l.b16 %v2163
  %v2723 = vunpack.c.h.b16 %v2163
  %v2724 = vunpack.c.l.b16 %v2164
  %v2725 = vunpack.c.h.b16 %v2164
  %v2726 = vunpack.c.l.b16 %v2165
  %v2727 = vunpack.c.h.b16 %v2165
  %v2728 = vunpack.c.l.b16 %v2166
  %v2729 = vunpack.c.h.b16 %v2166
  %v2730 = vunpack.c.l.b16 %v2167
  %v2731 = vunpack.c.h.b16 %v2167
  %v2732 = vunpack.c.l.b16 %v2168
  %v2733 = vunpack.c.h.b16 %v2168
  %v2734 = vunpack.c.l.b16 %v2169
  %v2735 = vunpack.c.h.b16 %v2169
  %v2736 = vunpack.c.l.b16 %v2170
  %v2737 = vunpack.c.h.b16 %v2170
  %v2738 = vunpack.c.l.b16 %v2171
  %v2739 = vunpack.c.h.b16 %v2171
  %v2740 = vunpack.c.l.b16 %v2172
  %v2741 = vunpack.c.h.b16 %v2172
  %v2742 = vunpack.c.l.b16 %v2173
  %v2743 = vunpack.c.h.b16 %v2173
  %v2744 = vunpack.c.l.b16 %v2174
  %v2745 = vunpack.c.h.b16 %v2174
  %v2746 = vunpack.c.l.b16 %v2175
  %v2747 = vunpack.c.h.b16 %v2175
  %v2748 = vunpack.c.l.b16 %v2176
  %v2749 = vunpack.c.h.b16 %v2176
  %v2750 = vunpack.c.l.b16 %v2177
  %v2751 = vunpack.c.h.b16 %v2177
  %v2752 = vunpack.c.l.b16 %v2178
  %v2753 = vunpack.c.h.b16 %v2178
  %v2754 = vunpack.c.l.b16 %v2179
  %v2755 = vunpack.c.h.b16 %v2179
  %v2756 = vunpack.c.l.b16 %v2180
  %v2757 = vunpack.c.h.b16 %v2180
  %v2758 = vunpack.c.l.b16 %v2181
  %v2759 = vunpack.c.h.b16 %v2181
  %v2760 = vunpack.c.l.b16 %v2182
  %v2761 = vunpack.c.h.b16 %v2182
  %v2762 = vunpack.c.l.b16 %v2183
  %v2763 = vunpack.c.h.b16 %v2183
  %v2764 = vunpack.c.l.b16 %v2184
  %v2765 = vunpack.c.h.b16 %v2184
  %v2766 = vunpack.c.l.b16 %v2185
  %v2767 = vunpack.c.h.b16 %v2185
  %v2768 = vunpack.c.l.b16 %v2186
  %v2769 = vunpack.c.h.b16 %v2186
  %v2770 = vunpack.c.l.b16 %v2187
  %v2771 = vunpack.c.h.b16 %v2187
  %v2772 = vunpack.c.l.b16 %v2188
  %v2773 = vunpack.c.h.b16 %v2188
  %v2774 = vunpack.c.l.b16 %v2189
  %v2775 = vunpack.c.h.b16 %v2189
  %v2776 = vunpack.c.l.b16 %v2190
  %v2777 = vunpack.c.h.b16 %v2190
  %v2778 = vunpack.c.l.b16 %v2191
  %v2779 = vunpack.c.h.b16 %v2191
  %v2780 = vunpack.c.l.b16 %v2192
  %v2781 = vunpack.c.h.b16 %v2192
  %v2782 = vunpack.c.l.b16 %v2193
  %v2783 = vunpack.c.h.b16 %v2193
  %v2784 = vunpack.c.l.b16 %v2194
  %v2785 = vunpack.c.h.b16 %v2194
  %v2786 = vunpack.c.l.b16 %v2195
  %v2787 = vunpack.c.h.b16 %v2195
  %v2788 = vunpack.c.l.b16 %v2196
  %v2789 = vunpack.c.h.b16 %v2196
  %v2790 = vunpack.c.l.b16 %v2197
  %v2791 = vunpack.c.h.b16 %v2197
  %v2792 = vunpack.c.l.b16 %v2198
  %v2793 = vunpack.c.h.b16 %v2198
  %v2794 = vunpack.c.l.b16 %v2199
  %v2795 = vunpack.c.h.b16 %v2199
  %v2796 = vunpack.c.l.b16 %v2200
  %v2797 = vunpack.c.h.b16 %v2200
  %v2798 = vunpack.c.l.b16 %v2201
  %v2799 = vunpack.c.h.b16 %v2201
  %v2800 = vunpack.c.l.b16 %v2202
  %v2801 = vunpack.c.h.b16 %v2202
  %v2802 = vunpack.c.l.b16 %v2203
  %v2803 = vunpack.c.h.b16 %v2203
  %v2804 = vpack.c.b16 %v2414, %v2412
  %v2805 = vpack.c.b16 %v2415, %v2413
  %v2806 = vpack.c.b16 %v2418, %v2416
  %v2807 = vpack.c.b16 %v2419, %v2417
  %v2808 = vpack.c.b16 %v2422, %v2420
  %v2809 = vpack.c.b16 %v2423, %v2421
  %v2810 = vpack.c.b16 %v2426, %v2424
  %v2811 = vpack.c.b16 %v2427, %v2425
  %v2812 = vpack.c.b16 %v2430, %v2428
  %v2813 = vpack.c.b16 %v2431, %v2429
  %v2814 = vpack.c.b16 %v2434, %v2432
  %v2815 = vpack.c.b16 %v2435, %v2433
  %v2816 = vpack.c.b16 %v2438, %v2436
  %v2817 = vpack.c.b16 %v2439, %v2437
  %v2818 = vpack.c.b16 %v2442, %v2440
  %v2819 = vpack.c.b16 %v2443, %v2441
  %v2820 = vpack.c.b16 %v2446, %v2444
  %v2821 = vpack.c.b16 %v2447, %v2445
  %v2822 = vpack.c.b16 %v2450, %v2448
  %v2823 = vpack.c.b16 %v2451, %v2449
  %v2824 = vpack.c.b16 %v2454, %v2452
  %v2825 = vpack.c.b16 %v2455, %v2453
  %v2826 = vpack.c.b16 %v2458, %v2456
  %v2827 = vpack.c.b16 %v2459, %v2457
  %v2828 = vpack.c.b16 %v2462, %v2460
  %v2829 = vpack.c.b16 %v2463, %v2461
  %v2830 = vpack.c.b16 %v2466, %v2464
  %v2831 = vpack.c.b16 %v2467, %v2465
  %v2832 = vpack.c.b16 %v2470, %v2468
  %v2833 = vpack.c.b16 %v2471, %v2469
  %v2834 = vpack.c.b16 %v2474, %v2472
  %v2835 = vpack.c.b16 %v2475, %v2473
  %v2836 = vpack.c.b16 %v2478, %v2476
  %v2837 = vpack.c.b16 %v2479, %v2477
  %v2838 = vpack.c.b16 %v2482, %v2480
  %v2839 = vpack.c.b16 %v2483, %v2481
  %v2840 = vpack.c.b16 %v2486, %v2484
  %v2841 = vpack.c.b16 %v2487, %v2485
  %v2842 = vpack.c.b16 %v2490, %v2488
  %v2843 = vpack.c.b16 %v2491, %v2489
  %v2844 = vpack.c.b16 %v2494, %v2492
  %v2845 = vpack.c.b16 %v2495, %v2493
  %v2846 = vpack.c.b16 %v2498, %v2496
  %v2847 = vpack.c.b16 %v2499, %v2497
  %v2848 = vpack.c.b16 %v2502, %v2500
  %v2849 = vpack.c.b16 %v2503, %v2501
  %v2850 = vpack.c.b16 %v2506, %v2504
  %v2851 = vpack.c.b16 %v2507, %v2505
  %v2852 = vpack.c.b16 %v2510, %v2508
  %v2853 = vpack.c.b16 %v2511, %v2509
  %v2854 = vpack.c.b16 %v2514, %v2512
  %v2855 = vpack.c.b16 %v2515, %v2513
  %v2856 = vpack.c.b16 %v2518, %v2516
  %v2857 = vpack.c.b16 %v2519, %v2517
  %v2858 = vpack.c.b16 %v2522, %v2520
  %v2859 = vpack.c.b16 %v2523, %v2521
  %v2860 = vpack.c.b16 %v2526, %v2524
  %v2861 = vpack.c.b16 %v2527, %v2525
  %v2862 = vpack.c.b16 %v2530, %v2528
  %v2863 = vpack.c.b16 %v2531, %v2529
  %v2864 = vpack.c.b16 %v2534, %v2532
  %v2865 = vpack.c.b16 %v2535, %v2533
  %v2866 = vpack.c.b16 %v2538, %v2536
  %v2867 = vpack.c.b16 %v2539, %v2537
  %v2868 = vpack.c.b16 %v2542, %v2540
  %v2869 = vpack.c.b16 %v2543, %v2541
  %v2870 = vpack.c.b16 %v2546, %v2544
  %v2871 = vpack.c.b16 %v2547, %v2545
  %v2872 = vpack.c.b16 %v2550, %v2548
  %v2873 = vpack.c.b16 %v2551, %v2549
  %v2874 = vpack.c.b16 %v2554, %v2552
  %v2875 = vpack.c.b16 %v2555, %v2553
  %v2876 = vpack.c.b16 %v2558, %v2556
  %v2877 = vpack.c.b16 %v2559, %v2557
  %v2878 = vpack.c.b16 %v2562, %v2560
  %v2879 = vpack.c.b16 %v2563, %v2561
  %v2880 = vpack.c.b16 %v2566, %v2564
  %v2881 = vpack.c.b16 %v2567, %v2565
  %v2882 = vpack.c.b16 %v2570, %v2568
  %v2883 = vpack.c.b16 %v2571, %v2569
  %v2884 = vpack.c.b16 %v2574, %v2572
  %v2885 = vpack.c.b16 %v2575, %v2573
  %v2886 = vpack.c.b16 %v2578, %v2576
  %v2887 = vpack.c.b16 %v2579, %v2577
  %v2888 = vpack.c.b16 %v2582, %v2580
  %v2889 = vpack.c.b16 %v2583, %v2581
  %v2890 = vpack.c.b16 %v2586, %v2584
  %v2891 = vpack.c.b16 %v2587, %v2585
  %v2892 = vpack.c.b16 %v2590, %v2588
  %v2893 = vpack.c.b16 %v2591, %v2589
  %v2894 = vpack.c.b16 %v2594, %v2592
  %v2895 = vpack.c.b16 %v2595, %v2593
  %v2896 = vpack.c.b16 %v2598, %v2596
  %v2897 = vpack.c.b16 %v2599, %v2597
  %v2898 = vpack.c.b16 %v2602, %v2600
  %v2899 = vpack.c.b16 %v2603, %v2601
  %v2900 = vpack.c.b16 %v2606, %v2604
  %v2901 = vpack.c.b16 %v2607, %v2605
  %v2902 = vpack.c.b16 %v2610, %v2608
  %v2903 = vpack.c.b16 %v2611, %v2609
  %v2904 = vpack.c.b16 %v2614, %v2612
  %v2905 = vpack.c.b16 %v2615, %v2613
  %v2906 = vpack.c.b16 %v2618, %v2616
  %v2907 = vpack.c.b16 %v2619, %v2617
  %v2908 = vpack.c.b16 %v2622, %v2620
  %v2909 = vpack.c.b16 %v2623, %v2621
  %v2910 = vpack.c.b16 %v2626, %v2624
  %v2911 = vpack.c.b16 %v2627, %v2625
  %v2912 = vpack.c.b16 %v2630, %v2628
  %v2913 = vpack.c.b16 %v2631, %v2629
  %v2914 = vpack.c.b16 %v2634, %v2632
  %v2915 = vpack.c.b16 %v2635, %v2633
  %v2916 = vpack.c.b16 %v2638, %v2636
  %v2917 = vpack.c.b16 %v2639, %v2637
  %v2918 = vpack.c.b16 %v2642, %v2640
  %v2919 = vpack.c.b16 %v2643, %v2641
  %v2920 = vpack.c.b16 %v2646, %v2644
  %v2921 = vpack.c.b16 %v2647, %v2645
  %v2922 = vpack.c.b16 %v2650, %v2648
  %v2923 = vpack.c.b16 %v2651, %v2649
  %v2924 = vpack.c.b16 %v2654, %v2652
  %v2925 = vpack.c.b16 %v2655, %v2653
  %v2926 = vpack.c.b16 %v2658, %v2656
  %v2927 = vpack.c.b16 %v2659, %v2657
  %v2928 = vpack.c.b16 %v2662, %v2660
  %v2929 = vpack.c.b16 %v2663, %v2661
  %v2930 = vpack.c.b16 %v2666, %v2664
  %v2931 = vpack.c.b16 %v2667, %v2665
  %v2932 = vpack.c.b16 %v2670, %v2668
  %v2933 = vpack.c.b16 %v2671, %v2669
  %v2934 = vpack.c.b16 %v2674, %v2672
  %v2935 = vpack.c.b16 %v2675, %v2673
  %v2936 = vpack.c.b16 %v2678, %v2676
  %v2937 = vpack.c.b16 %v2679, %v2677
  %v2938 = vpack.c.b16 %v2682, %v2680
  %v2939 = vpack.c.b16 %v2683, %v2681
  %v2940 = vpack.c.b16 %v2686, %v2684
  %v2941 = vpack.c.b16 %v2687, %v2685
  %v2942 = vpack.c.b16 %v2690, %v2688
  %v2943 = vpack.c.b16 %v2691, %v2689
  %v2944 = vpack.c.b16 %v2694, %v2692
  %v2945 = vpack.c.b16 %v2695, %v2693
  %v2946 = vpack.c.b16 %v2698, %v2696
  %v2947 = vpack.c.b16 %v2699, %v2697
  %v2948 = vpack.c.b16 %v2702, %v2700
  %v2949 = vpack.c.b16 %v2703, %v2701
  %v2950 = vpack.c.b16 %v2706, %v2704
  %v2951 = vpack.c.b16 %v2707, %v2705
  %v2952 = vpack.c.b16 %v2710, %v2708
  %v2953 = vpack.c.b16 %v2711, %v2709
  %v2954 = vpack.c.b16 %v2714, %v2712
  %v2955 = vpack.c.b16 %v2715, %v2713
  %v2956 = vpack.c.b16 %v2718, %v2716
  %v2957 = vpack.c.b16 %v2719, %v2717
  %v2958 = vpack.c.b16 %v2722, %v2720
  %v2959 = vpack.c.b16 %v2723, %v2721
  %v2960 = vpack.c.b16 %v2726, %v2724
  %v2961 = vpack.c.b16 %v2727, %v2725
  %v2962 = vpack.c.b16 %v2730, %v2728
  %v2963 = vpack.c.b16 %v2731, %v2729
  %v2964 = vpack.c.b16 %v2734, %v2732
  %v2965 = vpack.c.b16 %v2735, %v2733
  %v2966 = vpack.c.b16 %v2738, %v2736
  %v2967 = vpack.c.b16 %v2739, %v2737
  %v2968 = vpack.c.b16 %v2742, %v2740
  %v2969 = vpack.c.b16 %v2743, %v2741
  %v2970 = vpack.c.b16 %v2746, %v2744
  %v2971 = vpack.c.b16 %v2747, %v2745
  %v2972 = vpack.c.b16 %v2750, %v2748
  %v2973 = vpack.c.b16 %v2751, %v2749
  %v2974 = vpack.c.b16 %v2754, %v2752
  %v2975 = vpack.c.b16 %v2755, %v2753
  %v2976 = vpack.c.b16 %v2758, %v2756
  %v2977 = vpack.c.b16 %v2759, %v2757
  %v2978 = vpack.c.b16 %v2762, %v2760
  %v2979 = vpack.c.b16 %v2763, %v2761
  %v2980 = vpack.c.b16 %v2766, %v2764
  %v2981 = vpack.c.b16 %v2767, %v2765
  %v2982 = vpack.c.b16 %v2770, %v2768
  %v2983 = vpack.c.b16 %v2771, %v2769
  %v2984 = vpack.c.b16 %v2774, %v2772
  %v2985 = vpack.c.b16 %v2775, %v2773
  %v2986 = vpack.c.b16 %v2778, %v2776
  %v2987 = vpack.c.b16 %v2779, %v2777
  %v2988 = vpack.c.b16 %v2782, %v2780
  %v2989 = vpack.c.b16 %v2783, %v2781
  %v2990 = vpack.c.b16 %v2786, %v2784
  %v2991 = vpack.c.b16 %v2787, %v2785
  %v2992 = vpack.c.b16 %v2790, %v2788
  %v2993 = vpack.c.b16 %v2791, %v2789
  %v2994 = vpack.c.b16 %v2794, %v2792
  %v2995 = vpack.c.b16 %v2795, %v2793
  %v2996 = vpack.c.b16 %v2798, %v2796
  %v2997 = vpack.c.b16 %v2799, %v2797
  %v2998 = vpack.c.b16 %v2802, %v2800
  %v2999 = vpack.c.b16 %v2803, %v2801
  %3196 = vmatprep.subr.bf16.mxu0 %v2805
  %3197 = vmatpush1.bf16.msra.mxu0 %v2804
  %3198 = vmatprep.subr.bf16.mxu0 %v2807
  %3199 = vmatpush1.bf16.msra.mxu0 %v2806
  %3200 = vmatprep.subr.bf16.mxu0 %v2809
  %3201 = vmatpush1.bf16.msra.mxu0 %v2808
  %3202 = vmatprep.subr.bf16.mxu0 %v2811
  %3203 = vmatpush1.bf16.msra.mxu0 %v2810
  %3204 = vmatprep.subr.bf16.mxu0 %v2813
  %3205 = vmatpush1.bf16.msra.mxu0 %v2812
  %3206 = vmatprep.subr.bf16.mxu0 %v2815
  %3207 = vmatpush1.bf16.msra.mxu0 %v2814
  %3208 = vmatprep.subr.bf16.mxu0 %v2817
  %3209 = vmatpush1.bf16.msra.mxu0 %v2816
  %3210 = vmatprep.subr.bf16.mxu0 %v2819
  %3211 = vmatpush1.bf16.msra.mxu0 %v2818
  %3212 = vmatprep.subr.bf16.mxu0 %v2821
  %3213 = vmatpush1.bf16.msra.mxu0 %v2820
  %3214 = vmatprep.subr.bf16.mxu0 %v2823
  %3215 = vmatpush1.bf16.msra.mxu0 %v2822
  %3216 = vmatprep.subr.bf16.mxu0 %v2825
  %3217 = vmatpush1.bf16.msra.mxu0 %v2824
  %3218 = vmatprep.subr.bf16.mxu0 %v2827
  %3219 = vmatpush1.bf16.msra.mxu0 %v2826
  %3220 = vmatprep.subr.bf16.mxu0 %v2829
  %3221 = vmatpush1.bf16.msra.mxu0 %v2828
  %3222 = vmatprep.subr.bf16.mxu0 %v2831
  %3223 = vmatpush1.bf16.msra.mxu0 %v2830
  %3224 = vmatprep.subr.bf16.mxu0 %v2833
  %3225 = vmatpush1.bf16.msra.mxu0 %v2832
  %3226 = vmatprep.subr.bf16.mxu0 %v2835
  %3227 = vmatpush1.bf16.msra.mxu0 %v2834
  %3228 = vmatprep.mubr.bf16.mxu0 %v283
  %3229 = vmatmul.mubr.bf16.gmra.mrb[0].mxu0 %v282
  %v3230 = vpop.f32.mrb[0].mxu0
  %v3231 = vadd.f32 %v2209, %v3230
  %v3232 = vpop.f32.mrb[0].mxu0
  %v3233 = vadd.f32 %v2213, %v3232
  %v3234 = vpop.f32.mrb[0].mxu0
  %v3235 = vpop.f32.mrb[0].mxu0
  %3236 = vdwg.mxu0
  %3237 = vmatprep.subr.bf16.mxu0 %v2837
  %3238 = vmatpush1.bf16.msra.mxu0 %v2836
  %3239 = vmatprep.subr.bf16.mxu0 %v2839
  %3240 = vmatpush1.bf16.msra.mxu0 %v2838
  %3241 = vmatprep.subr.bf16.mxu0 %v2841
  %3242 = vmatpush1.bf16.msra.mxu0 %v2840
  %3243 = vmatprep.subr.bf16.mxu0 %v2843
  %3244 = vmatpush1.bf16.msra.mxu0 %v2842
  %3245 = vmatprep.subr.bf16.mxu0 %v2845
  %3246 = vmatpush1.bf16.msra.mxu0 %v2844
  %3247 = vmatprep.subr.bf16.mxu0 %v2847
  %3248 = vmatpush1.bf16.msra.mxu0 %v2846
  %3249 = vmatprep.subr.bf16.mxu0 %v2849
  %3250 = vmatpush1.bf16.msra.mxu0 %v2848
  %3251 = vmatprep.subr.bf16.mxu0 %v2851
  %3252 = vmatpush1.bf16.msra.mxu0 %v2850
  %3253 = vmatprep.subr.bf16.mxu0 %v2853
  %3254 = vmatpush1.bf16.msra.mxu0 %v2852
  %3255 = vmatprep.subr.bf16.mxu0 %v2855
  %3256 = vmatpush1.bf16.msra.mxu0 %v2854
  %3257 = vmatprep.subr.bf16.mxu0 %v2857
  %3258 = vmatpush1.bf16.msra.mxu0 %v2856
  %3259 = vmatprep.subr.bf16.mxu0 %v2859
  %3260 = vmatpush1.bf16.msra.mxu0 %v2858
  %3261 = vmatprep.subr.bf16.mxu0 %v2861
  %3262 = vmatpush1.bf16.msra.mxu0 %v2860
  %3263 = vmatprep.subr.bf16.mxu0 %v2863
  %3264 = vmatpush1.bf16.msra.mxu0 %v2862
  %3265 = vmatprep.subr.bf16.mxu0 %v2865
  %3266 = vmatpush1.bf16.msra.mxu0 %v2864
  %3267 = vmatprep.subr.bf16.mxu0 %v2867
  %3268 = vmatpush1.bf16.msra.mxu0 %v2866
  %3269 = vmatprep.mubr.bf16.mxu0 %v285
  %3270 = vmatmul.mubr.bf16.gmra.mrb[0].mxu0 %v284
  %v3271 = vpop.f32.mrb[0].mxu0
  %v3272 = vadd.f32 %v3231, %v3271
  %v3273 = vpop.f32.mrb[0].mxu0
  %v3274 = vadd.f32 %v3233, %v3273
  %v3275 = vpop.f32.mrb[0].mxu0
  %v3276 = vpop.f32.mrb[0].mxu0
  %3277 = vdwg.mxu0
  %3278 = vmatprep.subr.bf16.mxu0 %v2869
  %3279 = vmatpush1.bf16.msra.mxu0 %v2868
  %3280 = vmatprep.subr.bf16.mxu0 %v2871
  %3281 = vmatpush1.bf16.msra.mxu0 %v2870
  %3282 = vmatprep.subr.bf16.mxu0 %v2873
  %3283 = vmatpush1.bf16.msra.mxu0 %v2872
  %3284 = vmatprep.subr.bf16.mxu0 %v2875
  %3285 = vmatpush1.bf16.msra.mxu0 %v2874
  %3286 = vmatprep.subr.bf16.mxu0 %v2877
  %3287 = vmatpush1.bf16.msra.mxu0 %v2876
  %3288 = vmatprep.subr.bf16.mxu0 %v2879
  %3289 = vmatpush1.bf16.msra.mxu0 %v2878
  %3290 = vmatprep.subr.bf16.mxu0 %v2881
  %3291 = vmatpush1.bf16.msra.mxu0 %v2880
  %3292 = vmatprep.subr.bf16.mxu0 %v2883
  %3293 = vmatpush1.bf16.msra.mxu0 %v2882
  %3294 = vmatprep.subr.bf16.mxu0 %v2885
  %3295 = vmatpush1.bf16.msra.mxu0 %v2884
  %3296 = vmatprep.subr.bf16.mxu0 %v2887
  %3297 = vmatpush1.bf16.msra.mxu0 %v2886
  %3298 = vmatprep.subr.bf16.mxu0 %v2889
  %3299 = vmatpush1.bf16.msra.mxu0 %v2888
  %3300 = vmatprep.subr.bf16.mxu0 %v2891
  %3301 = vmatpush1.bf16.msra.mxu0 %v2890
  %3302 = vmatprep.subr.bf16.mxu0 %v2893
  %3303 = vmatpush1.bf16.msra.mxu0 %v2892
  %3304 = vmatprep.subr.bf16.mxu0 %v2895
  %3305 = vmatpush1.bf16.msra.mxu0 %v2894
  %3306 = vmatprep.subr.bf16.mxu0 %v2897
  %3307 = vmatpush1.bf16.msra.mxu0 %v2896
  %3308 = vmatprep.subr.bf16.mxu0 %v2899
  %3309 = vmatpush1.bf16.msra.mxu0 %v2898
  %3310 = vmatprep.mubr.bf16.mxu0 %v287
  %3311 = vmatmul.mubr.bf16.gmra.mrb[0].mxu0 %v286
  %v3312 = vpop.f32.mrb[0].mxu0
  %v3313 = vadd.f32 %v3272, %v3312
  %v3314 = vpop.f32.mrb[0].mxu0
  %v3315 = vadd.f32 %v3274, %v3314
  %v3316 = vpop.f32.mrb[0].mxu0
  %v3317 = vpop.f32.mrb[0].mxu0
  %3318 = vdwg.mxu0
  %3319 = vmatprep.subr.bf16.mxu0 %v2901
  %3320 = vmatpush1.bf16.msra.mxu0 %v2900
  %3321 = vmatprep.subr.bf16.mxu0 %v2903
  %3322 = vmatpush1.bf16.msra.mxu0 %v2902
  %3323 = vmatprep.subr.bf16.mxu0 %v2905
  %3324 = vmatpush1.bf16.msra.mxu0 %v2904
  %3325 = vmatprep.subr.bf16.mxu0 %v2907
  %3326 = vmatpush1.bf16.msra.mxu0 %v2906
  %3327 = vmatprep.subr.bf16.mxu0 %v2909
  %3328 = vmatpush1.bf16.msra.mxu0 %v2908
  %3329 = vmatprep.subr.bf16.mxu0 %v2911
  %3330 = vmatpush1.bf16.msra.mxu0 %v2910
  %3331 = vmatprep.subr.bf16.mxu0 %v2913
  %3332 = vmatpush1.bf16.msra.mxu0 %v2912
  %3333 = vmatprep.subr.bf16.mxu0 %v2915
  %3334 = vmatpush1.bf16.msra.mxu0 %v2914
  %3335 = vmatprep.subr.bf16.mxu0 %v2917
  %3336 = vmatpush1.bf16.msra.mxu0 %v2916
  %3337 = vmatprep.subr.bf16.mxu0 %v2919
  %3338 = vmatpush1.bf16.msra.mxu0 %v2918
  %3339 = vmatprep.subr.bf16.mxu0 %v2921
  %3340 = vmatpush1.bf16.msra.mxu0 %v2920
  %3341 = vmatprep.subr.bf16.mxu0 %v2923
  %3342 = vmatpush1.bf16.msra.mxu0 %v2922
  %3343 = vmatprep.subr.bf16.mxu0 %v2925
  %3344 = vmatpush1.bf16.msra.mxu0 %v2924
  %3345 = vmatprep.subr.bf16.mxu0 %v2927
  %3346 = vmatpush1.bf16.msra.mxu0 %v2926
  %3347 = vmatprep.subr.bf16.mxu0 %v2929
  %3348 = vmatpush1.bf16.msra.mxu0 %v2928
  %3349 = vmatprep.subr.bf16.mxu0 %v2931
  %3350 = vmatpush1.bf16.msra.mxu0 %v2930
  %3351 = vmatprep.mubr.bf16.mxu0 %v289
  %3352 = vmatmul.mubr.bf16.gmra.mrb[0].mxu0 %v288
  %v3353 = vpop.f32.mrb[0].mxu0
  %v3354 = vadd.f32 %v3313, %v3353
  %v3355 = vpop.f32.mrb[0].mxu0
  %v3356 = vadd.f32 %v3315, %v3355
  %v3357 = vpop.f32.mrb[0].mxu0
  %v3358 = vpop.f32.mrb[0].mxu0
  %3359 = vdwg.mxu0
  %3360 = vmatprep.subr.bf16.mxu0 %v2933
  %3361 = vmatpush1.bf16.msra.mxu0 %v2932
  %3362 = vmatprep.subr.bf16.mxu0 %v2935
  %3363 = vmatpush1.bf16.msra.mxu0 %v2934
  %3364 = vmatprep.subr.bf16.mxu0 %v2937
  %3365 = vmatpush1.bf16.msra.mxu0 %v2936
  %3366 = vmatprep.subr.bf16.mxu0 %v2939
  %3367 = vmatpush1.bf16.msra.mxu0 %v2938
  %3368 = vmatprep.subr.bf16.mxu0 %v2941
  %3369 = vmatpush1.bf16.msra.mxu0 %v2940
  %3370 = vmatprep.subr.bf16.mxu0 %v2943
  %3371 = vmatpush1.bf16.msra.mxu0 %v2942
  %3372 = vmatprep.subr.bf16.mxu0 %v2945
  %3373 = vmatpush1.bf16.msra.mxu0 %v2944
  %3374 = vmatprep.subr.bf16.mxu0 %v2947
  %3375 = vmatpush1.bf16.msra.mxu0 %v2946
  %3376 = vmatprep.subr.bf16.mxu0 %v2949
  %3377 = vmatpush1.bf16.msra.mxu0 %v2948
  %3378 = vmatprep.subr.bf16.mxu0 %v2951
  %3379 = vmatpush1.bf16.msra.mxu0 %v2950
  %3380 = vmatprep.subr.bf16.mxu0 %v2953
  %3381 = vmatpush1.bf16.msra.mxu0 %v2952
  %3382 = vmatprep.subr.bf16.mxu0 %v2955
  %3383 = vmatpush1.bf16.msra.mxu0 %v2954
  %3384 = vmatprep.subr.bf16.mxu0 %v2957
  %3385 = vmatpush1.bf16.msra.mxu0 %v2956
  %3386 = vmatprep.subr.bf16.mxu0 %v2959
  %3387 = vmatpush1.bf16.msra.mxu0 %v2958
  %3388 = vmatprep.subr.bf16.mxu0 %v2961
  %3389 = vmatpush1.bf16.msra.mxu0 %v2960
  %3390 = vmatprep.subr.bf16.mxu0 %v2963
  %3391 = vmatpush1.bf16.msra.mxu0 %v2962
  %3392 = vmatprep.mubr.bf16.mxu0 %v291
  %3393 = vmatmul.mubr.bf16.gmra.mrb[0].mxu0 %v290
  %v3394 = vpop.f32.mrb[0].mxu0
  %v3395 = vadd.f32 %v3354, %v3394
  %v3396 = vpop.f32.mrb[0].mxu0
  %v3397 = vadd.f32 %v3356, %v3396
  %v3398 = vpop.f32.mrb[0].mxu0
  %v3399 = vpop.f32.mrb[0].mxu0
  %3400 = vdwg.mxu0
  %3401 = vmatprep.subr.bf16.mxu0 %v2965
  %3402 = vmatpush1.bf16.msra.mxu0 %v2964
  %3403 = vmatprep.subr.bf16.mxu0 %v2967
  %3404 = vmatpush1.bf16.msra.mxu0 %v2966
  %3405 = vmatprep.subr.bf16.mxu0 %v2969
  %3406 = vmatpush1.bf16.msra.mxu0 %v2968
  %3407 = vmatprep.subr.bf16.mxu0 %v2971
  %3408 = vmatpush1.bf16.msra.mxu0 %v2970
  %3409 = vmatprep.subr.bf16.mxu0 %v2973
  %3410 = vmatpush1.bf16.msra.mxu0 %v2972
  %3411 = vmatprep.subr.bf16.mxu0 %v2975
  %3412 = vmatpush1.bf16.msra.mxu0 %v2974
  %3413 = vmatprep.subr.bf16.mxu0 %v2977
  %3414 = vmatpush1.bf16.msra.mxu0 %v2976
  %3415 = vmatprep.subr.bf16.mxu0 %v2979
  %3416 = vmatpush1.bf16.msra.mxu0 %v2978
  %3417 = vmatprep.subr.bf16.mxu0 %v2981
  %3418 = vmatpush1.bf16.msra.mxu0 %v2980
  %3419 = vmatprep.subr.bf16.mxu0 %v2983
  %3420 = vmatpush1.bf16.msra.mxu0 %v2982
  %3421 = vmatprep.subr.bf16.mxu0 %v2985
  %3422 = vmatpush1.bf16.msra.mxu0 %v2984
  %3423 = vmatprep.subr.bf16.mxu0 %v2987
  %3424 = vmatpush1.bf16.msra.mxu0 %v2986
  %3425 = vmatprep.subr.bf16.mxu0 %v2989
  %3426 = vmatpush1.bf16.msra.mxu0 %v2988
  %3427 = vmatprep.subr.bf16.mxu0 %v2991
  %3428 = vmatpush1.bf16.msra.mxu0 %v2990
  %3429 = vmatprep.subr.bf16.mxu0 %v2993
  %3430 = vmatpush1.bf16.msra.mxu0 %v2992
  %3431 = vmatprep.subr.bf16.mxu0 %v2995
  %3432 = vmatpush1.bf16.msra.mxu0 %v2994
  %3433 = vmatprep.mubr.bf16.mxu0 %v293
  %3434 = vmatmul.mubr.bf16.gmra.mrb[0].mxu0 %v292
  %v3435 = vpop.f32.mrb[0].mxu0
  %v3436 = vadd.f32 %v3395, %v3435
  %v3437 = vpop.f32.mrb[0].mxu0
  %v3438 = vadd.f32 %v3397, %v3437
  %v3439 = vpop.f32.mrb[0].mxu0
  %v3440 = vpop.f32.mrb[0].mxu0
  %3441 = vdwg.mxu0
  %3442 = vmatprep.subr.bf16.mxu0 %v2997
  %3443 = vmatpush1.bf16.msra.mxu0 %v2996
  %3444 = vmatprep.subr.bf16.mxu0 %v2999
  %3445 = vmatpush1.bf16.msra.mxu0 %v2998
  %3446 = vmatprep.subr.bf16.mxu0 0
  %3447 = vmatpush1.bf16.msra.mxu0 0
  %3448 = vmatprep.subr.bf16.mxu0 0
  %3449 = vmatpush1.bf16.msra.mxu0 0
  %3450 = vmatprep.subr.bf16.mxu0 0
  %3451 = vmatpush1.bf16.msra.mxu0 0
  %3452 = vmatprep.subr.bf16.mxu0 0
  %3453 = vmatpush1.bf16.msra.mxu0 0
  %3454 = vmatprep.subr.bf16.mxu0 0
  %3455 = vmatpush1.bf16.msra.mxu0 0
  %3456 = vmatprep.subr.bf16.mxu0 0
  %3457 = vmatpush1.bf16.msra.mxu0 0
  %3458 = vmatprep.subr.bf16.mxu0 0
  %3459 = vmatpush1.bf16.msra.mxu0 0
  %3460 = vmatprep.subr.bf16.mxu0 0
  %3461 = vmatpush1.bf16.msra.mxu0 0
  %3462 = vmatprep.subr.bf16.mxu0 0
  %3463 = vmatpush1.bf16.msra.mxu0 0
  %3464 = vmatprep.subr.bf16.mxu0 0
  %3465 = vmatpush1.bf16.msra.mxu0 0
  %3466 = vmatprep.subr.bf16.mxu0 0
  %3467 = vmatpush1.bf16.msra.mxu0 0
  %3468 = vmatprep.subr.bf16.mxu0 0
  %3469 = vmatpush1.bf16.msra.mxu0 0
  %3470 = vmatprep.subr.bf16.mxu0 0
  %3471 = vmatpush1.bf16.msra.mxu0 0
  %3472 = vmatprep.subr.bf16.mxu0 0
  %3473 = vmatpush1.bf16.msra.mxu0 0
  %3474 = vmatprep.mubr.bf16.mxu0 0
  %3475 = vmatmul.mubr.bf16.gmra.mrb[0].mxu0 %v1289
  %v3476 = vpop.f32.mrb[0].mxu0
  %v3477 = vadd.f32 %v3436, %v3476
  %v3478 = vpop.f32.mrb[0].mxu0
  %v3479 = vadd.f32 %v3438, %v3478
  %v3480 = vpop.f32.mrb[0].mxu0
  %v3481 = vpop.f32.mrb[0].mxu0
  %3482 = vdwg.mxu0
  %v3483 = vmax.f32 %v3477, 0.0
  %v3484 = vmax.f32 %v3479, 0.0
  %v3485 = vpack.c.bf16 %v3483, %v3483
  %v3486 = vpack.c.bf16 %v3484, %v3484
  %v3487 = vld [vmem:[%s9] sm:$0xff]
  %v3488 = vld [vmem:[%s9 + $0x8] sm:$0xff]
  %v3489 = vld [vmem:[%s9 + $0x10] sm:$0xff]
  %v3490 = vld [vmem:[%s9 + $0x18] sm:$0xff]
  %v3491 = vld [vmem:[%s9 + $0x20] sm:$0xff]
  %v3492 = vld [vmem:[%s9 + $0x28] sm:$0xff]
  %v3493 = vld [vmem:[%s9 + $0x30] sm:$0xff]
  %v3494 = vld [vmem:[%s9 + $0x38] sm:$0xff]
  %v3495 = vld [vmem:[%s9 + $0x40] sm:$0xff]
  %v3496 = vld [vmem:[%s9 + $0x48] sm:$0xff]
  %v3497 = vld [vmem:[%s9 + $0x50] sm:$0xff]
  %v3498 = vld [vmem:[%s9 + $0x58] sm:$0xff]
  %v3499 = vld [vmem:[%s9 + $0x60] sm:$0xff]
  %v3500 = vld [vmem:[%s9 + $0x68] sm:$0xff]
  %v3501 = vld [vmem:[%s9 + $0x70] sm:$0xff]
  %v3502 = vld [vmem:[%s9 + $0x78] sm:$0xff]
  %v3503 = vld [vmem:[%s9 + $0x80] sm:$0xff]
  %v3504 = vld [vmem:[%s9 + $0x88] sm:$0xff]
  %v3505 = vld [vmem:[%s9 + $0x90] sm:$0xff]
  %v3506 = vld [vmem:[%s9 + $0x98] sm:$0xff]
  %v3507 = vld [vmem:[%s9 + $0xa0] sm:$0xff]
  %v3508 = vld [vmem:[%s9 + $0xa8] sm:$0xff]
  %v3509 = vld [vmem:[%s9 + $0xb0] sm:$0xff]
  %v3510 = vld [vmem:[%s9 + $0xb8] sm:$0xff]
  %v3511 = vld [vmem:[%s9 + $0xc0] sm:$0xff]
  %v3512 = vld [vmem:[%s9 + $0xc8] sm:$0xff]
  %v3513 = vld [vmem:[%s9 + $0xd0] sm:$0xff]
  %v3514 = vld [vmem:[%s9 + $0xd8] sm:$0xff]
  %v3515 = vld [vmem:[%s9 + $0xe0] sm:$0xff]
  %v3516 = vld [vmem:[%s9 + $0xe8] sm:$0xff]
  %v3517 = vld [vmem:[%s9 + $0xf0] sm:$0xff]
  %v3518 = vld [vmem:[%s9 + $0xf8] sm:$0xff]
  %v3519 = vld [vmem:[%s10] sm:$0x3]
  %v3521 = vlaneseq
  %v3522 = vshrl.u32 %v3521, 7
  %v3523 = vsub.s32 0, %v3522
  %v3524 = vrot.slane %v3519, %v3523
  %v3525 = vlaneseq
  %v3526 = vshrl.u32 %v3525, 7
  %v3527 = vsub.s32 1, %v3526
  %v3528 = vrot.slane %v3519, %v3527
  %v3563 = vunpack.c.l.b16 %v3487
  %v3564 = vunpack.c.h.b16 %v3487
  %v3565 = vunpack.c.l.b16 %v3488
  %v3566 = vunpack.c.h.b16 %v3488
  %v3567 = vunpack.c.l.b16 %v3489
  %v3568 = vunpack.c.h.b16 %v3489
  %v3569 = vunpack.c.l.b16 %v3490
  %v3570 = vunpack.c.h.b16 %v3490
  %v3571 = vunpack.c.l.b16 %v3491
  %v3572 = vunpack.c.h.b16 %v3491
  %v3573 = vunpack.c.l.b16 %v3492
  %v3574 = vunpack.c.h.b16 %v3492
  %v3575 = vunpack.c.l.b16 %v3493
  %v3576 = vunpack.c.h.b16 %v3493
  %v3577 = vunpack.c.l.b16 %v3494
  %v3578 = vunpack.c.h.b16 %v3494
  %v3579 = vunpack.c.l.b16 %v3495
  %v3580 = vunpack.c.h.b16 %v3495
  %v3581 = vunpack.c.l.b16 %v3496
  %v3582 = vunpack.c.h.b16 %v3496
  %v3583 = vunpack.c.l.b16 %v3497
  %v3584 = vunpack.c.h.b16 %v3497
  %v3585 = vunpack.c.l.b16 %v3498
  %v3586 = vunpack.c.h.b16 %v3498
  %v3587 = vunpack.c.l.b16 %v3499
  %v3588 = vunpack.c.h.b16 %v3499
  %v3589 = vunpack.c.l.b16 %v3500
  %v3590 = vunpack.c.h.b16 %v3500
  %v3591 = vunpack.c.l.b16 %v3501
  %v3592 = vunpack.c.h.b16 %v3501
  %v3593 = vunpack.c.l.b16 %v3502
  %v3594 = vunpack.c.h.b16 %v3502
  %v3595 = vunpack.c.l.b16 %v3503
  %v3596 = vunpack.c.h.b16 %v3503
  %v3597 = vunpack.c.l.b16 %v3504
  %v3598 = vunpack.c.h.b16 %v3504
  %v3599 = vunpack.c.l.b16 %v3505
  %v3600 = vunpack.c.h.b16 %v3505
  %v3601 = vunpack.c.l.b16 %v3506
  %v3602 = vunpack.c.h.b16 %v3506
  %v3603 = vunpack.c.l.b16 %v3507
  %v3604 = vunpack.c.h.b16 %v3507
  %v3605 = vunpack.c.l.b16 %v3508
  %v3606 = vunpack.c.h.b16 %v3508
  %v3607 = vunpack.c.l.b16 %v3509
  %v3608 = vunpack.c.h.b16 %v3509
  %v3609 = vunpack.c.l.b16 %v3510
  %v3610 = vunpack.c.h.b16 %v3510
  %v3611 = vunpack.c.l.b16 %v3511
  %v3612 = vunpack.c.h.b16 %v3511
  %v3613 = vunpack.c.l.b16 %v3512
  %v3614 = vunpack.c.h.b16 %v3512
  %v3615 = vunpack.c.l.b16 %v3513
  %v3616 = vunpack.c.h.b16 %v3513
  %v3617 = vunpack.c.l.b16 %v3514
  %v3618 = vunpack.c.h.b16 %v3514
  %v3619 = vunpack.c.l.b16 %v3515
  %v3620 = vunpack.c.h.b16 %v3515
  %v3621 = vunpack.c.l.b16 %v3516
  %v3622 = vunpack.c.h.b16 %v3516
  %v3623 = vunpack.c.l.b16 %v3517
  %v3624 = vunpack.c.h.b16 %v3517
  %v3625 = vunpack.c.l.b16 %v3518
  %v3626 = vunpack.c.h.b16 %v3518
  %v3627 = vpack.c.b16 %v3565, %v3563
  %v3628 = vpack.c.b16 %v3566, %v3564
  %v3629 = vpack.c.b16 %v3569, %v3567
  %v3630 = vpack.c.b16 %v3570, %v3568
  %v3631 = vpack.c.b16 %v3573, %v3571
  %v3632 = vpack.c.b16 %v3574, %v3572
  %v3633 = vpack.c.b16 %v3577, %v3575
  %v3634 = vpack.c.b16 %v3578, %v3576
  %v3635 = vpack.c.b16 %v3581, %v3579
  %v3636 = vpack.c.b16 %v3582, %v3580
  %v3637 = vpack.c.b16 %v3585, %v3583
  %v3638 = vpack.c.b16 %v3586, %v3584
  %v3639 = vpack.c.b16 %v3589, %v3587
  %v3640 = vpack.c.b16 %v3590, %v3588
  %v3641 = vpack.c.b16 %v3593, %v3591
  %v3642 = vpack.c.b16 %v3594, %v3592
  %v3643 = vpack.c.b16 %v3597, %v3595
  %v3644 = vpack.c.b16 %v3598, %v3596
  %v3645 = vpack.c.b16 %v3601, %v3599
  %v3646 = vpack.c.b16 %v3602, %v3600
  %v3647 = vpack.c.b16 %v3605, %v3603
  %v3648 = vpack.c.b16 %v3606, %v3604
  %v3649 = vpack.c.b16 %v3609, %v3607
  %v3650 = vpack.c.b16 %v3610, %v3608
  %v3651 = vpack.c.b16 %v3613, %v3611
  %v3652 = vpack.c.b16 %v3614, %v3612
  %v3653 = vpack.c.b16 %v3617, %v3615
  %v3654 = vpack.c.b16 %v3618, %v3616
  %v3655 = vpack.c.b16 %v3621, %v3619
  %v3656 = vpack.c.b16 %v3622, %v3620
  %v3657 = vpack.c.b16 %v3625, %v3623
  %v3658 = vpack.c.b16 %v3626, %v3624
  %3691 = vmatprep.subr.bf16.mxu0 %v3628
  %3692 = vmatpush1.bf16.msra.mxu0 %v3627
  %3693 = vmatprep.subr.bf16.mxu0 %v3630
  %3694 = vmatpush1.bf16.msra.mxu0 %v3629
  %3695 = vmatprep.subr.bf16.mxu0 %v3632
  %3696 = vmatpush1.bf16.msra.mxu0 %v3631
  %3697 = vmatprep.subr.bf16.mxu0 %v3634
  %3698 = vmatpush1.bf16.msra.mxu0 %v3633
  %3699 = vmatprep.subr.bf16.mxu0 %v3636
  %3700 = vmatpush1.bf16.msra.mxu0 %v3635
  %3701 = vmatprep.subr.bf16.mxu0 %v3638
  %3702 = vmatpush1.bf16.msra.mxu0 %v3637
  %3703 = vmatprep.subr.bf16.mxu0 %v3640
  %3704 = vmatpush1.bf16.msra.mxu0 %v3639
  %3705 = vmatprep.subr.bf16.mxu0 %v3642
  %3706 = vmatpush1.bf16.msra.mxu0 %v3641
  %3707 = vmatprep.subr.bf16.mxu0 %v3644
  %3708 = vmatpush1.bf16.msra.mxu0 %v3643
  %3709 = vmatprep.subr.bf16.mxu0 %v3646
  %3710 = vmatpush1.bf16.msra.mxu0 %v3645
  %3711 = vmatprep.subr.bf16.mxu0 %v3648
  %3712 = vmatpush1.bf16.msra.mxu0 %v3647
  %3713 = vmatprep.subr.bf16.mxu0 %v3650
  %3714 = vmatpush1.bf16.msra.mxu0 %v3649
  %3715 = vmatprep.subr.bf16.mxu0 %v3652
  %3716 = vmatpush1.bf16.msra.mxu0 %v3651
  %3717 = vmatprep.subr.bf16.mxu0 %v3654
  %3718 = vmatpush1.bf16.msra.mxu0 %v3653
  %3719 = vmatprep.subr.bf16.mxu0 %v3656
  %3720 = vmatpush1.bf16.msra.mxu0 %v3655
  %3721 = vmatprep.subr.bf16.mxu0 %v3658
  %3722 = vmatpush1.bf16.msra.mxu0 %v3657
  %3723 = vmatprep.mubr.bf16.mxu0 %v3486
  %3724 = vmatmul.mubr.bf16.gmra.mrb[0].mxu0 %v3485
  %v3725 = vpop.f32.mrb[0].mxu0
  %v3726 = vadd.f32 %v3524, %v3725
  %v3727 = vpop.f32.mrb[0].mxu0
  %v3728 = vadd.f32 %v3528, %v3727
  %v3729 = vpop.f32.mrb[0].mxu0
  %v3730 = vpop.f32.mrb[0].mxu0
  %3731 = vdwg.mxu0
  %v3732 = vmax.f32 %v3726, 0.0
  %v3733 = vmax.f32 %v3728, 0.0
  %v3734 = vpack.c.bf16 %v3732, %v3732
  %v3735 = vpack.c.bf16 %v3733, %v3733
  %v3736 = vld [vmem:[%s11] sm:$0xf]
  %v3737 = vld [vmem:[%s11 + $0x4] sm:$0xf]
  %v3738 = vld [vmem:[%s11 + $0x8] sm:$0xf]
  %v3739 = vld [vmem:[%s11 + $0xc] sm:$0xf]
  %v3740 = vld [vmem:[%s11 + $0x10] sm:$0xf]
  %v3741 = vld [vmem:[%s11 + $0x14] sm:$0xf]
  %v3742 = vld [vmem:[%s11 + $0x18] sm:$0xf]
  %v3743 = vld [vmem:[%s11 + $0x1c] sm:$0xf]
  %v3744 = vld [vmem:[%s11 + $0x20] sm:$0xf]
  %v3745 = vld [vmem:[%s11 + $0x24] sm:$0xf]
  %v3746 = vld [vmem:[%s11 + $0x28] sm:$0xf]
  %v3747 = vld [vmem:[%s11 + $0x2c] sm:$0xf]
  %v3748 = vld [vmem:[%s11 + $0x30] sm:$0xf]
  %v3749 = vld [vmem:[%s11 + $0x34] sm:$0xf]
  %v3750 = vld [vmem:[%s11 + $0x38] sm:$0xf]
  %v3751 = vld [vmem:[%s11 + $0x3c] sm:$0xf]
  %v3752 = vld [vmem:[%s11 + $0x40] sm:$0xf]
  %v3753 = vld [vmem:[%s11 + $0x44] sm:$0xf]
  %v3754 = vld [vmem:[%s11 + $0x48] sm:$0xf]
  %v3755 = vld [vmem:[%s11 + $0x4c] sm:$0xf]
  %v3756 = vld [vmem:[%s11 + $0x50] sm:$0xf]
  %v3757 = vld [vmem:[%s11 + $0x54] sm:$0xf]
  %v3758 = vld [vmem:[%s11 + $0x58] sm:$0xf]
  %v3759 = vld [vmem:[%s11 + $0x5c] sm:$0xf]
  %v3760 = vld [vmem:[%s11 + $0x60] sm:$0xf]
  %v3761 = vld [vmem:[%s11 + $0x64] sm:$0xf]
  %v3762 = vld [vmem:[%s11 + $0x68] sm:$0xf]
  %v3763 = vld [vmem:[%s11 + $0x6c] sm:$0xf]
  %v3764 = vld [vmem:[%s11 + $0x70] sm:$0xf]
  %v3765 = vld [vmem:[%s11 + $0x74] sm:$0xf]
  %v3766 = vld [vmem:[%s11 + $0x78] sm:$0xf]
  %v3767 = vld [vmem:[%s11 + $0x7c] sm:$0xf]
  %v3768 = vld [vmem:[%s12] sm:$0x1]
  %v3770 = vlaneseq
  %v3771 = vshrl.u32 %v3770, 7
  %v3772 = vsub.s32 0, %v3771
  %v3773 = vrot.slane %v3768, %v3772
  %v3807 = vunpack.c.l.b16 %v3736
  %v3808 = vunpack.c.l.b16 %v3737
  %v3809 = vunpack.c.l.b16 %v3738
  %v3810 = vunpack.c.l.b16 %v3739
  %v3811 = vunpack.c.l.b16 %v3740
  %v3812 = vunpack.c.l.b16 %v3741
  %v3813 = vunpack.c.l.b16 %v3742
  %v3814 = vunpack.c.l.b16 %v3743
  %v3815 = vunpack.c.l.b16 %v3744
  %v3816 = vunpack.c.l.b16 %v3745
  %v3817 = vunpack.c.l.b16 %v3746
  %v3818 = vunpack.c.l.b16 %v3747
  %v3819 = vunpack.c.l.b16 %v3748
  %v3820 = vunpack.c.l.b16 %v3749
  %v3821 = vunpack.c.l.b16 %v3750
  %v3822 = vunpack.c.l.b16 %v3751
  %v3823 = vunpack.c.l.b16 %v3752
  %v3824 = vunpack.c.l.b16 %v3753
  %v3825 = vunpack.c.l.b16 %v3754
  %v3826 = vunpack.c.l.b16 %v3755
  %v3827 = vunpack.c.l.b16 %v3756
  %v3828 = vunpack.c.l.b16 %v3757
  %v3829 = vunpack.c.l.b16 %v3758
  %v3830 = vunpack.c.l.b16 %v3759
  %v3831 = vunpack.c.l.b16 %v3760
  %v3832 = vunpack.c.l.b16 %v3761
  %v3833 = vunpack.c.l.b16 %v3762
  %v3834 = vunpack.c.l.b16 %v3763
  %v3835 = vunpack.c.l.b16 %v3764
  %v3836 = vunpack.c.l.b16 %v3765
  %v3837 = vunpack.c.l.b16 %v3766
  %v3838 = vunpack.c.l.b16 %v3767
  %v3839 = vpack.c.b16 %v3808, %v3807
  %v3840 = vpack.c.b16 %v3810, %v3809
  %v3841 = vpack.c.b16 %v3812, %v3811
  %v3842 = vpack.c.b16 %v3814, %v3813
  %v3843 = vpack.c.b16 %v3816, %v3815
  %v3844 = vpack.c.b16 %v3818, %v3817
  %v3845 = vpack.c.b16 %v3820, %v3819
  %v3846 = vpack.c.b16 %v3822, %v3821
  %v3847 = vpack.c.b16 %v3824, %v3823
  %v3848 = vpack.c.b16 %v3826, %v3825
  %v3849 = vpack.c.b16 %v3828, %v3827
  %v3850 = vpack.c.b16 %v3830, %v3829
  %v3851 = vpack.c.b16 %v3832, %v3831
  %v3852 = vpack.c.b16 %v3834, %v3833
  %v3853 = vpack.c.b16 %v3836, %v3835
  %v3854 = vpack.c.b16 %v3838, %v3837
  %3871 = vmatprep.subr.bf16.mxu0 0
  %3872 = vmatpush1.bf16.msra.mxu0 %v3839
  %3873 = vmatprep.subr.bf16.mxu0 0
  %3874 = vmatpush1.bf16.msra.mxu0 %v3840
  %3875 = vmatprep.subr.bf16.mxu0 0
  %3876 = vmatpush1.bf16.msra.mxu0 %v3841
  %3877 = vmatprep.subr.bf16.mxu0 0
  %3878 = vmatpush1.bf16.msra.mxu0 %v3842
  %3879 = vmatprep.subr.bf16.mxu0 0
  %3880 = vmatpush1.bf16.msra.mxu0 %v3843
  %3881 = vmatprep.subr.bf16.mxu0 0
  %3882 = vmatpush1.bf16.msra.mxu0 %v3844
  %3883 = vmatprep.subr.bf16.mxu0 0
  %3884 = vmatpush1.bf16.msra.mxu0 %v3845
  %3885 = vmatprep.subr.bf16.mxu0 0
  %3886 = vmatpush1.bf16.msra.mxu0 %v3846
  %3887 = vmatprep.subr.bf16.mxu0 0
  %3888 = vmatpush1.bf16.msra.mxu0 %v3847
  %3889 = vmatprep.subr.bf16.mxu0 0
  %3890 = vmatpush1.bf16.msra.mxu0 %v3848
  %3891 = vmatprep.subr.bf16.mxu0 0
  %3892 = vmatpush1.bf16.msra.mxu0 %v3849
  %3893 = vmatprep.subr.bf16.mxu0 0
  %3894 = vmatpush1.bf16.msra.mxu0 %v3850
  %3895 = vmatprep.subr.bf16.mxu0 0
  %3896 = vmatpush1.bf16.msra.mxu0 %v3851
  %3897 = vmatprep.subr.bf16.mxu0 0
  %3898 = vmatpush1.bf16.msra.mxu0 %v3852
  %3899 = vmatprep.subr.bf16.mxu0 0
  %3900 = vmatpush1.bf16.msra.mxu0 %v3853
  %3901 = vmatprep.subr.bf16.mxu0 0
  %3902 = vmatpush1.bf16.msra.mxu0 %v3854
  %3903 = vmatprep.mubr.bf16.mxu0 %v3735
  %3904 = vmatmul.mubr.bf16.gmra.mrb[0].mxu0 %v3734
  %v3905 = vpop.f32.mrb[0].mxu0
  %v3906 = vadd.f32 %v3773, %v3905
  %v3907 = vpop.f32.mrb[0].mxu0
  %v3908 = vpop.f32.mrb[0].mxu0
  %v3909 = vpop.f32.mrb[0].mxu0
  %3910 = vdwg.mxu0
  %vm3911 = vcmask 31744
  %3912 = vst.msk [vmem:[%s14] sm:$0xff] %vm3911, %v3906
  // Predicated region
  $region54: #{two_branch_net_forward.17} parent=0 // pred_check
    _
  $region55: #{two_branch_net_forward.17} parent=0 // pred_check_branch
    %3914 = sbr.rel (0) target = $region57
  $region56: #{two_branch_net_forward.17} parent=0 // pred_region
    _
  $region57: #{two_branch_net_forward.17} parent=0 // pred_fallthru
    _
  // Predicated region
  $region58: #{two_branch_net_forward.17} parent=0 // pred_check
    _
  $region59: #{two_branch_net_forward.17} parent=0 // pred_check_branch
    %3916 = sbr.rel (0) target = $region61
  $region60: #{two_branch_net_forward.17} parent=0 // pred_region
    _
  $region61: #{two_branch_net_forward.17} parent=0 // pred_fallthru
    _
  // Predicated region
  $region62: #{two_branch_net_forward.17} parent=0 // pred_check
    _
  $region63: #{two_branch_net_forward.17} parent=0 // pred_check_branch
    %3918 = sbr.rel (0) target = $region65
  $region64: #{two_branch_net_forward.17} parent=0 // pred_region
    _
  $region65: #{two_branch_net_forward.17} parent=0 // pred_fallthru
    _
  // Predicated region
  $region66: #{two_branch_net_forward.17} parent=0 // pred_check
    _
  $region67: #{two_branch_net_forward.17} parent=0 // pred_check_branch
    %3920 = sbr.rel (0) target = $region69
  $region68: #{two_branch_net_forward.17} parent=0 // pred_region
    _
  $region69: #{two_branch_net_forward.17} parent=0 // pred_fallthru
    _

</llo_original>
